<compile_context>
chip_gen: v7x
topology: tpu7x:2x2x1
jax: 0.10.0
libtpu: 0.0.40
codegen_flags: <defaults>
</compile_context>

<pallas_src>
from functools import partial

import jax
import jax.numpy as jnp
from jax import lax
from jax.experimental import pallas as pl
from jax.experimental.pallas import tpu as pltpu

TARGET_SIZE = 6
HIDDEN = 256
SEQ_LEN = 25            # 4 convs with kernel=2 leave 21 steps -> Linear(21*target_size)
T_IN = SEQ_LEN - 1      # 24 im2col rows per example entering conv1
N_FINAL = SEQ_LEN - 3   # 22 time steps entering the fused conv4+Linear stage
OUT_PAD = 128           # lane-dense padded output width (real outputs in [:, :6])


def _round_up(x, m):
    return (x + m - 1) // m * m


def _conv_k2(h, wa, wb, b, bt):
    """Conv1d(kernel=2, stride=1) on a time-major 2-D activation slab.

    h  : (T*bt, Cin) bf16, rows ordered (t, batch-within-tile)
    out: ((T-1)*bt, Cout) bf16
    y[t] = x[t] @ W[:,:,0].T + x[t+1] @ W[:,:,1].T + b   (BN folded into W, b)
    """
    lhs = h[:-bt, :]                     # x[t]
    rhs = h[bt:, :]                      # x[t+1]  (shift by one time step = bt rows)
    y = (jnp.dot(lhs, wa, preferred_element_type=jnp.float32)
         + jnp.dot(rhs, wb, preferred_element_type=jnp.float32)
         + b)                            # f32 epilogue
    return y.astype(jnp.bfloat16)


def predictor_kernel(x_ref,
                     w1, b1,
                     w2a, w2b, b2,
                     w3a, w3b, b3,
                     wf, bf,
                     out_ref, h3_ref):
    bt = out_ref.shape[0]                                # batch-tile size (mult of 16)

    # conv1 + bn1: one matmul thanks to im2col'd input rows (x[t] ++ x[t+1]).
    h = (jnp.dot(x_ref[...], w1[...], preferred_element_type=jnp.float32)
         + b1[...]).astype(jnp.bfloat16)                 # (24*bt, 256)
    h = _conv_k2(h, w2a[...], w2b[...], b2[...], bt)     # (23*bt, 256)  conv2 + bn2
    h3_ref[...] = _conv_k2(h, w3a[...], w3b[...], b3[...], bt)  # (22*bt, 256) conv3+bn3

    # Fused conv4 + bn4 + Linear: out[j, :] = sum_s h3[s*bt + j, :] @ wf[s] + bias.
    # M-blocked so the f32 accumulator stays register-resident (<= 16 vregs).
    m_chunk = 128
    while bt % m_chunk:                                  # bt is a multiple of 16
        m_chunk //= 2
    bias = jnp.broadcast_to(bf[...], (m_chunk, OUT_PAD))  # hoisted out of the loops

    for c in range(bt // m_chunk):                       # few, static chunks
        base = c * m_chunk

        def tap(s, acc, base=base):
            row = pl.multiple_of(s * bt + base, 16)      # sublane-aligned start
            rows = h3_ref[pl.ds(row, m_chunk), :]        # (m_chunk, 256) bf16
            return acc + jnp.dot(rows, wf[s],            # wf[s]: dynamic 1st-axis load
                                 preferred_element_type=jnp.float32)

        acc = lax.fori_loop(0, N_FINAL, tap,
                            jnp.zeros((m_chunk, OUT_PAD), jnp.float32),
                            unroll=True)
        out_ref[base:base + m_chunk, :] = acc + bias     # lane-dense (m_chunk,128) store


def _vmem_limit_bytes():
    """Generation-aware VMEM limit (leave ~25% headroom for compiler scratch)."""
    cap = 128 * 1024 * 1024
    try:
        cap = int(getattr(pltpu.get_tpu_info(), "vmem_capacity_bytes", cap))
    except Exception:
        pass
    return min(cap * 3 // 4, 100 * 1024 * 1024)


@partial(jax.jit, static_argnames=("b_tile",))
def conv1d_predictor(x, params, b_tile=512):
    """x: (B, L=25, num_features) -> (B, TARGET_SIZE)."""
    B, L, F = x.shape
    assert L == SEQ_LEN, "conv chain requires L=25 so the Linear sees 21*target_size"

    # Batch tile: multiple of 16 (bf16 sublane packing).  Keep >= 2 grid steps
    # whenever B allows so "parallel" can shard tiles across v7x's two TCs.
    b_tile = max(16, _round_up(int(b_tile), 16))
    if B <= 2 * b_tile:
        b_tile = max(16, _round_up(-(-B // 2), 16))
    Bp = _round_up(B, b_tile)
    G = Bp // b_tile

    # (B, L, F) -> im2col'd bf16 rows, time-major per tile:
    # x2[(g*24 + t)*b_tile + j] = concat(x[g*b_tile + j, t], x[g*b_tile + j, t+1])
    xp = jnp.pad(x.astype(jnp.bfloat16), ((0, Bp - B), (0, 0), (0, 0)))
    xpair = jnp.concatenate([xp[:, :-1, :], xp[:, 1:, :]], axis=-1)   # (Bp, 24, 2F)
    x2 = (xpair.reshape(G, b_tile, T_IN, 2 * F)
               .transpose(0, 2, 1, 3)                                 # (G, 24, bt, 2F)
               .reshape(G * T_IN * b_tile, 2 * F))

    def const_spec(p):
        # Constant operands (index never changes): single-buffer to reclaim VMEM.
        return pl.BlockSpec(p.shape, lambda i, _nd=p.ndim: (0,) * _nd,
                            pipeline_mode=pl.Buffered(1))

    in_specs = [pl.BlockSpec((T_IN * b_tile, 2 * F), lambda i: (i, 0))]
    in_specs += [const_spec(p) for p in params]

    out = pl.pallas_call(
        predictor_kernel,
        out_shape=jax.ShapeDtypeStruct((Bp, OUT_PAD), jnp.float32),
        grid=(G,),
        in_specs=in_specs,
        out_specs=pl.BlockSpec((b_tile, OUT_PAD), lambda i: (i, 0)),
        scratch_shapes=[pltpu.VMEM((N_FINAL * b_tile, HIDDEN), jnp.bfloat16)],
        compiler_params=pltpu.CompilerParams(
            dimension_semantics=("parallel",),        # shard tiles over v7x's 2 TCs
            vmem_limit_bytes=_vmem_limit_bytes(),
        ),
    )(x2, *params)
    return out[:B, :TARGET_SIZE]


def init_params(key, num_features):
    """Deterministic synthetic parameters.

    Returns (kernel_params, ref_params):
      kernel_params: eval-mode BN folded into convs; conv1's two taps fused into
                     a single (2F, 256) weight; conv4+Linear fused into a
                     (22, 256, 128) lane-padded weight; matmul weights in bf16.
      ref_params   : the unfused folded parameters, for an independent reference.
    """
    eps = 1e-5
    keys = iter(jax.random.split(key, 32))

    def conv_bn(cin, cout):
        w = 0.05 * jax.random.normal(next(keys), (cout, cin, 2), jnp.float32)  # torch (out,in,k)
        b = 0.05 * jax.random.normal(next(keys), (cout,), jnp.float32)
        gamma = 1.0 + 0.1 * jax.random.normal(next(keys), (cout,), jnp.float32)
        beta = 0.1 * jax.random.normal(next(keys), (cout,), jnp.float32)
        mean = 0.1 * jax.random.normal(next(keys), (cout,), jnp.float32)
        var = jax.random.uniform(next(keys), (cout,), jnp.float32, 0.5, 1.5)
        scale = gamma / jnp.sqrt(var + eps)
        wa = w[:, :, 0].T * scale[None, :]            # (cin, cout), BN scale folded in
        wb = w[:, :, 1].T * scale[None, :]
        beff = (b - mean) * scale + beta              # (cout,)
        return wa, wb, beff

    p1 = conv_bn(num_features, HIDDEN)
    p2 = conv_bn(HIDDEN, HIDDEN)
    p3 = conv_bn(HIDDEN, HIDDEN)
    p4 = conv_bn(HIDDEN, TARGET_SIZE)

    wlin = 0.05 * jax.random.normal(next(keys), (TARGET_SIZE, 21 * TARGET_SIZE), jnp.float32)
    blin = 0.05 * jax.random.normal(next(keys), (TARGET_SIZE,), jnp.float32)

    # --- conv1: im2col tap fusion -> single (2F, 256) weight ------------------
    w1a, w1b, b1 = p1
    w1cat = jnp.concatenate([w1a, w1b], axis=0)                       # (2F, 256)

    # --- Fuse conv4+bn4 with the Linear --------------------------------------
    # PyTorch flattens the (C=6, T=21) activation channel-major: index = c*21 + t.
    w4a, w4b, b4 = p4
    wl_tco = wlin.reshape(TARGET_SIZE, TARGET_SIZE, 21).transpose(2, 1, 0)  # (t, c, o)
    wf = jnp.zeros((N_FINAL, HIDDEN, TARGET_SIZE), jnp.float32)
    wf = wf.at[:21].add(jnp.einsum('ic,tco->tio', w4a, wl_tco))   # x[t]   path
    wf = wf.at[1:].add(jnp.einsum('ic,tco->tio', w4b, wl_tco))    # x[t+1] path
    bfused = jnp.einsum('c,tco->o', b4, wl_tco) + blin

    # Pad output columns to a lane-dense width (wrapper slices [:, :6]).
    wf_pad = jnp.zeros((N_FINAL, HIDDEN, OUT_PAD), jnp.float32).at[..., :TARGET_SIZE].set(wf)
    bf_pad = jnp.zeros((1, OUT_PAD), jnp.float32).at[0, :TARGET_SIZE].set(bfused)

    def bias2d(b):
        return b[None, :].astype(jnp.float32)

    kernel_params = (
        w1cat.astype(jnp.bfloat16), bias2d(b1),
        p2[0].astype(jnp.bfloat16), p2[1].astype(jnp.bfloat16), bias2d(p2[2]),
        p3[0].astype(jnp.bfloat16), p3[1].astype(jnp.bfloat16), bias2d(p3[2]),
        wf_pad.astype(jnp.bfloat16), bf_pad)
    ref_params = dict(p1=p1, p2=p2, p3=p3, p4=p4, wl=wlin, bl=blin)
    return kernel_params, ref_params


def reference(x, ref_params):
    """Plain-JAX reference using the UNFUSED folded parameters.

    Mirrors the kernel numerics (bf16 weights/activations, f32 accumulation) so
    the comparison isolates kernel/fusion correctness; conv1's taps and the
    final conv+Linear are kept unfused here, independently validating both
    fusion algebras.
    """
    bf16 = jnp.bfloat16

    def conv(h, wa, wb, b):                   # h: (B, T, C) bf16
        return (jnp.einsum('btc,cd->btd', h[:, :-1], wa.astype(bf16),
                           preferred_element_type=jnp.float32)
                + jnp.einsum('btc,cd->btd', h[:, 1:], wb.astype(bf16),
                             preferred_element_type=jnp.float32)
                + b[None, None, :])

    h = x.astype(bf16)
    h = conv(h, *ref_params['p1']).astype(bf16)
    h = conv(h, *ref_params['p2']).astype(bf16)
    h = conv(h, *ref_params['p3']).astype(bf16)
    h4 = conv(h, *ref_params['p4'])           # (B, 21, 6) f32
    # torch flatten order of (C, T): index = c*21 + t -> transpose to (B, C, T)
    flat = jnp.transpose(h4, (0, 2, 1)).reshape(h4.shape[0], -1)
    return flat @ ref_params['wl'].T + ref_params['bl']


if __name__ == "__main__":
    B, NUM_FEATURES = 50, 16
    key = jax.random.PRNGKey(0)
    k_x, k_p = jax.random.split(key)

    x = jax.random.normal(k_x, (B, SEQ_LEN, NUM_FEATURES), jnp.float32)
    kernel_params, ref_params = init_params(k_p, NUM_FEATURES)

    # Default b_tile=512 gets clamped to 32 here (B=50), giving G=2 grid steps
    # (exercises the batch-tiled grid, batch padding, and the m_chunk=32 path).
    out = conv1d_predictor(x, kernel_params)
    out = jax.block_until_ready(out)

    ref = reference(x, ref_params)
    assert out.shape == (B, TARGET_SIZE)
    assert jnp.allclose(out, ref, rtol=2e-2, atol=2e-2), (
        f"Pallas output mismatch: max abs err {jnp.max(jnp.abs(out - ref)):.4e}")
    print("KERNEL_OK")
</pallas_src>

<mosaic_0001>
module attributes {stable_mosaic.version = 11 : i64} {
  func.func @predictor_kernel(%arg0: i32, %arg1: memref<768x32xbf16, #tpu.memory_space<vmem>>, %arg2: memref<32x256xbf16, #tpu.memory_space<vmem>>, %arg3: memref<1x256xf32, #tpu.memory_space<vmem>>, %arg4: memref<256x256xbf16, #tpu.memory_space<vmem>>, %arg5: memref<256x256xbf16, #tpu.memory_space<vmem>>, %arg6: memref<1x256xf32, #tpu.memory_space<vmem>>, %arg7: memref<256x256xbf16, #tpu.memory_space<vmem>>, %arg8: memref<256x256xbf16, #tpu.memory_space<vmem>>, %arg9: memref<1x256xf32, #tpu.memory_space<vmem>>, %arg10: memref<22x256x128xbf16, #tpu.memory_space<vmem>>, %arg11: memref<1x128xf32, #tpu.memory_space<vmem>>, %arg12: memref<32x128xf32, #tpu.memory_space<vmem>>, %arg13: memref<704x256xbf16, #tpu.memory_space<vmem>>) attributes {dimension_semantics = [#tpu.dimension_semantics<parallel>], iteration_bounds = array<i64: 2>, scalar_prefetch = 0 : i64, scratch_operands = 1 : i64, tpu.core_type = #tpu.core_type<tc>, window_params = [{transform_indices = @transform_0, window_bounds = array<i64: 768, 32>}, {pipeline_mode = #tpu.pipeline_mode<synchronous>, transform_indices = @transform_1, window_bounds = array<i64: 32, 256>}, {pipeline_mode = #tpu.pipeline_mode<synchronous>, transform_indices = @transform_2, window_bounds = array<i64: 1, 256>}, {pipeline_mode = #tpu.pipeline_mode<synchronous>, transform_indices = @transform_3, window_bounds = array<i64: 256, 256>}, {pipeline_mode = #tpu.pipeline_mode<synchronous>, transform_indices = @transform_4, window_bounds = array<i64: 256, 256>}, {pipeline_mode = #tpu.pipeline_mode<synchronous>, transform_indices = @transform_5, window_bounds = array<i64: 1, 256>}, {pipeline_mode = #tpu.pipeline_mode<synchronous>, transform_indices = @transform_6, window_bounds = array<i64: 256, 256>}, {pipeline_mode = #tpu.pipeline_mode<synchronous>, transform_indices = @transform_7, window_bounds = array<i64: 256, 256>}, {pipeline_mode = #tpu.pipeline_mode<synchronous>, transform_indices = @transform_8, window_bounds = array<i64: 1, 256>}, {pipeline_mode = #tpu.pipeline_mode<synchronous>, transform_indices = @transform_9, window_bounds = array<i64: 22, 256, 128>}, {pipeline_mode = #tpu.pipeline_mode<synchronous>, transform_indices = @transform_10, window_bounds = array<i64: 1, 128>}, {transform_indices = @transform_11, window_bounds = array<i64: 32, 128>}]} {
    %c0 = arith.constant 0 : index
    %c0_0 = arith.constant 0 : index
    %0 = vector.load %arg1[%c0, %c0_0] : memref<768x32xbf16, #tpu.memory_space<vmem>>, vector<768x32xbf16>
    %c0_1 = arith.constant 0 : index
    %c0_2 = arith.constant 0 : index
    %1 = vector.load %arg2[%c0_1, %c0_2] : memref<32x256xbf16, #tpu.memory_space<vmem>>, vector<32x256xbf16>
    %cst = arith.constant dense<0.000000e+00> : vector<768x256xf32>
    %2 = tpu.matmul %0, %1, %cst {dimension_numbers = #tpu.dot_dimension_numbers<[1], [0], [0], [1], [0, 0, 1, 1], [], []>} : vector<768x32xbf16>, vector<32x256xbf16>, vector<768x256xf32> -> vector<768x256xf32>
    %c0_3 = arith.constant 0 : index
    %c0_4 = arith.constant 0 : index
    %3 = vector.load %arg3[%c0_3, %c0_4] : memref<1x256xf32, #tpu.memory_space<vmem>>, vector<1x256xf32>
    %4 = vector.broadcast %3 : vector<1x256xf32> to vector<768x256xf32>
    %5 = arith.addf %2, %4 : vector<768x256xf32>
    %6 = arith.truncf %5 : vector<768x256xf32> to vector<768x256xbf16>
    %c0_5 = arith.constant 0 : index
    %c0_6 = arith.constant 0 : index
    %7 = vector.load %arg4[%c0_5, %c0_6] : memref<256x256xbf16, #tpu.memory_space<vmem>>, vector<256x256xbf16>
    %c0_7 = arith.constant 0 : index
    %c0_8 = arith.constant 0 : index
    %8 = vector.load %arg5[%c0_7, %c0_8] : memref<256x256xbf16, #tpu.memory_space<vmem>>, vector<256x256xbf16>
    %c0_9 = arith.constant 0 : index
    %c0_10 = arith.constant 0 : index
    %9 = vector.load %arg6[%c0_9, %c0_10] : memref<1x256xf32, #tpu.memory_space<vmem>>, vector<1x256xf32>
    %10 = vector.extract_strided_slice %6 {offsets = [0, 0], sizes = [736, 256], strides = [1, 1]} : vector<768x256xbf16> to vector<736x256xbf16>
    %11 = vector.extract_strided_slice %6 {offsets = [32, 0], sizes = [736, 256], strides = [1, 1]} : vector<768x256xbf16> to vector<736x256xbf16>
    %cst_11 = arith.constant dense<0.000000e+00> : vector<736x256xf32>
    %12 = tpu.matmul %10, %7, %cst_11 {dimension_numbers = #tpu.dot_dimension_numbers<[1], [0], [0], [1], [0, 0, 1, 1], [], []>} : vector<736x256xbf16>, vector<256x256xbf16>, vector<736x256xf32> -> vector<736x256xf32>
    %cst_12 = arith.constant dense<0.000000e+00> : vector<736x256xf32>
    %13 = tpu.matmul %11, %8, %cst_12 {dimension_numbers = #tpu.dot_dimension_numbers<[1], [0], [0], [1], [0, 0, 1, 1], [], []>} : vector<736x256xbf16>, vector<256x256xbf16>, vector<736x256xf32> -> vector<736x256xf32>
    %14 = arith.addf %12, %13 : vector<736x256xf32>
    %15 = vector.broadcast %9 : vector<1x256xf32> to vector<736x256xf32>
    %16 = arith.addf %14, %15 : vector<736x256xf32>
    %17 = arith.truncf %16 : vector<736x256xf32> to vector<736x256xbf16>
    %c0_13 = arith.constant 0 : index
    %c0_14 = arith.constant 0 : index
    %18 = vector.load %arg7[%c0_13, %c0_14] : memref<256x256xbf16, #tpu.memory_space<vmem>>, vector<256x256xbf16>
    %c0_15 = arith.constant 0 : index
    %c0_16 = arith.constant 0 : index
    %19 = vector.load %arg8[%c0_15, %c0_16] : memref<256x256xbf16, #tpu.memory_space<vmem>>, vector<256x256xbf16>
    %c0_17 = arith.constant 0 : index
    %c0_18 = arith.constant 0 : index
    %20 = vector.load %arg9[%c0_17, %c0_18] : memref<1x256xf32, #tpu.memory_space<vmem>>, vector<1x256xf32>
    %21 = vector.extract_strided_slice %17 {offsets = [0, 0], sizes = [704, 256], strides = [1, 1]} : vector<736x256xbf16> to vector<704x256xbf16>
    %22 = vector.extract_strided_slice %17 {offsets = [32, 0], sizes = [704, 256], strides = [1, 1]} : vector<736x256xbf16> to vector<704x256xbf16>
    %cst_19 = arith.constant dense<0.000000e+00> : vector<704x256xf32>
    %23 = tpu.matmul %21, %18, %cst_19 {dimension_numbers = #tpu.dot_dimension_numbers<[1], [0], [0], [1], [0, 0, 1, 1], [], []>} : vector<704x256xbf16>, vector<256x256xbf16>, vector<704x256xf32> -> vector<704x256xf32>
    %cst_20 = arith.constant dense<0.000000e+00> : vector<704x256xf32>
    %24 = tpu.matmul %22, %19, %cst_20 {dimension_numbers = #tpu.dot_dimension_numbers<[1], [0], [0], [1], [0, 0, 1, 1], [], []>} : vector<704x256xbf16>, vector<256x256xbf16>, vector<704x256xf32> -> vector<704x256xf32>
    %25 = arith.addf %23, %24 : vector<704x256xf32>
    %26 = vector.broadcast %20 : vector<1x256xf32> to vector<704x256xf32>
    %27 = arith.addf %25, %26 : vector<704x256xf32>
    %28 = arith.truncf %27 : vector<704x256xf32> to vector<704x256xbf16>
    %c0_21 = arith.constant 0 : index
    %c0_22 = arith.constant 0 : index
    %29 = vector.load %arg13[%c0_21, %c0_22] : memref<704x256xbf16, #tpu.memory_space<vmem>>, vector<704x256xbf16>
    tpu.vector_store %arg13[%c0_21, %c0_22], %28 {strides = array<i32>} : memref<704x256xbf16, #tpu.memory_space<vmem>>, vector<704x256xbf16>,
    %c0_23 = arith.constant 0 : index
    %c0_24 = arith.constant 0 : index
    %30 = vector.load %arg11[%c0_23, %c0_24] : memref<1x128xf32, #tpu.memory_space<vmem>>, vector<1x128xf32>
    %31 = vector.shape_cast %30 : vector<1x128xf32> to vector<1x128xf32>
    %32 = vector.broadcast %31 : vector<1x128xf32> to vector<32x128xf32>
    %cst_25 = arith.constant 0.000000e+00 : f32
    %33 = vector.broadcast %cst_25 : f32 to vector<32x128xf32>
    %c0_i32 = arith.constant 0 : i32
    %c32_i32 = arith.constant 32 : i32
    %34 = arith.muli %c0_i32, %c32_i32 : i32
    %c0_i32_26 = arith.constant 0 : i32
    %35 = arith.addi %34, %c0_i32_26 : i32
    %36 = tpu.assume_multiple %35, 16 : i32
    %37 = arith.index_cast %36 : i32 to index
    %c0_27 = arith.constant 0 : index
    %38 = vector.load %arg13[%37, %c0_27] : memref<704x256xbf16, #tpu.memory_space<vmem>>, vector<32x256xbf16>
    %39 = arith.index_cast %c0_i32 : i32 to index
    %c0_28 = arith.constant 0 : index
    %c0_29 = arith.constant 0 : index
    %40 = vector.load %arg10[%39, %c0_28, %c0_29] : memref<22x256x128xbf16, #tpu.memory_space<vmem>>, vector<1x256x128xbf16>
    %41 = vector.shape_cast %40 : vector<1x256x128xbf16> to vector<256x128xbf16>
    %cst_30 = arith.constant dense<0.000000e+00> : vector<32x128xf32>
    %42 = tpu.matmul %38, %41, %cst_30 {dimension_numbers = #tpu.dot_dimension_numbers<[1], [0], [0], [1], [0, 0, 1, 1], [], []>} : vector<32x256xbf16>, vector<256x128xbf16>, vector<32x128xf32> -> vector<32x128xf32>
    %43 = arith.addf %33, %42 : vector<32x128xf32>
    %c1_i32 = arith.constant 1 : i32
    %c32_i32_31 = arith.constant 32 : i32
    %44 = arith.muli %c1_i32, %c32_i32_31 : i32
    %c0_i32_32 = arith.constant 0 : i32
    %45 = arith.addi %44, %c0_i32_32 : i32
    %46 = tpu.assume_multiple %45, 16 : i32
    %47 = arith.index_cast %46 : i32 to index
    %c0_33 = arith.constant 0 : index
    %48 = vector.load %arg13[%47, %c0_33] : memref<704x256xbf16, #tpu.memory_space<vmem>>, vector<32x256xbf16>
    %49 = arith.index_cast %c1_i32 : i32 to index
    %c0_34 = arith.constant 0 : index
    %c0_35 = arith.constant 0 : index
    %50 = vector.load %arg10[%49, %c0_34, %c0_35] : memref<22x256x128xbf16, #tpu.memory_space<vmem>>, vector<1x256x128xbf16>
    %51 = vector.shape_cast %50 : vector<1x256x128xbf16> to vector<256x128xbf16>
    %cst_36 = arith.constant dense<0.000000e+00> : vector<32x128xf32>
    %52 = tpu.matmul %48, %51, %cst_36 {dimension_numbers = #tpu.dot_dimension_numbers<[1], [0], [0], [1], [0, 0, 1, 1], [], []>} : vector<32x256xbf16>, vector<256x128xbf16>, vector<32x128xf32> -> vector<32x128xf32>
    %53 = arith.addf %43, %52 : vector<32x128xf32>
    %c2_i32 = arith.constant 2 : i32
    %c32_i32_37 = arith.constant 32 : i32
    %54 = arith.muli %c2_i32, %c32_i32_37 : i32
    %c0_i32_38 = arith.constant 0 : i32
    %55 = arith.addi %54, %c0_i32_38 : i32
    %56 = tpu.assume_multiple %55, 16 : i32
    %57 = arith.index_cast %56 : i32 to index
    %c0_39 = arith.constant 0 : index
    %58 = vector.load %arg13[%57, %c0_39] : memref<704x256xbf16, #tpu.memory_space<vmem>>, vector<32x256xbf16>
    %59 = arith.index_cast %c2_i32 : i32 to index
    %c0_40 = arith.constant 0 : index
    %c0_41 = arith.constant 0 : index
    %60 = vector.load %arg10[%59, %c0_40, %c0_41] : memref<22x256x128xbf16, #tpu.memory_space<vmem>>, vector<1x256x128xbf16>
    %61 = vector.shape_cast %60 : vector<1x256x128xbf16> to vector<256x128xbf16>
    %cst_42 = arith.constant dense<0.000000e+00> : vector<32x128xf32>
    %62 = tpu.matmul %58, %61, %cst_42 {dimension_numbers = #tpu.dot_dimension_numbers<[1], [0], [0], [1], [0, 0, 1, 1], [], []>} : vector<32x256xbf16>, vector<256x128xbf16>, vector<32x128xf32> -> vector<32x128xf32>
    %63 = arith.addf %53, %62 : vector<32x128xf32>
    %c3_i32 = arith.constant 3 : i32
    %c32_i32_43 = arith.constant 32 : i32
    %64 = arith.muli %c3_i32, %c32_i32_43 : i32
    %c0_i32_44 = arith.constant 0 : i32
    %65 = arith.addi %64, %c0_i32_44 : i32
    %66 = tpu.assume_multiple %65, 16 : i32
    %67 = arith.index_cast %66 : i32 to index
    %c0_45 = arith.constant 0 : index
    %68 = vector.load %arg13[%67, %c0_45] : memref<704x256xbf16, #tpu.memory_space<vmem>>, vector<32x256xbf16>
    %69 = arith.index_cast %c3_i32 : i32 to index
    %c0_46 = arith.constant 0 : index
    %c0_47 = arith.constant 0 : index
    %70 = vector.load %arg10[%69, %c0_46, %c0_47] : memref<22x256x128xbf16, #tpu.memory_space<vmem>>, vector<1x256x128xbf16>
    %71 = vector.shape_cast %70 : vector<1x256x128xbf16> to vector<256x128xbf16>
    %cst_48 = arith.constant dense<0.000000e+00> : vector<32x128xf32>
    %72 = tpu.matmul %68, %71, %cst_48 {dimension_numbers = #tpu.dot_dimension_numbers<[1], [0], [0], [1], [0, 0, 1, 1], [], []>} : vector<32x256xbf16>, vector<256x128xbf16>, vector<32x128xf32> -> vector<32x128xf32>
    %73 = arith.addf %63, %72 : vector<32x128xf32>
    %c4_i32 = arith.constant 4 : i32
    %c32_i32_49 = arith.constant 32 : i32
    %74 = arith.muli %c4_i32, %c32_i32_49 : i32
    %c0_i32_50 = arith.constant 0 : i32
    %75 = arith.addi %74, %c0_i32_50 : i32
    %76 = tpu.assume_multiple %75, 16 : i32
    %77 = arith.index_cast %76 : i32 to index
    %c0_51 = arith.constant 0 : index
    %78 = vector.load %arg13[%77, %c0_51] : memref<704x256xbf16, #tpu.memory_space<vmem>>, vector<32x256xbf16>
    %79 = arith.index_cast %c4_i32 : i32 to index
    %c0_52 = arith.constant 0 : index
    %c0_53 = arith.constant 0 : index
    %80 = vector.load %arg10[%79, %c0_52, %c0_53] : memref<22x256x128xbf16, #tpu.memory_space<vmem>>, vector<1x256x128xbf16>
    %81 = vector.shape_cast %80 : vector<1x256x128xbf16> to vector<256x128xbf16>
    %cst_54 = arith.constant dense<0.000000e+00> : vector<32x128xf32>
    %82 = tpu.matmul %78, %81, %cst_54 {dimension_numbers = #tpu.dot_dimension_numbers<[1], [0], [0], [1], [0, 0, 1, 1], [], []>} : vector<32x256xbf16>, vector<256x128xbf16>, vector<32x128xf32> -> vector<32x128xf32>
    %83 = arith.addf %73, %82 : vector<32x128xf32>
    %c5_i32 = arith.constant 5 : i32
    %c32_i32_55 = arith.constant 32 : i32
    %84 = arith.muli %c5_i32, %c32_i32_55 : i32
    %c0_i32_56 = arith.constant 0 : i32
    %85 = arith.addi %84, %c0_i32_56 : i32
    %86 = tpu.assume_multiple %85, 16 : i32
    %87 = arith.index_cast %86 : i32 to index
    %c0_57 = arith.constant 0 : index
    %88 = vector.load %arg13[%87, %c0_57] : memref<704x256xbf16, #tpu.memory_space<vmem>>, vector<32x256xbf16>
    %89 = arith.index_cast %c5_i32 : i32 to index
    %c0_58 = arith.constant 0 : index
    %c0_59 = arith.constant 0 : index
    %90 = vector.load %arg10[%89, %c0_58, %c0_59] : memref<22x256x128xbf16, #tpu.memory_space<vmem>>, vector<1x256x128xbf16>
    %91 = vector.shape_cast %90 : vector<1x256x128xbf16> to vector<256x128xbf16>
    %cst_60 = arith.constant dense<0.000000e+00> : vector<32x128xf32>
    %92 = tpu.matmul %88, %91, %cst_60 {dimension_numbers = #tpu.dot_dimension_numbers<[1], [0], [0], [1], [0, 0, 1, 1], [], []>} : vector<32x256xbf16>, vector<256x128xbf16>, vector<32x128xf32> -> vector<32x128xf32>
    %93 = arith.addf %83, %92 : vector<32x128xf32>
    %c6_i32 = arith.constant 6 : i32
    %c32_i32_61 = arith.constant 32 : i32
    %94 = arith.muli %c6_i32, %c32_i32_61 : i32
    %c0_i32_62 = arith.constant 0 : i32
    %95 = arith.addi %94, %c0_i32_62 : i32
    %96 = tpu.assume_multiple %95, 16 : i32
    %97 = arith.index_cast %96 : i32 to index
    %c0_63 = arith.constant 0 : index
    %98 = vector.load %arg13[%97, %c0_63] : memref<704x256xbf16, #tpu.memory_space<vmem>>, vector<32x256xbf16>
    %99 = arith.index_cast %c6_i32 : i32 to index
    %c0_64 = arith.constant 0 : index
    %c0_65 = arith.constant 0 : index
    %100 = vector.load %arg10[%99, %c0_64, %c0_65] : memref<22x256x128xbf16, #tpu.memory_space<vmem>>, vector<1x256x128xbf16>
    %101 = vector.shape_cast %100 : vector<1x256x128xbf16> to vector<256x128xbf16>
    %cst_66 = arith.constant dense<0.000000e+00> : vector<32x128xf32>
    %102 = tpu.matmul %98, %101, %cst_66 {dimension_numbers = #tpu.dot_dimension_numbers<[1], [0], [0], [1], [0, 0, 1, 1], [], []>} : vector<32x256xbf16>, vector<256x128xbf16>, vector<32x128xf32> -> vector<32x128xf32>
    %103 = arith.addf %93, %102 : vector<32x128xf32>
    %c7_i32 = arith.constant 7 : i32
    %c32_i32_67 = arith.constant 32 : i32
    %104 = arith.muli %c7_i32, %c32_i32_67 : i32
    %c0_i32_68 = arith.constant 0 : i32
    %105 = arith.addi %104, %c0_i32_68 : i32
    %106 = tpu.assume_multiple %105, 16 : i32
    %107 = arith.index_cast %106 : i32 to index
    %c0_69 = arith.constant 0 : index
    %108 = vector.load %arg13[%107, %c0_69] : memref<704x256xbf16, #tpu.memory_space<vmem>>, vector<32x256xbf16>
    %109 = arith.index_cast %c7_i32 : i32 to index
    %c0_70 = arith.constant 0 : index
    %c0_71 = arith.constant 0 : index
    %110 = vector.load %arg10[%109, %c0_70, %c0_71] : memref<22x256x128xbf16, #tpu.memory_space<vmem>>, vector<1x256x128xbf16>
    %111 = vector.shape_cast %110 : vector<1x256x128xbf16> to vector<256x128xbf16>
    %cst_72 = arith.constant dense<0.000000e+00> : vector<32x128xf32>
    %112 = tpu.matmul %108, %111, %cst_72 {dimension_numbers = #tpu.dot_dimension_numbers<[1], [0], [0], [1], [0, 0, 1, 1], [], []>} : vector<32x256xbf16>, vector<256x128xbf16>, vector<32x128xf32> -> vector<32x128xf32>
    %113 = arith.addf %103, %112 : vector<32x128xf32>
    %c8_i32 = arith.constant 8 : i32
    %c32_i32_73 = arith.constant 32 : i32
    %114 = arith.muli %c8_i32, %c32_i32_73 : i32
    %c0_i32_74 = arith.constant 0 : i32
    %115 = arith.addi %114, %c0_i32_74 : i32
    %116 = tpu.assume_multiple %115, 16 : i32
    %117 = arith.index_cast %116 : i32 to index
    %c0_75 = arith.constant 0 : index
    %118 = vector.load %arg13[%117, %c0_75] : memref<704x256xbf16, #tpu.memory_space<vmem>>, vector<32x256xbf16>
    %119 = arith.index_cast %c8_i32 : i32 to index
    %c0_76 = arith.constant 0 : index
    %c0_77 = arith.constant 0 : index
    %120 = vector.load %arg10[%119, %c0_76, %c0_77] : memref<22x256x128xbf16, #tpu.memory_space<vmem>>, vector<1x256x128xbf16>
    %121 = vector.shape_cast %120 : vector<1x256x128xbf16> to vector<256x128xbf16>
    %cst_78 = arith.constant dense<0.000000e+00> : vector<32x128xf32>
    %122 = tpu.matmul %118, %121, %cst_78 {dimension_numbers = #tpu.dot_dimension_numbers<[1], [0], [0], [1], [0, 0, 1, 1], [], []>} : vector<32x256xbf16>, vector<256x128xbf16>, vector<32x128xf32> -> vector<32x128xf32>
    %123 = arith.addf %113, %122 : vector<32x128xf32>
    %c9_i32 = arith.constant 9 : i32
    %c32_i32_79 = arith.constant 32 : i32
    %124 = arith.muli %c9_i32, %c32_i32_79 : i32
    %c0_i32_80 = arith.constant 0 : i32
    %125 = arith.addi %124, %c0_i32_80 : i32
    %126 = tpu.assume_multiple %125, 16 : i32
    %127 = arith.index_cast %126 : i32 to index
    %c0_81 = arith.constant 0 : index
    %128 = vector.load %arg13[%127, %c0_81] : memref<704x256xbf16, #tpu.memory_space<vmem>>, vector<32x256xbf16>
    %129 = arith.index_cast %c9_i32 : i32 to index
    %c0_82 = arith.constant 0 : index
    %c0_83 = arith.constant 0 : index
    %130 = vector.load %arg10[%129, %c0_82, %c0_83] : memref<22x256x128xbf16, #tpu.memory_space<vmem>>, vector<1x256x128xbf16>
    %131 = vector.shape_cast %130 : vector<1x256x128xbf16> to vector<256x128xbf16>
    %cst_84 = arith.constant dense<0.000000e+00> : vector<32x128xf32>
    %132 = tpu.matmul %128, %131, %cst_84 {dimension_numbers = #tpu.dot_dimension_numbers<[1], [0], [0], [1], [0, 0, 1, 1], [], []>} : vector<32x256xbf16>, vector<256x128xbf16>, vector<32x128xf32> -> vector<32x128xf32>
    %133 = arith.addf %123, %132 : vector<32x128xf32>
    %c10_i32 = arith.constant 10 : i32
    %c32_i32_85 = arith.constant 32 : i32
    %134 = arith.muli %c10_i32, %c32_i32_85 : i32
    %c0_i32_86 = arith.constant 0 : i32
    %135 = arith.addi %134, %c0_i32_86 : i32
    %136 = tpu.assume_multiple %135, 16 : i32
    %137 = arith.index_cast %136 : i32 to index
    %c0_87 = arith.constant 0 : index
    %138 = vector.load %arg13[%137, %c0_87] : memref<704x256xbf16, #tpu.memory_space<vmem>>, vector<32x256xbf16>
    %139 = arith.index_cast %c10_i32 : i32 to index
    %c0_88 = arith.constant 0 : index
    %c0_89 = arith.constant 0 : index
    %140 = vector.load %arg10[%139, %c0_88, %c0_89] : memref<22x256x128xbf16, #tpu.memory_space<vmem>>, vector<1x256x128xbf16>
    %141 = vector.shape_cast %140 : vector<1x256x128xbf16> to vector<256x128xbf16>
    %cst_90 = arith.constant dense<0.000000e+00> : vector<32x128xf32>
    %142 = tpu.matmul %138, %141, %cst_90 {dimension_numbers = #tpu.dot_dimension_numbers<[1], [0], [0], [1], [0, 0, 1, 1], [], []>} : vector<32x256xbf16>, vector<256x128xbf16>, vector<32x128xf32> -> vector<32x128xf32>
    %143 = arith.addf %133, %142 : vector<32x128xf32>
    %c11_i32 = arith.constant 11 : i32
    %c32_i32_91 = arith.constant 32 : i32
    %144 = arith.muli %c11_i32, %c32_i32_91 : i32
    %c0_i32_92 = arith.constant 0 : i32
    %145 = arith.addi %144, %c0_i32_92 : i32
    %146 = tpu.assume_multiple %145, 16 : i32
    %147 = arith.index_cast %146 : i32 to index
    %c0_93 = arith.constant 0 : index
    %148 = vector.load %arg13[%147, %c0_93] : memref<704x256xbf16, #tpu.memory_space<vmem>>, vector<32x256xbf16>
    %149 = arith.index_cast %c11_i32 : i32 to index
    %c0_94 = arith.constant 0 : index
    %c0_95 = arith.constant 0 : index
    %150 = vector.load %arg10[%149, %c0_94, %c0_95] : memref<22x256x128xbf16, #tpu.memory_space<vmem>>, vector<1x256x128xbf16>
    %151 = vector.shape_cast %150 : vector<1x256x128xbf16> to vector<256x128xbf16>
    %cst_96 = arith.constant dense<0.000000e+00> : vector<32x128xf32>
    %152 = tpu.matmul %148, %151, %cst_96 {dimension_numbers = #tpu.dot_dimension_numbers<[1], [0], [0], [1], [0, 0, 1, 1], [], []>} : vector<32x256xbf16>, vector<256x128xbf16>, vector<32x128xf32> -> vector<32x128xf32>
    %153 = arith.addf %143, %152 : vector<32x128xf32>
    %c12_i32 = arith.constant 12 : i32
    %c32_i32_97 = arith.constant 32 : i32
    %154 = arith.muli %c12_i32, %c32_i32_97 : i32
    %c0_i32_98 = arith.constant 0 : i32
    %155 = arith.addi %154, %c0_i32_98 : i32
    %156 = tpu.assume_multiple %155, 16 : i32
    %157 = arith.index_cast %156 : i32 to index
    %c0_99 = arith.constant 0 : index
    %158 = vector.load %arg13[%157, %c0_99] : memref<704x256xbf16, #tpu.memory_space<vmem>>, vector<32x256xbf16>
    %159 = arith.index_cast %c12_i32 : i32 to index
    %c0_100 = arith.constant 0 : index
    %c0_101 = arith.constant 0 : index
    %160 = vector.load %arg10[%159, %c0_100, %c0_101] : memref<22x256x128xbf16, #tpu.memory_space<vmem>>, vector<1x256x128xbf16>
    %161 = vector.shape_cast %160 : vector<1x256x128xbf16> to vector<256x128xbf16>
    %cst_102 = arith.constant dense<0.000000e+00> : vector<32x128xf32>
    %162 = tpu.matmul %158, %161, %cst_102 {dimension_numbers = #tpu.dot_dimension_numbers<[1], [0], [0], [1], [0, 0, 1, 1], [], []>} : vector<32x256xbf16>, vector<256x128xbf16>, vector<32x128xf32> -> vector<32x128xf32>
    %163 = arith.addf %153, %162 : vector<32x128xf32>
    %c13_i32 = arith.constant 13 : i32
    %c32_i32_103 = arith.constant 32 : i32
    %164 = arith.muli %c13_i32, %c32_i32_103 : i32
    %c0_i32_104 = arith.constant 0 : i32
    %165 = arith.addi %164, %c0_i32_104 : i32
    %166 = tpu.assume_multiple %165, 16 : i32
    %167 = arith.index_cast %166 : i32 to index
    %c0_105 = arith.constant 0 : index
    %168 = vector.load %arg13[%167, %c0_105] : memref<704x256xbf16, #tpu.memory_space<vmem>>, vector<32x256xbf16>
    %169 = arith.index_cast %c13_i32 : i32 to index
    %c0_106 = arith.constant 0 : index
    %c0_107 = arith.constant 0 : index
    %170 = vector.load %arg10[%169, %c0_106, %c0_107] : memref<22x256x128xbf16, #tpu.memory_space<vmem>>, vector<1x256x128xbf16>
    %171 = vector.shape_cast %170 : vector<1x256x128xbf16> to vector<256x128xbf16>
    %cst_108 = arith.constant dense<0.000000e+00> : vector<32x128xf32>
    %172 = tpu.matmul %168, %171, %cst_108 {dimension_numbers = #tpu.dot_dimension_numbers<[1], [0], [0], [1], [0, 0, 1, 1], [], []>} : vector<32x256xbf16>, vector<256x128xbf16>, vector<32x128xf32> -> vector<32x128xf32>
    %173 = arith.addf %163, %172 : vector<32x128xf32>
    %c14_i32 = arith.constant 14 : i32
    %c32_i32_109 = arith.constant 32 : i32
    %174 = arith.muli %c14_i32, %c32_i32_109 : i32
    %c0_i32_110 = arith.constant 0 : i32
    %175 = arith.addi %174, %c0_i32_110 : i32
    %176 = tpu.assume_multiple %175, 16 : i32
    %177 = arith.index_cast %176 : i32 to index
    %c0_111 = arith.constant 0 : index
    %178 = vector.load %arg13[%177, %c0_111] : memref<704x256xbf16, #tpu.memory_space<vmem>>, vector<32x256xbf16>
    %179 = arith.index_cast %c14_i32 : i32 to index
    %c0_112 = arith.constant 0 : index
    %c0_113 = arith.constant 0 : index
    %180 = vector.load %arg10[%179, %c0_112, %c0_113] : memref<22x256x128xbf16, #tpu.memory_space<vmem>>, vector<1x256x128xbf16>
    %181 = vector.shape_cast %180 : vector<1x256x128xbf16> to vector<256x128xbf16>
    %cst_114 = arith.constant dense<0.000000e+00> : vector<32x128xf32>
    %182 = tpu.matmul %178, %181, %cst_114 {dimension_numbers = #tpu.dot_dimension_numbers<[1], [0], [0], [1], [0, 0, 1, 1], [], []>} : vector<32x256xbf16>, vector<256x128xbf16>, vector<32x128xf32> -> vector<32x128xf32>
    %183 = arith.addf %173, %182 : vector<32x128xf32>
    %c15_i32 = arith.constant 15 : i32
    %c32_i32_115 = arith.constant 32 : i32
    %184 = arith.muli %c15_i32, %c32_i32_115 : i32
    %c0_i32_116 = arith.constant 0 : i32
    %185 = arith.addi %184, %c0_i32_116 : i32
    %186 = tpu.assume_multiple %185, 16 : i32
    %187 = arith.index_cast %186 : i32 to index
    %c0_117 = arith.constant 0 : index
    %188 = vector.load %arg13[%187, %c0_117] : memref<704x256xbf16, #tpu.memory_space<vmem>>, vector<32x256xbf16>
    %189 = arith.index_cast %c15_i32 : i32 to index
    %c0_118 = arith.constant 0 : index
    %c0_119 = arith.constant 0 : index
    %190 = vector.load %arg10[%189, %c0_118, %c0_119] : memref<22x256x128xbf16, #tpu.memory_space<vmem>>, vector<1x256x128xbf16>
    %191 = vector.shape_cast %190 : vector<1x256x128xbf16> to vector<256x128xbf16>
    %cst_120 = arith.constant dense<0.000000e+00> : vector<32x128xf32>
    %192 = tpu.matmul %188, %191, %cst_120 {dimension_numbers = #tpu.dot_dimension_numbers<[1], [0], [0], [1], [0, 0, 1, 1], [], []>} : vector<32x256xbf16>, vector<256x128xbf16>, vector<32x128xf32> -> vector<32x128xf32>
    %193 = arith.addf %183, %192 : vector<32x128xf32>
    %c16_i32 = arith.constant 16 : i32
    %c32_i32_121 = arith.constant 32 : i32
    %194 = arith.muli %c16_i32, %c32_i32_121 : i32
    %c0_i32_122 = arith.constant 0 : i32
    %195 = arith.addi %194, %c0_i32_122 : i32
    %196 = tpu.assume_multiple %195, 16 : i32
    %197 = arith.index_cast %196 : i32 to index
    %c0_123 = arith.constant 0 : index
    %198 = vector.load %arg13[%197, %c0_123] : memref<704x256xbf16, #tpu.memory_space<vmem>>, vector<32x256xbf16>
    %199 = arith.index_cast %c16_i32 : i32 to index
    %c0_124 = arith.constant 0 : index
    %c0_125 = arith.constant 0 : index
    %200 = vector.load %arg10[%199, %c0_124, %c0_125] : memref<22x256x128xbf16, #tpu.memory_space<vmem>>, vector<1x256x128xbf16>
    %201 = vector.shape_cast %200 : vector<1x256x128xbf16> to vector<256x128xbf16>
    %cst_126 = arith.constant dense<0.000000e+00> : vector<32x128xf32>
    %202 = tpu.matmul %198, %201, %cst_126 {dimension_numbers = #tpu.dot_dimension_numbers<[1], [0], [0], [1], [0, 0, 1, 1], [], []>} : vector<32x256xbf16>, vector<256x128xbf16>, vector<32x128xf32> -> vector<32x128xf32>
    %203 = arith.addf %193, %202 : vector<32x128xf32>
    %c17_i32 = arith.constant 17 : i32
    %c32_i32_127 = arith.constant 32 : i32
    %204 = arith.muli %c17_i32, %c32_i32_127 : i32
    %c0_i32_128 = arith.constant 0 : i32
    %205 = arith.addi %204, %c0_i32_128 : i32
    %206 = tpu.assume_multiple %205, 16 : i32
    %207 = arith.index_cast %206 : i32 to index
    %c0_129 = arith.constant 0 : index
    %208 = vector.load %arg13[%207, %c0_129] : memref<704x256xbf16, #tpu.memory_space<vmem>>, vector<32x256xbf16>
    %209 = arith.index_cast %c17_i32 : i32 to index
    %c0_130 = arith.constant 0 : index
    %c0_131 = arith.constant 0 : index
    %210 = vector.load %arg10[%209, %c0_130, %c0_131] : memref<22x256x128xbf16, #tpu.memory_space<vmem>>, vector<1x256x128xbf16>
    %211 = vector.shape_cast %210 : vector<1x256x128xbf16> to vector<256x128xbf16>
    %cst_132 = arith.constant dense<0.000000e+00> : vector<32x128xf32>
    %212 = tpu.matmul %208, %211, %cst_132 {dimension_numbers = #tpu.dot_dimension_numbers<[1], [0], [0], [1], [0, 0, 1, 1], [], []>} : vector<32x256xbf16>, vector<256x128xbf16>, vector<32x128xf32> -> vector<32x128xf32>
    %213 = arith.addf %203, %212 : vector<32x128xf32>
    %c18_i32 = arith.constant 18 : i32
    %c32_i32_133 = arith.constant 32 : i32
    %214 = arith.muli %c18_i32, %c32_i32_133 : i32
    %c0_i32_134 = arith.constant 0 : i32
    %215 = arith.addi %214, %c0_i32_134 : i32
    %216 = tpu.assume_multiple %215, 16 : i32
    %217 = arith.index_cast %216 : i32 to index
    %c0_135 = arith.constant 0 : index
    %218 = vector.load %arg13[%217, %c0_135] : memref<704x256xbf16, #tpu.memory_space<vmem>>, vector<32x256xbf16>
    %219 = arith.index_cast %c18_i32 : i32 to index
    %c0_136 = arith.constant 0 : index
    %c0_137 = arith.constant 0 : index
    %220 = vector.load %arg10[%219, %c0_136, %c0_137] : memref<22x256x128xbf16, #tpu.memory_space<vmem>>, vector<1x256x128xbf16>
    %221 = vector.shape_cast %220 : vector<1x256x128xbf16> to vector<256x128xbf16>
    %cst_138 = arith.constant dense<0.000000e+00> : vector<32x128xf32>
    %222 = tpu.matmul %218, %221, %cst_138 {dimension_numbers = #tpu.dot_dimension_numbers<[1], [0], [0], [1], [0, 0, 1, 1], [], []>} : vector<32x256xbf16>, vector<256x128xbf16>, vector<32x128xf32> -> vector<32x128xf32>
    %223 = arith.addf %213, %222 : vector<32x128xf32>
    %c19_i32 = arith.constant 19 : i32
    %c32_i32_139 = arith.constant 32 : i32
    %224 = arith.muli %c19_i32, %c32_i32_139 : i32
    %c0_i32_140 = arith.constant 0 : i32
    %225 = arith.addi %224, %c0_i32_140 : i32
    %226 = tpu.assume_multiple %225, 16 : i32
    %227 = arith.index_cast %226 : i32 to index
    %c0_141 = arith.constant 0 : index
    %228 = vector.load %arg13[%227, %c0_141] : memref<704x256xbf16, #tpu.memory_space<vmem>>, vector<32x256xbf16>
    %229 = arith.index_cast %c19_i32 : i32 to index
    %c0_142 = arith.constant 0 : index
    %c0_143 = arith.constant 0 : index
    %230 = vector.load %arg10[%229, %c0_142, %c0_143] : memref<22x256x128xbf16, #tpu.memory_space<vmem>>, vector<1x256x128xbf16>
    %231 = vector.shape_cast %230 : vector<1x256x128xbf16> to vector<256x128xbf16>
    %cst_144 = arith.constant dense<0.000000e+00> : vector<32x128xf32>
    %232 = tpu.matmul %228, %231, %cst_144 {dimension_numbers = #tpu.dot_dimension_numbers<[1], [0], [0], [1], [0, 0, 1, 1], [], []>} : vector<32x256xbf16>, vector<256x128xbf16>, vector<32x128xf32> -> vector<32x128xf32>
    %233 = arith.addf %223, %232 : vector<32x128xf32>
    %c20_i32 = arith.constant 20 : i32
    %c32_i32_145 = arith.constant 32 : i32
    %234 = arith.muli %c20_i32, %c32_i32_145 : i32
    %c0_i32_146 = arith.constant 0 : i32
    %235 = arith.addi %234, %c0_i32_146 : i32
    %236 = tpu.assume_multiple %235, 16 : i32
    %237 = arith.index_cast %236 : i32 to index
    %c0_147 = arith.constant 0 : index
    %238 = vector.load %arg13[%237, %c0_147] : memref<704x256xbf16, #tpu.memory_space<vmem>>, vector<32x256xbf16>
    %239 = arith.index_cast %c20_i32 : i32 to index
    %c0_148 = arith.constant 0 : index
    %c0_149 = arith.constant 0 : index
    %240 = vector.load %arg10[%239, %c0_148, %c0_149] : memref<22x256x128xbf16, #tpu.memory_space<vmem>>, vector<1x256x128xbf16>
    %241 = vector.shape_cast %240 : vector<1x256x128xbf16> to vector<256x128xbf16>
    %cst_150 = arith.constant dense<0.000000e+00> : vector<32x128xf32>
    %242 = tpu.matmul %238, %241, %cst_150 {dimension_numbers = #tpu.dot_dimension_numbers<[1], [0], [0], [1], [0, 0, 1, 1], [], []>} : vector<32x256xbf16>, vector<256x128xbf16>, vector<32x128xf32> -> vector<32x128xf32>
    %243 = arith.addf %233, %242 : vector<32x128xf32>
    %c21_i32 = arith.constant 21 : i32
    %c32_i32_151 = arith.constant 32 : i32
    %244 = arith.muli %c21_i32, %c32_i32_151 : i32
    %c0_i32_152 = arith.constant 0 : i32
    %245 = arith.addi %244, %c0_i32_152 : i32
    %246 = tpu.assume_multiple %245, 16 : i32
    %247 = arith.index_cast %246 : i32 to index
    %c0_153 = arith.constant 0 : index
    %248 = vector.load %arg13[%247, %c0_153] : memref<704x256xbf16, #tpu.memory_space<vmem>>, vector<32x256xbf16>
    %249 = arith.index_cast %c21_i32 : i32 to index
    %c0_154 = arith.constant 0 : index
    %c0_155 = arith.constant 0 : index
    %250 = vector.load %arg10[%249, %c0_154, %c0_155] : memref<22x256x128xbf16, #tpu.memory_space<vmem>>, vector<1x256x128xbf16>
    %251 = vector.shape_cast %250 : vector<1x256x128xbf16> to vector<256x128xbf16>
    %cst_156 = arith.constant dense<0.000000e+00> : vector<32x128xf32>
    %252 = tpu.matmul %248, %251, %cst_156 {dimension_numbers = #tpu.dot_dimension_numbers<[1], [0], [0], [1], [0, 0, 1, 1], [], []>} : vector<32x256xbf16>, vector<256x128xbf16>, vector<32x128xf32> -> vector<32x128xf32>
    %253 = arith.addf %243, %252 : vector<32x128xf32>
    %c22_i32 = arith.constant 22 : i32
    %254 = arith.addf %253, %32 : vector<32x128xf32>
    %c0_157 = arith.constant 0 : index
    %c0_158 = arith.constant 0 : index
    %255 = vector.load %arg12[%c0_157, %c0_158] : memref<32x128xf32, #tpu.memory_space<vmem>>, vector<32x128xf32>
    tpu.vector_store %arg12[%c0_157, %c0_158], %254 {strides = array<i32>} : memref<32x128xf32, #tpu.memory_space<vmem>>, vector<32x128xf32>,
    return
  }
  func.func @transform_0(%arg0: i32) -> (i32, i32) {
    %c0_i32 = arith.constant 0 : i32
    %c0_i32_0 = arith.constant 0 : i32
    return %arg0, %c0_i32 : i32, i32
  }
  func.func @transform_1(%arg0: i32) -> (i32, i32) {
    %c0_i32 = arith.constant 0 : i32
    %c0_i32_0 = arith.constant 0 : i32
    %c0_i32_1 = arith.constant 0 : i32
    return %c0_i32, %c0_i32_0 : i32, i32
  }
  func.func @transform_2(%arg0: i32) -> (i32, i32) {
    %c0_i32 = arith.constant 0 : i32
    %c0_i32_0 = arith.constant 0 : i32
    %c0_i32_1 = arith.constant 0 : i32
    return %c0_i32, %c0_i32_0 : i32, i32
  }
  func.func @transform_3(%arg0: i32) -> (i32, i32) {
    %c0_i32 = arith.constant 0 : i32
    %c0_i32_0 = arith.constant 0 : i32
    %c0_i32_1 = arith.constant 0 : i32
    return %c0_i32, %c0_i32_0 : i32, i32
  }
  func.func @transform_4(%arg0: i32) -> (i32, i32) {
    %c0_i32 = arith.constant 0 : i32
    %c0_i32_0 = arith.constant 0 : i32
    %c0_i32_1 = arith.constant 0 : i32
    return %c0_i32, %c0_i32_0 : i32, i32
  }
  func.func @transform_5(%arg0: i32) -> (i32, i32) {
    %c0_i32 = arith.constant 0 : i32
    %c0_i32_0 = arith.constant 0 : i32
    %c0_i32_1 = arith.constant 0 : i32
    return %c0_i32, %c0_i32_0 : i32, i32
  }
  func.func @transform_6(%arg0: i32) -> (i32, i32) {
    %c0_i32 = arith.constant 0 : i32
    %c0_i32_0 = arith.constant 0 : i32
    %c0_i32_1 = arith.constant 0 : i32
    return %c0_i32, %c0_i32_0 : i32, i32
  }
  func.func @transform_7(%arg0: i32) -> (i32, i32) {
    %c0_i32 = arith.constant 0 : i32
    %c0_i32_0 = arith.constant 0 : i32
    %c0_i32_1 = arith.constant 0 : i32
    return %c0_i32, %c0_i32_0 : i32, i32
  }
  func.func @transform_8(%arg0: i32) -> (i32, i32) {
    %c0_i32 = arith.constant 0 : i32
    %c0_i32_0 = arith.constant 0 : i32
    %c0_i32_1 = arith.constant 0 : i32
    return %c0_i32, %c0_i32_0 : i32, i32
  }
  func.func @transform_9(%arg0: i32) -> (i32, i32, i32) {
    %c0_i32 = arith.constant 0 : i32
    %c0_i32_0 = arith.constant 0 : i32
    %c0_i32_1 = arith.constant 0 : i32
    %c0_i32_2 = arith.constant 0 : i32
    return %c0_i32, %c0_i32_0, %c0_i32_1 : i32, i32, i32
  }
  func.func @transform_10(%arg0: i32) -> (i32, i32) {
    %c0_i32 = arith.constant 0 : i32
    %c0_i32_0 = arith.constant 0 : i32
    %c0_i32_1 = arith.constant 0 : i32
    return %c0_i32, %c0_i32_0 : i32, i32
  }
  func.func @transform_11(%arg0: i32) -> (i32, i32) {
    %c0_i32 = arith.constant 0 : i32
    %c0_i32_0 = arith.constant 0 : i32
    return %arg0, %c0_i32 : i32, i32
  }
}

</mosaic_0001>

<llo_original>
// kernel: conv1d_predictor.1
$region0: #{conv1d_predictor.1}
  #allocation0 [shape = 'u32[]', space=smem, size = 0x4, offset = 0x4, fixed_abs, tag = 'smem constant byte address 0x4 - core index']
  #allocation1 [shape = 'u32[144,128]{1,0:T(1,128)}', space=vmem, size = 0x12000, scoped, tag = 'internal scratch']
  #allocation2 [shape = 'bf16[704,256]{1,0:T(16,128)(2,1)}', space=vmem, size = 0x58000, scoped, tag = 'scratch operand']
  %s0 = inlined_call_operand.hbm [shape: bf16[1536,32], index: 0, kind: input, shape index: {}]
  %s1 = inlined_call_operand.hbm [shape: bf16[32,256], index: 1, kind: input, shape index: {}]
  %s2 = inlined_call_operand.hbm [shape: f32[1,256], index: 2, kind: input, shape index: {}]
  %s3 = inlined_call_operand.hbm [shape: bf16[256,256], index: 3, kind: input, shape index: {}]
  %s4 = inlined_call_operand.hbm [shape: bf16[256,256], index: 4, kind: input, shape index: {}]
  %s5 = inlined_call_operand.hbm [shape: f32[1,256], index: 5, kind: input, shape index: {}]
  %s6 = inlined_call_operand.hbm [shape: bf16[256,256], index: 6, kind: input, shape index: {}]
  %s7 = inlined_call_operand.hbm [shape: bf16[256,256], index: 7, kind: input, shape index: {}]
  %s8 = inlined_call_operand.hbm [shape: f32[1,256], index: 8, kind: input, shape index: {}]
  %s9 = inlined_call_operand.hbm [shape: bf16[22,256,128], index: 9, kind: input, shape index: {}]
  %s10 = inlined_call_operand.hbm [shape: f32[1,128], index: 10, kind: input, shape index: {}]
  %s11 = inlined_call_operand.hbm [shape: f32[64,128], index: 11, kind: output, shape index: {}]
  %s12 = sld [smem:[#allocation0]]
  $region121: #{conv1d_predictor.1} parent=0
    _
  %s14 = ssub.s32 1, %s12
  %s15 = scalar_select 0, %s14, %s12
  $region1: #{conv1d_predictor.1} parent=0
    #allocation3 [shape = 'u8[393216]{0}', space=vmem, size = 0x60000, scoped, tag = 'input window, operand 0']
    #allocation4 [shape = 's32[2]{0}', space=sflag, size = 0x8, scoped, tag = 'scoped memory for conv1d_predictor.1']
    #allocation5 [shape = 's32[2]{0}', space=sflag, size = 0x8, scoped, tag = 'scoped memory for conv1d_predictor.1']
    #allocation6 [shape = 'u8[16384]{0}', space=vmem, size = 0x4000, scoped, tag = 'input window, operand 1, single buffered']
    #allocation7 [shape = 's32[1]{0}', space=sflag, size = 0x4, scoped, tag = 'scoped memory for conv1d_predictor.1']
    #allocation8 [shape = 'u8[1024]{0}', space=vmem, size = 0x400, scoped, tag = 'input window, operand 2, single buffered']
    #allocation9 [shape = 'u8[131072]{0}', space=vmem, size = 0x20000, scoped, tag = 'input window, operand 3, single buffered']
    #allocation10 [shape = 's32[1]{0}', space=sflag, size = 0x4, scoped, tag = 'scoped memory for conv1d_predictor.1']
    #allocation11 [shape = 'u8[131072]{0}', space=vmem, size = 0x20000, scoped, tag = 'input window, operand 4, single buffered']
    #allocation12 [shape = 'u8[1024]{0}', space=vmem, size = 0x400, scoped, tag = 'input window, operand 5, single buffered']
    #allocation13 [shape = 's32[1]{0}', space=sflag, size = 0x4, scoped, tag = 'scoped memory for conv1d_predictor.1']
    #allocation14 [shape = 'u8[131072]{0}', space=vmem, size = 0x20000, scoped, tag = 'input window, operand 6, single buffered']
    #allocation15 [shape = 'u8[131072]{0}', space=vmem, size = 0x20000, scoped, tag = 'input window, operand 7, single buffered']
    #allocation16 [shape = 's32[1]{0}', space=sflag, size = 0x4, scoped, tag = 'scoped memory for conv1d_predictor.1']
    #allocation17 [shape = 'u8[1024]{0}', space=vmem, size = 0x400, scoped, tag = 'input window, operand 8, single buffered']
    #allocation18 [shape = 'u8[1441792]{0}', space=vmem, size = 0x160000, scoped, tag = 'input window, operand 9, single buffered']
    #allocation19 [shape = 's32[1]{0}', space=sflag, size = 0x4, scoped, tag = 'scoped memory for conv1d_predictor.1']
    #allocation20 [shape = 'u8[512]{0}', space=vmem, size = 0x400, scoped, tag = 'input window, operand 10, single buffered']
    #allocation21 [shape = 'u8[32768]{0}', space=vmem, size = 0x8000, scoped, tag = 'output window, operand 0']
    %16 = vsyncpa [#allocation4], 0
    %s17 = scalar_lea.sflag [#allocation4], 1
    %18 = vsyncpa %s17, 0
    %19 = vsyncpa [#allocation7], 0
    %20 = vsyncpa [#allocation10], 0
    %21 = vsyncpa [#allocation13], 0
    %22 = vsyncpa [#allocation16], 0
    %23 = vsyncpa [#allocation19], 0
    %24 = vsyncpa [#allocation5], 0
    %s25 = scalar_lea.sflag [#allocation5], 1
    %26 = vsyncpa %s25, 0
    loop: start=0, step=1, limit=4
    $region2: #{conv1d_predictor.1} parent=1 // loop_pre_header
      _
    $region3: #{conv1d_predictor.1} parent=1 // loop_header
      %s28 = sphi 0, %s32
      %p29 = scmp.ge.s32.totalorder %s28, 4
      %s38 = sphi 0, %s40
      %s41 = sphi 0, %s38
      %s42 = sphi 0, %s41
      %s58 = sphi 0, %s42
      %s62 = sphi 0, %s62
      %s64 = sphi 0, %s62
      %s65 = sphi 0, %s64
      %s79 = sphi 0, %s65
      %s83 = sphi 0, %s83
      %s85 = sphi 0, %s83
      %s86 = sphi 0, %s85
      %s100 = sphi 0, %s86
      %s104 = sphi 0, %s104
      %s106 = sphi 0, %s104
      %s107 = sphi 0, %s106
      %s121 = sphi 0, %s107
      %s125 = sphi 0, %s125
      %s127 = sphi 0, %s125
      %s128 = sphi 0, %s127
      %s142 = sphi 0, %s128
      %s146 = sphi 0, %s146
      %s148 = sphi 0, %s146
      %s149 = sphi 0, %s148
      %s163 = sphi 0, %s149
      %s167 = sphi 0, %s167
      %s169 = sphi 0, %s167
      %s170 = sphi 0, %s169
      %s184 = sphi 0, %s170
      %s188 = sphi 0, %s188
      %s190 = sphi 0, %s188
      %s191 = sphi 0, %s190
      %s205 = sphi 0, %s191
      %s209 = sphi 0, %s209
      %s211 = sphi 0, %s209
      %s212 = sphi 0, %s211
      %s226 = sphi 0, %s212
      %s230 = sphi 0, %s230
      %s232 = sphi 0, %s230
      %s233 = sphi 0, %s232
      %s247 = sphi 0, %s233
      %s251 = sphi 0, %s251
      %s253 = sphi 0, %s251
      %s254 = sphi 0, %s253
      %s268 = sphi 0, %s254
      %s274 = sphi 0, %s276
      %s277 = sphi 0, %s274
      %s278 = sphi 0, %s277
      %s294 = sphi 0, %s278
    $region4: #{conv1d_predictor.1} parent=1 // loop_header_branch
      %31 = sbr.rel (%p29) target = $region8
    $region5: #{conv1d_predictor.1} parent=1 // loop_body
      %s33 = ssub.s32 %s28, 1
      %s34 = ssub.s32 %s28, 2
      %s35 = sadd.s32 %s28, 1
      %s36 = ssub.s32 %s28, %s35
      %p37 = scmp.eq.s32.totalorder %s36, 0
      %s39 = sadd.s32 %s38, 1
      %s40 = scalar_select %p37, %s38, %s39
      %p43 = pneg %p37
      %p44 = scmp.eq.s32.totalorder %s28, 1
      %p45 = por %p43, %p44
      %p46 = scmp.ne.s32.totalorder %s38, %s41
      %p47 = scmp.eq.s32.totalorder %s28, 0
      %p48 = por %p46, %p47
      %p49 = scmp.ne.s32.totalorder %s38, %s41
      %p50 = scmp.eq.s32.totalorder %s33, 1
      %p51 = por %p49, %p50
      %p52 = scmp.ne.s32.totalorder %s41, %s42
      %p53 = scmp.eq.s32.totalorder %s33, 0
      %p54 = por %p52, %p53
      %p55 = scmp.ne.s32.totalorder %s41, %s42
      %p56 = scmp.eq.s32.totalorder %s34, 1
      %p57 = por %p55, %p56
      %p59 = scmp.ne.s32.totalorder %s42, %s58
      %p60 = scmp.eq.s32.totalorder %s34, 0
      %p61 = por %p59, %p60
      %s63 = sadd.s32 %s62, 1
      %p66 = scmp.eq.s32.totalorder %s28, 1
      %p67 = scmp.ne.s32.totalorder %s62, %s64
      %p68 = scmp.eq.s32.totalorder %s28, 0
      %p69 = por %p67, %p68
      %p70 = scmp.ne.s32.totalorder %s62, %s64
      %p71 = scmp.eq.s32.totalorder %s33, 1
      %p72 = por %p70, %p71
      %p73 = scmp.ne.s32.totalorder %s64, %s65
      %p74 = scmp.eq.s32.totalorder %s33, 0
      %p75 = por %p73, %p74
      %p76 = scmp.ne.s32.totalorder %s64, %s65
      %p77 = scmp.eq.s32.totalorder %s34, 1
      %p78 = por %p76, %p77
      %p80 = scmp.ne.s32.totalorder %s65, %s79
      %p81 = scmp.eq.s32.totalorder %s34, 0
      %p82 = por %p80, %p81
      %s84 = sadd.s32 %s83, 1
      %p87 = scmp.eq.s32.totalorder %s28, 1
      %p88 = scmp.ne.s32.totalorder %s83, %s85
      %p89 = scmp.eq.s32.totalorder %s28, 0
      %p90 = por %p88, %p89
      %p91 = scmp.ne.s32.totalorder %s83, %s85
      %p92 = scmp.eq.s32.totalorder %s33, 1
      %p93 = por %p91, %p92
      %p94 = scmp.ne.s32.totalorder %s85, %s86
      %p95 = scmp.eq.s32.totalorder %s33, 0
      %p96 = por %p94, %p95
      %p97 = scmp.ne.s32.totalorder %s85, %s86
      %p98 = scmp.eq.s32.totalorder %s34, 1
      %p99 = por %p97, %p98
      %p101 = scmp.ne.s32.totalorder %s86, %s100
      %p102 = scmp.eq.s32.totalorder %s34, 0
      %p103 = por %p101, %p102
      %s105 = sadd.s32 %s104, 1
      %p108 = scmp.eq.s32.totalorder %s28, 1
      %p109 = scmp.ne.s32.totalorder %s104, %s106
      %p110 = scmp.eq.s32.totalorder %s28, 0
      %p111 = por %p109, %p110
      %p112 = scmp.ne.s32.totalorder %s104, %s106
      %p113 = scmp.eq.s32.totalorder %s33, 1
      %p114 = por %p112, %p113
      %p115 = scmp.ne.s32.totalorder %s106, %s107
      %p116 = scmp.eq.s32.totalorder %s33, 0
      %p117 = por %p115, %p116
      %p118 = scmp.ne.s32.totalorder %s106, %s107
      %p119 = scmp.eq.s32.totalorder %s34, 1
      %p120 = por %p118, %p119
      %p122 = scmp.ne.s32.totalorder %s107, %s121
      %p123 = scmp.eq.s32.totalorder %s34, 0
      %p124 = por %p122, %p123
      %s126 = sadd.s32 %s125, 1
      %p129 = scmp.eq.s32.totalorder %s28, 1
      %p130 = scmp.ne.s32.totalorder %s125, %s127
      %p131 = scmp.eq.s32.totalorder %s28, 0
      %p132 = por %p130, %p131
      %p133 = scmp.ne.s32.totalorder %s125, %s127
      %p134 = scmp.eq.s32.totalorder %s33, 1
      %p135 = por %p133, %p134
      %p136 = scmp.ne.s32.totalorder %s127, %s128
      %p137 = scmp.eq.s32.totalorder %s33, 0
      %p138 = por %p136, %p137
      %p139 = scmp.ne.s32.totalorder %s127, %s128
      %p140 = scmp.eq.s32.totalorder %s34, 1
      %p141 = por %p139, %p140
      %p143 = scmp.ne.s32.totalorder %s128, %s142
      %p144 = scmp.eq.s32.totalorder %s34, 0
      %p145 = por %p143, %p144
      %s147 = sadd.s32 %s146, 1
      %p150 = scmp.eq.s32.totalorder %s28, 1
      %p151 = scmp.ne.s32.totalorder %s146, %s148
      %p152 = scmp.eq.s32.totalorder %s28, 0
      %p153 = por %p151, %p152
      %p154 = scmp.ne.s32.totalorder %s146, %s148
      %p155 = scmp.eq.s32.totalorder %s33, 1
      %p156 = por %p154, %p155
      %p157 = scmp.ne.s32.totalorder %s148, %s149
      %p158 = scmp.eq.s32.totalorder %s33, 0
      %p159 = por %p157, %p158
      %p160 = scmp.ne.s32.totalorder %s148, %s149
      %p161 = scmp.eq.s32.totalorder %s34, 1
      %p162 = por %p160, %p161
      %p164 = scmp.ne.s32.totalorder %s149, %s163
      %p165 = scmp.eq.s32.totalorder %s34, 0
      %p166 = por %p164, %p165
      %s168 = sadd.s32 %s167, 1
      %p171 = scmp.eq.s32.totalorder %s28, 1
      %p172 = scmp.ne.s32.totalorder %s167, %s169
      %p173 = scmp.eq.s32.totalorder %s28, 0
      %p174 = por %p172, %p173
      %p175 = scmp.ne.s32.totalorder %s167, %s169
      %p176 = scmp.eq.s32.totalorder %s33, 1
      %p177 = por %p175, %p176
      %p178 = scmp.ne.s32.totalorder %s169, %s170
      %p179 = scmp.eq.s32.totalorder %s33, 0
      %p180 = por %p178, %p179
      %p181 = scmp.ne.s32.totalorder %s169, %s170
      %p182 = scmp.eq.s32.totalorder %s34, 1
      %p183 = por %p181, %p182
      %p185 = scmp.ne.s32.totalorder %s170, %s184
      %p186 = scmp.eq.s32.totalorder %s34, 0
      %p187 = por %p185, %p186
      %s189 = sadd.s32 %s188, 1
      %p192 = scmp.eq.s32.totalorder %s28, 1
      %p193 = scmp.ne.s32.totalorder %s188, %s190
      %p194 = scmp.eq.s32.totalorder %s28, 0
      %p195 = por %p193, %p194
      %p196 = scmp.ne.s32.totalorder %s188, %s190
      %p197 = scmp.eq.s32.totalorder %s33, 1
      %p198 = por %p196, %p197
      %p199 = scmp.ne.s32.totalorder %s190, %s191
      %p200 = scmp.eq.s32.totalorder %s33, 0
      %p201 = por %p199, %p200
      %p202 = scmp.ne.s32.totalorder %s190, %s191
      %p203 = scmp.eq.s32.totalorder %s34, 1
      %p204 = por %p202, %p203
      %p206 = scmp.ne.s32.totalorder %s191, %s205
      %p207 = scmp.eq.s32.totalorder %s34, 0
      %p208 = por %p206, %p207
      %s210 = sadd.s32 %s209, 1
      %p213 = scmp.eq.s32.totalorder %s28, 1
      %p214 = scmp.ne.s32.totalorder %s209, %s211
      %p215 = scmp.eq.s32.totalorder %s28, 0
      %p216 = por %p214, %p215
      %p217 = scmp.ne.s32.totalorder %s209, %s211
      %p218 = scmp.eq.s32.totalorder %s33, 1
      %p219 = por %p217, %p218
      %p220 = scmp.ne.s32.totalorder %s211, %s212
      %p221 = scmp.eq.s32.totalorder %s33, 0
      %p222 = por %p220, %p221
      %p223 = scmp.ne.s32.totalorder %s211, %s212
      %p224 = scmp.eq.s32.totalorder %s34, 1
      %p225 = por %p223, %p224
      %p227 = scmp.ne.s32.totalorder %s212, %s226
      %p228 = scmp.eq.s32.totalorder %s34, 0
      %p229 = por %p227, %p228
      %s231 = sadd.s32 %s230, 1
      %p234 = scmp.eq.s32.totalorder %s28, 1
      %p235 = scmp.ne.s32.totalorder %s230, %s232
      %p236 = scmp.eq.s32.totalorder %s28, 0
      %p237 = por %p235, %p236
      %p238 = scmp.ne.s32.totalorder %s230, %s232
      %p239 = scmp.eq.s32.totalorder %s33, 1
      %p240 = por %p238, %p239
      %p241 = scmp.ne.s32.totalorder %s232, %s233
      %p242 = scmp.eq.s32.totalorder %s33, 0
      %p243 = por %p241, %p242
      %p244 = scmp.ne.s32.totalorder %s232, %s233
      %p245 = scmp.eq.s32.totalorder %s34, 1
      %p246 = por %p244, %p245
      %p248 = scmp.ne.s32.totalorder %s233, %s247
      %p249 = scmp.eq.s32.totalorder %s34, 0
      %p250 = por %p248, %p249
      %s252 = sadd.s32 %s251, 1
      %p255 = scmp.eq.s32.totalorder %s28, 1
      %p256 = scmp.ne.s32.totalorder %s251, %s253
      %p257 = scmp.eq.s32.totalorder %s28, 0
      %p258 = por %p256, %p257
      %p259 = scmp.ne.s32.totalorder %s251, %s253
      %p260 = scmp.eq.s32.totalorder %s33, 1
      %p261 = por %p259, %p260
      %p262 = scmp.ne.s32.totalorder %s253, %s254
      %p263 = scmp.eq.s32.totalorder %s33, 0
      %p264 = por %p262, %p263
      %p265 = scmp.ne.s32.totalorder %s253, %s254
      %p266 = scmp.eq.s32.totalorder %s34, 1
      %p267 = por %p265, %p266
      %p269 = scmp.ne.s32.totalorder %s254, %s268
      %p270 = scmp.eq.s32.totalorder %s34, 0
      %p271 = por %p269, %p270
      %s272 = ssub.s32 %s28, %s35
      %p273 = scmp.eq.s32.totalorder %s272, 0
      %s275 = sadd.s32 %s274, 1
      %s276 = scalar_select %p273, %s274, %s275
      %p279 = pneg %p273
      %p280 = scmp.eq.s32.totalorder %s28, 1
      %p281 = por %p279, %p280
      %p282 = scmp.ne.s32.totalorder %s274, %s277
      %p283 = scmp.eq.s32.totalorder %s28, 0
      %p284 = por %p282, %p283
      %p285 = scmp.ne.s32.totalorder %s274, %s277
      %p286 = scmp.eq.s32.totalorder %s33, 1
      %p287 = por %p285, %p286
      %p288 = scmp.ne.s32.totalorder %s277, %s278
      %p289 = scmp.eq.s32.totalorder %s33, 0
      %p290 = por %p288, %p289
      %p291 = scmp.ne.s32.totalorder %s277, %s278
      %p292 = scmp.eq.s32.totalorder %s34, 1
      %p293 = por %p291, %p292
      %p295 = scmp.ne.s32.totalorder %s278, %s294
      %p296 = scmp.eq.s32.totalorder %s34, 0
      %p297 = por %p295, %p296
      %p298 = scmp.le.s32.totalorder 1, %s28
      %p299 = scmp.lt.s32.totalorder %s28, 3
      %p300 = pnand %p298, %p299
      %p301 = pneg %p300
      // Predicated region
      $region9: #{conv1d_predictor.1} parent=5 // pred_check
        _
      $region10: #{conv1d_predictor.1} parent=5 // pred_check_branch
        %303 = sbr.rel (%p300) target = $region12
      $region11: #{conv1d_predictor.1} parent=5 // pred_region
        %s304 = ssub.s32 %s28, 1
        // Predicated region
        $region13: #{conv1d_predictor.1} parent=11 // pred_check
          %p305 = pneg %p75
        $region14: #{conv1d_predictor.1} parent=11 // pred_check_branch
          %307 = sbr.rel (%p305) target = $region16
        $region15: #{conv1d_predictor.1} parent=11 // pred_region
          %s309 = ssub.s32 512, 512
          %310 = vsyncadd [#allocation7], %s309
          %s311 = sshll.u32 [#allocation6], 4
          %s312 = int_to_ptr.vmem [resolvable:$true] %s311
          %317 = dma.hbm_to_vmem [thread:$0]  %s1, 512, %s312, [#allocation7], 128, 128, 8
        $region16: #{conv1d_predictor.1} parent=11 // pred_fallthru
          _
        // Predicated region
        $region17: #{conv1d_predictor.1} parent=11 // pred_check
          %p318 = pneg %p96
        $region18: #{conv1d_predictor.1} parent=11 // pred_check_branch
          %320 = sbr.rel (%p318) target = $region20
        $region19: #{conv1d_predictor.1} parent=11 // pred_region
          %s322 = ssub.s32 32, 32
          %323 = vsyncadd [#allocation7], %s322
          %s325 = sshll.u32 [#allocation8], 4
          %s326 = int_to_ptr.vmem [resolvable:$true] %s325
          %328 = dma.hbm_to_vmem [thread:$0]  %s2, 32, %s326, [#allocation7]
        $region20: #{conv1d_predictor.1} parent=11 // pred_fallthru
          _
        // Predicated region
        $region21: #{conv1d_predictor.1} parent=11 // pred_check
          %p329 = pneg %p117
        $region22: #{conv1d_predictor.1} parent=11 // pred_check_branch
          %331 = sbr.rel (%p329) target = $region24
        $region23: #{conv1d_predictor.1} parent=11 // pred_region
          %s333 = ssub.s32 4096, 4096
          %334 = vsyncadd [#allocation10], %s333
          %s335 = sshll.u32 [#allocation9], 4
          %s336 = int_to_ptr.vmem [resolvable:$true] %s335
          %341 = dma.hbm_to_vmem [thread:$0]  %s3, 4096, %s336, [#allocation10], 128, 128, 8
        $region24: #{conv1d_predictor.1} parent=11 // pred_fallthru
          _
        // Predicated region
        $region25: #{conv1d_predictor.1} parent=11 // pred_check
          %p342 = pneg %p138
        $region26: #{conv1d_predictor.1} parent=11 // pred_check_branch
          %344 = sbr.rel (%p342) target = $region28
        $region27: #{conv1d_predictor.1} parent=11 // pred_region
          %s346 = ssub.s32 4096, 4096
          %347 = vsyncadd [#allocation10], %s346
          %s348 = sshll.u32 [#allocation11], 4
          %s349 = int_to_ptr.vmem [resolvable:$true] %s348
          %354 = dma.hbm_to_vmem [thread:$0]  %s4, 4096, %s349, [#allocation10], 128, 128, 8
        $region28: #{conv1d_predictor.1} parent=11 // pred_fallthru
          _
        // Predicated region
        $region29: #{conv1d_predictor.1} parent=11 // pred_check
          %p355 = pneg %p159
        $region30: #{conv1d_predictor.1} parent=11 // pred_check_branch
          %357 = sbr.rel (%p355) target = $region32
        $region31: #{conv1d_predictor.1} parent=11 // pred_region
          %s359 = ssub.s32 32, 32
          %360 = vsyncadd [#allocation13], %s359
          %s362 = sshll.u32 [#allocation12], 4
          %s363 = int_to_ptr.vmem [resolvable:$true] %s362
          %365 = dma.hbm_to_vmem [thread:$0]  %s5, 32, %s363, [#allocation13]
        $region32: #{conv1d_predictor.1} parent=11 // pred_fallthru
          _
        // Predicated region
        $region33: #{conv1d_predictor.1} parent=11 // pred_check
          %p366 = pneg %p180
        $region34: #{conv1d_predictor.1} parent=11 // pred_check_branch
          %368 = sbr.rel (%p366) target = $region36
        $region35: #{conv1d_predictor.1} parent=11 // pred_region
          %s370 = ssub.s32 4096, 4096
          %371 = vsyncadd [#allocation13], %s370
          %s372 = sshll.u32 [#allocation14], 4
          %s373 = int_to_ptr.vmem [resolvable:$true] %s372
          %378 = dma.hbm_to_vmem [thread:$0]  %s6, 4096, %s373, [#allocation13], 128, 128, 8
        $region36: #{conv1d_predictor.1} parent=11 // pred_fallthru
          _
        // Predicated region
        $region37: #{conv1d_predictor.1} parent=11 // pred_check
          %p379 = pneg %p201
        $region38: #{conv1d_predictor.1} parent=11 // pred_check_branch
          %381 = sbr.rel (%p379) target = $region40
        $region39: #{conv1d_predictor.1} parent=11 // pred_region
          %s383 = ssub.s32 4096, 4096
          %384 = vsyncadd [#allocation16], %s383
          %s385 = sshll.u32 [#allocation15], 4
          %s386 = int_to_ptr.vmem [resolvable:$true] %s385
          %391 = dma.hbm_to_vmem [thread:$0]  %s7, 4096, %s386, [#allocation16], 128, 128, 8
        $region40: #{conv1d_predictor.1} parent=11 // pred_fallthru
          _
        // Predicated region
        $region41: #{conv1d_predictor.1} parent=11 // pred_check
          %p392 = pneg %p222
        $region42: #{conv1d_predictor.1} parent=11 // pred_check_branch
          %394 = sbr.rel (%p392) target = $region44
        $region43: #{conv1d_predictor.1} parent=11 // pred_region
          %s396 = ssub.s32 32, 32
          %397 = vsyncadd [#allocation16], %s396
          %s399 = sshll.u32 [#allocation17], 4
          %s400 = int_to_ptr.vmem [resolvable:$true] %s399
          %402 = dma.hbm_to_vmem [thread:$0]  %s8, 32, %s400, [#allocation16]
        $region44: #{conv1d_predictor.1} parent=11 // pred_fallthru
          _
        // Predicated region
        $region45: #{conv1d_predictor.1} parent=11 // pred_check
          %p403 = pneg %p243
        $region46: #{conv1d_predictor.1} parent=11 // pred_check_branch
          %405 = sbr.rel (%p403) target = $region48
        $region47: #{conv1d_predictor.1} parent=11 // pred_region
          %s407 = ssub.s32 45056, 45056
          %408 = vsyncadd [#allocation19], %s407
          %s409 = sshll.u32 [#allocation18], 4
          %s410 = int_to_ptr.vmem [resolvable:$true] %s409
          %415 = dma.hbm_to_vmem [thread:$0]  %s9, 45056, %s410, [#allocation19], 64, 64, 4
        $region48: #{conv1d_predictor.1} parent=11 // pred_fallthru
          _
        // Predicated region
        $region49: #{conv1d_predictor.1} parent=11 // pred_check
          %p416 = pneg %p264
        $region50: #{conv1d_predictor.1} parent=11 // pred_check_branch
          %418 = sbr.rel (%p416) target = $region52
        $region51: #{conv1d_predictor.1} parent=11 // pred_region
          %s420 = ssub.s32 16, 16
          %421 = vsyncadd [#allocation19], %s420
          %s423 = sshll.u32 [#allocation20], 4
          %s424 = int_to_ptr.vmem [resolvable:$true] %s423
          %426 = dma.hbm_to_vmem [thread:$0]  %s10, 16, %s424, [#allocation19]
        $region52: #{conv1d_predictor.1} parent=11 // pred_fallthru
          _
      $region12: #{conv1d_predictor.1} parent=5 // pred_fallthru
        _
      %p427 = scmp.lt.s32.totalorder %s28, 2
      // Predicated region
      $region53: #{conv1d_predictor.1} parent=5 // pred_check
        %p428 = pneg %p427
      $region54: #{conv1d_predictor.1} parent=5 // pred_check_branch
        %430 = sbr.rel (%p428) target = $region56
      $region55: #{conv1d_predictor.1} parent=5 // pred_region
        // Predicated region
        $region57: #{conv1d_predictor.1} parent=55 // pred_check
          %p431 = pneg %p48
        $region58: #{conv1d_predictor.1} parent=55 // pred_check_branch
          %433 = sbr.rel (%p431) target = $region60
        $region59: #{conv1d_predictor.1} parent=55 // pred_region
          %s434 = sand.u32 %s38, 1
          %s435 = scalar_lea.sflag [#allocation4], %s434
          %s436 = sand.u32 %s38, 1
          %s437 = smul.addr %s436, 384
          %s438 = scalar_lea.vmem [#allocation3], %s437
          %s439 = smul.u32 96, %s28
          %s441 = ssub.s32 6144, 6144
          %442 = vsyncadd %s435, %s441
          %s443 = smul.addr %s439, 64
          %s444 = scalar_lea.hbm %s0, %s443
          %s445 = sshll.u32 %s438, 4
          %s446 = int_to_ptr.vmem [resolvable:$true] %s445
          %451 = dma.hbm_to_vmem [thread:$0]  %s444, 6144, %s446, %s435, 64, 64, 4
        $region60: #{conv1d_predictor.1} parent=55 // pred_fallthru
          _
      $region56: #{conv1d_predictor.1} parent=5 // pred_fallthru
        _
      %p452 = scmp.le.s32.totalorder 1, %s28
      %p453 = scmp.lt.s32.totalorder %s28, 3
      %p454 = pnand %p452, %p453
      %p455 = pneg %p454
      // Predicated region
      $region61: #{conv1d_predictor.1} parent=5 // pred_check
        _
      $region62: #{conv1d_predictor.1} parent=5 // pred_check_branch
        %457 = sbr.rel (%p454) target = $region64
      $region63: #{conv1d_predictor.1} parent=5 // pred_region
        %s458 = ssub.s32 %s28, 1
        %s459 = sand.u32 %s41, 1
        %s460 = scalar_lea.sflag [#allocation4], %s459
        %s461 = sand.u32 %s41, 1
        %s462 = smul.addr %s461, 384
        %s463 = scalar_lea.vmem [#allocation3], %s462
        // Predicated region
        $region65: #{conv1d_predictor.1} parent=63 // pred_check
          %p464 = pneg %p54
        $region66: #{conv1d_predictor.1} parent=63 // pred_check_branch
          %466 = sbr.rel (%p464) target = $region68
        $region67: #{conv1d_predictor.1} parent=63 // pred_region
          %467 = dma.done %s460, 6144
        $region68: #{conv1d_predictor.1} parent=63 // pred_fallthru
          _
        // Predicated region
        $region69: #{conv1d_predictor.1} parent=63 // pred_check
          %p468 = pneg %p75
        $region70: #{conv1d_predictor.1} parent=63 // pred_check_branch
          %470 = sbr.rel (%p468) target = $region72
        $region71: #{conv1d_predictor.1} parent=63 // pred_region
          %471 = dma.done [#allocation7], 512
        $region72: #{conv1d_predictor.1} parent=63 // pred_fallthru
          _
        // Predicated region
        $region73: #{conv1d_predictor.1} parent=63 // pred_check
          %p472 = pneg %p96
        $region74: #{conv1d_predictor.1} parent=63 // pred_check_branch
          %474 = sbr.rel (%p472) target = $region76
        $region75: #{conv1d_predictor.1} parent=63 // pred_region
          %475 = dma.done [#allocation7], 32
        $region76: #{conv1d_predictor.1} parent=63 // pred_fallthru
          _
        // Predicated region
        $region77: #{conv1d_predictor.1} parent=63 // pred_check
          %p476 = pneg %p117
        $region78: #{conv1d_predictor.1} parent=63 // pred_check_branch
          %478 = sbr.rel (%p476) target = $region80
        $region79: #{conv1d_predictor.1} parent=63 // pred_region
          %479 = dma.done [#allocation10], 4096
        $region80: #{conv1d_predictor.1} parent=63 // pred_fallthru
          _
        // Predicated region
        $region81: #{conv1d_predictor.1} parent=63 // pred_check
          %p480 = pneg %p138
        $region82: #{conv1d_predictor.1} parent=63 // pred_check_branch
          %482 = sbr.rel (%p480) target = $region84
        $region83: #{conv1d_predictor.1} parent=63 // pred_region
          %483 = dma.done [#allocation10], 4096
        $region84: #{conv1d_predictor.1} parent=63 // pred_fallthru
          _
        // Predicated region
        $region85: #{conv1d_predictor.1} parent=63 // pred_check
          %p484 = pneg %p159
        $region86: #{conv1d_predictor.1} parent=63 // pred_check_branch
          %486 = sbr.rel (%p484) target = $region88
        $region87: #{conv1d_predictor.1} parent=63 // pred_region
          %487 = dma.done [#allocation13], 32
        $region88: #{conv1d_predictor.1} parent=63 // pred_fallthru
          _
        // Predicated region
        $region89: #{conv1d_predictor.1} parent=63 // pred_check
          %p488 = pneg %p180
        $region90: #{conv1d_predictor.1} parent=63 // pred_check_branch
          %490 = sbr.rel (%p488) target = $region92
        $region91: #{conv1d_predictor.1} parent=63 // pred_region
          %491 = dma.done [#allocation13], 4096
        $region92: #{conv1d_predictor.1} parent=63 // pred_fallthru
          _
        // Predicated region
        $region93: #{conv1d_predictor.1} parent=63 // pred_check
          %p492 = pneg %p201
        $region94: #{conv1d_predictor.1} parent=63 // pred_check_branch
          %494 = sbr.rel (%p492) target = $region96
        $region95: #{conv1d_predictor.1} parent=63 // pred_region
          %495 = dma.done [#allocation16], 4096
        $region96: #{conv1d_predictor.1} parent=63 // pred_fallthru
          _
        // Predicated region
        $region97: #{conv1d_predictor.1} parent=63 // pred_check
          %p496 = pneg %p222
        $region98: #{conv1d_predictor.1} parent=63 // pred_check_branch
          %498 = sbr.rel (%p496) target = $region100
        $region99: #{conv1d_predictor.1} parent=63 // pred_region
          %499 = dma.done [#allocation16], 32
        $region100: #{conv1d_predictor.1} parent=63 // pred_fallthru
          _
        // Predicated region
        $region101: #{conv1d_predictor.1} parent=63 // pred_check
          %p500 = pneg %p243
        $region102: #{conv1d_predictor.1} parent=63 // pred_check_branch
          %502 = sbr.rel (%p500) target = $region104
        $region103: #{conv1d_predictor.1} parent=63 // pred_region
          %503 = dma.done [#allocation19], 45056
        $region104: #{conv1d_predictor.1} parent=63 // pred_fallthru
          _
        // Predicated region
        $region105: #{conv1d_predictor.1} parent=63 // pred_check
          %p504 = pneg %p264
        $region106: #{conv1d_predictor.1} parent=63 // pred_check_branch
          %506 = sbr.rel (%p504) target = $region108
        $region107: #{conv1d_predictor.1} parent=63 // pred_region
          %507 = dma.done [#allocation19], 16
        $region108: #{conv1d_predictor.1} parent=63 // pred_fallthru
          _
        %s508 = sand.u32 %s41, 1
        %s509 = scalar_lea.sflag [#allocation4], %s508
        %s510 = sand.u32 %s41, 1
        %s511 = smul.addr %s510, 384
        %s512 = scalar_lea.vmem [#allocation3], %s511
        %p513 = pneg %p54
        %p514 = pneg %p51
        %p515 = pneg %p75
        %p516 = pneg %p72
        %p517 = pneg %p96
        %p518 = pneg %p93
        %p519 = pneg %p117
        %p520 = pneg %p114
        %p521 = pneg %p138
        %p522 = pneg %p135
        %p523 = pneg %p159
        %p524 = pneg %p156
        %p525 = pneg %p180
        %p526 = pneg %p177
        %p527 = pneg %p201
        %p528 = pneg %p198
        %p529 = pneg %p222
        %p530 = pneg %p219
        %p531 = pneg %p243
        %p532 = pneg %p240
        %p533 = pneg %p264
        %p534 = pneg %p261
        %p535 = pneg %p290
        %p536 = pneg %p287
        %s537 = sand.u32 %s277, 1
        %s538 = scalar_lea.sflag [#allocation5], %s537
        %s539 = sand.u32 %s277, 1
        %s540 = smul.addr %s539, 32
        %s541 = scalar_lea.vmem [#allocation21], %s540
        %s542 = smul.u32 96, %s33
        %s543 = smul.u32 4, %s33
        %v545 = vld [vmem:[%s463] sm:$0xf]
        %v546 = vld [vmem:[%s463 + $0x4] sm:$0xf]
        %v547 = vld [vmem:[%s463 + $0x8] sm:$0xf]
        %v548 = vld [vmem:[%s463 + $0xc] sm:$0xf]
        %v549 = vld [vmem:[%s463 + $0x10] sm:$0xf]
        %v550 = vld [vmem:[%s463 + $0x14] sm:$0xf]
        %v551 = vld [vmem:[%s463 + $0x18] sm:$0xf]
        %v552 = vld [vmem:[%s463 + $0x1c] sm:$0xf]
        %v553 = vld [vmem:[%s463 + $0x20] sm:$0xf]
        %v554 = vld [vmem:[%s463 + $0x24] sm:$0xf]
        %v555 = vld [vmem:[%s463 + $0x28] sm:$0xf]
        %v556 = vld [vmem:[%s463 + $0x2c] sm:$0xf]
        %v557 = vld [vmem:[%s463 + $0x30] sm:$0xf]
        %v558 = vld [vmem:[%s463 + $0x34] sm:$0xf]
        %v559 = vld [vmem:[%s463 + $0x38] sm:$0xf]
        %v560 = vld [vmem:[%s463 + $0x3c] sm:$0xf]
        %v561 = vld [vmem:[%s463 + $0x40] sm:$0xf]
        %v562 = vld [vmem:[%s463 + $0x44] sm:$0xf]
        %v563 = vld [vmem:[%s463 + $0x48] sm:$0xf]
        %v564 = vld [vmem:[%s463 + $0x4c] sm:$0xf]
        %v565 = vld [vmem:[%s463 + $0x50] sm:$0xf]
        %v566 = vld [vmem:[%s463 + $0x54] sm:$0xf]
        %v567 = vld [vmem:[%s463 + $0x58] sm:$0xf]
        %v568 = vld [vmem:[%s463 + $0x5c] sm:$0xf]
        %v569 = vld [vmem:[%s463 + $0x60] sm:$0xf]
        %v570 = vld [vmem:[%s463 + $0x64] sm:$0xf]
        %v571 = vld [vmem:[%s463 + $0x68] sm:$0xf]
        %v572 = vld [vmem:[%s463 + $0x6c] sm:$0xf]
        %v573 = vld [vmem:[%s463 + $0x70] sm:$0xf]
        %v574 = vld [vmem:[%s463 + $0x74] sm:$0xf]
        %v575 = vld [vmem:[%s463 + $0x78] sm:$0xf]
        %v576 = vld [vmem:[%s463 + $0x7c] sm:$0xf]
        %v577 = vld [vmem:[%s463 + $0x80] sm:$0xf]
        %v578 = vld [vmem:[%s463 + $0x84] sm:$0xf]
        %v579 = vld [vmem:[%s463 + $0x88] sm:$0xf]
        %v580 = vld [vmem:[%s463 + $0x8c] sm:$0xf]
        %v581 = vld [vmem:[%s463 + $0x90] sm:$0xf]
        %v582 = vld [vmem:[%s463 + $0x94] sm:$0xf]
        %v583 = vld [vmem:[%s463 + $0x98] sm:$0xf]
        %v584 = vld [vmem:[%s463 + $0x9c] sm:$0xf]
        %v585 = vld [vmem:[%s463 + $0xa0] sm:$0xf]
        %v586 = vld [vmem:[%s463 + $0xa4] sm:$0xf]
        %v587 = vld [vmem:[%s463 + $0xa8] sm:$0xf]
        %v588 = vld [vmem:[%s463 + $0xac] sm:$0xf]
        %v589 = vld [vmem:[%s463 + $0xb0] sm:$0xf]
        %v590 = vld [vmem:[%s463 + $0xb4] sm:$0xf]
        %v591 = vld [vmem:[%s463 + $0xb8] sm:$0xf]
        %v592 = vld [vmem:[%s463 + $0xbc] sm:$0xf]
        %v593 = vld [vmem:[%s463 + $0xc0] sm:$0xf]
        %v594 = vld [vmem:[%s463 + $0xc4] sm:$0xf]
        %v595 = vld [vmem:[%s463 + $0xc8] sm:$0xf]
        %v596 = vld [vmem:[%s463 + $0xcc] sm:$0xf]
        %v597 = vld [vmem:[%s463 + $0xd0] sm:$0xf]
        %v598 = vld [vmem:[%s463 + $0xd4] sm:$0xf]
        %v599 = vld [vmem:[%s463 + $0xd8] sm:$0xf]
        %v600 = vld [vmem:[%s463 + $0xdc] sm:$0xf]
        %v601 = vld [vmem:[%s463 + $0xe0] sm:$0xf]
        %v602 = vld [vmem:[%s463 + $0xe4] sm:$0xf]
        %v603 = vld [vmem:[%s463 + $0xe8] sm:$0xf]
        %v604 = vld [vmem:[%s463 + $0xec] sm:$0xf]
        %v605 = vld [vmem:[%s463 + $0xf0] sm:$0xf]
        %v606 = vld [vmem:[%s463 + $0xf4] sm:$0xf]
        %v607 = vld [vmem:[%s463 + $0xf8] sm:$0xf]
        %v608 = vld [vmem:[%s463 + $0xfc] sm:$0xf]
        %v609 = vld [vmem:[%s463 + $0x100] sm:$0xf]
        %v610 = vld [vmem:[%s463 + $0x104] sm:$0xf]
        %v611 = vld [vmem:[%s463 + $0x108] sm:$0xf]
        %v612 = vld [vmem:[%s463 + $0x10c] sm:$0xf]
        %v613 = vld [vmem:[%s463 + $0x110] sm:$0xf]
        %v614 = vld [vmem:[%s463 + $0x114] sm:$0xf]
        %v615 = vld [vmem:[%s463 + $0x118] sm:$0xf]
        %v616 = vld [vmem:[%s463 + $0x11c] sm:$0xf]
        %v617 = vld [vmem:[%s463 + $0x120] sm:$0xf]
        %v618 = vld [vmem:[%s463 + $0x124] sm:$0xf]
        %v619 = vld [vmem:[%s463 + $0x128] sm:$0xf]
        %v620 = vld [vmem:[%s463 + $0x12c] sm:$0xf]
        %v621 = vld [vmem:[%s463 + $0x130] sm:$0xf]
        %v622 = vld [vmem:[%s463 + $0x134] sm:$0xf]
        %v623 = vld [vmem:[%s463 + $0x138] sm:$0xf]
        %v624 = vld [vmem:[%s463 + $0x13c] sm:$0xf]
        %v625 = vld [vmem:[%s463 + $0x140] sm:$0xf]
        %v626 = vld [vmem:[%s463 + $0x144] sm:$0xf]
        %v627 = vld [vmem:[%s463 + $0x148] sm:$0xf]
        %v628 = vld [vmem:[%s463 + $0x14c] sm:$0xf]
        %v629 = vld [vmem:[%s463 + $0x150] sm:$0xf]
        %v630 = vld [vmem:[%s463 + $0x154] sm:$0xf]
        %v631 = vld [vmem:[%s463 + $0x158] sm:$0xf]
        %v632 = vld [vmem:[%s463 + $0x15c] sm:$0xf]
        %v633 = vld [vmem:[%s463 + $0x160] sm:$0xf]
        %v634 = vld [vmem:[%s463 + $0x164] sm:$0xf]
        %v635 = vld [vmem:[%s463 + $0x168] sm:$0xf]
        %v636 = vld [vmem:[%s463 + $0x16c] sm:$0xf]
        %v637 = vld [vmem:[%s463 + $0x170] sm:$0xf]
        %v638 = vld [vmem:[%s463 + $0x174] sm:$0xf]
        %v639 = vld [vmem:[%s463 + $0x178] sm:$0xf]
        %v640 = vld [vmem:[%s463 + $0x17c] sm:$0xf]
        %v641 = vld [vmem:[#allocation6] sm:$0xff]
        %v642 = vld [vmem:[#allocation6 + $0x8] sm:$0xff]
        %v643 = vld [vmem:[#allocation6 + $0x10] sm:$0xff]
        %v644 = vld [vmem:[#allocation6 + $0x18] sm:$0xff]
        %v645 = vld [vmem:[#allocation8] sm:$0x3]
        %v647 = vlaneseq
        %v648 = vshrl.u32 %v647, 7
        %v649 = vsub.s32 0, %v648
        %v650 = vrot.slane %v645, %v649
        %v651 = vlaneseq
        %v652 = vshrl.u32 %v651, 7
        %v653 = vsub.s32 1, %v652
        %v654 = vrot.slane %v645, %v653
        %v753 = vunpack.c.l.b16 %v545
        %v754 = vunpack.c.l.b16 %v546
        %v755 = vunpack.c.l.b16 %v547
        %v756 = vunpack.c.l.b16 %v548
        %v757 = vunpack.c.l.b16 %v549
        %v758 = vunpack.c.l.b16 %v550
        %v759 = vunpack.c.l.b16 %v551
        %v760 = vunpack.c.l.b16 %v552
        %v761 = vunpack.c.l.b16 %v553
        %v762 = vunpack.c.l.b16 %v554
        %v763 = vunpack.c.l.b16 %v555
        %v764 = vunpack.c.l.b16 %v556
        %v765 = vunpack.c.l.b16 %v557
        %v766 = vunpack.c.l.b16 %v558
        %v767 = vunpack.c.l.b16 %v559
        %v768 = vunpack.c.l.b16 %v560
        %v769 = vunpack.c.l.b16 %v561
        %v770 = vunpack.c.l.b16 %v562
        %v771 = vunpack.c.l.b16 %v563
        %v772 = vunpack.c.l.b16 %v564
        %v773 = vunpack.c.l.b16 %v565
        %v774 = vunpack.c.l.b16 %v566
        %v775 = vunpack.c.l.b16 %v567
        %v776 = vunpack.c.l.b16 %v568
        %v777 = vunpack.c.l.b16 %v569
        %v778 = vunpack.c.l.b16 %v570
        %v779 = vunpack.c.l.b16 %v571
        %v780 = vunpack.c.l.b16 %v572
        %v781 = vunpack.c.l.b16 %v573
        %v782 = vunpack.c.l.b16 %v574
        %v783 = vunpack.c.l.b16 %v575
        %v784 = vunpack.c.l.b16 %v576
        %v785 = vunpack.c.l.b16 %v577
        %v786 = vunpack.c.l.b16 %v578
        %v787 = vunpack.c.l.b16 %v579
        %v788 = vunpack.c.l.b16 %v580
        %v789 = vunpack.c.l.b16 %v581
        %v790 = vunpack.c.l.b16 %v582
        %v791 = vunpack.c.l.b16 %v583
        %v792 = vunpack.c.l.b16 %v584
        %v793 = vunpack.c.l.b16 %v585
        %v794 = vunpack.c.l.b16 %v586
        %v795 = vunpack.c.l.b16 %v587
        %v796 = vunpack.c.l.b16 %v588
        %v797 = vunpack.c.l.b16 %v589
        %v798 = vunpack.c.l.b16 %v590
        %v799 = vunpack.c.l.b16 %v591
        %v800 = vunpack.c.l.b16 %v592
        %v801 = vunpack.c.l.b16 %v593
        %v802 = vunpack.c.l.b16 %v594
        %v803 = vunpack.c.l.b16 %v595
        %v804 = vunpack.c.l.b16 %v596
        %v805 = vunpack.c.l.b16 %v597
        %v806 = vunpack.c.l.b16 %v598
        %v807 = vunpack.c.l.b16 %v599
        %v808 = vunpack.c.l.b16 %v600
        %v809 = vunpack.c.l.b16 %v601
        %v810 = vunpack.c.l.b16 %v602
        %v811 = vunpack.c.l.b16 %v603
        %v812 = vunpack.c.l.b16 %v604
        %v813 = vunpack.c.l.b16 %v605
        %v814 = vunpack.c.l.b16 %v606
        %v815 = vunpack.c.l.b16 %v607
        %v816 = vunpack.c.l.b16 %v608
        %v817 = vunpack.c.l.b16 %v609
        %v818 = vunpack.c.l.b16 %v610
        %v819 = vunpack.c.l.b16 %v611
        %v820 = vunpack.c.l.b16 %v612
        %v821 = vunpack.c.l.b16 %v613
        %v822 = vunpack.c.l.b16 %v614
        %v823 = vunpack.c.l.b16 %v615
        %v824 = vunpack.c.l.b16 %v616
        %v825 = vunpack.c.l.b16 %v617
        %v826 = vunpack.c.l.b16 %v618
        %v827 = vunpack.c.l.b16 %v619
        %v828 = vunpack.c.l.b16 %v620
        %v829 = vunpack.c.l.b16 %v621
        %v830 = vunpack.c.l.b16 %v622
        %v831 = vunpack.c.l.b16 %v623
        %v832 = vunpack.c.l.b16 %v624
        %v833 = vunpack.c.l.b16 %v625
        %v834 = vunpack.c.l.b16 %v626
        %v835 = vunpack.c.l.b16 %v627
        %v836 = vunpack.c.l.b16 %v628
        %v837 = vunpack.c.l.b16 %v629
        %v838 = vunpack.c.l.b16 %v630
        %v839 = vunpack.c.l.b16 %v631
        %v840 = vunpack.c.l.b16 %v632
        %v841 = vunpack.c.l.b16 %v633
        %v842 = vunpack.c.l.b16 %v634
        %v843 = vunpack.c.l.b16 %v635
        %v844 = vunpack.c.l.b16 %v636
        %v845 = vunpack.c.l.b16 %v637
        %v846 = vunpack.c.l.b16 %v638
        %v847 = vunpack.c.l.b16 %v639
        %v848 = vunpack.c.l.b16 %v640
        %v849 = vpack.c.b16 %v754, %v753
        %v850 = vpack.c.b16 %v756, %v755
        %v851 = vpack.c.b16 %v758, %v757
        %v852 = vpack.c.b16 %v760, %v759
        %v853 = vpack.c.b16 %v762, %v761
        %v854 = vpack.c.b16 %v764, %v763
        %v855 = vpack.c.b16 %v766, %v765
        %v856 = vpack.c.b16 %v768, %v767
        %v857 = vpack.c.b16 %v770, %v769
        %v858 = vpack.c.b16 %v772, %v771
        %v859 = vpack.c.b16 %v774, %v773
        %v860 = vpack.c.b16 %v776, %v775
        %v861 = vpack.c.b16 %v778, %v777
        %v862 = vpack.c.b16 %v780, %v779
        %v863 = vpack.c.b16 %v782, %v781
        %v864 = vpack.c.b16 %v784, %v783
        %v865 = vpack.c.b16 %v786, %v785
        %v866 = vpack.c.b16 %v788, %v787
        %v867 = vpack.c.b16 %v790, %v789
        %v868 = vpack.c.b16 %v792, %v791
        %v869 = vpack.c.b16 %v794, %v793
        %v870 = vpack.c.b16 %v796, %v795
        %v871 = vpack.c.b16 %v798, %v797
        %v872 = vpack.c.b16 %v800, %v799
        %v873 = vpack.c.b16 %v802, %v801
        %v874 = vpack.c.b16 %v804, %v803
        %v875 = vpack.c.b16 %v806, %v805
        %v876 = vpack.c.b16 %v808, %v807
        %v877 = vpack.c.b16 %v810, %v809
        %v878 = vpack.c.b16 %v812, %v811
        %v879 = vpack.c.b16 %v814, %v813
        %v880 = vpack.c.b16 %v816, %v815
        %v881 = vpack.c.b16 %v818, %v817
        %v882 = vpack.c.b16 %v820, %v819
        %v883 = vpack.c.b16 %v822, %v821
        %v884 = vpack.c.b16 %v824, %v823
        %v885 = vpack.c.b16 %v826, %v825
        %v886 = vpack.c.b16 %v828, %v827
        %v887 = vpack.c.b16 %v830, %v829
        %v888 = vpack.c.b16 %v832, %v831
        %v889 = vpack.c.b16 %v834, %v833
        %v890 = vpack.c.b16 %v836, %v835
        %v891 = vpack.c.b16 %v838, %v837
        %v892 = vpack.c.b16 %v840, %v839
        %v893 = vpack.c.b16 %v842, %v841
        %v894 = vpack.c.b16 %v844, %v843
        %v895 = vpack.c.b16 %v846, %v845
        %v896 = vpack.c.b16 %v848, %v847
        %v901 = vunpack.c.l.b16 %v641
        %v902 = vunpack.c.h.b16 %v641
        %v903 = vunpack.c.l.b16 %v642
        %v904 = vunpack.c.h.b16 %v642
        %v905 = vunpack.c.l.b16 %v643
        %v906 = vunpack.c.h.b16 %v643
        %v907 = vunpack.c.l.b16 %v644
        %v908 = vunpack.c.h.b16 %v644
        %v909 = vpack.c.b16 %v903, %v901
        %v910 = vpack.c.b16 %v904, %v902
        %v911 = vpack.c.b16 %v907, %v905
        %v912 = vpack.c.b16 %v908, %v906
        %vm917 = vcmask 261120
        %v919 = vsel %vm917, %v849, 0
        %v922 = vsel %vm917, %v850, 0
        %v925 = vsel %vm917, %v851, 0
        %v928 = vsel %vm917, %v852, 0
        %v931 = vsel %vm917, %v853, 0
        %v934 = vsel %vm917, %v854, 0
        %v937 = vsel %vm917, %v855, 0
        %v940 = vsel %vm917, %v856, 0
        %v943 = vsel %vm917, %v857, 0
        %v946 = vsel %vm917, %v858, 0
        %v949 = vsel %vm917, %v859, 0
        %v952 = vsel %vm917, %v860, 0
        %v955 = vsel %vm917, %v861, 0
        %v958 = vsel %vm917, %v862, 0
        %v961 = vsel %vm917, %v863, 0
        %v964 = vsel %vm917, %v864, 0
        %v967 = vsel %vm917, %v865, 0
        %v970 = vsel %vm917, %v866, 0
        %v973 = vsel %vm917, %v867, 0
        %v976 = vsel %vm917, %v868, 0
        %v979 = vsel %vm917, %v869, 0
        %v982 = vsel %vm917, %v870, 0
        %v985 = vsel %vm917, %v871, 0
        %v988 = vsel %vm917, %v872, 0
        %v991 = vsel %vm917, %v873, 0
        %v994 = vsel %vm917, %v874, 0
        %v997 = vsel %vm917, %v875, 0
        %v1000 = vsel %vm917, %v876, 0
        %v1003 = vsel %vm917, %v877, 0
        %v1006 = vsel %vm917, %v878, 0
        %v1009 = vsel %vm917, %v879, 0
        %v1012 = vsel %vm917, %v880, 0
        %v1015 = vsel %vm917, %v881, 0
        %v1018 = vsel %vm917, %v882, 0
        %v1021 = vsel %vm917, %v883, 0
        %v1024 = vsel %vm917, %v884, 0
        %v1027 = vsel %vm917, %v885, 0
        %v1030 = vsel %vm917, %v886, 0
        %v1033 = vsel %vm917, %v887, 0
        %v1036 = vsel %vm917, %v888, 0
        %v1039 = vsel %vm917, %v889, 0
        %v1042 = vsel %vm917, %v890, 0
        %v1045 = vsel %vm917, %v891, 0
        %v1048 = vsel %vm917, %v892, 0
        %v1051 = vsel %vm917, %v893, 0
        %v1054 = vsel %vm917, %v894, 0
        %v1057 = vsel %vm917, %v895, 0
        %v1060 = vsel %vm917, %v896, 0
        %1062 = vmatprep.subr.bf16.mxu0 %v910
        %1063 = vmatpush1.bf16.msra.mxu0 %v909
        %1064 = vmatprep.subr.bf16.mxu0 %v912
        %1065 = vmatpush1.bf16.msra.mxu0 %v911
        %1066 = vmatprep.subr.bf16.mxu0 0
        %1067 = vmatpush1.bf16.msra.mxu0 0
        %1068 = vmatprep.subr.bf16.mxu0 0
        %1069 = vmatpush1.bf16.msra.mxu0 0
        %1070 = vmatprep.subr.bf16.mxu0 0
        %1071 = vmatpush1.bf16.msra.mxu0 0
        %1072 = vmatprep.subr.bf16.mxu0 0
        %1073 = vmatpush1.bf16.msra.mxu0 0
        %1074 = vmatprep.subr.bf16.mxu0 0
        %1075 = vmatpush1.bf16.msra.mxu0 0
        %1076 = vmatprep.subr.bf16.mxu0 0
        %1077 = vmatpush1.bf16.msra.mxu0 0
        %1078 = vmatprep.subr.bf16.mxu0 0
        %1079 = vmatpush1.bf16.msra.mxu0 0
        %1080 = vmatprep.subr.bf16.mxu0 0
        %1081 = vmatpush1.bf16.msra.mxu0 0
        %1082 = vmatprep.subr.bf16.mxu0 0
        %1083 = vmatpush1.bf16.msra.mxu0 0
        %1084 = vmatprep.subr.bf16.mxu0 0
        %1085 = vmatpush1.bf16.msra.mxu0 0
        %1086 = vmatprep.subr.bf16.mxu0 0
        %1087 = vmatpush1.bf16.msra.mxu0 0
        %1088 = vmatprep.subr.bf16.mxu0 0
        %1089 = vmatpush1.bf16.msra.mxu0 0
        %1090 = vmatprep.subr.bf16.mxu0 0
        %1091 = vmatpush1.bf16.msra.mxu0 0
        %1092 = vmatprep.subr.bf16.mxu0 0
        %1093 = vmatpush1.bf16.msra.mxu0 0
        %1094 = vmatprep.mubr.bf16.mxu0 0
        %1095 = vmatmul.mubr.bf16.gmra.mrb[0].mxu0 %v919
        %v1096 = vpop.f32.mrb[0].mxu0
        %v1097 = vadd.f32 %v650, %v1096
        %v1098 = vpop.f32.mrb[0].mxu0
        %v1099 = vadd.f32 %v654, %v1098
        %v1100 = vpop.f32.mrb[0].mxu0
        %v1101 = vadd.f32 %v650, %v1100
        %v1102 = vpop.f32.mrb[0].mxu0
        %v1103 = vadd.f32 %v654, %v1102
        %1104 = vmatprep.mubr.bf16.mxu0 0
        %1105 = vmatmul.mubr.bf16.gmra.mrb[0].mxu0 %v922
        %v1106 = vpop.f32.mrb[0].mxu0
        %v1107 = vadd.f32 %v650, %v1106
        %v1108 = vpop.f32.mrb[0].mxu0
        %v1109 = vadd.f32 %v654, %v1108
        %v1110 = vpop.f32.mrb[0].mxu0
        %v1111 = vadd.f32 %v650, %v1110
        %v1112 = vpop.f32.mrb[0].mxu0
        %v1113 = vadd.f32 %v654, %v1112
        %1114 = vmatprep.mubr.bf16.mxu0 0
        %1115 = vmatmul.mubr.bf16.gmra.mrb[0].mxu0 %v925
        %v1116 = vpop.f32.mrb[0].mxu0
        %v1117 = vadd.f32 %v650, %v1116
        %v1118 = vpop.f32.mrb[0].mxu0
        %v1119 = vadd.f32 %v654, %v1118
        %v1120 = vpop.f32.mrb[0].mxu0
        %v1121 = vadd.f32 %v650, %v1120
        %v1122 = vpop.f32.mrb[0].mxu0
        %v1123 = vadd.f32 %v654, %v1122
        %1124 = vmatprep.mubr.bf16.mxu0 0
        %1125 = vmatmul.mubr.bf16.gmra.mrb[0].mxu0 %v928
        %v1126 = vpop.f32.mrb[0].mxu0
        %v1127 = vadd.f32 %v650, %v1126
        %v1128 = vpop.f32.mrb[0].mxu0
        %v1129 = vadd.f32 %v654, %v1128
        %v1130 = vpop.f32.mrb[0].mxu0
        %v1131 = vadd.f32 %v650, %v1130
        %v1132 = vpop.f32.mrb[0].mxu0
        %v1133 = vadd.f32 %v654, %v1132
        %1134 = vmatprep.mubr.bf16.mxu0 0
        %1135 = vmatmul.mubr.bf16.gmra.mrb[0].mxu0 %v931
        %v1136 = vpop.f32.mrb[0].mxu0
        %v1137 = vadd.f32 %v650, %v1136
        %v1138 = vpop.f32.mrb[0].mxu0
        %v1139 = vadd.f32 %v654, %v1138
        %v1140 = vpop.f32.mrb[0].mxu0
        %v1141 = vadd.f32 %v650, %v1140
        %v1142 = vpop.f32.mrb[0].mxu0
        %v1143 = vadd.f32 %v654, %v1142
        %1144 = vmatprep.mubr.bf16.mxu0 0
        %1145 = vmatmul.mubr.bf16.gmra.mrb[0].mxu0 %v934
        %v1146 = vpop.f32.mrb[0].mxu0
        %v1147 = vadd.f32 %v650, %v1146
        %v1148 = vpop.f32.mrb[0].mxu0
        %v1149 = vadd.f32 %v654, %v1148
        %v1150 = vpop.f32.mrb[0].mxu0
        %v1151 = vadd.f32 %v650, %v1150
        %v1152 = vpop.f32.mrb[0].mxu0
        %v1153 = vadd.f32 %v654, %v1152
        %1154 = vmatprep.mubr.bf16.mxu0 0
        %1155 = vmatmul.mubr.bf16.gmra.mrb[0].mxu0 %v937
        %v1156 = vpop.f32.mrb[0].mxu0
        %v1157 = vadd.f32 %v650, %v1156
        %v1158 = vpop.f32.mrb[0].mxu0
        %v1159 = vadd.f32 %v654, %v1158
        %v1160 = vpop.f32.mrb[0].mxu0
        %v1161 = vadd.f32 %v650, %v1160
        %v1162 = vpop.f32.mrb[0].mxu0
        %v1163 = vadd.f32 %v654, %v1162
        %1164 = vmatprep.mubr.bf16.mxu0 0
        %1165 = vmatmul.mubr.bf16.gmra.mrb[0].mxu0 %v940
        %v1166 = vpop.f32.mrb[0].mxu0
        %v1167 = vadd.f32 %v650, %v1166
        %v1168 = vpop.f32.mrb[0].mxu0
        %v1169 = vadd.f32 %v654, %v1168
        %v1170 = vpop.f32.mrb[0].mxu0
        %v1171 = vadd.f32 %v650, %v1170
        %v1172 = vpop.f32.mrb[0].mxu0
        %v1173 = vadd.f32 %v654, %v1172
        %1174 = vmatprep.mubr.bf16.mxu0 0
        %1175 = vmatmul.mubr.bf16.gmra.mrb[0].mxu0 %v943
        %v1176 = vpop.f32.mrb[0].mxu0
        %v1177 = vadd.f32 %v650, %v1176
        %v1178 = vpop.f32.mrb[0].mxu0
        %v1179 = vadd.f32 %v654, %v1178
        %v1180 = vpop.f32.mrb[0].mxu0
        %v1181 = vadd.f32 %v650, %v1180
        %v1182 = vpop.f32.mrb[0].mxu0
        %v1183 = vadd.f32 %v654, %v1182
        %1184 = vmatprep.mubr.bf16.mxu0 0
        %1185 = vmatmul.mubr.bf16.gmra.mrb[0].mxu0 %v946
        %v1186 = vpop.f32.mrb[0].mxu0
        %v1187 = vadd.f32 %v650, %v1186
        %v1188 = vpop.f32.mrb[0].mxu0
        %v1189 = vadd.f32 %v654, %v1188
        %v1190 = vpop.f32.mrb[0].mxu0
        %v1191 = vadd.f32 %v650, %v1190
        %v1192 = vpop.f32.mrb[0].mxu0
        %v1193 = vadd.f32 %v654, %v1192
        %1194 = vmatprep.mubr.bf16.mxu0 0
        %1195 = vmatmul.mubr.bf16.gmra.mrb[0].mxu0 %v949
        %v1196 = vpop.f32.mrb[0].mxu0
        %v1197 = vadd.f32 %v650, %v1196
        %v1198 = vpop.f32.mrb[0].mxu0
        %v1199 = vadd.f32 %v654, %v1198
        %v1200 = vpop.f32.mrb[0].mxu0
        %v1201 = vadd.f32 %v650, %v1200
        %v1202 = vpop.f32.mrb[0].mxu0
        %v1203 = vadd.f32 %v654, %v1202
        %1204 = vmatprep.mubr.bf16.mxu0 0
        %1205 = vmatmul.mubr.bf16.gmra.mrb[0].mxu0 %v952
        %v1206 = vpop.f32.mrb[0].mxu0
        %v1207 = vadd.f32 %v650, %v1206
        %v1208 = vpop.f32.mrb[0].mxu0
        %v1209 = vadd.f32 %v654, %v1208
        %v1210 = vpop.f32.mrb[0].mxu0
        %v1211 = vadd.f32 %v650, %v1210
        %v1212 = vpop.f32.mrb[0].mxu0
        %v1213 = vadd.f32 %v654, %v1212
        %1214 = vmatprep.mubr.bf16.mxu0 0
        %1215 = vmatmul.mubr.bf16.gmra.mrb[0].mxu0 %v955
        %v1216 = vpop.f32.mrb[0].mxu0
        %v1217 = vadd.f32 %v650, %v1216
        %v1218 = vpop.f32.mrb[0].mxu0
        %v1219 = vadd.f32 %v654, %v1218
        %v1220 = vpop.f32.mrb[0].mxu0
        %v1221 = vadd.f32 %v650, %v1220
        %v1222 = vpop.f32.mrb[0].mxu0
        %v1223 = vadd.f32 %v654, %v1222
        %1224 = vmatprep.mubr.bf16.mxu0 0
        %1225 = vmatmul.mubr.bf16.gmra.mrb[0].mxu0 %v958
        %v1226 = vpop.f32.mrb[0].mxu0
        %v1227 = vadd.f32 %v650, %v1226
        %v1228 = vpop.f32.mrb[0].mxu0
        %v1229 = vadd.f32 %v654, %v1228
        %v1230 = vpop.f32.mrb[0].mxu0
        %v1231 = vadd.f32 %v650, %v1230
        %v1232 = vpop.f32.mrb[0].mxu0
        %v1233 = vadd.f32 %v654, %v1232
        %1234 = vmatprep.mubr.bf16.mxu0 0
        %1235 = vmatmul.mubr.bf16.gmra.mrb[0].mxu0 %v961
        %v1236 = vpop.f32.mrb[0].mxu0
        %v1237 = vadd.f32 %v650, %v1236
        %v1238 = vpop.f32.mrb[0].mxu0
        %v1239 = vadd.f32 %v654, %v1238
        %v1240 = vpop.f32.mrb[0].mxu0
        %v1241 = vadd.f32 %v650, %v1240
        %v1242 = vpop.f32.mrb[0].mxu0
        %v1243 = vadd.f32 %v654, %v1242
        %1244 = vmatprep.mubr.bf16.mxu0 0
        %1245 = vmatmul.mubr.bf16.gmra.mrb[0].mxu0 %v964
        %v1246 = vpop.f32.mrb[0].mxu0
        %v1247 = vadd.f32 %v650, %v1246
        %v1248 = vpop.f32.mrb[0].mxu0
        %v1249 = vadd.f32 %v654, %v1248
        %v1250 = vpop.f32.mrb[0].mxu0
        %v1251 = vadd.f32 %v650, %v1250
        %v1252 = vpop.f32.mrb[0].mxu0
        %v1253 = vadd.f32 %v654, %v1252
        %1254 = vmatprep.mubr.bf16.mxu0 0
        %1255 = vmatmul.mubr.bf16.gmra.mrb[0].mxu0 %v967
        %v1256 = vpop.f32.mrb[0].mxu0
        %v1257 = vadd.f32 %v650, %v1256
        %v1258 = vpop.f32.mrb[0].mxu0
        %v1259 = vadd.f32 %v654, %v1258
        %v1260 = vpop.f32.mrb[0].mxu0
        %v1261 = vadd.f32 %v650, %v1260
        %v1262 = vpop.f32.mrb[0].mxu0
        %v1263 = vadd.f32 %v654, %v1262
        %1264 = vmatprep.mubr.bf16.mxu0 0
        %1265 = vmatmul.mubr.bf16.gmra.mrb[0].mxu0 %v970
        %v1266 = vpop.f32.mrb[0].mxu0
        %v1267 = vadd.f32 %v650, %v1266
        %v1268 = vpop.f32.mrb[0].mxu0
        %v1269 = vadd.f32 %v654, %v1268
        %v1270 = vpop.f32.mrb[0].mxu0
        %v1271 = vadd.f32 %v650, %v1270
        %v1272 = vpop.f32.mrb[0].mxu0
        %v1273 = vadd.f32 %v654, %v1272
        %1274 = vmatprep.mubr.bf16.mxu0 0
        %1275 = vmatmul.mubr.bf16.gmra.mrb[0].mxu0 %v973
        %v1276 = vpop.f32.mrb[0].mxu0
        %v1277 = vadd.f32 %v650, %v1276
        %v1278 = vpop.f32.mrb[0].mxu0
        %v1279 = vadd.f32 %v654, %v1278
        %v1280 = vpop.f32.mrb[0].mxu0
        %v1281 = vadd.f32 %v650, %v1280
        %v1282 = vpop.f32.mrb[0].mxu0
        %v1283 = vadd.f32 %v654, %v1282
        %1284 = vmatprep.mubr.bf16.mxu0 0
        %1285 = vmatmul.mubr.bf16.gmra.mrb[0].mxu0 %v976
        %v1286 = vpop.f32.mrb[0].mxu0
        %v1287 = vadd.f32 %v650, %v1286
        %v1288 = vpop.f32.mrb[0].mxu0
        %v1289 = vadd.f32 %v654, %v1288
        %v1290 = vpop.f32.mrb[0].mxu0
        %v1291 = vadd.f32 %v650, %v1290
        %v1292 = vpop.f32.mrb[0].mxu0
        %v1293 = vadd.f32 %v654, %v1292
        %1294 = vmatprep.mubr.bf16.mxu0 0
        %1295 = vmatmul.mubr.bf16.gmra.mrb[0].mxu0 %v979
        %v1296 = vpop.f32.mrb[0].mxu0
        %v1297 = vadd.f32 %v650, %v1296
        %v1298 = vpop.f32.mrb[0].mxu0
        %v1299 = vadd.f32 %v654, %v1298
        %v1300 = vpop.f32.mrb[0].mxu0
        %v1301 = vadd.f32 %v650, %v1300
        %v1302 = vpop.f32.mrb[0].mxu0
        %v1303 = vadd.f32 %v654, %v1302
        %1304 = vmatprep.mubr.bf16.mxu0 0
        %1305 = vmatmul.mubr.bf16.gmra.mrb[0].mxu0 %v982
        %v1306 = vpop.f32.mrb[0].mxu0
        %v1307 = vadd.f32 %v650, %v1306
        %v1308 = vpop.f32.mrb[0].mxu0
        %v1309 = vadd.f32 %v654, %v1308
        %v1310 = vpop.f32.mrb[0].mxu0
        %v1311 = vadd.f32 %v650, %v1310
        %v1312 = vpop.f32.mrb[0].mxu0
        %v1313 = vadd.f32 %v654, %v1312
        %1314 = vmatprep.mubr.bf16.mxu0 0
        %1315 = vmatmul.mubr.bf16.gmra.mrb[0].mxu0 %v985
        %v1316 = vpop.f32.mrb[0].mxu0
        %v1317 = vadd.f32 %v650, %v1316
        %v1318 = vpop.f32.mrb[0].mxu0
        %v1319 = vadd.f32 %v654, %v1318
        %v1320 = vpop.f32.mrb[0].mxu0
        %v1321 = vadd.f32 %v650, %v1320
        %v1322 = vpop.f32.mrb[0].mxu0
        %v1323 = vadd.f32 %v654, %v1322
        %1324 = vmatprep.mubr.bf16.mxu0 0
        %1325 = vmatmul.mubr.bf16.gmra.mrb[0].mxu0 %v988
        %v1326 = vpop.f32.mrb[0].mxu0
        %v1327 = vadd.f32 %v650, %v1326
        %v1328 = vpop.f32.mrb[0].mxu0
        %v1329 = vadd.f32 %v654, %v1328
        %v1330 = vpop.f32.mrb[0].mxu0
        %v1331 = vadd.f32 %v650, %v1330
        %v1332 = vpop.f32.mrb[0].mxu0
        %v1333 = vadd.f32 %v654, %v1332
        %1334 = vmatprep.mubr.bf16.mxu0 0
        %1335 = vmatmul.mubr.bf16.gmra.mrb[0].mxu0 %v991
        %v1336 = vpop.f32.mrb[0].mxu0
        %v1337 = vadd.f32 %v650, %v1336
        %v1338 = vpop.f32.mrb[0].mxu0
        %v1339 = vadd.f32 %v654, %v1338
        %v1340 = vpop.f32.mrb[0].mxu0
        %v1341 = vadd.f32 %v650, %v1340
        %v1342 = vpop.f32.mrb[0].mxu0
        %v1343 = vadd.f32 %v654, %v1342
        %1344 = vmatprep.mubr.bf16.mxu0 0
        %1345 = vmatmul.mubr.bf16.gmra.mrb[0].mxu0 %v994
        %v1346 = vpop.f32.mrb[0].mxu0
        %v1347 = vadd.f32 %v650, %v1346
        %v1348 = vpop.f32.mrb[0].mxu0
        %v1349 = vadd.f32 %v654, %v1348
        %v1350 = vpop.f32.mrb[0].mxu0
        %v1351 = vadd.f32 %v650, %v1350
        %v1352 = vpop.f32.mrb[0].mxu0
        %v1353 = vadd.f32 %v654, %v1352
        %1354 = vmatprep.mubr.bf16.mxu0 0
        %1355 = vmatmul.mubr.bf16.gmra.mrb[0].mxu0 %v997
        %v1356 = vpop.f32.mrb[0].mxu0
        %v1357 = vadd.f32 %v650, %v1356
        %v1358 = vpop.f32.mrb[0].mxu0
        %v1359 = vadd.f32 %v654, %v1358
        %v1360 = vpop.f32.mrb[0].mxu0
        %v1361 = vadd.f32 %v650, %v1360
        %v1362 = vpop.f32.mrb[0].mxu0
        %v1363 = vadd.f32 %v654, %v1362
        %1364 = vmatprep.mubr.bf16.mxu0 0
        %1365 = vmatmul.mubr.bf16.gmra.mrb[0].mxu0 %v1000
        %v1366 = vpop.f32.mrb[0].mxu0
        %v1367 = vadd.f32 %v650, %v1366
        %v1368 = vpop.f32.mrb[0].mxu0
        %v1369 = vadd.f32 %v654, %v1368
        %v1370 = vpop.f32.mrb[0].mxu0
        %v1371 = vadd.f32 %v650, %v1370
        %v1372 = vpop.f32.mrb[0].mxu0
        %v1373 = vadd.f32 %v654, %v1372
        %1374 = vmatprep.mubr.bf16.mxu0 0
        %1375 = vmatmul.mubr.bf16.gmra.mrb[0].mxu0 %v1003
        %v1376 = vpop.f32.mrb[0].mxu0
        %v1377 = vadd.f32 %v650, %v1376
        %v1378 = vpop.f32.mrb[0].mxu0
        %v1379 = vadd.f32 %v654, %v1378
        %v1380 = vpop.f32.mrb[0].mxu0
        %v1381 = vadd.f32 %v650, %v1380
        %v1382 = vpop.f32.mrb[0].mxu0
        %v1383 = vadd.f32 %v654, %v1382
        %1384 = vmatprep.mubr.bf16.mxu0 0
        %1385 = vmatmul.mubr.bf16.gmra.mrb[0].mxu0 %v1006
        %v1386 = vpop.f32.mrb[0].mxu0
        %v1387 = vadd.f32 %v650, %v1386
        %v1388 = vpop.f32.mrb[0].mxu0
        %v1389 = vadd.f32 %v654, %v1388
        %v1390 = vpop.f32.mrb[0].mxu0
        %v1391 = vadd.f32 %v650, %v1390
        %v1392 = vpop.f32.mrb[0].mxu0
        %v1393 = vadd.f32 %v654, %v1392
        %1394 = vmatprep.mubr.bf16.mxu0 0
        %1395 = vmatmul.mubr.bf16.gmra.mrb[0].mxu0 %v1009
        %v1396 = vpop.f32.mrb[0].mxu0
        %v1397 = vadd.f32 %v650, %v1396
        %v1398 = vpop.f32.mrb[0].mxu0
        %v1399 = vadd.f32 %v654, %v1398
        %v1400 = vpop.f32.mrb[0].mxu0
        %v1401 = vadd.f32 %v650, %v1400
        %v1402 = vpop.f32.mrb[0].mxu0
        %v1403 = vadd.f32 %v654, %v1402
        %1404 = vmatprep.mubr.bf16.mxu0 0
        %1405 = vmatmul.mubr.bf16.gmra.mrb[0].mxu0 %v1012
        %v1406 = vpop.f32.mrb[0].mxu0
        %v1407 = vadd.f32 %v650, %v1406
        %v1408 = vpop.f32.mrb[0].mxu0
        %v1409 = vadd.f32 %v654, %v1408
        %v1410 = vpop.f32.mrb[0].mxu0
        %v1411 = vadd.f32 %v650, %v1410
        %v1412 = vpop.f32.mrb[0].mxu0
        %v1413 = vadd.f32 %v654, %v1412
        %1414 = vmatprep.mubr.bf16.mxu0 0
        %1415 = vmatmul.mubr.bf16.gmra.mrb[0].mxu0 %v1015
        %v1416 = vpop.f32.mrb[0].mxu0
        %v1417 = vadd.f32 %v650, %v1416
        %v1418 = vpop.f32.mrb[0].mxu0
        %v1419 = vadd.f32 %v654, %v1418
        %v1420 = vpop.f32.mrb[0].mxu0
        %v1421 = vadd.f32 %v650, %v1420
        %v1422 = vpop.f32.mrb[0].mxu0
        %v1423 = vadd.f32 %v654, %v1422
        %1424 = vmatprep.mubr.bf16.mxu0 0
        %1425 = vmatmul.mubr.bf16.gmra.mrb[0].mxu0 %v1018
        %v1426 = vpop.f32.mrb[0].mxu0
        %v1427 = vadd.f32 %v650, %v1426
        %v1428 = vpop.f32.mrb[0].mxu0
        %v1429 = vadd.f32 %v654, %v1428
        %v1430 = vpop.f32.mrb[0].mxu0
        %v1431 = vadd.f32 %v650, %v1430
        %v1432 = vpop.f32.mrb[0].mxu0
        %v1433 = vadd.f32 %v654, %v1432
        %1434 = vmatprep.mubr.bf16.mxu0 0
        %1435 = vmatmul.mubr.bf16.gmra.mrb[0].mxu0 %v1021
        %v1436 = vpop.f32.mrb[0].mxu0
        %v1437 = vadd.f32 %v650, %v1436
        %v1438 = vpop.f32.mrb[0].mxu0
        %v1439 = vadd.f32 %v654, %v1438
        %v1440 = vpop.f32.mrb[0].mxu0
        %v1441 = vadd.f32 %v650, %v1440
        %v1442 = vpop.f32.mrb[0].mxu0
        %v1443 = vadd.f32 %v654, %v1442
        %1444 = vmatprep.mubr.bf16.mxu0 0
        %1445 = vmatmul.mubr.bf16.gmra.mrb[0].mxu0 %v1024
        %v1446 = vpop.f32.mrb[0].mxu0
        %v1447 = vadd.f32 %v650, %v1446
        %v1448 = vpop.f32.mrb[0].mxu0
        %v1449 = vadd.f32 %v654, %v1448
        %v1450 = vpop.f32.mrb[0].mxu0
        %v1451 = vadd.f32 %v650, %v1450
        %v1452 = vpop.f32.mrb[0].mxu0
        %v1453 = vadd.f32 %v654, %v1452
        %1454 = vmatprep.mubr.bf16.mxu0 0
        %1455 = vmatmul.mubr.bf16.gmra.mrb[0].mxu0 %v1027
        %v1456 = vpop.f32.mrb[0].mxu0
        %v1457 = vadd.f32 %v650, %v1456
        %v1458 = vpop.f32.mrb[0].mxu0
        %v1459 = vadd.f32 %v654, %v1458
        %v1460 = vpop.f32.mrb[0].mxu0
        %v1461 = vadd.f32 %v650, %v1460
        %v1462 = vpop.f32.mrb[0].mxu0
        %v1463 = vadd.f32 %v654, %v1462
        %1464 = vmatprep.mubr.bf16.mxu0 0
        %1465 = vmatmul.mubr.bf16.gmra.mrb[0].mxu0 %v1030
        %v1466 = vpop.f32.mrb[0].mxu0
        %v1467 = vadd.f32 %v650, %v1466
        %v1468 = vpop.f32.mrb[0].mxu0
        %v1469 = vadd.f32 %v654, %v1468
        %v1470 = vpop.f32.mrb[0].mxu0
        %v1471 = vadd.f32 %v650, %v1470
        %v1472 = vpop.f32.mrb[0].mxu0
        %v1473 = vadd.f32 %v654, %v1472
        %1474 = vmatprep.mubr.bf16.mxu0 0
        %1475 = vmatmul.mubr.bf16.gmra.mrb[0].mxu0 %v1033
        %v1476 = vpop.f32.mrb[0].mxu0
        %v1477 = vadd.f32 %v650, %v1476
        %v1478 = vpop.f32.mrb[0].mxu0
        %v1479 = vadd.f32 %v654, %v1478
        %v1480 = vpop.f32.mrb[0].mxu0
        %v1481 = vadd.f32 %v650, %v1480
        %v1482 = vpop.f32.mrb[0].mxu0
        %v1483 = vadd.f32 %v654, %v1482
        %1484 = vmatprep.mubr.bf16.mxu0 0
        %1485 = vmatmul.mubr.bf16.gmra.mrb[0].mxu0 %v1036
        %v1486 = vpop.f32.mrb[0].mxu0
        %v1487 = vadd.f32 %v650, %v1486
        %v1488 = vpop.f32.mrb[0].mxu0
        %v1489 = vadd.f32 %v654, %v1488
        %v1490 = vpop.f32.mrb[0].mxu0
        %v1491 = vadd.f32 %v650, %v1490
        %v1492 = vpop.f32.mrb[0].mxu0
        %v1493 = vadd.f32 %v654, %v1492
        %1494 = vmatprep.mubr.bf16.mxu0 0
        %1495 = vmatmul.mubr.bf16.gmra.mrb[0].mxu0 %v1039
        %v1496 = vpop.f32.mrb[0].mxu0
        %v1497 = vadd.f32 %v650, %v1496
        %v1498 = vpop.f32.mrb[0].mxu0
        %v1499 = vadd.f32 %v654, %v1498
        %v1500 = vpop.f32.mrb[0].mxu0
        %v1501 = vadd.f32 %v650, %v1500
        %v1502 = vpop.f32.mrb[0].mxu0
        %v1503 = vadd.f32 %v654, %v1502
        %1504 = vmatprep.mubr.bf16.mxu0 0
        %1505 = vmatmul.mubr.bf16.gmra.mrb[0].mxu0 %v1042
        %v1506 = vpop.f32.mrb[0].mxu0
        %v1507 = vadd.f32 %v650, %v1506
        %v1508 = vpop.f32.mrb[0].mxu0
        %v1509 = vadd.f32 %v654, %v1508
        %v1510 = vpop.f32.mrb[0].mxu0
        %v1511 = vadd.f32 %v650, %v1510
        %v1512 = vpop.f32.mrb[0].mxu0
        %v1513 = vadd.f32 %v654, %v1512
        %1514 = vmatprep.mubr.bf16.mxu0 0
        %1515 = vmatmul.mubr.bf16.gmra.mrb[0].mxu0 %v1045
        %v1516 = vpop.f32.mrb[0].mxu0
        %v1517 = vadd.f32 %v650, %v1516
        %v1518 = vpop.f32.mrb[0].mxu0
        %v1519 = vadd.f32 %v654, %v1518
        %v1520 = vpop.f32.mrb[0].mxu0
        %v1521 = vadd.f32 %v650, %v1520
        %v1522 = vpop.f32.mrb[0].mxu0
        %v1523 = vadd.f32 %v654, %v1522
        %1524 = vmatprep.mubr.bf16.mxu0 0
        %1525 = vmatmul.mubr.bf16.gmra.mrb[0].mxu0 %v1048
        %v1526 = vpop.f32.mrb[0].mxu0
        %v1527 = vadd.f32 %v650, %v1526
        %v1528 = vpop.f32.mrb[0].mxu0
        %v1529 = vadd.f32 %v654, %v1528
        %v1530 = vpop.f32.mrb[0].mxu0
        %v1531 = vadd.f32 %v650, %v1530
        %v1532 = vpop.f32.mrb[0].mxu0
        %v1533 = vadd.f32 %v654, %v1532
        %1534 = vmatprep.mubr.bf16.mxu0 0
        %1535 = vmatmul.mubr.bf16.gmra.mrb[0].mxu0 %v1051
        %v1536 = vpop.f32.mrb[0].mxu0
        %v1537 = vadd.f32 %v650, %v1536
        %v1538 = vpop.f32.mrb[0].mxu0
        %v1539 = vadd.f32 %v654, %v1538
        %v1540 = vpop.f32.mrb[0].mxu0
        %v1541 = vadd.f32 %v650, %v1540
        %v1542 = vpop.f32.mrb[0].mxu0
        %v1543 = vadd.f32 %v654, %v1542
        %1544 = vmatprep.mubr.bf16.mxu0 0
        %1545 = vmatmul.mubr.bf16.gmra.mrb[0].mxu0 %v1054
        %v1546 = vpop.f32.mrb[0].mxu0
        %v1547 = vadd.f32 %v650, %v1546
        %v1548 = vpop.f32.mrb[0].mxu0
        %v1549 = vadd.f32 %v654, %v1548
        %v1550 = vpop.f32.mrb[0].mxu0
        %v1551 = vadd.f32 %v650, %v1550
        %v1552 = vpop.f32.mrb[0].mxu0
        %v1553 = vadd.f32 %v654, %v1552
        %1554 = vmatprep.mubr.bf16.mxu0 0
        %1555 = vmatmul.mubr.bf16.gmra.mrb[0].mxu0 %v1057
        %v1556 = vpop.f32.mrb[0].mxu0
        %v1557 = vadd.f32 %v650, %v1556
        %v1558 = vpop.f32.mrb[0].mxu0
        %v1559 = vadd.f32 %v654, %v1558
        %v1560 = vpop.f32.mrb[0].mxu0
        %v1561 = vadd.f32 %v650, %v1560
        %v1562 = vpop.f32.mrb[0].mxu0
        %v1563 = vadd.f32 %v654, %v1562
        %1564 = vmatprep.mubr.bf16.mxu0 0
        %1565 = vmatmul.mubr.bf16.gmra.mrb[0].mxu0 %v1060
        %v1566 = vpop.f32.mrb[0].mxu0
        %v1567 = vadd.f32 %v650, %v1566
        %v1568 = vpop.f32.mrb[0].mxu0
        %v1569 = vadd.f32 %v654, %v1568
        %v1570 = vpop.f32.mrb[0].mxu0
        %v1571 = vadd.f32 %v650, %v1570
        %v1572 = vpop.f32.mrb[0].mxu0
        %v1573 = vadd.f32 %v654, %v1572
        %1574 = vdwg.mxu0
        %v1575 = vpack.c.bf16 %v1101, %v1097
        %v1576 = vpack.c.bf16 %v1103, %v1099
        %v1577 = vpack.c.bf16 %v1111, %v1107
        %v1578 = vpack.c.bf16 %v1113, %v1109
        %v1579 = vpack.c.bf16 %v1121, %v1117
        %v1580 = vpack.c.bf16 %v1123, %v1119
        %v1581 = vpack.c.bf16 %v1131, %v1127
        %v1582 = vpack.c.bf16 %v1133, %v1129
        %v1583 = vpack.c.bf16 %v1141, %v1137
        %v1584 = vpack.c.bf16 %v1143, %v1139
        %v1585 = vpack.c.bf16 %v1151, %v1147
        %v1586 = vpack.c.bf16 %v1153, %v1149
        %v1587 = vpack.c.bf16 %v1161, %v1157
        %v1588 = vpack.c.bf16 %v1163, %v1159
        %v1589 = vpack.c.bf16 %v1171, %v1167
        %v1590 = vpack.c.bf16 %v1173, %v1169
        %v1591 = vpack.c.bf16 %v1181, %v1177
        %v1592 = vpack.c.bf16 %v1183, %v1179
        %v1593 = vpack.c.bf16 %v1191, %v1187
        %v1594 = vpack.c.bf16 %v1193, %v1189
        %v1595 = vpack.c.bf16 %v1201, %v1197
        %v1596 = vpack.c.bf16 %v1203, %v1199
        %v1597 = vpack.c.bf16 %v1211, %v1207
        %v1598 = vpack.c.bf16 %v1213, %v1209
        %v1599 = vpack.c.bf16 %v1221, %v1217
        %v1600 = vpack.c.bf16 %v1223, %v1219
        %v1601 = vpack.c.bf16 %v1231, %v1227
        %v1602 = vpack.c.bf16 %v1233, %v1229
        %v1603 = vpack.c.bf16 %v1241, %v1237
        %v1604 = vpack.c.bf16 %v1243, %v1239
        %v1605 = vpack.c.bf16 %v1251, %v1247
        %v1606 = vpack.c.bf16 %v1253, %v1249
        %v1607 = vpack.c.bf16 %v1261, %v1257
        %v1608 = vpack.c.bf16 %v1263, %v1259
        %v1609 = vpack.c.bf16 %v1271, %v1267
        %v1610 = vpack.c.bf16 %v1273, %v1269
        %v1611 = vpack.c.bf16 %v1281, %v1277
        %v1612 = vpack.c.bf16 %v1283, %v1279
        %v1613 = vpack.c.bf16 %v1291, %v1287
        %v1614 = vpack.c.bf16 %v1293, %v1289
        %v1615 = vpack.c.bf16 %v1301, %v1297
        %v1616 = vpack.c.bf16 %v1303, %v1299
        %v1617 = vpack.c.bf16 %v1311, %v1307
        %v1618 = vpack.c.bf16 %v1313, %v1309
        %v1619 = vpack.c.bf16 %v1321, %v1317
        %v1620 = vpack.c.bf16 %v1323, %v1319
        %v1621 = vpack.c.bf16 %v1331, %v1327
        %v1622 = vpack.c.bf16 %v1333, %v1329
        %v1623 = vpack.c.bf16 %v1341, %v1337
        %v1624 = vpack.c.bf16 %v1343, %v1339
        %v1625 = vpack.c.bf16 %v1351, %v1347
        %v1626 = vpack.c.bf16 %v1353, %v1349
        %v1627 = vpack.c.bf16 %v1361, %v1357
        %v1628 = vpack.c.bf16 %v1363, %v1359
        %v1629 = vpack.c.bf16 %v1371, %v1367
        %v1630 = vpack.c.bf16 %v1373, %v1369
        %v1631 = vpack.c.bf16 %v1381, %v1377
        %v1632 = vpack.c.bf16 %v1383, %v1379
        %v1633 = vpack.c.bf16 %v1391, %v1387
        %v1634 = vpack.c.bf16 %v1393, %v1389
        %v1635 = vpack.c.bf16 %v1401, %v1397
        %v1636 = vpack.c.bf16 %v1403, %v1399
        %v1637 = vpack.c.bf16 %v1411, %v1407
        %v1638 = vpack.c.bf16 %v1413, %v1409
        %v1639 = vpack.c.bf16 %v1421, %v1417
        %v1640 = vpack.c.bf16 %v1423, %v1419
        %v1641 = vpack.c.bf16 %v1431, %v1427
        %v1642 = vpack.c.bf16 %v1433, %v1429
        %v1643 = vpack.c.bf16 %v1441, %v1437
        %v1644 = vpack.c.bf16 %v1443, %v1439
        %v1645 = vpack.c.bf16 %v1451, %v1447
        %v1646 = vpack.c.bf16 %v1453, %v1449
        %v1647 = vpack.c.bf16 %v1461, %v1457
        %v1648 = vpack.c.bf16 %v1463, %v1459
        %v1649 = vpack.c.bf16 %v1471, %v1467
        %v1650 = vpack.c.bf16 %v1473, %v1469
        %v1651 = vpack.c.bf16 %v1481, %v1477
        %v1652 = vpack.c.bf16 %v1483, %v1479
        %v1653 = vpack.c.bf16 %v1491, %v1487
        %v1654 = vpack.c.bf16 %v1493, %v1489
        %v1655 = vpack.c.bf16 %v1501, %v1497
        %v1656 = vpack.c.bf16 %v1503, %v1499
        %v1657 = vpack.c.bf16 %v1511, %v1507
        %v1658 = vpack.c.bf16 %v1513, %v1509
        %v1659 = vpack.c.bf16 %v1521, %v1517
        %v1660 = vpack.c.bf16 %v1523, %v1519
        %v1661 = vpack.c.bf16 %v1531, %v1527
        %v1662 = vpack.c.bf16 %v1533, %v1529
        %v1663 = vpack.c.bf16 %v1541, %v1537
        %v1664 = vpack.c.bf16 %v1543, %v1539
        %v1665 = vpack.c.bf16 %v1551, %v1547
        %v1666 = vpack.c.bf16 %v1553, %v1549
        %v1667 = vpack.c.bf16 %v1561, %v1557
        %v1668 = vpack.c.bf16 %v1563, %v1559
        %v1669 = vpack.c.bf16 %v1571, %v1567
        %v1670 = vpack.c.bf16 %v1573, %v1569
        %v1671 = vld [vmem:[#allocation9] sm:$0xff]
        %v1672 = vld [vmem:[#allocation9 + $0x8] sm:$0xff]
        %v1673 = vld [vmem:[#allocation9 + $0x10] sm:$0xff]
        %v1674 = vld [vmem:[#allocation9 + $0x18] sm:$0xff]
        %v1675 = vld [vmem:[#allocation9 + $0x20] sm:$0xff]
        %v1676 = vld [vmem:[#allocation9 + $0x28] sm:$0xff]
        %v1677 = vld [vmem:[#allocation9 + $0x30] sm:$0xff]
        %v1678 = vld [vmem:[#allocation9 + $0x38] sm:$0xff]
        %v1679 = vld [vmem:[#allocation9 + $0x40] sm:$0xff]
        %v1680 = vld [vmem:[#allocation9 + $0x48] sm:$0xff]
        %v1681 = vld [vmem:[#allocation9 + $0x50] sm:$0xff]
        %v1682 = vld [vmem:[#allocation9 + $0x58] sm:$0xff]
        %v1683 = vld [vmem:[#allocation9 + $0x60] sm:$0xff]
        %v1684 = vld [vmem:[#allocation9 + $0x68] sm:$0xff]
        %v1685 = vld [vmem:[#allocation9 + $0x70] sm:$0xff]
        %v1686 = vld [vmem:[#allocation9 + $0x78] sm:$0xff]
        %v1687 = vld [vmem:[#allocation9 + $0x80] sm:$0xff]
        %v1688 = vld [vmem:[#allocation9 + $0x88] sm:$0xff]
        %v1689 = vld [vmem:[#allocation9 + $0x90] sm:$0xff]
        %v1690 = vld [vmem:[#allocation9 + $0x98] sm:$0xff]
        %v1691 = vld [vmem:[#allocation9 + $0xa0] sm:$0xff]
        %v1692 = vld [vmem:[#allocation9 + $0xa8] sm:$0xff]
        %v1693 = vld [vmem:[#allocation9 + $0xb0] sm:$0xff]
        %v1694 = vld [vmem:[#allocation9 + $0xb8] sm:$0xff]
        %v1695 = vld [vmem:[#allocation9 + $0xc0] sm:$0xff]
        %v1696 = vld [vmem:[#allocation9 + $0xc8] sm:$0xff]
        %v1697 = vld [vmem:[#allocation9 + $0xd0] sm:$0xff]
        %v1698 = vld [vmem:[#allocation9 + $0xd8] sm:$0xff]
        %v1699 = vld [vmem:[#allocation9 + $0xe0] sm:$0xff]
        %v1700 = vld [vmem:[#allocation9 + $0xe8] sm:$0xff]
        %v1701 = vld [vmem:[#allocation9 + $0xf0] sm:$0xff]
        %v1702 = vld [vmem:[#allocation9 + $0xf8] sm:$0xff]
        %v1703 = vld [vmem:[#allocation11] sm:$0xff]
        %v1704 = vld [vmem:[#allocation11 + $0x8] sm:$0xff]
        %v1705 = vld [vmem:[#allocation11 + $0x10] sm:$0xff]
        %v1706 = vld [vmem:[#allocation11 + $0x18] sm:$0xff]
        %v1707 = vld [vmem:[#allocation11 + $0x20] sm:$0xff]
        %v1708 = vld [vmem:[#allocation11 + $0x28] sm:$0xff]
        %v1709 = vld [vmem:[#allocation11 + $0x30] sm:$0xff]
        %v1710 = vld [vmem:[#allocation11 + $0x38] sm:$0xff]
        %v1711 = vld [vmem:[#allocation11 + $0x40] sm:$0xff]
        %v1712 = vld [vmem:[#allocation11 + $0x48] sm:$0xff]
        %v1713 = vld [vmem:[#allocation11 + $0x50] sm:$0xff]
        %v1714 = vld [vmem:[#allocation11 + $0x58] sm:$0xff]
        %v1715 = vld [vmem:[#allocation11 + $0x60] sm:$0xff]
        %v1716 = vld [vmem:[#allocation11 + $0x68] sm:$0xff]
        %v1717 = vld [vmem:[#allocation11 + $0x70] sm:$0xff]
        %v1718 = vld [vmem:[#allocation11 + $0x78] sm:$0xff]
        %v1719 = vld [vmem:[#allocation11 + $0x80] sm:$0xff]
        %v1720 = vld [vmem:[#allocation11 + $0x88] sm:$0xff]
        %v1721 = vld [vmem:[#allocation11 + $0x90] sm:$0xff]
        %v1722 = vld [vmem:[#allocation11 + $0x98] sm:$0xff]
        %v1723 = vld [vmem:[#allocation11 + $0xa0] sm:$0xff]
        %v1724 = vld [vmem:[#allocation11 + $0xa8] sm:$0xff]
        %v1725 = vld [vmem:[#allocation11 + $0xb0] sm:$0xff]
        %v1726 = vld [vmem:[#allocation11 + $0xb8] sm:$0xff]
        %v1727 = vld [vmem:[#allocation11 + $0xc0] sm:$0xff]
        %v1728 = vld [vmem:[#allocation11 + $0xc8] sm:$0xff]
        %v1729 = vld [vmem:[#allocation11 + $0xd0] sm:$0xff]
        %v1730 = vld [vmem:[#allocation11 + $0xd8] sm:$0xff]
        %v1731 = vld [vmem:[#allocation11 + $0xe0] sm:$0xff]
        %v1732 = vld [vmem:[#allocation11 + $0xe8] sm:$0xff]
        %v1733 = vld [vmem:[#allocation11 + $0xf0] sm:$0xff]
        %v1734 = vld [vmem:[#allocation11 + $0xf8] sm:$0xff]
        %v1735 = vld [vmem:[#allocation12] sm:$0x3]
        %v1768 = vunpack.c.l.b16 %v1703
        %v1769 = vunpack.c.h.b16 %v1703
        %v1770 = vunpack.c.l.b16 %v1704
        %v1771 = vunpack.c.h.b16 %v1704
        %v1772 = vunpack.c.l.b16 %v1705
        %v1773 = vunpack.c.h.b16 %v1705
        %v1774 = vunpack.c.l.b16 %v1706
        %v1775 = vunpack.c.h.b16 %v1706
        %v1776 = vunpack.c.l.b16 %v1707
        %v1777 = vunpack.c.h.b16 %v1707
        %v1778 = vunpack.c.l.b16 %v1708
        %v1779 = vunpack.c.h.b16 %v1708
        %v1780 = vunpack.c.l.b16 %v1709
        %v1781 = vunpack.c.h.b16 %v1709
        %v1782 = vunpack.c.l.b16 %v1710
        %v1783 = vunpack.c.h.b16 %v1710
        %v1784 = vunpack.c.l.b16 %v1711
        %v1785 = vunpack.c.h.b16 %v1711
        %v1786 = vunpack.c.l.b16 %v1712
        %v1787 = vunpack.c.h.b16 %v1712
        %v1788 = vunpack.c.l.b16 %v1713
        %v1789 = vunpack.c.h.b16 %v1713
        %v1790 = vunpack.c.l.b16 %v1714
        %v1791 = vunpack.c.h.b16 %v1714
        %v1792 = vunpack.c.l.b16 %v1715
        %v1793 = vunpack.c.h.b16 %v1715
        %v1794 = vunpack.c.l.b16 %v1716
        %v1795 = vunpack.c.h.b16 %v1716
        %v1796 = vunpack.c.l.b16 %v1717
        %v1797 = vunpack.c.h.b16 %v1717
        %v1798 = vunpack.c.l.b16 %v1718
        %v1799 = vunpack.c.h.b16 %v1718
        %v1800 = vunpack.c.l.b16 %v1719
        %v1801 = vunpack.c.h.b16 %v1719
        %v1802 = vunpack.c.l.b16 %v1720
        %v1803 = vunpack.c.h.b16 %v1720
        %v1804 = vunpack.c.l.b16 %v1721
        %v1805 = vunpack.c.h.b16 %v1721
        %v1806 = vunpack.c.l.b16 %v1722
        %v1807 = vunpack.c.h.b16 %v1722
        %v1808 = vunpack.c.l.b16 %v1723
        %v1809 = vunpack.c.h.b16 %v1723
        %v1810 = vunpack.c.l.b16 %v1724
        %v1811 = vunpack.c.h.b16 %v1724
        %v1812 = vunpack.c.l.b16 %v1725
        %v1813 = vunpack.c.h.b16 %v1725
        %v1814 = vunpack.c.l.b16 %v1726
        %v1815 = vunpack.c.h.b16 %v1726
        %v1816 = vunpack.c.l.b16 %v1727
        %v1817 = vunpack.c.h.b16 %v1727
        %v1818 = vunpack.c.l.b16 %v1728
        %v1819 = vunpack.c.h.b16 %v1728
        %v1820 = vunpack.c.l.b16 %v1729
        %v1821 = vunpack.c.h.b16 %v1729
        %v1822 = vunpack.c.l.b16 %v1730
        %v1823 = vunpack.c.h.b16 %v1730
        %v1824 = vunpack.c.l.b16 %v1731
        %v1825 = vunpack.c.h.b16 %v1731
        %v1826 = vunpack.c.l.b16 %v1732
        %v1827 = vunpack.c.h.b16 %v1732
        %v1828 = vunpack.c.l.b16 %v1733
        %v1829 = vunpack.c.h.b16 %v1733
        %v1830 = vunpack.c.l.b16 %v1734
        %v1831 = vunpack.c.h.b16 %v1734
        %v1832 = vpack.c.b16 %v1770, %v1768
        %v1833 = vpack.c.b16 %v1771, %v1769
        %v1834 = vpack.c.b16 %v1774, %v1772
        %v1835 = vpack.c.b16 %v1775, %v1773
        %v1836 = vpack.c.b16 %v1778, %v1776
        %v1837 = vpack.c.b16 %v1779, %v1777
        %v1838 = vpack.c.b16 %v1782, %v1780
        %v1839 = vpack.c.b16 %v1783, %v1781
        %v1840 = vpack.c.b16 %v1786, %v1784
        %v1841 = vpack.c.b16 %v1787, %v1785
        %v1842 = vpack.c.b16 %v1790, %v1788
        %v1843 = vpack.c.b16 %v1791, %v1789
        %v1844 = vpack.c.b16 %v1794, %v1792
        %v1845 = vpack.c.b16 %v1795, %v1793
        %v1846 = vpack.c.b16 %v1798, %v1796
        %v1847 = vpack.c.b16 %v1799, %v1797
        %v1848 = vpack.c.b16 %v1802, %v1800
        %v1849 = vpack.c.b16 %v1803, %v1801
        %v1850 = vpack.c.b16 %v1806, %v1804
        %v1851 = vpack.c.b16 %v1807, %v1805
        %v1852 = vpack.c.b16 %v1810, %v1808
        %v1853 = vpack.c.b16 %v1811, %v1809
        %v1854 = vpack.c.b16 %v1814, %v1812
        %v1855 = vpack.c.b16 %v1815, %v1813
        %v1856 = vpack.c.b16 %v1818, %v1816
        %v1857 = vpack.c.b16 %v1819, %v1817
        %v1858 = vpack.c.b16 %v1822, %v1820
        %v1859 = vpack.c.b16 %v1823, %v1821
        %v1860 = vpack.c.b16 %v1826, %v1824
        %v1861 = vpack.c.b16 %v1827, %v1825
        %v1862 = vpack.c.b16 %v1830, %v1828
        %v1863 = vpack.c.b16 %v1831, %v1829
        %1896 = vmatprep.subr.bf16.mxu0 %v1833
        %1897 = vmatpush1.bf16.msra.mxu0 %v1832
        %1898 = vmatprep.subr.bf16.mxu0 %v1835
        %1899 = vmatpush1.bf16.msra.mxu0 %v1834
        %1900 = vmatprep.subr.bf16.mxu0 %v1837
        %1901 = vmatpush1.bf16.msra.mxu0 %v1836
        %1902 = vmatprep.subr.bf16.mxu0 %v1839
        %1903 = vmatpush1.bf16.msra.mxu0 %v1838
        %1904 = vmatprep.subr.bf16.mxu0 %v1841
        %1905 = vmatpush1.bf16.msra.mxu0 %v1840
        %1906 = vmatprep.subr.bf16.mxu0 %v1843
        %1907 = vmatpush1.bf16.msra.mxu0 %v1842
        %1908 = vmatprep.subr.bf16.mxu0 %v1845
        %1909 = vmatpush1.bf16.msra.mxu0 %v1844
        %1910 = vmatprep.subr.bf16.mxu0 %v1847
        %1911 = vmatpush1.bf16.msra.mxu0 %v1846
        %1912 = vmatprep.subr.bf16.mxu0 %v1849
        %1913 = vmatpush1.bf16.msra.mxu0 %v1848
        %1914 = vmatprep.subr.bf16.mxu0 %v1851
        %1915 = vmatpush1.bf16.msra.mxu0 %v1850
        %1916 = vmatprep.subr.bf16.mxu0 %v1853
        %1917 = vmatpush1.bf16.msra.mxu0 %v1852
        %1918 = vmatprep.subr.bf16.mxu0 %v1855
        %1919 = vmatpush1.bf16.msra.mxu0 %v1854
        %1920 = vmatprep.subr.bf16.mxu0 %v1857
        %1921 = vmatpush1.bf16.msra.mxu0 %v1856
        %1922 = vmatprep.subr.bf16.mxu0 %v1859
        %1923 = vmatpush1.bf16.msra.mxu0 %v1858
        %1924 = vmatprep.subr.bf16.mxu0 %v1861
        %1925 = vmatpush1.bf16.msra.mxu0 %v1860
        %1926 = vmatprep.subr.bf16.mxu0 %v1863
        %1927 = vmatpush1.bf16.msra.mxu0 %v1862
        %1928 = vmatprep.mubr.bf16.mxu0 %v1580
        %1929 = vmatmul.mubr.bf16.gmra.mrb[0].mxu0 %v1579
        %v1930 = vpop.f32.mrb[0].mxu0
        %v1931 = vadd.f32 0.0, %v1930
        %v1932 = vpop.f32.mrb[0].mxu0
        %v1933 = vadd.f32 0.0, %v1932
        %v1934 = vpop.f32.mrb[0].mxu0
        %v1935 = vadd.f32 0.0, %v1934
        %v1936 = vpop.f32.mrb[0].mxu0
        %v1937 = vadd.f32 0.0, %v1936
        %1938 = vmatprep.mubr.bf16.mxu0 %v1582
        %1939 = vmatmul.mubr.bf16.gmra.mrb[0].mxu0 %v1581
        %v1940 = vpop.f32.mrb[0].mxu0
        %v1941 = vadd.f32 0.0, %v1940
        %v1942 = vpop.f32.mrb[0].mxu0
        %v1943 = vadd.f32 0.0, %v1942
        %v1944 = vpop.f32.mrb[0].mxu0
        %v1945 = vadd.f32 0.0, %v1944
        %v1946 = vpop.f32.mrb[0].mxu0
        %v1947 = vadd.f32 0.0, %v1946
        %1948 = vmatprep.mubr.bf16.mxu0 %v1584
        %1949 = vmatmul.mubr.bf16.gmra.mrb[0].mxu0 %v1583
        %v1950 = vpop.f32.mrb[0].mxu0
        %v1951 = vadd.f32 0.0, %v1950
        %v1952 = vpop.f32.mrb[0].mxu0
        %v1953 = vadd.f32 0.0, %v1952
        %v1954 = vpop.f32.mrb[0].mxu0
        %v1955 = vadd.f32 0.0, %v1954
        %v1956 = vpop.f32.mrb[0].mxu0
        %v1957 = vadd.f32 0.0, %v1956
        %1958 = vmatprep.mubr.bf16.mxu0 %v1586
        %1959 = vmatmul.mubr.bf16.gmra.mrb[0].mxu0 %v1585
        %v1960 = vpop.f32.mrb[0].mxu0
        %v1961 = vadd.f32 0.0, %v1960
        %v1962 = vpop.f32.mrb[0].mxu0
        %v1963 = vadd.f32 0.0, %v1962
        %v1964 = vpop.f32.mrb[0].mxu0
        %v1965 = vadd.f32 0.0, %v1964
        %v1966 = vpop.f32.mrb[0].mxu0
        %v1967 = vadd.f32 0.0, %v1966
        %1968 = vmatprep.mubr.bf16.mxu0 %v1588
        %1969 = vmatmul.mubr.bf16.gmra.mrb[0].mxu0 %v1587
        %v1970 = vpop.f32.mrb[0].mxu0
        %v1971 = vadd.f32 0.0, %v1970
        %v1972 = vpop.f32.mrb[0].mxu0
        %v1973 = vadd.f32 0.0, %v1972
        %v1974 = vpop.f32.mrb[0].mxu0
        %v1975 = vadd.f32 0.0, %v1974
        %v1976 = vpop.f32.mrb[0].mxu0
        %v1977 = vadd.f32 0.0, %v1976
        %1978 = vmatprep.mubr.bf16.mxu0 %v1590
        %1979 = vmatmul.mubr.bf16.gmra.mrb[0].mxu0 %v1589
        %v1980 = vpop.f32.mrb[0].mxu0
        %v1981 = vadd.f32 0.0, %v1980
        %v1982 = vpop.f32.mrb[0].mxu0
        %v1983 = vadd.f32 0.0, %v1982
        %v1984 = vpop.f32.mrb[0].mxu0
        %v1985 = vadd.f32 0.0, %v1984
        %v1986 = vpop.f32.mrb[0].mxu0
        %v1987 = vadd.f32 0.0, %v1986
        %1988 = vmatprep.mubr.bf16.mxu0 %v1592
        %1989 = vmatmul.mubr.bf16.gmra.mrb[0].mxu0 %v1591
        %v1990 = vpop.f32.mrb[0].mxu0
        %v1991 = vadd.f32 0.0, %v1990
        %v1992 = vpop.f32.mrb[0].mxu0
        %v1993 = vadd.f32 0.0, %v1992
        %v1994 = vpop.f32.mrb[0].mxu0
        %v1995 = vadd.f32 0.0, %v1994
        %v1996 = vpop.f32.mrb[0].mxu0
        %v1997 = vadd.f32 0.0, %v1996
        %1998 = vmatprep.mubr.bf16.mxu0 %v1594
        %1999 = vmatmul.mubr.bf16.gmra.mrb[0].mxu0 %v1593
        %v2000 = vpop.f32.mrb[0].mxu0
        %v2001 = vadd.f32 0.0, %v2000
        %v2002 = vpop.f32.mrb[0].mxu0
        %v2003 = vadd.f32 0.0, %v2002
        %v2004 = vpop.f32.mrb[0].mxu0
        %v2005 = vadd.f32 0.0, %v2004
        %v2006 = vpop.f32.mrb[0].mxu0
        %v2007 = vadd.f32 0.0, %v2006
        %2008 = vmatprep.mubr.bf16.mxu0 %v1596
        %2009 = vmatmul.mubr.bf16.gmra.mrb[0].mxu0 %v1595
        %v2010 = vpop.f32.mrb[0].mxu0
        %v2011 = vadd.f32 0.0, %v2010
        %v2012 = vpop.f32.mrb[0].mxu0
        %v2013 = vadd.f32 0.0, %v2012
        %v2014 = vpop.f32.mrb[0].mxu0
        %v2015 = vadd.f32 0.0, %v2014
        %v2016 = vpop.f32.mrb[0].mxu0
        %v2017 = vadd.f32 0.0, %v2016
        %2018 = vmatprep.mubr.bf16.mxu0 %v1598
        %2019 = vmatmul.mubr.bf16.gmra.mrb[0].mxu0 %v1597
        %v2020 = vpop.f32.mrb[0].mxu0
        %v2021 = vadd.f32 0.0, %v2020
        %v2022 = vpop.f32.mrb[0].mxu0
        %v2023 = vadd.f32 0.0, %v2022
        %v2024 = vpop.f32.mrb[0].mxu0
        %v2025 = vadd.f32 0.0, %v2024
        %v2026 = vpop.f32.mrb[0].mxu0
        %v2027 = vadd.f32 0.0, %v2026
        %2028 = vmatprep.mubr.bf16.mxu0 %v1600
        %2029 = vmatmul.mubr.bf16.gmra.mrb[0].mxu0 %v1599
        %v2030 = vpop.f32.mrb[0].mxu0
        %v2031 = vadd.f32 0.0, %v2030
        %v2032 = vpop.f32.mrb[0].mxu0
        %v2033 = vadd.f32 0.0, %v2032
        %v2034 = vpop.f32.mrb[0].mxu0
        %v2035 = vadd.f32 0.0, %v2034
        %v2036 = vpop.f32.mrb[0].mxu0
        %v2037 = vadd.f32 0.0, %v2036
        %2038 = vmatprep.mubr.bf16.mxu0 %v1602
        %2039 = vmatmul.mubr.bf16.gmra.mrb[0].mxu0 %v1601
        %v2040 = vpop.f32.mrb[0].mxu0
        %v2041 = vadd.f32 0.0, %v2040
        %v2042 = vpop.f32.mrb[0].mxu0
        %v2043 = vadd.f32 0.0, %v2042
        %v2044 = vpop.f32.mrb[0].mxu0
        %v2045 = vadd.f32 0.0, %v2044
        %v2046 = vpop.f32.mrb[0].mxu0
        %v2047 = vadd.f32 0.0, %v2046
        %2048 = vmatprep.mubr.bf16.mxu0 %v1604
        %2049 = vmatmul.mubr.bf16.gmra.mrb[0].mxu0 %v1603
        %v2050 = vpop.f32.mrb[0].mxu0
        %v2051 = vadd.f32 0.0, %v2050
        %v2052 = vpop.f32.mrb[0].mxu0
        %v2053 = vadd.f32 0.0, %v2052
        %v2054 = vpop.f32.mrb[0].mxu0
        %v2055 = vadd.f32 0.0, %v2054
        %v2056 = vpop.f32.mrb[0].mxu0
        %v2057 = vadd.f32 0.0, %v2056
        %2058 = vmatprep.mubr.bf16.mxu0 %v1606
        %2059 = vmatmul.mubr.bf16.gmra.mrb[0].mxu0 %v1605
        %v2060 = vpop.f32.mrb[0].mxu0
        %v2061 = vadd.f32 0.0, %v2060
        %v2062 = vpop.f32.mrb[0].mxu0
        %v2063 = vadd.f32 0.0, %v2062
        %v2064 = vpop.f32.mrb[0].mxu0
        %v2065 = vadd.f32 0.0, %v2064
        %v2066 = vpop.f32.mrb[0].mxu0
        %v2067 = vadd.f32 0.0, %v2066
        %2068 = vmatprep.mubr.bf16.mxu0 %v1608
        %2069 = vmatmul.mubr.bf16.gmra.mrb[0].mxu0 %v1607
        %v2070 = vpop.f32.mrb[0].mxu0
        %v2071 = vadd.f32 0.0, %v2070
        %v2072 = vpop.f32.mrb[0].mxu0
        %v2073 = vadd.f32 0.0, %v2072
        %v2074 = vpop.f32.mrb[0].mxu0
        %v2075 = vadd.f32 0.0, %v2074
        %v2076 = vpop.f32.mrb[0].mxu0
        %v2077 = vadd.f32 0.0, %v2076
        %2078 = vmatprep.mubr.bf16.mxu0 %v1610
        %2079 = vmatmul.mubr.bf16.gmra.mrb[0].mxu0 %v1609
        %v2080 = vpop.f32.mrb[0].mxu0
        %v2081 = vadd.f32 0.0, %v2080
        %v2082 = vpop.f32.mrb[0].mxu0
        %v2083 = vadd.f32 0.0, %v2082
        %v2084 = vpop.f32.mrb[0].mxu0
        %v2085 = vadd.f32 0.0, %v2084
        %v2086 = vpop.f32.mrb[0].mxu0
        %v2087 = vadd.f32 0.0, %v2086
        %2088 = vmatprep.mubr.bf16.mxu0 %v1612
        %2089 = vmatmul.mubr.bf16.gmra.mrb[0].mxu0 %v1611
        %v2090 = vpop.f32.mrb[0].mxu0
        %v2091 = vadd.f32 0.0, %v2090
        %v2092 = vpop.f32.mrb[0].mxu0
        %v2093 = vadd.f32 0.0, %v2092
        %v2094 = vpop.f32.mrb[0].mxu0
        %v2095 = vadd.f32 0.0, %v2094
        %v2096 = vpop.f32.mrb[0].mxu0
        %v2097 = vadd.f32 0.0, %v2096
        %2098 = vmatprep.mubr.bf16.mxu0 %v1614
        %2099 = vmatmul.mubr.bf16.gmra.mrb[0].mxu0 %v1613
        %v2100 = vpop.f32.mrb[0].mxu0
        %v2101 = vadd.f32 0.0, %v2100
        %v2102 = vpop.f32.mrb[0].mxu0
        %v2103 = vadd.f32 0.0, %v2102
        %v2104 = vpop.f32.mrb[0].mxu0
        %v2105 = vadd.f32 0.0, %v2104
        %v2106 = vpop.f32.mrb[0].mxu0
        %v2107 = vadd.f32 0.0, %v2106
        %2108 = vmatprep.mubr.bf16.mxu0 %v1616
        %2109 = vmatmul.mubr.bf16.gmra.mrb[0].mxu0 %v1615
        %v2110 = vpop.f32.mrb[0].mxu0
        %v2111 = vadd.f32 0.0, %v2110
        %v2112 = vpop.f32.mrb[0].mxu0
        %v2113 = vadd.f32 0.0, %v2112
        %v2114 = vpop.f32.mrb[0].mxu0
        %v2115 = vadd.f32 0.0, %v2114
        %v2116 = vpop.f32.mrb[0].mxu0
        %v2117 = vadd.f32 0.0, %v2116
        %2118 = vmatprep.mubr.bf16.mxu0 %v1618
        %2119 = vmatmul.mubr.bf16.gmra.mrb[0].mxu0 %v1617
        %v2120 = vpop.f32.mrb[0].mxu0
        %v2121 = vadd.f32 0.0, %v2120
        %v2122 = vpop.f32.mrb[0].mxu0
        %v2123 = vadd.f32 0.0, %v2122
        %v2124 = vpop.f32.mrb[0].mxu0
        %v2125 = vadd.f32 0.0, %v2124
        %v2126 = vpop.f32.mrb[0].mxu0
        %v2127 = vadd.f32 0.0, %v2126
        %2128 = vmatprep.mubr.bf16.mxu0 %v1620
        %2129 = vmatmul.mubr.bf16.gmra.mrb[0].mxu0 %v1619
        %v2130 = vpop.f32.mrb[0].mxu0
        %v2131 = vadd.f32 0.0, %v2130
        %v2132 = vpop.f32.mrb[0].mxu0
        %v2133 = vadd.f32 0.0, %v2132
        %v2134 = vpop.f32.mrb[0].mxu0
        %v2135 = vadd.f32 0.0, %v2134
        %v2136 = vpop.f32.mrb[0].mxu0
        %v2137 = vadd.f32 0.0, %v2136
        %2138 = vmatprep.mubr.bf16.mxu0 %v1622
        %2139 = vmatmul.mubr.bf16.gmra.mrb[0].mxu0 %v1621
        %v2140 = vpop.f32.mrb[0].mxu0
        %v2141 = vadd.f32 0.0, %v2140
        %v2142 = vpop.f32.mrb[0].mxu0
        %v2143 = vadd.f32 0.0, %v2142
        %v2144 = vpop.f32.mrb[0].mxu0
        %v2145 = vadd.f32 0.0, %v2144
        %v2146 = vpop.f32.mrb[0].mxu0
        %v2147 = vadd.f32 0.0, %v2146
        %2148 = vmatprep.mubr.bf16.mxu0 %v1624
        %2149 = vmatmul.mubr.bf16.gmra.mrb[0].mxu0 %v1623
        %v2150 = vpop.f32.mrb[0].mxu0
        %v2151 = vadd.f32 0.0, %v2150
        %v2152 = vpop.f32.mrb[0].mxu0
        %v2153 = vadd.f32 0.0, %v2152
        %v2154 = vpop.f32.mrb[0].mxu0
        %v2155 = vadd.f32 0.0, %v2154
        %v2156 = vpop.f32.mrb[0].mxu0
        %v2157 = vadd.f32 0.0, %v2156
        %2158 = vmatprep.mubr.bf16.mxu0 %v1626
        %2159 = vmatmul.mubr.bf16.gmra.mrb[0].mxu0 %v1625
        %v2160 = vpop.f32.mrb[0].mxu0
        %v2161 = vadd.f32 0.0, %v2160
        %v2162 = vpop.f32.mrb[0].mxu0
        %v2163 = vadd.f32 0.0, %v2162
        %v2164 = vpop.f32.mrb[0].mxu0
        %v2165 = vadd.f32 0.0, %v2164
        %v2166 = vpop.f32.mrb[0].mxu0
        %v2167 = vadd.f32 0.0, %v2166
        %2168 = vmatprep.mubr.bf16.mxu0 %v1628
        %2169 = vmatmul.mubr.bf16.gmra.mrb[0].mxu0 %v1627
        %v2170 = vpop.f32.mrb[0].mxu0
        %v2171 = vadd.f32 0.0, %v2170
        %v2172 = vpop.f32.mrb[0].mxu0
        %v2173 = vadd.f32 0.0, %v2172
        %v2174 = vpop.f32.mrb[0].mxu0
        %v2175 = vadd.f32 0.0, %v2174
        %v2176 = vpop.f32.mrb[0].mxu0
        %v2177 = vadd.f32 0.0, %v2176
        %2178 = vmatprep.mubr.bf16.mxu0 %v1630
        %2179 = vmatmul.mubr.bf16.gmra.mrb[0].mxu0 %v1629
        %v2180 = vpop.f32.mrb[0].mxu0
        %v2181 = vadd.f32 0.0, %v2180
        %v2182 = vpop.f32.mrb[0].mxu0
        %v2183 = vadd.f32 0.0, %v2182
        %v2184 = vpop.f32.mrb[0].mxu0
        %v2185 = vadd.f32 0.0, %v2184
        %v2186 = vpop.f32.mrb[0].mxu0
        %v2187 = vadd.f32 0.0, %v2186
        %2188 = vmatprep.mubr.bf16.mxu0 %v1632
        %2189 = vmatmul.mubr.bf16.gmra.mrb[0].mxu0 %v1631
        %v2190 = vpop.f32.mrb[0].mxu0
        %v2191 = vadd.f32 0.0, %v2190
        %v2192 = vpop.f32.mrb[0].mxu0
        %v2193 = vadd.f32 0.0, %v2192
        %v2194 = vpop.f32.mrb[0].mxu0
        %v2195 = vadd.f32 0.0, %v2194
        %v2196 = vpop.f32.mrb[0].mxu0
        %v2197 = vadd.f32 0.0, %v2196
        %2198 = vmatprep.mubr.bf16.mxu0 %v1634
        %2199 = vmatmul.mubr.bf16.gmra.mrb[0].mxu0 %v1633
        %v2200 = vpop.f32.mrb[0].mxu0
        %v2201 = vadd.f32 0.0, %v2200
        %v2202 = vpop.f32.mrb[0].mxu0
        %v2203 = vadd.f32 0.0, %v2202
        %v2204 = vpop.f32.mrb[0].mxu0
        %v2205 = vadd.f32 0.0, %v2204
        %v2206 = vpop.f32.mrb[0].mxu0
        %v2207 = vadd.f32 0.0, %v2206
        %2208 = vmatprep.mubr.bf16.mxu0 %v1636
        %2209 = vmatmul.mubr.bf16.gmra.mrb[0].mxu0 %v1635
        %v2210 = vpop.f32.mrb[0].mxu0
        %v2211 = vadd.f32 0.0, %v2210
        %v2212 = vpop.f32.mrb[0].mxu0
        %v2213 = vadd.f32 0.0, %v2212
        %v2214 = vpop.f32.mrb[0].mxu0
        %v2215 = vadd.f32 0.0, %v2214
        %v2216 = vpop.f32.mrb[0].mxu0
        %v2217 = vadd.f32 0.0, %v2216
        %2218 = vmatprep.mubr.bf16.mxu0 %v1638
        %2219 = vmatmul.mubr.bf16.gmra.mrb[0].mxu0 %v1637
        %v2220 = vpop.f32.mrb[0].mxu0
        %v2221 = vadd.f32 0.0, %v2220
        %v2222 = vpop.f32.mrb[0].mxu0
        %v2223 = vadd.f32 0.0, %v2222
        %v2224 = vpop.f32.mrb[0].mxu0
        %v2225 = vadd.f32 0.0, %v2224
        %v2226 = vpop.f32.mrb[0].mxu0
        %v2227 = vadd.f32 0.0, %v2226
        %2228 = vmatprep.mubr.bf16.mxu0 %v1640
        %2229 = vmatmul.mubr.bf16.gmra.mrb[0].mxu0 %v1639
        %v2230 = vpop.f32.mrb[0].mxu0
        %v2231 = vadd.f32 0.0, %v2230
        %v2232 = vpop.f32.mrb[0].mxu0
        %v2233 = vadd.f32 0.0, %v2232
        %v2234 = vpop.f32.mrb[0].mxu0
        %v2235 = vadd.f32 0.0, %v2234
        %v2236 = vpop.f32.mrb[0].mxu0
        %v2237 = vadd.f32 0.0, %v2236
        %2238 = vmatprep.mubr.bf16.mxu0 %v1642
        %2239 = vmatmul.mubr.bf16.gmra.mrb[0].mxu0 %v1641
        %v2240 = vpop.f32.mrb[0].mxu0
        %v2241 = vadd.f32 0.0, %v2240
        %v2242 = vpop.f32.mrb[0].mxu0
        %v2243 = vadd.f32 0.0, %v2242
        %v2244 = vpop.f32.mrb[0].mxu0
        %v2245 = vadd.f32 0.0, %v2244
        %v2246 = vpop.f32.mrb[0].mxu0
        %v2247 = vadd.f32 0.0, %v2246
        %2248 = vmatprep.mubr.bf16.mxu0 %v1644
        %2249 = vmatmul.mubr.bf16.gmra.mrb[0].mxu0 %v1643
        %v2250 = vpop.f32.mrb[0].mxu0
        %v2251 = vadd.f32 0.0, %v2250
        %v2252 = vpop.f32.mrb[0].mxu0
        %v2253 = vadd.f32 0.0, %v2252
        %v2254 = vpop.f32.mrb[0].mxu0
        %v2255 = vadd.f32 0.0, %v2254
        %v2256 = vpop.f32.mrb[0].mxu0
        %v2257 = vadd.f32 0.0, %v2256
        %2258 = vmatprep.mubr.bf16.mxu0 %v1646
        %2259 = vmatmul.mubr.bf16.gmra.mrb[0].mxu0 %v1645
        %v2260 = vpop.f32.mrb[0].mxu0
        %v2261 = vadd.f32 0.0, %v2260
        %v2262 = vpop.f32.mrb[0].mxu0
        %v2263 = vadd.f32 0.0, %v2262
        %v2264 = vpop.f32.mrb[0].mxu0
        %v2265 = vadd.f32 0.0, %v2264
        %v2266 = vpop.f32.mrb[0].mxu0
        %v2267 = vadd.f32 0.0, %v2266
        %2268 = vmatprep.mubr.bf16.mxu0 %v1648
        %2269 = vmatmul.mubr.bf16.gmra.mrb[0].mxu0 %v1647
        %v2270 = vpop.f32.mrb[0].mxu0
        %v2271 = vadd.f32 0.0, %v2270
        %v2272 = vpop.f32.mrb[0].mxu0
        %v2273 = vadd.f32 0.0, %v2272
        %v2274 = vpop.f32.mrb[0].mxu0
        %v2275 = vadd.f32 0.0, %v2274
        %v2276 = vpop.f32.mrb[0].mxu0
        %v2277 = vadd.f32 0.0, %v2276
        %2278 = vmatprep.mubr.bf16.mxu0 %v1650
        %2279 = vmatmul.mubr.bf16.gmra.mrb[0].mxu0 %v1649
        %v2280 = vpop.f32.mrb[0].mxu0
        %v2281 = vadd.f32 0.0, %v2280
        %v2282 = vpop.f32.mrb[0].mxu0
        %v2283 = vadd.f32 0.0, %v2282
        %v2284 = vpop.f32.mrb[0].mxu0
        %v2285 = vadd.f32 0.0, %v2284
        %v2286 = vpop.f32.mrb[0].mxu0
        %v2287 = vadd.f32 0.0, %v2286
        %2288 = vmatprep.mubr.bf16.mxu0 %v1652
        %2289 = vmatmul.mubr.bf16.gmra.mrb[0].mxu0 %v1651
        %v2290 = vpop.f32.mrb[0].mxu0
        %v2291 = vadd.f32 0.0, %v2290
        %v2292 = vpop.f32.mrb[0].mxu0
        %v2293 = vadd.f32 0.0, %v2292
        %v2294 = vpop.f32.mrb[0].mxu0
        %v2295 = vadd.f32 0.0, %v2294
        %v2296 = vpop.f32.mrb[0].mxu0
        %v2297 = vadd.f32 0.0, %v2296
        %2298 = vmatprep.mubr.bf16.mxu0 %v1654
        %2299 = vmatmul.mubr.bf16.gmra.mrb[0].mxu0 %v1653
        %v2300 = vpop.f32.mrb[0].mxu0
        %v2301 = vadd.f32 0.0, %v2300
        %v2302 = vpop.f32.mrb[0].mxu0
        %v2303 = vadd.f32 0.0, %v2302
        %v2304 = vpop.f32.mrb[0].mxu0
        %v2305 = vadd.f32 0.0, %v2304
        %v2306 = vpop.f32.mrb[0].mxu0
        %v2307 = vadd.f32 0.0, %v2306
        %2308 = vmatprep.mubr.bf16.mxu0 %v1656
        %2309 = vmatmul.mubr.bf16.gmra.mrb[0].mxu0 %v1655
        %v2310 = vpop.f32.mrb[0].mxu0
        %v2311 = vadd.f32 0.0, %v2310
        %v2312 = vpop.f32.mrb[0].mxu0
        %v2313 = vadd.f32 0.0, %v2312
        %v2314 = vpop.f32.mrb[0].mxu0
        %v2315 = vadd.f32 0.0, %v2314
        %v2316 = vpop.f32.mrb[0].mxu0
        %v2317 = vadd.f32 0.0, %v2316
        %2318 = vmatprep.mubr.bf16.mxu0 %v1658
        %2319 = vmatmul.mubr.bf16.gmra.mrb[0].mxu0 %v1657
        %v2320 = vpop.f32.mrb[0].mxu0
        %v2321 = vadd.f32 0.0, %v2320
        %v2322 = vpop.f32.mrb[0].mxu0
        %v2323 = vadd.f32 0.0, %v2322
        %v2324 = vpop.f32.mrb[0].mxu0
        %v2325 = vadd.f32 0.0, %v2324
        %v2326 = vpop.f32.mrb[0].mxu0
        %v2327 = vadd.f32 0.0, %v2326
        %2328 = vmatprep.mubr.bf16.mxu0 %v1660
        %2329 = vmatmul.mubr.bf16.gmra.mrb[0].mxu0 %v1659
        %v2330 = vpop.f32.mrb[0].mxu0
        %v2331 = vadd.f32 0.0, %v2330
        %v2332 = vpop.f32.mrb[0].mxu0
        %v2333 = vadd.f32 0.0, %v2332
        %v2334 = vpop.f32.mrb[0].mxu0
        %v2335 = vadd.f32 0.0, %v2334
        %v2336 = vpop.f32.mrb[0].mxu0
        %v2337 = vadd.f32 0.0, %v2336
        %2338 = vmatprep.mubr.bf16.mxu0 %v1662
        %2339 = vmatmul.mubr.bf16.gmra.mrb[0].mxu0 %v1661
        %v2340 = vpop.f32.mrb[0].mxu0
        %v2341 = vadd.f32 0.0, %v2340
        %v2342 = vpop.f32.mrb[0].mxu0
        %v2343 = vadd.f32 0.0, %v2342
        %v2344 = vpop.f32.mrb[0].mxu0
        %v2345 = vadd.f32 0.0, %v2344
        %v2346 = vpop.f32.mrb[0].mxu0
        %v2347 = vadd.f32 0.0, %v2346
        %2348 = vmatprep.mubr.bf16.mxu0 %v1664
        %2349 = vmatmul.mubr.bf16.gmra.mrb[0].mxu0 %v1663
        %v2350 = vpop.f32.mrb[0].mxu0
        %v2351 = vadd.f32 0.0, %v2350
        %v2352 = vpop.f32.mrb[0].mxu0
        %v2353 = vadd.f32 0.0, %v2352
        %v2354 = vpop.f32.mrb[0].mxu0
        %v2355 = vadd.f32 0.0, %v2354
        %v2356 = vpop.f32.mrb[0].mxu0
        %v2357 = vadd.f32 0.0, %v2356
        %2358 = vmatprep.mubr.bf16.mxu0 %v1666
        %2359 = vmatmul.mubr.bf16.gmra.mrb[0].mxu0 %v1665
        %v2360 = vpop.f32.mrb[0].mxu0
        %v2361 = vadd.f32 0.0, %v2360
        %v2362 = vpop.f32.mrb[0].mxu0
        %v2363 = vadd.f32 0.0, %v2362
        %v2364 = vpop.f32.mrb[0].mxu0
        %v2365 = vadd.f32 0.0, %v2364
        %v2366 = vpop.f32.mrb[0].mxu0
        %v2367 = vadd.f32 0.0, %v2366
        %2368 = vmatprep.mubr.bf16.mxu0 %v1668
        %2369 = vmatmul.mubr.bf16.gmra.mrb[0].mxu0 %v1667
        %v2370 = vpop.f32.mrb[0].mxu0
        %v2371 = vadd.f32 0.0, %v2370
        %v2372 = vpop.f32.mrb[0].mxu0
        %v2373 = vadd.f32 0.0, %v2372
        %v2374 = vpop.f32.mrb[0].mxu0
        %v2375 = vadd.f32 0.0, %v2374
        %v2376 = vpop.f32.mrb[0].mxu0
        %v2377 = vadd.f32 0.0, %v2376
        %2378 = vmatprep.mubr.bf16.mxu0 %v1670
        %2379 = vmatmul.mubr.bf16.gmra.mrb[0].mxu0 %v1669
        %v2380 = vpop.f32.mrb[0].mxu0
        %v2381 = vadd.f32 0.0, %v2380
        %v2382 = vpop.f32.mrb[0].mxu0
        %v2383 = vadd.f32 0.0, %v2382
        %v2384 = vpop.f32.mrb[0].mxu0
        %v2385 = vadd.f32 0.0, %v2384
        %v2386 = vpop.f32.mrb[0].mxu0
        %v2387 = vadd.f32 0.0, %v2386
        %2388 = vdwg.mxu0
        %v2421 = vunpack.c.l.b16 %v1671
        %v2422 = vunpack.c.h.b16 %v1671
        %v2423 = vunpack.c.l.b16 %v1672
        %v2424 = vunpack.c.h.b16 %v1672
        %v2425 = vunpack.c.l.b16 %v1673
        %v2426 = vunpack.c.h.b16 %v1673
        %v2427 = vunpack.c.l.b16 %v1674
        %v2428 = vunpack.c.h.b16 %v1674
        %v2429 = vunpack.c.l.b16 %v1675
        %v2430 = vunpack.c.h.b16 %v1675
        %v2431 = vunpack.c.l.b16 %v1676
        %v2432 = vunpack.c.h.b16 %v1676
        %v2433 = vunpack.c.l.b16 %v1677
        %v2434 = vunpack.c.h.b16 %v1677
        %v2435 = vunpack.c.l.b16 %v1678
        %v2436 = vunpack.c.h.b16 %v1678
        %v2437 = vunpack.c.l.b16 %v1679
        %v2438 = vunpack.c.h.b16 %v1679
        %v2439 = vunpack.c.l.b16 %v1680
        %v2440 = vunpack.c.h.b16 %v1680
        %v2441 = vunpack.c.l.b16 %v1681
        %v2442 = vunpack.c.h.b16 %v1681
        %v2443 = vunpack.c.l.b16 %v1682
        %v2444 = vunpack.c.h.b16 %v1682
        %v2445 = vunpack.c.l.b16 %v1683
        %v2446 = vunpack.c.h.b16 %v1683
        %v2447 = vunpack.c.l.b16 %v1684
        %v2448 = vunpack.c.h.b16 %v1684
        %v2449 = vunpack.c.l.b16 %v1685
        %v2450 = vunpack.c.h.b16 %v1685
        %v2451 = vunpack.c.l.b16 %v1686
        %v2452 = vunpack.c.h.b16 %v1686
        %v2453 = vunpack.c.l.b16 %v1687
        %v2454 = vunpack.c.h.b16 %v1687
        %v2455 = vunpack.c.l.b16 %v1688
        %v2456 = vunpack.c.h.b16 %v1688
        %v2457 = vunpack.c.l.b16 %v1689
        %v2458 = vunpack.c.h.b16 %v1689
        %v2459 = vunpack.c.l.b16 %v1690
        %v2460 = vunpack.c.h.b16 %v1690
        %v2461 = vunpack.c.l.b16 %v1691
        %v2462 = vunpack.c.h.b16 %v1691
        %v2463 = vunpack.c.l.b16 %v1692
        %v2464 = vunpack.c.h.b16 %v1692
        %v2465 = vunpack.c.l.b16 %v1693
        %v2466 = vunpack.c.h.b16 %v1693
        %v2467 = vunpack.c.l.b16 %v1694
        %v2468 = vunpack.c.h.b16 %v1694
        %v2469 = vunpack.c.l.b16 %v1695
        %v2470 = vunpack.c.h.b16 %v1695
        %v2471 = vunpack.c.l.b16 %v1696
        %v2472 = vunpack.c.h.b16 %v1696
        %v2473 = vunpack.c.l.b16 %v1697
        %v2474 = vunpack.c.h.b16 %v1697
        %v2475 = vunpack.c.l.b16 %v1698
        %v2476 = vunpack.c.h.b16 %v1698
        %v2477 = vunpack.c.l.b16 %v1699
        %v2478 = vunpack.c.h.b16 %v1699
        %v2479 = vunpack.c.l.b16 %v1700
        %v2480 = vunpack.c.h.b16 %v1700
        %v2481 = vunpack.c.l.b16 %v1701
        %v2482 = vunpack.c.h.b16 %v1701
        %v2483 = vunpack.c.l.b16 %v1702
        %v2484 = vunpack.c.h.b16 %v1702
        %v2485 = vpack.c.b16 %v2423, %v2421
        %v2486 = vpack.c.b16 %v2424, %v2422
        %v2487 = vpack.c.b16 %v2427, %v2425
        %v2488 = vpack.c.b16 %v2428, %v2426
        %v2489 = vpack.c.b16 %v2431, %v2429
        %v2490 = vpack.c.b16 %v2432, %v2430
        %v2491 = vpack.c.b16 %v2435, %v2433
        %v2492 = vpack.c.b16 %v2436, %v2434
        %v2493 = vpack.c.b16 %v2439, %v2437
        %v2494 = vpack.c.b16 %v2440, %v2438
        %v2495 = vpack.c.b16 %v2443, %v2441
        %v2496 = vpack.c.b16 %v2444, %v2442
        %v2497 = vpack.c.b16 %v2447, %v2445
        %v2498 = vpack.c.b16 %v2448, %v2446
        %v2499 = vpack.c.b16 %v2451, %v2449
        %v2500 = vpack.c.b16 %v2452, %v2450
        %v2501 = vpack.c.b16 %v2455, %v2453
        %v2502 = vpack.c.b16 %v2456, %v2454
        %v2503 = vpack.c.b16 %v2459, %v2457
        %v2504 = vpack.c.b16 %v2460, %v2458
        %v2505 = vpack.c.b16 %v2463, %v2461
        %v2506 = vpack.c.b16 %v2464, %v2462
        %v2507 = vpack.c.b16 %v2467, %v2465
        %v2508 = vpack.c.b16 %v2468, %v2466
        %v2509 = vpack.c.b16 %v2471, %v2469
        %v2510 = vpack.c.b16 %v2472, %v2470
        %v2511 = vpack.c.b16 %v2475, %v2473
        %v2512 = vpack.c.b16 %v2476, %v2474
        %v2513 = vpack.c.b16 %v2479, %v2477
        %v2514 = vpack.c.b16 %v2480, %v2478
        %v2515 = vpack.c.b16 %v2483, %v2481
        %v2516 = vpack.c.b16 %v2484, %v2482
        %2549 = vmatprep.subr.bf16.mxu0 %v2486
        %2550 = vmatpush1.bf16.msra.mxu0 %v2485
        %2551 = vmatprep.subr.bf16.mxu0 %v2488
        %2552 = vmatpush1.bf16.msra.mxu0 %v2487
        %2553 = vmatprep.subr.bf16.mxu0 %v2490
        %2554 = vmatpush1.bf16.msra.mxu0 %v2489
        %2555 = vmatprep.subr.bf16.mxu0 %v2492
        %2556 = vmatpush1.bf16.msra.mxu0 %v2491
        %2557 = vmatprep.subr.bf16.mxu0 %v2494
        %2558 = vmatpush1.bf16.msra.mxu0 %v2493
        %2559 = vmatprep.subr.bf16.mxu0 %v2496
        %2560 = vmatpush1.bf16.msra.mxu0 %v2495
        %2561 = vmatprep.subr.bf16.mxu0 %v2498
        %2562 = vmatpush1.bf16.msra.mxu0 %v2497
        %2563 = vmatprep.subr.bf16.mxu0 %v2500
        %2564 = vmatpush1.bf16.msra.mxu0 %v2499
        %2565 = vmatprep.subr.bf16.mxu0 %v2502
        %2566 = vmatpush1.bf16.msra.mxu0 %v2501
        %2567 = vmatprep.subr.bf16.mxu0 %v2504
        %2568 = vmatpush1.bf16.msra.mxu0 %v2503
        %2569 = vmatprep.subr.bf16.mxu0 %v2506
        %2570 = vmatpush1.bf16.msra.mxu0 %v2505
        %2571 = vmatprep.subr.bf16.mxu0 %v2508
        %2572 = vmatpush1.bf16.msra.mxu0 %v2507
        %2573 = vmatprep.subr.bf16.mxu0 %v2510
        %2574 = vmatpush1.bf16.msra.mxu0 %v2509
        %2575 = vmatprep.subr.bf16.mxu0 %v2512
        %2576 = vmatpush1.bf16.msra.mxu0 %v2511
        %2577 = vmatprep.subr.bf16.mxu0 %v2514
        %2578 = vmatpush1.bf16.msra.mxu0 %v2513
        %2579 = vmatprep.subr.bf16.mxu0 %v2516
        %2580 = vmatpush1.bf16.msra.mxu0 %v2515
        %2581 = vmatprep.mubr.bf16.mxu0 %v1576
        %2582 = vmatmul.mubr.bf16.gmra.mrb[0].mxu0 %v1575
        %v2583 = vpop.f32.mrb[0].mxu0
        %v2584 = vadd.f32 %v1931, %v2583
        %v2585 = vpop.f32.mrb[0].mxu0
        %v2586 = vadd.f32 %v1933, %v2585
        %v2587 = vpop.f32.mrb[0].mxu0
        %v2588 = vadd.f32 %v1935, %v2587
        %v2589 = vpop.f32.mrb[0].mxu0
        %v2590 = vadd.f32 %v1937, %v2589
        %2591 = vmatprep.mubr.bf16.mxu0 %v1578
        %2592 = vmatmul.mubr.bf16.gmra.mrb[0].mxu0 %v1577
        %v2593 = vpop.f32.mrb[0].mxu0
        %v2594 = vadd.f32 %v1941, %v2593
        %v2595 = vpop.f32.mrb[0].mxu0
        %v2596 = vadd.f32 %v1943, %v2595
        %v2597 = vpop.f32.mrb[0].mxu0
        %v2598 = vadd.f32 %v1945, %v2597
        %v2599 = vpop.f32.mrb[0].mxu0
        %v2600 = vadd.f32 %v1947, %v2599
        %2601 = vmatprep.mubr.bf16.mxu0 %v1580
        %2602 = vmatmul.mubr.bf16.gmra.mrb[0].mxu0 %v1579
        %v2603 = vpop.f32.mrb[0].mxu0
        %v2604 = vadd.f32 %v1951, %v2603
        %v2605 = vpop.f32.mrb[0].mxu0
        %v2606 = vadd.f32 %v1953, %v2605
        %v2607 = vpop.f32.mrb[0].mxu0
        %v2608 = vadd.f32 %v1955, %v2607
        %v2609 = vpop.f32.mrb[0].mxu0
        %v2610 = vadd.f32 %v1957, %v2609
        %2611 = vmatprep.mubr.bf16.mxu0 %v1582
        %2612 = vmatmul.mubr.bf16.gmra.mrb[0].mxu0 %v1581
        %v2613 = vpop.f32.mrb[0].mxu0
        %v2614 = vadd.f32 %v1961, %v2613
        %v2615 = vpop.f32.mrb[0].mxu0
        %v2616 = vadd.f32 %v1963, %v2615
        %v2617 = vpop.f32.mrb[0].mxu0
        %v2618 = vadd.f32 %v1965, %v2617
        %v2619 = vpop.f32.mrb[0].mxu0
        %v2620 = vadd.f32 %v1967, %v2619
        %2621 = vmatprep.mubr.bf16.mxu0 %v1584
        %2622 = vmatmul.mubr.bf16.gmra.mrb[0].mxu0 %v1583
        %v2623 = vpop.f32.mrb[0].mxu0
        %v2624 = vadd.f32 %v1971, %v2623
        %v2625 = vpop.f32.mrb[0].mxu0
        %v2626 = vadd.f32 %v1973, %v2625
        %v2627 = vpop.f32.mrb[0].mxu0
        %v2628 = vadd.f32 %v1975, %v2627
        %v2629 = vpop.f32.mrb[0].mxu0
        %v2630 = vadd.f32 %v1977, %v2629
        %2631 = vmatprep.mubr.bf16.mxu0 %v1586
        %2632 = vmatmul.mubr.bf16.gmra.mrb[0].mxu0 %v1585
        %v2633 = vpop.f32.mrb[0].mxu0
        %v2634 = vadd.f32 %v1981, %v2633
        %v2635 = vpop.f32.mrb[0].mxu0
        %v2636 = vadd.f32 %v1983, %v2635
        %v2637 = vpop.f32.mrb[0].mxu0
        %v2638 = vadd.f32 %v1985, %v2637
        %v2639 = vpop.f32.mrb[0].mxu0
        %v2640 = vadd.f32 %v1987, %v2639
        %2641 = vmatprep.mubr.bf16.mxu0 %v1588
        %2642 = vmatmul.mubr.bf16.gmra.mrb[0].mxu0 %v1587
        %v2643 = vpop.f32.mrb[0].mxu0
        %v2644 = vadd.f32 %v1991, %v2643
        %v2645 = vpop.f32.mrb[0].mxu0
        %v2646 = vadd.f32 %v1993, %v2645
        %v2647 = vpop.f32.mrb[0].mxu0
        %v2648 = vadd.f32 %v1995, %v2647
        %v2649 = vpop.f32.mrb[0].mxu0
        %v2650 = vadd.f32 %v1997, %v2649
        %2651 = vmatprep.mubr.bf16.mxu0 %v1590
        %2652 = vmatmul.mubr.bf16.gmra.mrb[0].mxu0 %v1589
        %v2653 = vpop.f32.mrb[0].mxu0
        %v2654 = vadd.f32 %v2001, %v2653
        %v2655 = vpop.f32.mrb[0].mxu0
        %v2656 = vadd.f32 %v2003, %v2655
        %v2657 = vpop.f32.mrb[0].mxu0
        %v2658 = vadd.f32 %v2005, %v2657
        %v2659 = vpop.f32.mrb[0].mxu0
        %v2660 = vadd.f32 %v2007, %v2659
        %2661 = vmatprep.mubr.bf16.mxu0 %v1592
        %2662 = vmatmul.mubr.bf16.gmra.mrb[0].mxu0 %v1591
        %v2663 = vpop.f32.mrb[0].mxu0
        %v2664 = vadd.f32 %v2011, %v2663
        %v2665 = vpop.f32.mrb[0].mxu0
        %v2666 = vadd.f32 %v2013, %v2665
        %v2667 = vpop.f32.mrb[0].mxu0
        %v2668 = vadd.f32 %v2015, %v2667
        %v2669 = vpop.f32.mrb[0].mxu0
        %v2670 = vadd.f32 %v2017, %v2669
        %2671 = vmatprep.mubr.bf16.mxu0 %v1594
        %2672 = vmatmul.mubr.bf16.gmra.mrb[0].mxu0 %v1593
        %v2673 = vpop.f32.mrb[0].mxu0
        %v2674 = vadd.f32 %v2021, %v2673
        %v2675 = vpop.f32.mrb[0].mxu0
        %v2676 = vadd.f32 %v2023, %v2675
        %v2677 = vpop.f32.mrb[0].mxu0
        %v2678 = vadd.f32 %v2025, %v2677
        %v2679 = vpop.f32.mrb[0].mxu0
        %v2680 = vadd.f32 %v2027, %v2679
        %2681 = vmatprep.mubr.bf16.mxu0 %v1596
        %2682 = vmatmul.mubr.bf16.gmra.mrb[0].mxu0 %v1595
        %v2683 = vpop.f32.mrb[0].mxu0
        %v2684 = vadd.f32 %v2031, %v2683
        %v2685 = vpop.f32.mrb[0].mxu0
        %v2686 = vadd.f32 %v2033, %v2685
        %v2687 = vpop.f32.mrb[0].mxu0
        %v2688 = vadd.f32 %v2035, %v2687
        %v2689 = vpop.f32.mrb[0].mxu0
        %v2690 = vadd.f32 %v2037, %v2689
        %2691 = vmatprep.mubr.bf16.mxu0 %v1598
        %2692 = vmatmul.mubr.bf16.gmra.mrb[0].mxu0 %v1597
        %v2693 = vpop.f32.mrb[0].mxu0
        %v2694 = vadd.f32 %v2041, %v2693
        %v2695 = vpop.f32.mrb[0].mxu0
        %v2696 = vadd.f32 %v2043, %v2695
        %v2697 = vpop.f32.mrb[0].mxu0
        %v2698 = vadd.f32 %v2045, %v2697
        %v2699 = vpop.f32.mrb[0].mxu0
        %v2700 = vadd.f32 %v2047, %v2699
        %2701 = vmatprep.mubr.bf16.mxu0 %v1600
        %2702 = vmatmul.mubr.bf16.gmra.mrb[0].mxu0 %v1599
        %v2703 = vpop.f32.mrb[0].mxu0
        %v2704 = vadd.f32 %v2051, %v2703
        %v2705 = vpop.f32.mrb[0].mxu0
        %v2706 = vadd.f32 %v2053, %v2705
        %v2707 = vpop.f32.mrb[0].mxu0
        %v2708 = vadd.f32 %v2055, %v2707
        %v2709 = vpop.f32.mrb[0].mxu0
        %v2710 = vadd.f32 %v2057, %v2709
        %2711 = vmatprep.mubr.bf16.mxu0 %v1602
        %2712 = vmatmul.mubr.bf16.gmra.mrb[0].mxu0 %v1601
        %v2713 = vpop.f32.mrb[0].mxu0
        %v2714 = vadd.f32 %v2061, %v2713
        %v2715 = vpop.f32.mrb[0].mxu0
        %v2716 = vadd.f32 %v2063, %v2715
        %v2717 = vpop.f32.mrb[0].mxu0
        %v2718 = vadd.f32 %v2065, %v2717
        %v2719 = vpop.f32.mrb[0].mxu0
        %v2720 = vadd.f32 %v2067, %v2719
        %2721 = vmatprep.mubr.bf16.mxu0 %v1604
        %2722 = vmatmul.mubr.bf16.gmra.mrb[0].mxu0 %v1603
        %v2723 = vpop.f32.mrb[0].mxu0
        %v2724 = vadd.f32 %v2071, %v2723
        %v2725 = vpop.f32.mrb[0].mxu0
        %v2726 = vadd.f32 %v2073, %v2725
        %v2727 = vpop.f32.mrb[0].mxu0
        %v2728 = vadd.f32 %v2075, %v2727
        %v2729 = vpop.f32.mrb[0].mxu0
        %v2730 = vadd.f32 %v2077, %v2729
        %2731 = vmatprep.mubr.bf16.mxu0 %v1606
        %2732 = vmatmul.mubr.bf16.gmra.mrb[0].mxu0 %v1605
        %v2733 = vpop.f32.mrb[0].mxu0
        %v2734 = vadd.f32 %v2081, %v2733
        %v2735 = vpop.f32.mrb[0].mxu0
        %v2736 = vadd.f32 %v2083, %v2735
        %v2737 = vpop.f32.mrb[0].mxu0
        %v2738 = vadd.f32 %v2085, %v2737
        %v2739 = vpop.f32.mrb[0].mxu0
        %v2740 = vadd.f32 %v2087, %v2739
        %2741 = vmatprep.mubr.bf16.mxu0 %v1608
        %2742 = vmatmul.mubr.bf16.gmra.mrb[0].mxu0 %v1607
        %v2743 = vpop.f32.mrb[0].mxu0
        %v2744 = vadd.f32 %v2091, %v2743
        %v2745 = vpop.f32.mrb[0].mxu0
        %v2746 = vadd.f32 %v2093, %v2745
        %v2747 = vpop.f32.mrb[0].mxu0
        %v2748 = vadd.f32 %v2095, %v2747
        %v2749 = vpop.f32.mrb[0].mxu0
        %v2750 = vadd.f32 %v2097, %v2749
        %2751 = vmatprep.mubr.bf16.mxu0 %v1610
        %2752 = vmatmul.mubr.bf16.gmra.mrb[0].mxu0 %v1609
        %v2753 = vpop.f32.mrb[0].mxu0
        %v2754 = vadd.f32 %v2101, %v2753
        %v2755 = vpop.f32.mrb[0].mxu0
        %v2756 = vadd.f32 %v2103, %v2755
        %v2757 = vpop.f32.mrb[0].mxu0
        %v2758 = vadd.f32 %v2105, %v2757
        %v2759 = vpop.f32.mrb[0].mxu0
        %v2760 = vadd.f32 %v2107, %v2759
        %2761 = vmatprep.mubr.bf16.mxu0 %v1612
        %2762 = vmatmul.mubr.bf16.gmra.mrb[0].mxu0 %v1611
        %v2763 = vpop.f32.mrb[0].mxu0
        %v2764 = vadd.f32 %v2111, %v2763
        %v2765 = vpop.f32.mrb[0].mxu0
        %v2766 = vadd.f32 %v2113, %v2765
        %v2767 = vpop.f32.mrb[0].mxu0
        %v2768 = vadd.f32 %v2115, %v2767
        %v2769 = vpop.f32.mrb[0].mxu0
        %v2770 = vadd.f32 %v2117, %v2769
        %2771 = vmatprep.mubr.bf16.mxu0 %v1614
        %2772 = vmatmul.mubr.bf16.gmra.mrb[0].mxu0 %v1613
        %v2773 = vpop.f32.mrb[0].mxu0
        %v2774 = vadd.f32 %v2121, %v2773
        %v2775 = vpop.f32.mrb[0].mxu0
        %v2776 = vadd.f32 %v2123, %v2775
        %v2777 = vpop.f32.mrb[0].mxu0
        %v2778 = vadd.f32 %v2125, %v2777
        %v2779 = vpop.f32.mrb[0].mxu0
        %v2780 = vadd.f32 %v2127, %v2779
        %2781 = vmatprep.mubr.bf16.mxu0 %v1616
        %2782 = vmatmul.mubr.bf16.gmra.mrb[0].mxu0 %v1615
        %v2783 = vpop.f32.mrb[0].mxu0
        %v2784 = vadd.f32 %v2131, %v2783
        %v2785 = vpop.f32.mrb[0].mxu0
        %v2786 = vadd.f32 %v2133, %v2785
        %v2787 = vpop.f32.mrb[0].mxu0
        %v2788 = vadd.f32 %v2135, %v2787
        %v2789 = vpop.f32.mrb[0].mxu0
        %v2790 = vadd.f32 %v2137, %v2789
        %2791 = vmatprep.mubr.bf16.mxu0 %v1618
        %2792 = vmatmul.mubr.bf16.gmra.mrb[0].mxu0 %v1617
        %v2793 = vpop.f32.mrb[0].mxu0
        %v2794 = vadd.f32 %v2141, %v2793
        %v2795 = vpop.f32.mrb[0].mxu0
        %v2796 = vadd.f32 %v2143, %v2795
        %v2797 = vpop.f32.mrb[0].mxu0
        %v2798 = vadd.f32 %v2145, %v2797
        %v2799 = vpop.f32.mrb[0].mxu0
        %v2800 = vadd.f32 %v2147, %v2799
        %2801 = vmatprep.mubr.bf16.mxu0 %v1620
        %2802 = vmatmul.mubr.bf16.gmra.mrb[0].mxu0 %v1619
        %v2803 = vpop.f32.mrb[0].mxu0
        %v2804 = vadd.f32 %v2151, %v2803
        %v2805 = vpop.f32.mrb[0].mxu0
        %v2806 = vadd.f32 %v2153, %v2805
        %v2807 = vpop.f32.mrb[0].mxu0
        %v2808 = vadd.f32 %v2155, %v2807
        %v2809 = vpop.f32.mrb[0].mxu0
        %v2810 = vadd.f32 %v2157, %v2809
        %2811 = vmatprep.mubr.bf16.mxu0 %v1622
        %2812 = vmatmul.mubr.bf16.gmra.mrb[0].mxu0 %v1621
        %v2813 = vpop.f32.mrb[0].mxu0
        %v2814 = vadd.f32 %v2161, %v2813
        %v2815 = vpop.f32.mrb[0].mxu0
        %v2816 = vadd.f32 %v2163, %v2815
        %v2817 = vpop.f32.mrb[0].mxu0
        %v2818 = vadd.f32 %v2165, %v2817
        %v2819 = vpop.f32.mrb[0].mxu0
        %v2820 = vadd.f32 %v2167, %v2819
        %2821 = vmatprep.mubr.bf16.mxu0 %v1624
        %2822 = vmatmul.mubr.bf16.gmra.mrb[0].mxu0 %v1623
        %v2823 = vpop.f32.mrb[0].mxu0
        %v2824 = vadd.f32 %v2171, %v2823
        %v2825 = vpop.f32.mrb[0].mxu0
        %v2826 = vadd.f32 %v2173, %v2825
        %v2827 = vpop.f32.mrb[0].mxu0
        %v2828 = vadd.f32 %v2175, %v2827
        %v2829 = vpop.f32.mrb[0].mxu0
        %v2830 = vadd.f32 %v2177, %v2829
        %2831 = vmatprep.mubr.bf16.mxu0 %v1626
        %2832 = vmatmul.mubr.bf16.gmra.mrb[0].mxu0 %v1625
        %v2833 = vpop.f32.mrb[0].mxu0
        %v2834 = vadd.f32 %v2181, %v2833
        %v2835 = vpop.f32.mrb[0].mxu0
        %v2836 = vadd.f32 %v2183, %v2835
        %v2837 = vpop.f32.mrb[0].mxu0
        %v2838 = vadd.f32 %v2185, %v2837
        %v2839 = vpop.f32.mrb[0].mxu0
        %v2840 = vadd.f32 %v2187, %v2839
        %2841 = vmatprep.mubr.bf16.mxu0 %v1628
        %2842 = vmatmul.mubr.bf16.gmra.mrb[0].mxu0 %v1627
        %v2843 = vpop.f32.mrb[0].mxu0
        %v2844 = vadd.f32 %v2191, %v2843
        %v2845 = vpop.f32.mrb[0].mxu0
        %v2846 = vadd.f32 %v2193, %v2845
        %v2847 = vpop.f32.mrb[0].mxu0
        %v2848 = vadd.f32 %v2195, %v2847
        %v2849 = vpop.f32.mrb[0].mxu0
        %v2850 = vadd.f32 %v2197, %v2849
        %2851 = vmatprep.mubr.bf16.mxu0 %v1630
        %2852 = vmatmul.mubr.bf16.gmra.mrb[0].mxu0 %v1629
        %v2853 = vpop.f32.mrb[0].mxu0
        %v2854 = vadd.f32 %v2201, %v2853
        %v2855 = vpop.f32.mrb[0].mxu0
        %v2856 = vadd.f32 %v2203, %v2855
        %v2857 = vpop.f32.mrb[0].mxu0
        %v2858 = vadd.f32 %v2205, %v2857
        %v2859 = vpop.f32.mrb[0].mxu0
        %v2860 = vadd.f32 %v2207, %v2859
        %2861 = vmatprep.mubr.bf16.mxu0 %v1632
        %2862 = vmatmul.mubr.bf16.gmra.mrb[0].mxu0 %v1631
        %v2863 = vpop.f32.mrb[0].mxu0
        %v2864 = vadd.f32 %v2211, %v2863
        %v2865 = vpop.f32.mrb[0].mxu0
        %v2866 = vadd.f32 %v2213, %v2865
        %v2867 = vpop.f32.mrb[0].mxu0
        %v2868 = vadd.f32 %v2215, %v2867
        %v2869 = vpop.f32.mrb[0].mxu0
        %v2870 = vadd.f32 %v2217, %v2869
        %2871 = vmatprep.mubr.bf16.mxu0 %v1634
        %2872 = vmatmul.mubr.bf16.gmra.mrb[0].mxu0 %v1633
        %v2873 = vpop.f32.mrb[0].mxu0
        %v2874 = vadd.f32 %v2221, %v2873
        %v2875 = vpop.f32.mrb[0].mxu0
        %v2876 = vadd.f32 %v2223, %v2875
        %v2877 = vpop.f32.mrb[0].mxu0
        %v2878 = vadd.f32 %v2225, %v2877
        %v2879 = vpop.f32.mrb[0].mxu0
        %v2880 = vadd.f32 %v2227, %v2879
        %2881 = vmatprep.mubr.bf16.mxu0 %v1636
        %2882 = vmatmul.mubr.bf16.gmra.mrb[0].mxu0 %v1635
        %v2883 = vpop.f32.mrb[0].mxu0
        %v2884 = vadd.f32 %v2231, %v2883
        %v2885 = vpop.f32.mrb[0].mxu0
        %v2886 = vadd.f32 %v2233, %v2885
        %v2887 = vpop.f32.mrb[0].mxu0
        %v2888 = vadd.f32 %v2235, %v2887
        %v2889 = vpop.f32.mrb[0].mxu0
        %v2890 = vadd.f32 %v2237, %v2889
        %2891 = vmatprep.mubr.bf16.mxu0 %v1638
        %2892 = vmatmul.mubr.bf16.gmra.mrb[0].mxu0 %v1637
        %v2893 = vpop.f32.mrb[0].mxu0
        %v2894 = vadd.f32 %v2241, %v2893
        %v2895 = vpop.f32.mrb[0].mxu0
        %v2896 = vadd.f32 %v2243, %v2895
        %v2897 = vpop.f32.mrb[0].mxu0
        %v2898 = vadd.f32 %v2245, %v2897
        %v2899 = vpop.f32.mrb[0].mxu0
        %v2900 = vadd.f32 %v2247, %v2899
        %2901 = vmatprep.mubr.bf16.mxu0 %v1640
        %2902 = vmatmul.mubr.bf16.gmra.mrb[0].mxu0 %v1639
        %v2903 = vpop.f32.mrb[0].mxu0
        %v2904 = vadd.f32 %v2251, %v2903
        %v2905 = vpop.f32.mrb[0].mxu0
        %v2906 = vadd.f32 %v2253, %v2905
        %v2907 = vpop.f32.mrb[0].mxu0
        %v2908 = vadd.f32 %v2255, %v2907
        %v2909 = vpop.f32.mrb[0].mxu0
        %v2910 = vadd.f32 %v2257, %v2909
        %2911 = vmatprep.mubr.bf16.mxu0 %v1642
        %2912 = vmatmul.mubr.bf16.gmra.mrb[0].mxu0 %v1641
        %v2913 = vpop.f32.mrb[0].mxu0
        %v2914 = vadd.f32 %v2261, %v2913
        %v2915 = vpop.f32.mrb[0].mxu0
        %v2916 = vadd.f32 %v2263, %v2915
        %v2917 = vpop.f32.mrb[0].mxu0
        %v2918 = vadd.f32 %v2265, %v2917
        %v2919 = vpop.f32.mrb[0].mxu0
        %v2920 = vadd.f32 %v2267, %v2919
        %2921 = vmatprep.mubr.bf16.mxu0 %v1644
        %2922 = vmatmul.mubr.bf16.gmra.mrb[0].mxu0 %v1643
        %v2923 = vpop.f32.mrb[0].mxu0
        %v2924 = vadd.f32 %v2271, %v2923
        %v2925 = vpop.f32.mrb[0].mxu0
        %v2926 = vadd.f32 %v2273, %v2925
        %v2927 = vpop.f32.mrb[0].mxu0
        %v2928 = vadd.f32 %v2275, %v2927
        %v2929 = vpop.f32.mrb[0].mxu0
        %v2930 = vadd.f32 %v2277, %v2929
        %2931 = vmatprep.mubr.bf16.mxu0 %v1646
        %2932 = vmatmul.mubr.bf16.gmra.mrb[0].mxu0 %v1645
        %v2933 = vpop.f32.mrb[0].mxu0
        %v2934 = vadd.f32 %v2281, %v2933
        %v2935 = vpop.f32.mrb[0].mxu0
        %v2936 = vadd.f32 %v2283, %v2935
        %v2937 = vpop.f32.mrb[0].mxu0
        %v2938 = vadd.f32 %v2285, %v2937
        %v2939 = vpop.f32.mrb[0].mxu0
        %v2940 = vadd.f32 %v2287, %v2939
        %2941 = vmatprep.mubr.bf16.mxu0 %v1648
        %2942 = vmatmul.mubr.bf16.gmra.mrb[0].mxu0 %v1647
        %v2943 = vpop.f32.mrb[0].mxu0
        %v2944 = vadd.f32 %v2291, %v2943
        %v2945 = vpop.f32.mrb[0].mxu0
        %v2946 = vadd.f32 %v2293, %v2945
        %v2947 = vpop.f32.mrb[0].mxu0
        %v2948 = vadd.f32 %v2295, %v2947
        %v2949 = vpop.f32.mrb[0].mxu0
        %v2950 = vadd.f32 %v2297, %v2949
        %2951 = vmatprep.mubr.bf16.mxu0 %v1650
        %2952 = vmatmul.mubr.bf16.gmra.mrb[0].mxu0 %v1649
        %v2953 = vpop.f32.mrb[0].mxu0
        %v2954 = vadd.f32 %v2301, %v2953
        %v2955 = vpop.f32.mrb[0].mxu0
        %v2956 = vadd.f32 %v2303, %v2955
        %v2957 = vpop.f32.mrb[0].mxu0
        %v2958 = vadd.f32 %v2305, %v2957
        %v2959 = vpop.f32.mrb[0].mxu0
        %v2960 = vadd.f32 %v2307, %v2959
        %2961 = vmatprep.mubr.bf16.mxu0 %v1652
        %2962 = vmatmul.mubr.bf16.gmra.mrb[0].mxu0 %v1651
        %v2963 = vpop.f32.mrb[0].mxu0
        %v2964 = vadd.f32 %v2311, %v2963
        %v2965 = vpop.f32.mrb[0].mxu0
        %v2966 = vadd.f32 %v2313, %v2965
        %v2967 = vpop.f32.mrb[0].mxu0
        %v2968 = vadd.f32 %v2315, %v2967
        %v2969 = vpop.f32.mrb[0].mxu0
        %v2970 = vadd.f32 %v2317, %v2969
        %2971 = vmatprep.mubr.bf16.mxu0 %v1654
        %2972 = vmatmul.mubr.bf16.gmra.mrb[0].mxu0 %v1653
        %v2973 = vpop.f32.mrb[0].mxu0
        %v2974 = vadd.f32 %v2321, %v2973
        %v2975 = vpop.f32.mrb[0].mxu0
        %v2976 = vadd.f32 %v2323, %v2975
        %v2977 = vpop.f32.mrb[0].mxu0
        %v2978 = vadd.f32 %v2325, %v2977
        %v2979 = vpop.f32.mrb[0].mxu0
        %v2980 = vadd.f32 %v2327, %v2979
        %2981 = vmatprep.mubr.bf16.mxu0 %v1656
        %2982 = vmatmul.mubr.bf16.gmra.mrb[0].mxu0 %v1655
        %v2983 = vpop.f32.mrb[0].mxu0
        %v2984 = vadd.f32 %v2331, %v2983
        %v2985 = vpop.f32.mrb[0].mxu0
        %v2986 = vadd.f32 %v2333, %v2985
        %v2987 = vpop.f32.mrb[0].mxu0
        %v2988 = vadd.f32 %v2335, %v2987
        %v2989 = vpop.f32.mrb[0].mxu0
        %v2990 = vadd.f32 %v2337, %v2989
        %2991 = vmatprep.mubr.bf16.mxu0 %v1658
        %2992 = vmatmul.mubr.bf16.gmra.mrb[0].mxu0 %v1657
        %v2993 = vpop.f32.mrb[0].mxu0
        %v2994 = vadd.f32 %v2341, %v2993
        %v2995 = vpop.f32.mrb[0].mxu0
        %v2996 = vadd.f32 %v2343, %v2995
        %v2997 = vpop.f32.mrb[0].mxu0
        %v2998 = vadd.f32 %v2345, %v2997
        %v2999 = vpop.f32.mrb[0].mxu0
        %v3000 = vadd.f32 %v2347, %v2999
        %3001 = vmatprep.mubr.bf16.mxu0 %v1660
        %3002 = vmatmul.mubr.bf16.gmra.mrb[0].mxu0 %v1659
        %v3003 = vpop.f32.mrb[0].mxu0
        %v3004 = vadd.f32 %v2351, %v3003
        %v3005 = vpop.f32.mrb[0].mxu0
        %v3006 = vadd.f32 %v2353, %v3005
        %v3007 = vpop.f32.mrb[0].mxu0
        %v3008 = vadd.f32 %v2355, %v3007
        %v3009 = vpop.f32.mrb[0].mxu0
        %v3010 = vadd.f32 %v2357, %v3009
        %3011 = vmatprep.mubr.bf16.mxu0 %v1662
        %3012 = vmatmul.mubr.bf16.gmra.mrb[0].mxu0 %v1661
        %v3013 = vpop.f32.mrb[0].mxu0
        %v3014 = vadd.f32 %v2361, %v3013
        %v3015 = vpop.f32.mrb[0].mxu0
        %v3016 = vadd.f32 %v2363, %v3015
        %v3017 = vpop.f32.mrb[0].mxu0
        %v3018 = vadd.f32 %v2365, %v3017
        %v3019 = vpop.f32.mrb[0].mxu0
        %v3020 = vadd.f32 %v2367, %v3019
        %3021 = vmatprep.mubr.bf16.mxu0 %v1664
        %3022 = vmatmul.mubr.bf16.gmra.mrb[0].mxu0 %v1663
        %v3023 = vpop.f32.mrb[0].mxu0
        %v3024 = vadd.f32 %v2371, %v3023
        %v3025 = vpop.f32.mrb[0].mxu0
        %v3026 = vadd.f32 %v2373, %v3025
        %v3027 = vpop.f32.mrb[0].mxu0
        %v3028 = vadd.f32 %v2375, %v3027
        %v3029 = vpop.f32.mrb[0].mxu0
        %v3030 = vadd.f32 %v2377, %v3029
        %3031 = vmatprep.mubr.bf16.mxu0 %v1666
        %3032 = vmatmul.mubr.bf16.gmra.mrb[0].mxu0 %v1665
        %v3033 = vpop.f32.mrb[0].mxu0
        %v3034 = vadd.f32 %v2381, %v3033
        %v3035 = vpop.f32.mrb[0].mxu0
        %v3036 = vadd.f32 %v2383, %v3035
        %v3037 = vpop.f32.mrb[0].mxu0
        %v3038 = vadd.f32 %v2385, %v3037
        %v3039 = vpop.f32.mrb[0].mxu0
        %v3040 = vadd.f32 %v2387, %v3039
        %3041 = vdwg.mxu0
        %v3043 = vlaneseq
        %v3044 = vshrl.u32 %v3043, 7
        %v3045 = vsub.s32 0, %v3044
        %v3046 = vrot.slane %v1735, %v3045
        %v3047 = vlaneseq
        %v3048 = vshrl.u32 %v3047, 7
        %v3049 = vsub.s32 1, %v3048
        %v3050 = vrot.slane %v1735, %v3049
        %v3053 = vadd.f32 %v2584, %v3046
        %v3054 = vadd.f32 %v2586, %v3050
        %v3055 = vadd.f32 %v2588, %v3046
        %v3056 = vadd.f32 %v2590, %v3050
        %v3057 = vadd.f32 %v2594, %v3046
        %v3058 = vadd.f32 %v2596, %v3050
        %v3059 = vadd.f32 %v2598, %v3046
        %v3060 = vadd.f32 %v2600, %v3050
        %v3061 = vadd.f32 %v2604, %v3046
        %v3062 = vadd.f32 %v2606, %v3050
        %v3063 = vadd.f32 %v2608, %v3046
        %v3064 = vadd.f32 %v2610, %v3050
        %v3065 = vadd.f32 %v2614, %v3046
        %v3066 = vadd.f32 %v2616, %v3050
        %v3067 = vadd.f32 %v2618, %v3046
        %v3068 = vadd.f32 %v2620, %v3050
        %v3069 = vadd.f32 %v2624, %v3046
        %v3070 = vadd.f32 %v2626, %v3050
        %v3071 = vadd.f32 %v2628, %v3046
        %v3072 = vadd.f32 %v2630, %v3050
        %v3073 = vadd.f32 %v2634, %v3046
        %v3074 = vadd.f32 %v2636, %v3050
        %v3075 = vadd.f32 %v2638, %v3046
        %v3076 = vadd.f32 %v2640, %v3050
        %v3077 = vadd.f32 %v2644, %v3046
        %v3078 = vadd.f32 %v2646, %v3050
        %v3079 = vadd.f32 %v2648, %v3046
        %v3080 = vadd.f32 %v2650, %v3050
        %v3081 = vadd.f32 %v2654, %v3046
        %v3082 = vadd.f32 %v2656, %v3050
        %v3083 = vadd.f32 %v2658, %v3046
        %v3084 = vadd.f32 %v2660, %v3050
        %v3085 = vadd.f32 %v2664, %v3046
        %v3086 = vadd.f32 %v2666, %v3050
        %v3087 = vadd.f32 %v2668, %v3046
        %v3088 = vadd.f32 %v2670, %v3050
        %v3089 = vadd.f32 %v2674, %v3046
        %v3090 = vadd.f32 %v2676, %v3050
        %v3091 = vadd.f32 %v2678, %v3046
        %v3092 = vadd.f32 %v2680, %v3050
        %v3093 = vadd.f32 %v2684, %v3046
        %v3094 = vadd.f32 %v2686, %v3050
        %v3095 = vadd.f32 %v2688, %v3046
        %v3096 = vadd.f32 %v2690, %v3050
        %v3097 = vadd.f32 %v2694, %v3046
        %v3098 = vadd.f32 %v2696, %v3050
        %v3099 = vadd.f32 %v2698, %v3046
        %v3100 = vadd.f32 %v2700, %v3050
        %v3101 = vadd.f32 %v2704, %v3046
        %v3102 = vadd.f32 %v2706, %v3050
        %v3103 = vadd.f32 %v2708, %v3046
        %v3104 = vadd.f32 %v2710, %v3050
        %v3105 = vadd.f32 %v2714, %v3046
        %v3106 = vadd.f32 %v2716, %v3050
        %v3107 = vadd.f32 %v2718, %v3046
        %v3108 = vadd.f32 %v2720, %v3050
        %v3109 = vadd.f32 %v2724, %v3046
        %v3110 = vadd.f32 %v2726, %v3050
        %v3111 = vadd.f32 %v2728, %v3046
        %v3112 = vadd.f32 %v2730, %v3050
        %v3113 = vadd.f32 %v2734, %v3046
        %v3114 = vadd.f32 %v2736, %v3050
        %v3115 = vadd.f32 %v2738, %v3046
        %v3116 = vadd.f32 %v2740, %v3050
        %v3117 = vadd.f32 %v2744, %v3046
        %v3118 = vadd.f32 %v2746, %v3050
        %v3119 = vadd.f32 %v2748, %v3046
        %v3120 = vadd.f32 %v2750, %v3050
        %v3121 = vadd.f32 %v2754, %v3046
        %v3122 = vadd.f32 %v2756, %v3050
        %v3123 = vadd.f32 %v2758, %v3046
        %v3124 = vadd.f32 %v2760, %v3050
        %v3125 = vadd.f32 %v2764, %v3046
        %v3126 = vadd.f32 %v2766, %v3050
        %v3127 = vadd.f32 %v2768, %v3046
        %v3128 = vadd.f32 %v2770, %v3050
        %v3129 = vadd.f32 %v2774, %v3046
        %v3130 = vadd.f32 %v2776, %v3050
        %v3131 = vadd.f32 %v2778, %v3046
        %v3132 = vadd.f32 %v2780, %v3050
        %v3133 = vadd.f32 %v2784, %v3046
        %v3134 = vadd.f32 %v2786, %v3050
        %v3135 = vadd.f32 %v2788, %v3046
        %v3136 = vadd.f32 %v2790, %v3050
        %v3137 = vadd.f32 %v2794, %v3046
        %v3138 = vadd.f32 %v2796, %v3050
        %v3139 = vadd.f32 %v2798, %v3046
        %v3140 = vadd.f32 %v2800, %v3050
        %v3141 = vadd.f32 %v2804, %v3046
        %v3142 = vadd.f32 %v2806, %v3050
        %v3143 = vadd.f32 %v2808, %v3046
        %v3144 = vadd.f32 %v2810, %v3050
        %v3145 = vadd.f32 %v2814, %v3046
        %v3146 = vadd.f32 %v2816, %v3050
        %v3147 = vadd.f32 %v2818, %v3046
        %v3148 = vadd.f32 %v2820, %v3050
        %v3149 = vadd.f32 %v2824, %v3046
        %v3150 = vadd.f32 %v2826, %v3050
        %v3151 = vadd.f32 %v2828, %v3046
        %v3152 = vadd.f32 %v2830, %v3050
        %v3153 = vadd.f32 %v2834, %v3046
        %v3154 = vadd.f32 %v2836, %v3050
        %v3155 = vadd.f32 %v2838, %v3046
        %v3156 = vadd.f32 %v2840, %v3050
        %v3157 = vadd.f32 %v2844, %v3046
        %v3158 = vadd.f32 %v2846, %v3050
        %v3159 = vadd.f32 %v2848, %v3046
        %v3160 = vadd.f32 %v2850, %v3050
        %v3161 = vadd.f32 %v2854, %v3046
        %v3162 = vadd.f32 %v2856, %v3050
        %v3163 = vadd.f32 %v2858, %v3046
        %v3164 = vadd.f32 %v2860, %v3050
        %v3165 = vadd.f32 %v2864, %v3046
        %v3166 = vadd.f32 %v2866, %v3050
        %v3167 = vadd.f32 %v2868, %v3046
        %v3168 = vadd.f32 %v2870, %v3050
        %v3169 = vadd.f32 %v2874, %v3046
        %v3170 = vadd.f32 %v2876, %v3050
        %v3171 = vadd.f32 %v2878, %v3046
        %v3172 = vadd.f32 %v2880, %v3050
        %v3173 = vadd.f32 %v2884, %v3046
        %v3174 = vadd.f32 %v2886, %v3050
        %v3175 = vadd.f32 %v2888, %v3046
        %v3176 = vadd.f32 %v2890, %v3050
        %v3177 = vadd.f32 %v2894, %v3046
        %v3178 = vadd.f32 %v2896, %v3050
        %v3179 = vadd.f32 %v2898, %v3046
        %v3180 = vadd.f32 %v2900, %v3050
        %v3181 = vadd.f32 %v2904, %v3046
        %v3182 = vadd.f32 %v2906, %v3050
        %v3183 = vadd.f32 %v2908, %v3046
        %v3184 = vadd.f32 %v2910, %v3050
        %v3185 = vadd.f32 %v2914, %v3046
        %v3186 = vadd.f32 %v2916, %v3050
        %v3187 = vadd.f32 %v2918, %v3046
        %v3188 = vadd.f32 %v2920, %v3050
        %v3189 = vadd.f32 %v2924, %v3046
        %v3190 = vadd.f32 %v2926, %v3050
        %v3191 = vadd.f32 %v2928, %v3046
        %v3192 = vadd.f32 %v2930, %v3050
        %v3193 = vadd.f32 %v2934, %v3046
        %v3194 = vadd.f32 %v2936, %v3050
        %v3195 = vadd.f32 %v2938, %v3046
        %v3196 = vadd.f32 %v2940, %v3050
        %v3197 = vadd.f32 %v2944, %v3046
        %v3198 = vadd.f32 %v2946, %v3050
        %v3199 = vadd.f32 %v2948, %v3046
        %v3200 = vadd.f32 %v2950, %v3050
        %v3201 = vadd.f32 %v2954, %v3046
        %v3202 = vadd.f32 %v2956, %v3050
        %v3203 = vadd.f32 %v2958, %v3046
        %v3204 = vadd.f32 %v2960, %v3050
        %v3205 = vadd.f32 %v2964, %v3046
        %v3206 = vadd.f32 %v2966, %v3050
        %v3207 = vadd.f32 %v2968, %v3046
        %v3208 = vadd.f32 %v2970, %v3050
        %v3209 = vadd.f32 %v2974, %v3046
        %v3210 = vadd.f32 %v2976, %v3050
        %v3211 = vadd.f32 %v2978, %v3046
        %v3212 = vadd.f32 %v2980, %v3050
        %v3213 = vadd.f32 %v2984, %v3046
        %v3214 = vadd.f32 %v2986, %v3050
        %v3215 = vadd.f32 %v2988, %v3046
        %v3216 = vadd.f32 %v2990, %v3050
        %v3217 = vadd.f32 %v2994, %v3046
        %v3218 = vadd.f32 %v2996, %v3050
        %v3219 = vadd.f32 %v2998, %v3046
        %v3220 = vadd.f32 %v3000, %v3050
        %v3221 = vadd.f32 %v3004, %v3046
        %v3222 = vadd.f32 %v3006, %v3050
        %v3223 = vadd.f32 %v3008, %v3046
        %v3224 = vadd.f32 %v3010, %v3050
        %v3225 = vadd.f32 %v3014, %v3046
        %v3226 = vadd.f32 %v3016, %v3050
        %v3227 = vadd.f32 %v3018, %v3046
        %v3228 = vadd.f32 %v3020, %v3050
        %v3229 = vadd.f32 %v3024, %v3046
        %v3230 = vadd.f32 %v3026, %v3050
        %v3231 = vadd.f32 %v3028, %v3046
        %v3232 = vadd.f32 %v3030, %v3050
        %v3233 = vadd.f32 %v3034, %v3046
        %v3234 = vadd.f32 %v3036, %v3050
        %v3235 = vadd.f32 %v3038, %v3046
        %v3236 = vadd.f32 %v3040, %v3050
        %v3237 = vpack.c.bf16 %v3055, %v3053
        %v3238 = vpack.c.bf16 %v3056, %v3054
        %v3239 = vpack.c.bf16 %v3059, %v3057
        %v3240 = vpack.c.bf16 %v3060, %v3058
        %v3241 = vpack.c.bf16 %v3063, %v3061
        %v3242 = vpack.c.bf16 %v3064, %v3062
        %v3243 = vpack.c.bf16 %v3067, %v3065
        %v3244 = vpack.c.bf16 %v3068, %v3066
        %v3245 = vpack.c.bf16 %v3071, %v3069
        %v3246 = vpack.c.bf16 %v3072, %v3070
        %v3247 = vpack.c.bf16 %v3075, %v3073
        %v3248 = vpack.c.bf16 %v3076, %v3074
        %v3249 = vpack.c.bf16 %v3079, %v3077
        %v3250 = vpack.c.bf16 %v3080, %v3078
        %v3251 = vpack.c.bf16 %v3083, %v3081
        %v3252 = vpack.c.bf16 %v3084, %v3082
        %v3253 = vpack.c.bf16 %v3087, %v3085
        %v3254 = vpack.c.bf16 %v3088, %v3086
        %v3255 = vpack.c.bf16 %v3091, %v3089
        %v3256 = vpack.c.bf16 %v3092, %v3090
        %v3257 = vpack.c.bf16 %v3095, %v3093
        %v3258 = vpack.c.bf16 %v3096, %v3094
        %v3259 = vpack.c.bf16 %v3099, %v3097
        %v3260 = vpack.c.bf16 %v3100, %v3098
        %v3261 = vpack.c.bf16 %v3103, %v3101
        %v3262 = vpack.c.bf16 %v3104, %v3102
        %v3263 = vpack.c.bf16 %v3107, %v3105
        %v3264 = vpack.c.bf16 %v3108, %v3106
        %v3265 = vpack.c.bf16 %v3111, %v3109
        %v3266 = vpack.c.bf16 %v3112, %v3110
        %v3267 = vpack.c.bf16 %v3115, %v3113
        %v3268 = vpack.c.bf16 %v3116, %v3114
        %v3269 = vpack.c.bf16 %v3119, %v3117
        %v3270 = vpack.c.bf16 %v3120, %v3118
        %v3271 = vpack.c.bf16 %v3123, %v3121
        %v3272 = vpack.c.bf16 %v3124, %v3122
        %v3273 = vpack.c.bf16 %v3127, %v3125
        %v3274 = vpack.c.bf16 %v3128, %v3126
        %v3275 = vpack.c.bf16 %v3131, %v3129
        %v3276 = vpack.c.bf16 %v3132, %v3130
        %v3277 = vpack.c.bf16 %v3135, %v3133
        %v3278 = vpack.c.bf16 %v3136, %v3134
        %v3279 = vpack.c.bf16 %v3139, %v3137
        %v3280 = vpack.c.bf16 %v3140, %v3138
        %v3281 = vpack.c.bf16 %v3143, %v3141
        %v3282 = vpack.c.bf16 %v3144, %v3142
        %v3283 = vpack.c.bf16 %v3147, %v3145
        %v3284 = vpack.c.bf16 %v3148, %v3146
        %v3285 = vpack.c.bf16 %v3151, %v3149
        %v3286 = vpack.c.bf16 %v3152, %v3150
        %v3287 = vpack.c.bf16 %v3155, %v3153
        %v3288 = vpack.c.bf16 %v3156, %v3154
        %v3289 = vpack.c.bf16 %v3159, %v3157
        %v3290 = vpack.c.bf16 %v3160, %v3158
        %v3291 = vpack.c.bf16 %v3163, %v3161
        %v3292 = vpack.c.bf16 %v3164, %v3162
        %v3293 = vpack.c.bf16 %v3167, %v3165
        %v3294 = vpack.c.bf16 %v3168, %v3166
        %v3295 = vpack.c.bf16 %v3171, %v3169
        %v3296 = vpack.c.bf16 %v3172, %v3170
        %v3297 = vpack.c.bf16 %v3175, %v3173
        %v3298 = vpack.c.bf16 %v3176, %v3174
        %v3299 = vpack.c.bf16 %v3179, %v3177
        %v3300 = vpack.c.bf16 %v3180, %v3178
        %v3301 = vpack.c.bf16 %v3183, %v3181
        %v3302 = vpack.c.bf16 %v3184, %v3182
        %v3303 = vpack.c.bf16 %v3187, %v3185
        %v3304 = vpack.c.bf16 %v3188, %v3186
        %v3305 = vpack.c.bf16 %v3191, %v3189
        %v3306 = vpack.c.bf16 %v3192, %v3190
        %v3307 = vpack.c.bf16 %v3195, %v3193
        %v3308 = vpack.c.bf16 %v3196, %v3194
        %v3309 = vpack.c.bf16 %v3199, %v3197
        %v3310 = vpack.c.bf16 %v3200, %v3198
        %v3311 = vpack.c.bf16 %v3203, %v3201
        %v3312 = vpack.c.bf16 %v3204, %v3202
        %v3313 = vpack.c.bf16 %v3207, %v3205
        %v3314 = vpack.c.bf16 %v3208, %v3206
        %v3315 = vpack.c.bf16 %v3211, %v3209
        %v3316 = vpack.c.bf16 %v3212, %v3210
        %v3317 = vpack.c.bf16 %v3215, %v3213
        %v3318 = vpack.c.bf16 %v3216, %v3214
        %v3319 = vpack.c.bf16 %v3219, %v3217
        %v3320 = vpack.c.bf16 %v3220, %v3218
        %v3321 = vpack.c.bf16 %v3223, %v3221
        %v3322 = vpack.c.bf16 %v3224, %v3222
        %v3323 = vpack.c.bf16 %v3227, %v3225
        %v3324 = vpack.c.bf16 %v3228, %v3226
        %v3325 = vpack.c.bf16 %v3231, %v3229
        %v3326 = vpack.c.bf16 %v3232, %v3230
        %v3327 = vpack.c.bf16 %v3235, %v3233
        %v3328 = vpack.c.bf16 %v3236, %v3234
        %v3329 = vld [vmem:[#allocation14] sm:$0xff]
        %v3330 = vld [vmem:[#allocation14 + $0x8] sm:$0xff]
        %v3331 = vld [vmem:[#allocation14 + $0x10] sm:$0xff]
        %v3332 = vld [vmem:[#allocation14 + $0x18] sm:$0xff]
        %v3333 = vld [vmem:[#allocation14 + $0x20] sm:$0xff]
        %v3334 = vld [vmem:[#allocation14 + $0x28] sm:$0xff]
        %v3335 = vld [vmem:[#allocation14 + $0x30] sm:$0xff]
        %v3336 = vld [vmem:[#allocation14 + $0x38] sm:$0xff]
        %v3337 = vld [vmem:[#allocation14 + $0x40] sm:$0xff]
        %v3338 = vld [vmem:[#allocation14 + $0x48] sm:$0xff]
        %v3339 = vld [vmem:[#allocation14 + $0x50] sm:$0xff]
        %v3340 = vld [vmem:[#allocation14 + $0x58] sm:$0xff]
        %v3341 = vld [vmem:[#allocation14 + $0x60] sm:$0xff]
        %v3342 = vld [vmem:[#allocation14 + $0x68] sm:$0xff]
        %v3343 = vld [vmem:[#allocation14 + $0x70] sm:$0xff]
        %v3344 = vld [vmem:[#allocation14 + $0x78] sm:$0xff]
        %v3345 = vld [vmem:[#allocation14 + $0x80] sm:$0xff]
        %v3346 = vld [vmem:[#allocation14 + $0x88] sm:$0xff]
        %v3347 = vld [vmem:[#allocation14 + $0x90] sm:$0xff]
        %v3348 = vld [vmem:[#allocation14 + $0x98] sm:$0xff]
        %v3349 = vld [vmem:[#allocation14 + $0xa0] sm:$0xff]
        %v3350 = vld [vmem:[#allocation14 + $0xa8] sm:$0xff]
        %v3351 = vld [vmem:[#allocation14 + $0xb0] sm:$0xff]
        %v3352 = vld [vmem:[#allocation14 + $0xb8] sm:$0xff]
        %v3353 = vld [vmem:[#allocation14 + $0xc0] sm:$0xff]
        %v3354 = vld [vmem:[#allocation14 + $0xc8] sm:$0xff]
        %v3355 = vld [vmem:[#allocation14 + $0xd0] sm:$0xff]
        %v3356 = vld [vmem:[#allocation14 + $0xd8] sm:$0xff]
        %v3357 = vld [vmem:[#allocation14 + $0xe0] sm:$0xff]
        %v3358 = vld [vmem:[#allocation14 + $0xe8] sm:$0xff]
        %v3359 = vld [vmem:[#allocation14 + $0xf0] sm:$0xff]
        %v3360 = vld [vmem:[#allocation14 + $0xf8] sm:$0xff]
        %v3361 = vld [vmem:[#allocation15] sm:$0xff]
        %v3362 = vld [vmem:[#allocation15 + $0x8] sm:$0xff]
        %v3363 = vld [vmem:[#allocation15 + $0x10] sm:$0xff]
        %v3364 = vld [vmem:[#allocation15 + $0x18] sm:$0xff]
        %v3365 = vld [vmem:[#allocation15 + $0x20] sm:$0xff]
        %v3366 = vld [vmem:[#allocation15 + $0x28] sm:$0xff]
        %v3367 = vld [vmem:[#allocation15 + $0x30] sm:$0xff]
        %v3368 = vld [vmem:[#allocation15 + $0x38] sm:$0xff]
        %v3369 = vld [vmem:[#allocation15 + $0x40] sm:$0xff]
        %v3370 = vld [vmem:[#allocation15 + $0x48] sm:$0xff]
        %v3371 = vld [vmem:[#allocation15 + $0x50] sm:$0xff]
        %v3372 = vld [vmem:[#allocation15 + $0x58] sm:$0xff]
        %v3373 = vld [vmem:[#allocation15 + $0x60] sm:$0xff]
        %v3374 = vld [vmem:[#allocation15 + $0x68] sm:$0xff]
        %v3375 = vld [vmem:[#allocation15 + $0x70] sm:$0xff]
        %v3376 = vld [vmem:[#allocation15 + $0x78] sm:$0xff]
        %v3377 = vld [vmem:[#allocation15 + $0x80] sm:$0xff]
        %v3378 = vld [vmem:[#allocation15 + $0x88] sm:$0xff]
        %v3379 = vld [vmem:[#allocation15 + $0x90] sm:$0xff]
        %v3380 = vld [vmem:[#allocation15 + $0x98] sm:$0xff]
        %v3381 = vld [vmem:[#allocation15 + $0xa0] sm:$0xff]
        %v3382 = vld [vmem:[#allocation15 + $0xa8] sm:$0xff]
        %v3383 = vld [vmem:[#allocation15 + $0xb0] sm:$0xff]
        %v3384 = vld [vmem:[#allocation15 + $0xb8] sm:$0xff]
        %v3385 = vld [vmem:[#allocation15 + $0xc0] sm:$0xff]
        %v3386 = vld [vmem:[#allocation15 + $0xc8] sm:$0xff]
        %v3387 = vld [vmem:[#allocation15 + $0xd0] sm:$0xff]
        %v3388 = vld [vmem:[#allocation15 + $0xd8] sm:$0xff]
        %v3389 = vld [vmem:[#allocation15 + $0xe0] sm:$0xff]
        %v3390 = vld [vmem:[#allocation15 + $0xe8] sm:$0xff]
        %v3391 = vld [vmem:[#allocation15 + $0xf0] sm:$0xff]
        %v3392 = vld [vmem:[#allocation15 + $0xf8] sm:$0xff]
        %v3393 = vld [vmem:[#allocation17] sm:$0x3]
        %v3426 = vunpack.c.l.b16 %v3361
        %v3427 = vunpack.c.h.b16 %v3361
        %v3428 = vunpack.c.l.b16 %v3362
        %v3429 = vunpack.c.h.b16 %v3362
        %v3430 = vunpack.c.l.b16 %v3363
        %v3431 = vunpack.c.h.b16 %v3363
        %v3432 = vunpack.c.l.b16 %v3364
        %v3433 = vunpack.c.h.b16 %v3364
        %v3434 = vunpack.c.l.b16 %v3365
        %v3435 = vunpack.c.h.b16 %v3365
        %v3436 = vunpack.c.l.b16 %v3366
        %v3437 = vunpack.c.h.b16 %v3366
        %v3438 = vunpack.c.l.b16 %v3367
        %v3439 = vunpack.c.h.b16 %v3367
        %v3440 = vunpack.c.l.b16 %v3368
        %v3441 = vunpack.c.h.b16 %v3368
        %v3442 = vunpack.c.l.b16 %v3369
        %v3443 = vunpack.c.h.b16 %v3369
        %v3444 = vunpack.c.l.b16 %v3370
        %v3445 = vunpack.c.h.b16 %v3370
        %v3446 = vunpack.c.l.b16 %v3371
        %v3447 = vunpack.c.h.b16 %v3371
        %v3448 = vunpack.c.l.b16 %v3372
        %v3449 = vunpack.c.h.b16 %v3372
        %v3450 = vunpack.c.l.b16 %v3373
        %v3451 = vunpack.c.h.b16 %v3373
        %v3452 = vunpack.c.l.b16 %v3374
        %v3453 = vunpack.c.h.b16 %v3374
        %v3454 = vunpack.c.l.b16 %v3375
        %v3455 = vunpack.c.h.b16 %v3375
        %v3456 = vunpack.c.l.b16 %v3376
        %v3457 = vunpack.c.h.b16 %v3376
        %v3458 = vunpack.c.l.b16 %v3377
        %v3459 = vunpack.c.h.b16 %v3377
        %v3460 = vunpack.c.l.b16 %v3378
        %v3461 = vunpack.c.h.b16 %v3378
        %v3462 = vunpack.c.l.b16 %v3379
        %v3463 = vunpack.c.h.b16 %v3379
        %v3464 = vunpack.c.l.b16 %v3380
        %v3465 = vunpack.c.h.b16 %v3380
        %v3466 = vunpack.c.l.b16 %v3381
        %v3467 = vunpack.c.h.b16 %v3381
        %v3468 = vunpack.c.l.b16 %v3382
        %v3469 = vunpack.c.h.b16 %v3382
        %v3470 = vunpack.c.l.b16 %v3383
        %v3471 = vunpack.c.h.b16 %v3383
        %v3472 = vunpack.c.l.b16 %v3384
        %v3473 = vunpack.c.h.b16 %v3384
        %v3474 = vunpack.c.l.b16 %v3385
        %v3475 = vunpack.c.h.b16 %v3385
        %v3476 = vunpack.c.l.b16 %v3386
        %v3477 = vunpack.c.h.b16 %v3386
        %v3478 = vunpack.c.l.b16 %v3387
        %v3479 = vunpack.c.h.b16 %v3387
        %v3480 = vunpack.c.l.b16 %v3388
        %v3481 = vunpack.c.h.b16 %v3388
        %v3482 = vunpack.c.l.b16 %v3389
        %v3483 = vunpack.c.h.b16 %v3389
        %v3484 = vunpack.c.l.b16 %v3390
        %v3485 = vunpack.c.h.b16 %v3390
        %v3486 = vunpack.c.l.b16 %v3391
        %v3487 = vunpack.c.h.b16 %v3391
        %v3488 = vunpack.c.l.b16 %v3392
        %v3489 = vunpack.c.h.b16 %v3392
        %v3490 = vpack.c.b16 %v3428, %v3426
        %v3491 = vpack.c.b16 %v3429, %v3427
        %v3492 = vpack.c.b16 %v3432, %v3430
        %v3493 = vpack.c.b16 %v3433, %v3431
        %v3494 = vpack.c.b16 %v3436, %v3434
        %v3495 = vpack.c.b16 %v3437, %v3435
        %v3496 = vpack.c.b16 %v3440, %v3438
        %v3497 = vpack.c.b16 %v3441, %v3439
        %v3498 = vpack.c.b16 %v3444, %v3442
        %v3499 = vpack.c.b16 %v3445, %v3443
        %v3500 = vpack.c.b16 %v3448, %v3446
        %v3501 = vpack.c.b16 %v3449, %v3447
        %v3502 = vpack.c.b16 %v3452, %v3450
        %v3503 = vpack.c.b16 %v3453, %v3451
        %v3504 = vpack.c.b16 %v3456, %v3454
        %v3505 = vpack.c.b16 %v3457, %v3455
        %v3506 = vpack.c.b16 %v3460, %v3458
        %v3507 = vpack.c.b16 %v3461, %v3459
        %v3508 = vpack.c.b16 %v3464, %v3462
        %v3509 = vpack.c.b16 %v3465, %v3463
        %v3510 = vpack.c.b16 %v3468, %v3466
        %v3511 = vpack.c.b16 %v3469, %v3467
        %v3512 = vpack.c.b16 %v3472, %v3470
        %v3513 = vpack.c.b16 %v3473, %v3471
        %v3514 = vpack.c.b16 %v3476, %v3474
        %v3515 = vpack.c.b16 %v3477, %v3475
        %v3516 = vpack.c.b16 %v3480, %v3478
        %v3517 = vpack.c.b16 %v3481, %v3479
        %v3518 = vpack.c.b16 %v3484, %v3482
        %v3519 = vpack.c.b16 %v3485, %v3483
        %v3520 = vpack.c.b16 %v3488, %v3486
        %v3521 = vpack.c.b16 %v3489, %v3487
        %3554 = vmatprep.subr.bf16.mxu0 %v3491
        %3555 = vmatpush1.bf16.msra.mxu0 %v3490
        %3556 = vmatprep.subr.bf16.mxu0 %v3493
        %3557 = vmatpush1.bf16.msra.mxu0 %v3492
        %3558 = vmatprep.subr.bf16.mxu0 %v3495
        %3559 = vmatpush1.bf16.msra.mxu0 %v3494
        %3560 = vmatprep.subr.bf16.mxu0 %v3497
        %3561 = vmatpush1.bf16.msra.mxu0 %v3496
        %3562 = vmatprep.subr.bf16.mxu0 %v3499
        %3563 = vmatpush1.bf16.msra.mxu0 %v3498
        %3564 = vmatprep.subr.bf16.mxu0 %v3501
        %3565 = vmatpush1.bf16.msra.mxu0 %v3500
        %3566 = vmatprep.subr.bf16.mxu0 %v3503
        %3567 = vmatpush1.bf16.msra.mxu0 %v3502
        %3568 = vmatprep.subr.bf16.mxu0 %v3505
        %3569 = vmatpush1.bf16.msra.mxu0 %v3504
        %3570 = vmatprep.subr.bf16.mxu0 %v3507
        %3571 = vmatpush1.bf16.msra.mxu0 %v3506
        %3572 = vmatprep.subr.bf16.mxu0 %v3509
        %3573 = vmatpush1.bf16.msra.mxu0 %v3508
        %3574 = vmatprep.subr.bf16.mxu0 %v3511
        %3575 = vmatpush1.bf16.msra.mxu0 %v3510
        %3576 = vmatprep.subr.bf16.mxu0 %v3513
        %3577 = vmatpush1.bf16.msra.mxu0 %v3512
        %3578 = vmatprep.subr.bf16.mxu0 %v3515
        %3579 = vmatpush1.bf16.msra.mxu0 %v3514
        %3580 = vmatprep.subr.bf16.mxu0 %v3517
        %3581 = vmatpush1.bf16.msra.mxu0 %v3516
        %3582 = vmatprep.subr.bf16.mxu0 %v3519
        %3583 = vmatpush1.bf16.msra.mxu0 %v3518
        %3584 = vmatprep.subr.bf16.mxu0 %v3521
        %3585 = vmatpush1.bf16.msra.mxu0 %v3520
        %3586 = vmatprep.mubr.bf16.mxu0 %v3242
        %3587 = vmatmul.mubr.bf16.gmra.mrb[0].mxu0 %v3241
        %v3588 = vpop.f32.mrb[0].mxu0
        %v3589 = vadd.f32 0.0, %v3588
        %v3590 = vpop.f32.mrb[0].mxu0
        %v3591 = vadd.f32 0.0, %v3590
        %v3592 = vpop.f32.mrb[0].mxu0
        %v3593 = vadd.f32 0.0, %v3592
        %v3594 = vpop.f32.mrb[0].mxu0
        %v3595 = vadd.f32 0.0, %v3594
        %3596 = vmatprep.mubr.bf16.mxu0 %v3244
        %3597 = vmatmul.mubr.bf16.gmra.mrb[0].mxu0 %v3243
        %v3598 = vpop.f32.mrb[0].mxu0
        %v3599 = vadd.f32 0.0, %v3598
        %v3600 = vpop.f32.mrb[0].mxu0
        %v3601 = vadd.f32 0.0, %v3600
        %v3602 = vpop.f32.mrb[0].mxu0
        %v3603 = vadd.f32 0.0, %v3602
        %v3604 = vpop.f32.mrb[0].mxu0
        %v3605 = vadd.f32 0.0, %v3604
        %3606 = vmatprep.mubr.bf16.mxu0 %v3246
        %3607 = vmatmul.mubr.bf16.gmra.mrb[0].mxu0 %v3245
        %v3608 = vpop.f32.mrb[0].mxu0
        %v3609 = vadd.f32 0.0, %v3608
        %v3610 = vpop.f32.mrb[0].mxu0
        %v3611 = vadd.f32 0.0, %v3610
        %v3612 = vpop.f32.mrb[0].mxu0
        %v3613 = vadd.f32 0.0, %v3612
        %v3614 = vpop.f32.mrb[0].mxu0
        %v3615 = vadd.f32 0.0, %v3614
        %3616 = vmatprep.mubr.bf16.mxu0 %v3248
        %3617 = vmatmul.mubr.bf16.gmra.mrb[0].mxu0 %v3247
        %v3618 = vpop.f32.mrb[0].mxu0
        %v3619 = vadd.f32 0.0, %v3618
        %v3620 = vpop.f32.mrb[0].mxu0
        %v3621 = vadd.f32 0.0, %v3620
        %v3622 = vpop.f32.mrb[0].mxu0
        %v3623 = vadd.f32 0.0, %v3622
        %v3624 = vpop.f32.mrb[0].mxu0
        %v3625 = vadd.f32 0.0, %v3624
        %3626 = vmatprep.mubr.bf16.mxu0 %v3250
        %3627 = vmatmul.mubr.bf16.gmra.mrb[0].mxu0 %v3249
        %v3628 = vpop.f32.mrb[0].mxu0
        %v3629 = vadd.f32 0.0, %v3628
        %v3630 = vpop.f32.mrb[0].mxu0
        %v3631 = vadd.f32 0.0, %v3630
        %v3632 = vpop.f32.mrb[0].mxu0
        %v3633 = vadd.f32 0.0, %v3632
        %v3634 = vpop.f32.mrb[0].mxu0
        %v3635 = vadd.f32 0.0, %v3634
        %3636 = vmatprep.mubr.bf16.mxu0 %v3252
        %3637 = vmatmul.mubr.bf16.gmra.mrb[0].mxu0 %v3251
        %v3638 = vpop.f32.mrb[0].mxu0
        %v3639 = vadd.f32 0.0, %v3638
        %v3640 = vpop.f32.mrb[0].mxu0
        %v3641 = vadd.f32 0.0, %v3640
        %v3642 = vpop.f32.mrb[0].mxu0
        %v3643 = vadd.f32 0.0, %v3642
        %v3644 = vpop.f32.mrb[0].mxu0
        %v3645 = vadd.f32 0.0, %v3644
        %3646 = vmatprep.mubr.bf16.mxu0 %v3254
        %3647 = vmatmul.mubr.bf16.gmra.mrb[0].mxu0 %v3253
        %v3648 = vpop.f32.mrb[0].mxu0
        %v3649 = vadd.f32 0.0, %v3648
        %v3650 = vpop.f32.mrb[0].mxu0
        %v3651 = vadd.f32 0.0, %v3650
        %v3652 = vpop.f32.mrb[0].mxu0
        %v3653 = vadd.f32 0.0, %v3652
        %v3654 = vpop.f32.mrb[0].mxu0
        %v3655 = vadd.f32 0.0, %v3654
        %3656 = vmatprep.mubr.bf16.mxu0 %v3256
        %3657 = vmatmul.mubr.bf16.gmra.mrb[0].mxu0 %v3255
        %v3658 = vpop.f32.mrb[0].mxu0
        %v3659 = vadd.f32 0.0, %v3658
        %v3660 = vpop.f32.mrb[0].mxu0
        %v3661 = vadd.f32 0.0, %v3660
        %v3662 = vpop.f32.mrb[0].mxu0
        %v3663 = vadd.f32 0.0, %v3662
        %v3664 = vpop.f32.mrb[0].mxu0
        %v3665 = vadd.f32 0.0, %v3664
        %3666 = vmatprep.mubr.bf16.mxu0 %v3258
        %3667 = vmatmul.mubr.bf16.gmra.mrb[0].mxu0 %v3257
        %v3668 = vpop.f32.mrb[0].mxu0
        %v3669 = vadd.f32 0.0, %v3668
        %v3670 = vpop.f32.mrb[0].mxu0
        %v3671 = vadd.f32 0.0, %v3670
        %v3672 = vpop.f32.mrb[0].mxu0
        %v3673 = vadd.f32 0.0, %v3672
        %v3674 = vpop.f32.mrb[0].mxu0
        %v3675 = vadd.f32 0.0, %v3674
        %3676 = vmatprep.mubr.bf16.mxu0 %v3260
        %3677 = vmatmul.mubr.bf16.gmra.mrb[0].mxu0 %v3259
        %v3678 = vpop.f32.mrb[0].mxu0
        %v3679 = vadd.f32 0.0, %v3678
        %v3680 = vpop.f32.mrb[0].mxu0
        %v3681 = vadd.f32 0.0, %v3680
        %v3682 = vpop.f32.mrb[0].mxu0
        %v3683 = vadd.f32 0.0, %v3682
        %v3684 = vpop.f32.mrb[0].mxu0
        %v3685 = vadd.f32 0.0, %v3684
        %3686 = vmatprep.mubr.bf16.mxu0 %v3262
        %3687 = vmatmul.mubr.bf16.gmra.mrb[0].mxu0 %v3261
        %v3688 = vpop.f32.mrb[0].mxu0
        %v3689 = vadd.f32 0.0, %v3688
        %v3690 = vpop.f32.mrb[0].mxu0
        %v3691 = vadd.f32 0.0, %v3690
        %v3692 = vpop.f32.mrb[0].mxu0
        %v3693 = vadd.f32 0.0, %v3692
        %v3694 = vpop.f32.mrb[0].mxu0
        %v3695 = vadd.f32 0.0, %v3694
        %3696 = vmatprep.mubr.bf16.mxu0 %v3264
        %3697 = vmatmul.mubr.bf16.gmra.mrb[0].mxu0 %v3263
        %v3698 = vpop.f32.mrb[0].mxu0
        %v3699 = vadd.f32 0.0, %v3698
        %v3700 = vpop.f32.mrb[0].mxu0
        %v3701 = vadd.f32 0.0, %v3700
        %v3702 = vpop.f32.mrb[0].mxu0
        %v3703 = vadd.f32 0.0, %v3702
        %v3704 = vpop.f32.mrb[0].mxu0
        %v3705 = vadd.f32 0.0, %v3704
        %3706 = vmatprep.mubr.bf16.mxu0 %v3266
        %3707 = vmatmul.mubr.bf16.gmra.mrb[0].mxu0 %v3265
        %v3708 = vpop.f32.mrb[0].mxu0
        %v3709 = vadd.f32 0.0, %v3708
        %v3710 = vpop.f32.mrb[0].mxu0
        %v3711 = vadd.f32 0.0, %v3710
        %v3712 = vpop.f32.mrb[0].mxu0
        %v3713 = vadd.f32 0.0, %v3712
        %v3714 = vpop.f32.mrb[0].mxu0
        %v3715 = vadd.f32 0.0, %v3714
        %3716 = vmatprep.mubr.bf16.mxu0 %v3268
        %3717 = vmatmul.mubr.bf16.gmra.mrb[0].mxu0 %v3267
        %v3718 = vpop.f32.mrb[0].mxu0
        %v3719 = vadd.f32 0.0, %v3718
        %v3720 = vpop.f32.mrb[0].mxu0
        %v3721 = vadd.f32 0.0, %v3720
        %v3722 = vpop.f32.mrb[0].mxu0
        %v3723 = vadd.f32 0.0, %v3722
        %v3724 = vpop.f32.mrb[0].mxu0
        %v3725 = vadd.f32 0.0, %v3724
        %3726 = vmatprep.mubr.bf16.mxu0 %v3270
        %3727 = vmatmul.mubr.bf16.gmra.mrb[0].mxu0 %v3269
        %v3728 = vpop.f32.mrb[0].mxu0
        %v3729 = vadd.f32 0.0, %v3728
        %v3730 = vpop.f32.mrb[0].mxu0
        %v3731 = vadd.f32 0.0, %v3730
        %v3732 = vpop.f32.mrb[0].mxu0
        %v3733 = vadd.f32 0.0, %v3732
        %v3734 = vpop.f32.mrb[0].mxu0
        %v3735 = vadd.f32 0.0, %v3734
        %3736 = vmatprep.mubr.bf16.mxu0 %v3272
        %3737 = vmatmul.mubr.bf16.gmra.mrb[0].mxu0 %v3271
        %v3738 = vpop.f32.mrb[0].mxu0
        %v3739 = vadd.f32 0.0, %v3738
        %v3740 = vpop.f32.mrb[0].mxu0
        %v3741 = vadd.f32 0.0, %v3740
        %v3742 = vpop.f32.mrb[0].mxu0
        %v3743 = vadd.f32 0.0, %v3742
        %v3744 = vpop.f32.mrb[0].mxu0
        %v3745 = vadd.f32 0.0, %v3744
        %3746 = vmatprep.mubr.bf16.mxu0 %v3274
        %3747 = vmatmul.mubr.bf16.gmra.mrb[0].mxu0 %v3273
        %v3748 = vpop.f32.mrb[0].mxu0
        %v3749 = vadd.f32 0.0, %v3748
        %v3750 = vpop.f32.mrb[0].mxu0
        %v3751 = vadd.f32 0.0, %v3750
        %v3752 = vpop.f32.mrb[0].mxu0
        %v3753 = vadd.f32 0.0, %v3752
        %v3754 = vpop.f32.mrb[0].mxu0
        %v3755 = vadd.f32 0.0, %v3754
        %3756 = vmatprep.mubr.bf16.mxu0 %v3276
        %3757 = vmatmul.mubr.bf16.gmra.mrb[0].mxu0 %v3275
        %v3758 = vpop.f32.mrb[0].mxu0
        %v3759 = vadd.f32 0.0, %v3758
        %v3760 = vpop.f32.mrb[0].mxu0
        %v3761 = vadd.f32 0.0, %v3760
        %v3762 = vpop.f32.mrb[0].mxu0
        %v3763 = vadd.f32 0.0, %v3762
        %v3764 = vpop.f32.mrb[0].mxu0
        %v3765 = vadd.f32 0.0, %v3764
        %3766 = vmatprep.mubr.bf16.mxu0 %v3278
        %3767 = vmatmul.mubr.bf16.gmra.mrb[0].mxu0 %v3277
        %v3768 = vpop.f32.mrb[0].mxu0
        %v3769 = vadd.f32 0.0, %v3768
        %v3770 = vpop.f32.mrb[0].mxu0
        %v3771 = vadd.f32 0.0, %v3770
        %v3772 = vpop.f32.mrb[0].mxu0
        %v3773 = vadd.f32 0.0, %v3772
        %v3774 = vpop.f32.mrb[0].mxu0
        %v3775 = vadd.f32 0.0, %v3774
        %3776 = vmatprep.mubr.bf16.mxu0 %v3280
        %3777 = vmatmul.mubr.bf16.gmra.mrb[0].mxu0 %v3279
        %v3778 = vpop.f32.mrb[0].mxu0
        %v3779 = vadd.f32 0.0, %v3778
        %v3780 = vpop.f32.mrb[0].mxu0
        %v3781 = vadd.f32 0.0, %v3780
        %v3782 = vpop.f32.mrb[0].mxu0
        %v3783 = vadd.f32 0.0, %v3782
        %v3784 = vpop.f32.mrb[0].mxu0
        %v3785 = vadd.f32 0.0, %v3784
        %3786 = vmatprep.mubr.bf16.mxu0 %v3282
        %3787 = vmatmul.mubr.bf16.gmra.mrb[0].mxu0 %v3281
        %v3788 = vpop.f32.mrb[0].mxu0
        %v3789 = vadd.f32 0.0, %v3788
        %v3790 = vpop.f32.mrb[0].mxu0
        %v3791 = vadd.f32 0.0, %v3790
        %v3792 = vpop.f32.mrb[0].mxu0
        %v3793 = vadd.f32 0.0, %v3792
        %v3794 = vpop.f32.mrb[0].mxu0
        %v3795 = vadd.f32 0.0, %v3794
        %3796 = vmatprep.mubr.bf16.mxu0 %v3284
        %3797 = vmatmul.mubr.bf16.gmra.mrb[0].mxu0 %v3283
        %v3798 = vpop.f32.mrb[0].mxu0
        %v3799 = vadd.f32 0.0, %v3798
        %v3800 = vpop.f32.mrb[0].mxu0
        %v3801 = vadd.f32 0.0, %v3800
        %v3802 = vpop.f32.mrb[0].mxu0
        %v3803 = vadd.f32 0.0, %v3802
        %v3804 = vpop.f32.mrb[0].mxu0
        %v3805 = vadd.f32 0.0, %v3804
        %3806 = vmatprep.mubr.bf16.mxu0 %v3286
        %3807 = vmatmul.mubr.bf16.gmra.mrb[0].mxu0 %v3285
        %v3808 = vpop.f32.mrb[0].mxu0
        %v3809 = vadd.f32 0.0, %v3808
        %v3810 = vpop.f32.mrb[0].mxu0
        %v3811 = vadd.f32 0.0, %v3810
        %v3812 = vpop.f32.mrb[0].mxu0
        %v3813 = vadd.f32 0.0, %v3812
        %v3814 = vpop.f32.mrb[0].mxu0
        %v3815 = vadd.f32 0.0, %v3814
        %3816 = vmatprep.mubr.bf16.mxu0 %v3288
        %3817 = vmatmul.mubr.bf16.gmra.mrb[0].mxu0 %v3287
        %v3818 = vpop.f32.mrb[0].mxu0
        %v3819 = vadd.f32 0.0, %v3818
        %v3820 = vpop.f32.mrb[0].mxu0
        %v3821 = vadd.f32 0.0, %v3820
        %v3822 = vpop.f32.mrb[0].mxu0
        %v3823 = vadd.f32 0.0, %v3822
        %v3824 = vpop.f32.mrb[0].mxu0
        %v3825 = vadd.f32 0.0, %v3824
        %3826 = vmatprep.mubr.bf16.mxu0 %v3290
        %3827 = vmatmul.mubr.bf16.gmra.mrb[0].mxu0 %v3289
        %v3828 = vpop.f32.mrb[0].mxu0
        %v3829 = vadd.f32 0.0, %v3828
        %v3830 = vpop.f32.mrb[0].mxu0
        %v3831 = vadd.f32 0.0, %v3830
        %v3832 = vpop.f32.mrb[0].mxu0
        %v3833 = vadd.f32 0.0, %v3832
        %v3834 = vpop.f32.mrb[0].mxu0
        %v3835 = vadd.f32 0.0, %v3834
        %3836 = vmatprep.mubr.bf16.mxu0 %v3292
        %3837 = vmatmul.mubr.bf16.gmra.mrb[0].mxu0 %v3291
        %v3838 = vpop.f32.mrb[0].mxu0
        %v3839 = vadd.f32 0.0, %v3838
        %v3840 = vpop.f32.mrb[0].mxu0
        %v3841 = vadd.f32 0.0, %v3840
        %v3842 = vpop.f32.mrb[0].mxu0
        %v3843 = vadd.f32 0.0, %v3842
        %v3844 = vpop.f32.mrb[0].mxu0
        %v3845 = vadd.f32 0.0, %v3844
        %3846 = vmatprep.mubr.bf16.mxu0 %v3294
        %3847 = vmatmul.mubr.bf16.gmra.mrb[0].mxu0 %v3293
        %v3848 = vpop.f32.mrb[0].mxu0
        %v3849 = vadd.f32 0.0, %v3848
        %v3850 = vpop.f32.mrb[0].mxu0
        %v3851 = vadd.f32 0.0, %v3850
        %v3852 = vpop.f32.mrb[0].mxu0
        %v3853 = vadd.f32 0.0, %v3852
        %v3854 = vpop.f32.mrb[0].mxu0
        %v3855 = vadd.f32 0.0, %v3854
        %3856 = vmatprep.mubr.bf16.mxu0 %v3296
        %3857 = vmatmul.mubr.bf16.gmra.mrb[0].mxu0 %v3295
        %v3858 = vpop.f32.mrb[0].mxu0
        %v3859 = vadd.f32 0.0, %v3858
        %v3860 = vpop.f32.mrb[0].mxu0
        %v3861 = vadd.f32 0.0, %v3860
        %v3862 = vpop.f32.mrb[0].mxu0
        %v3863 = vadd.f32 0.0, %v3862
        %v3864 = vpop.f32.mrb[0].mxu0
        %v3865 = vadd.f32 0.0, %v3864
        %3866 = vmatprep.mubr.bf16.mxu0 %v3298
        %3867 = vmatmul.mubr.bf16.gmra.mrb[0].mxu0 %v3297
        %v3868 = vpop.f32.mrb[0].mxu0
        %v3869 = vadd.f32 0.0, %v3868
        %v3870 = vpop.f32.mrb[0].mxu0
        %v3871 = vadd.f32 0.0, %v3870
        %v3872 = vpop.f32.mrb[0].mxu0
        %v3873 = vadd.f32 0.0, %v3872
        %v3874 = vpop.f32.mrb[0].mxu0
        %v3875 = vadd.f32 0.0, %v3874
        %3876 = vmatprep.mubr.bf16.mxu0 %v3300
        %3877 = vmatmul.mubr.bf16.gmra.mrb[0].mxu0 %v3299
        %v3878 = vpop.f32.mrb[0].mxu0
        %v3879 = vadd.f32 0.0, %v3878
        %v3880 = vpop.f32.mrb[0].mxu0
        %v3881 = vadd.f32 0.0, %v3880
        %v3882 = vpop.f32.mrb[0].mxu0
        %v3883 = vadd.f32 0.0, %v3882
        %v3884 = vpop.f32.mrb[0].mxu0
        %v3885 = vadd.f32 0.0, %v3884
        %3886 = vmatprep.mubr.bf16.mxu0 %v3302
        %3887 = vmatmul.mubr.bf16.gmra.mrb[0].mxu0 %v3301
        %v3888 = vpop.f32.mrb[0].mxu0
        %v3889 = vadd.f32 0.0, %v3888
        %v3890 = vpop.f32.mrb[0].mxu0
        %v3891 = vadd.f32 0.0, %v3890
        %v3892 = vpop.f32.mrb[0].mxu0
        %v3893 = vadd.f32 0.0, %v3892
        %v3894 = vpop.f32.mrb[0].mxu0
        %v3895 = vadd.f32 0.0, %v3894
        %3896 = vmatprep.mubr.bf16.mxu0 %v3304
        %3897 = vmatmul.mubr.bf16.gmra.mrb[0].mxu0 %v3303
        %v3898 = vpop.f32.mrb[0].mxu0
        %v3899 = vadd.f32 0.0, %v3898
        %v3900 = vpop.f32.mrb[0].mxu0
        %v3901 = vadd.f32 0.0, %v3900
        %v3902 = vpop.f32.mrb[0].mxu0
        %v3903 = vadd.f32 0.0, %v3902
        %v3904 = vpop.f32.mrb[0].mxu0
        %v3905 = vadd.f32 0.0, %v3904
        %3906 = vmatprep.mubr.bf16.mxu0 %v3306
        %3907 = vmatmul.mubr.bf16.gmra.mrb[0].mxu0 %v3305
        %v3908 = vpop.f32.mrb[0].mxu0
        %v3909 = vadd.f32 0.0, %v3908
        %v3910 = vpop.f32.mrb[0].mxu0
        %v3911 = vadd.f32 0.0, %v3910
        %v3912 = vpop.f32.mrb[0].mxu0
        %v3913 = vadd.f32 0.0, %v3912
        %v3914 = vpop.f32.mrb[0].mxu0
        %v3915 = vadd.f32 0.0, %v3914
        %3916 = vmatprep.mubr.bf16.mxu0 %v3308
        %3917 = vmatmul.mubr.bf16.gmra.mrb[0].mxu0 %v3307
        %v3918 = vpop.f32.mrb[0].mxu0
        %v3919 = vadd.f32 0.0, %v3918
        %v3920 = vpop.f32.mrb[0].mxu0
        %v3921 = vadd.f32 0.0, %v3920
        %v3922 = vpop.f32.mrb[0].mxu0
        %v3923 = vadd.f32 0.0, %v3922
        %v3924 = vpop.f32.mrb[0].mxu0
        %v3925 = vadd.f32 0.0, %v3924
        %3926 = vmatprep.mubr.bf16.mxu0 %v3310
        %3927 = vmatmul.mubr.bf16.gmra.mrb[0].mxu0 %v3309
        %v3928 = vpop.f32.mrb[0].mxu0
        %v3929 = vadd.f32 0.0, %v3928
        %v3930 = vpop.f32.mrb[0].mxu0
        %v3931 = vadd.f32 0.0, %v3930
        %v3932 = vpop.f32.mrb[0].mxu0
        %v3933 = vadd.f32 0.0, %v3932
        %v3934 = vpop.f32.mrb[0].mxu0
        %v3935 = vadd.f32 0.0, %v3934
        %3936 = vmatprep.mubr.bf16.mxu0 %v3312
        %3937 = vmatmul.mubr.bf16.gmra.mrb[0].mxu0 %v3311
        %v3938 = vpop.f32.mrb[0].mxu0
        %v3939 = vadd.f32 0.0, %v3938
        %v3940 = vpop.f32.mrb[0].mxu0
        %v3941 = vadd.f32 0.0, %v3940
        %v3942 = vpop.f32.mrb[0].mxu0
        %v3943 = vadd.f32 0.0, %v3942
        %v3944 = vpop.f32.mrb[0].mxu0
        %v3945 = vadd.f32 0.0, %v3944
        %3946 = vmatprep.mubr.bf16.mxu0 %v3314
        %3947 = vmatmul.mubr.bf16.gmra.mrb[0].mxu0 %v3313
        %v3948 = vpop.f32.mrb[0].mxu0
        %v3949 = vadd.f32 0.0, %v3948
        %v3950 = vpop.f32.mrb[0].mxu0
        %v3951 = vadd.f32 0.0, %v3950
        %v3952 = vpop.f32.mrb[0].mxu0
        %v3953 = vadd.f32 0.0, %v3952
        %v3954 = vpop.f32.mrb[0].mxu0
        %v3955 = vadd.f32 0.0, %v3954
        %3956 = vmatprep.mubr.bf16.mxu0 %v3316
        %3957 = vmatmul.mubr.bf16.gmra.mrb[0].mxu0 %v3315
        %v3958 = vpop.f32.mrb[0].mxu0
        %v3959 = vadd.f32 0.0, %v3958
        %v3960 = vpop.f32.mrb[0].mxu0
        %v3961 = vadd.f32 0.0, %v3960
        %v3962 = vpop.f32.mrb[0].mxu0
        %v3963 = vadd.f32 0.0, %v3962
        %v3964 = vpop.f32.mrb[0].mxu0
        %v3965 = vadd.f32 0.0, %v3964
        %3966 = vmatprep.mubr.bf16.mxu0 %v3318
        %3967 = vmatmul.mubr.bf16.gmra.mrb[0].mxu0 %v3317
        %v3968 = vpop.f32.mrb[0].mxu0
        %v3969 = vadd.f32 0.0, %v3968
        %v3970 = vpop.f32.mrb[0].mxu0
        %v3971 = vadd.f32 0.0, %v3970
        %v3972 = vpop.f32.mrb[0].mxu0
        %v3973 = vadd.f32 0.0, %v3972
        %v3974 = vpop.f32.mrb[0].mxu0
        %v3975 = vadd.f32 0.0, %v3974
        %3976 = vmatprep.mubr.bf16.mxu0 %v3320
        %3977 = vmatmul.mubr.bf16.gmra.mrb[0].mxu0 %v3319
        %v3978 = vpop.f32.mrb[0].mxu0
        %v3979 = vadd.f32 0.0, %v3978
        %v3980 = vpop.f32.mrb[0].mxu0
        %v3981 = vadd.f32 0.0, %v3980
        %v3982 = vpop.f32.mrb[0].mxu0
        %v3983 = vadd.f32 0.0, %v3982
        %v3984 = vpop.f32.mrb[0].mxu0
        %v3985 = vadd.f32 0.0, %v3984
        %3986 = vmatprep.mubr.bf16.mxu0 %v3322
        %3987 = vmatmul.mubr.bf16.gmra.mrb[0].mxu0 %v3321
        %v3988 = vpop.f32.mrb[0].mxu0
        %v3989 = vadd.f32 0.0, %v3988
        %v3990 = vpop.f32.mrb[0].mxu0
        %v3991 = vadd.f32 0.0, %v3990
        %v3992 = vpop.f32.mrb[0].mxu0
        %v3993 = vadd.f32 0.0, %v3992
        %v3994 = vpop.f32.mrb[0].mxu0
        %v3995 = vadd.f32 0.0, %v3994
        %3996 = vmatprep.mubr.bf16.mxu0 %v3324
        %3997 = vmatmul.mubr.bf16.gmra.mrb[0].mxu0 %v3323
        %v3998 = vpop.f32.mrb[0].mxu0
        %v3999 = vadd.f32 0.0, %v3998
        %v4000 = vpop.f32.mrb[0].mxu0
        %v4001 = vadd.f32 0.0, %v4000
        %v4002 = vpop.f32.mrb[0].mxu0
        %v4003 = vadd.f32 0.0, %v4002
        %v4004 = vpop.f32.mrb[0].mxu0
        %v4005 = vadd.f32 0.0, %v4004
        %4006 = vmatprep.mubr.bf16.mxu0 %v3326
        %4007 = vmatmul.mubr.bf16.gmra.mrb[0].mxu0 %v3325
        %v4008 = vpop.f32.mrb[0].mxu0
        %v4009 = vadd.f32 0.0, %v4008
        %v4010 = vpop.f32.mrb[0].mxu0
        %v4011 = vadd.f32 0.0, %v4010
        %v4012 = vpop.f32.mrb[0].mxu0
        %v4013 = vadd.f32 0.0, %v4012
        %v4014 = vpop.f32.mrb[0].mxu0
        %v4015 = vadd.f32 0.0, %v4014
        %4016 = vmatprep.mubr.bf16.mxu0 %v3328
        %4017 = vmatmul.mubr.bf16.gmra.mrb[0].mxu0 %v3327
        %v4018 = vpop.f32.mrb[0].mxu0
        %v4019 = vadd.f32 0.0, %v4018
        %v4020 = vpop.f32.mrb[0].mxu0
        %v4021 = vadd.f32 0.0, %v4020
        %v4022 = vpop.f32.mrb[0].mxu0
        %v4023 = vadd.f32 0.0, %v4022
        %v4024 = vpop.f32.mrb[0].mxu0
        %v4025 = vadd.f32 0.0, %v4024
        %4026 = vdwg.mxu0
        %v4059 = vunpack.c.l.b16 %v3329
        %v4060 = vunpack.c.h.b16 %v3329
        %v4061 = vunpack.c.l.b16 %v3330
        %v4062 = vunpack.c.h.b16 %v3330
        %v4063 = vunpack.c.l.b16 %v3331
        %v4064 = vunpack.c.h.b16 %v3331
        %v4065 = vunpack.c.l.b16 %v3332
        %v4066 = vunpack.c.h.b16 %v3332
        %v4067 = vunpack.c.l.b16 %v3333
        %v4068 = vunpack.c.h.b16 %v3333
        %v4069 = vunpack.c.l.b16 %v3334
        %v4070 = vunpack.c.h.b16 %v3334
        %v4071 = vunpack.c.l.b16 %v3335
        %v4072 = vunpack.c.h.b16 %v3335
        %v4073 = vunpack.c.l.b16 %v3336
        %v4074 = vunpack.c.h.b16 %v3336
        %v4075 = vunpack.c.l.b16 %v3337
        %v4076 = vunpack.c.h.b16 %v3337
        %v4077 = vunpack.c.l.b16 %v3338
        %v4078 = vunpack.c.h.b16 %v3338
        %v4079 = vunpack.c.l.b16 %v3339
        %v4080 = vunpack.c.h.b16 %v3339
        %v4081 = vunpack.c.l.b16 %v3340
        %v4082 = vunpack.c.h.b16 %v3340
        %v4083 = vunpack.c.l.b16 %v3341
        %v4084 = vunpack.c.h.b16 %v3341
        %v4085 = vunpack.c.l.b16 %v3342
        %v4086 = vunpack.c.h.b16 %v3342
        %v4087 = vunpack.c.l.b16 %v3343
        %v4088 = vunpack.c.h.b16 %v3343
        %v4089 = vunpack.c.l.b16 %v3344
        %v4090 = vunpack.c.h.b16 %v3344
        %v4091 = vunpack.c.l.b16 %v3345
        %v4092 = vunpack.c.h.b16 %v3345
        %v4093 = vunpack.c.l.b16 %v3346
        %v4094 = vunpack.c.h.b16 %v3346
        %v4095 = vunpack.c.l.b16 %v3347
        %v4096 = vunpack.c.h.b16 %v3347
        %v4097 = vunpack.c.l.b16 %v3348
        %v4098 = vunpack.c.h.b16 %v3348
        %v4099 = vunpack.c.l.b16 %v3349
        %v4100 = vunpack.c.h.b16 %v3349
        %v4101 = vunpack.c.l.b16 %v3350
        %v4102 = vunpack.c.h.b16 %v3350
        %v4103 = vunpack.c.l.b16 %v3351
        %v4104 = vunpack.c.h.b16 %v3351
        %v4105 = vunpack.c.l.b16 %v3352
        %v4106 = vunpack.c.h.b16 %v3352
        %v4107 = vunpack.c.l.b16 %v3353
        %v4108 = vunpack.c.h.b16 %v3353
        %v4109 = vunpack.c.l.b16 %v3354
        %v4110 = vunpack.c.h.b16 %v3354
        %v4111 = vunpack.c.l.b16 %v3355
        %v4112 = vunpack.c.h.b16 %v3355
        %v4113 = vunpack.c.l.b16 %v3356
        %v4114 = vunpack.c.h.b16 %v3356
        %v4115 = vunpack.c.l.b16 %v3357
        %v4116 = vunpack.c.h.b16 %v3357
        %v4117 = vunpack.c.l.b16 %v3358
        %v4118 = vunpack.c.h.b16 %v3358
        %v4119 = vunpack.c.l.b16 %v3359
        %v4120 = vunpack.c.h.b16 %v3359
        %v4121 = vunpack.c.l.b16 %v3360
        %v4122 = vunpack.c.h.b16 %v3360
        %v4123 = vpack.c.b16 %v4061, %v4059
        %v4124 = vpack.c.b16 %v4062, %v4060
        %v4125 = vpack.c.b16 %v4065, %v4063
        %v4126 = vpack.c.b16 %v4066, %v4064
        %v4127 = vpack.c.b16 %v4069, %v4067
        %v4128 = vpack.c.b16 %v4070, %v4068
        %v4129 = vpack.c.b16 %v4073, %v4071
        %v4130 = vpack.c.b16 %v4074, %v4072
        %v4131 = vpack.c.b16 %v4077, %v4075
        %v4132 = vpack.c.b16 %v4078, %v4076
        %v4133 = vpack.c.b16 %v4081, %v4079
        %v4134 = vpack.c.b16 %v4082, %v4080
        %v4135 = vpack.c.b16 %v4085, %v4083
        %v4136 = vpack.c.b16 %v4086, %v4084
        %v4137 = vpack.c.b16 %v4089, %v4087
        %v4138 = vpack.c.b16 %v4090, %v4088
        %v4139 = vpack.c.b16 %v4093, %v4091
        %v4140 = vpack.c.b16 %v4094, %v4092
        %v4141 = vpack.c.b16 %v4097, %v4095
        %v4142 = vpack.c.b16 %v4098, %v4096
        %v4143 = vpack.c.b16 %v4101, %v4099
        %v4144 = vpack.c.b16 %v4102, %v4100
        %v4145 = vpack.c.b16 %v4105, %v4103
        %v4146 = vpack.c.b16 %v4106, %v4104
        %v4147 = vpack.c.b16 %v4109, %v4107
        %v4148 = vpack.c.b16 %v4110, %v4108
        %v4149 = vpack.c.b16 %v4113, %v4111
        %v4150 = vpack.c.b16 %v4114, %v4112
        %v4151 = vpack.c.b16 %v4117, %v4115
        %v4152 = vpack.c.b16 %v4118, %v4116
        %v4153 = vpack.c.b16 %v4121, %v4119
        %v4154 = vpack.c.b16 %v4122, %v4120
        %4187 = vmatprep.subr.bf16.mxu0 %v4124
        %4188 = vmatpush1.bf16.msra.mxu0 %v4123
        %4189 = vmatprep.subr.bf16.mxu0 %v4126
        %4190 = vmatpush1.bf16.msra.mxu0 %v4125
        %4191 = vmatprep.subr.bf16.mxu0 %v4128
        %4192 = vmatpush1.bf16.msra.mxu0 %v4127
        %4193 = vmatprep.subr.bf16.mxu0 %v4130
        %4194 = vmatpush1.bf16.msra.mxu0 %v4129
        %4195 = vmatprep.subr.bf16.mxu0 %v4132
        %4196 = vmatpush1.bf16.msra.mxu0 %v4131
        %4197 = vmatprep.subr.bf16.mxu0 %v4134
        %4198 = vmatpush1.bf16.msra.mxu0 %v4133
        %4199 = vmatprep.subr.bf16.mxu0 %v4136
        %4200 = vmatpush1.bf16.msra.mxu0 %v4135
        %4201 = vmatprep.subr.bf16.mxu0 %v4138
        %4202 = vmatpush1.bf16.msra.mxu0 %v4137
        %4203 = vmatprep.subr.bf16.mxu0 %v4140
        %4204 = vmatpush1.bf16.msra.mxu0 %v4139
        %4205 = vmatprep.subr.bf16.mxu0 %v4142
        %4206 = vmatpush1.bf16.msra.mxu0 %v4141
        %4207 = vmatprep.subr.bf16.mxu0 %v4144
        %4208 = vmatpush1.bf16.msra.mxu0 %v4143
        %4209 = vmatprep.subr.bf16.mxu0 %v4146
        %4210 = vmatpush1.bf16.msra.mxu0 %v4145
        %4211 = vmatprep.subr.bf16.mxu0 %v4148
        %4212 = vmatpush1.bf16.msra.mxu0 %v4147
        %4213 = vmatprep.subr.bf16.mxu0 %v4150
        %4214 = vmatpush1.bf16.msra.mxu0 %v4149
        %4215 = vmatprep.subr.bf16.mxu0 %v4152
        %4216 = vmatpush1.bf16.msra.mxu0 %v4151
        %4217 = vmatprep.subr.bf16.mxu0 %v4154
        %4218 = vmatpush1.bf16.msra.mxu0 %v4153
        %4219 = vmatprep.mubr.bf16.mxu0 %v3238
        %4220 = vmatmul.mubr.bf16.gmra.mrb[0].mxu0 %v3237
        %v4221 = vpop.f32.mrb[0].mxu0
        %v4222 = vadd.f32 %v3589, %v4221
        %v4223 = vpop.f32.mrb[0].mxu0
        %v4224 = vadd.f32 %v3591, %v4223
        %v4225 = vpop.f32.mrb[0].mxu0
        %v4226 = vadd.f32 %v3593, %v4225
        %v4227 = vpop.f32.mrb[0].mxu0
        %v4228 = vadd.f32 %v3595, %v4227
        %4229 = vmatprep.mubr.bf16.mxu0 %v3240
        %4230 = vmatmul.mubr.bf16.gmra.mrb[0].mxu0 %v3239
        %v4231 = vpop.f32.mrb[0].mxu0
        %v4232 = vadd.f32 %v3599, %v4231
        %v4233 = vpop.f32.mrb[0].mxu0
        %v4234 = vadd.f32 %v3601, %v4233
        %v4235 = vpop.f32.mrb[0].mxu0
        %v4236 = vadd.f32 %v3603, %v4235
        %v4237 = vpop.f32.mrb[0].mxu0
        %v4238 = vadd.f32 %v3605, %v4237
        %4239 = vmatprep.mubr.bf16.mxu0 %v3242
        %4240 = vmatmul.mubr.bf16.gmra.mrb[0].mxu0 %v3241
        %v4241 = vpop.f32.mrb[0].mxu0
        %v4242 = vadd.f32 %v3609, %v4241
        %v4243 = vpop.f32.mrb[0].mxu0
        %v4244 = vadd.f32 %v3611, %v4243
        %v4245 = vpop.f32.mrb[0].mxu0
        %v4246 = vadd.f32 %v3613, %v4245
        %v4247 = vpop.f32.mrb[0].mxu0
        %v4248 = vadd.f32 %v3615, %v4247
        %4249 = vmatprep.mubr.bf16.mxu0 %v3244
        %4250 = vmatmul.mubr.bf16.gmra.mrb[0].mxu0 %v3243
        %v4251 = vpop.f32.mrb[0].mxu0
        %v4252 = vadd.f32 %v3619, %v4251
        %v4253 = vpop.f32.mrb[0].mxu0
        %v4254 = vadd.f32 %v3621, %v4253
        %v4255 = vpop.f32.mrb[0].mxu0
        %v4256 = vadd.f32 %v3623, %v4255
        %v4257 = vpop.f32.mrb[0].mxu0
        %v4258 = vadd.f32 %v3625, %v4257
        %4259 = vmatprep.mubr.bf16.mxu0 %v3246
        %4260 = vmatmul.mubr.bf16.gmra.mrb[0].mxu0 %v3245
        %v4261 = vpop.f32.mrb[0].mxu0
        %v4262 = vadd.f32 %v3629, %v4261
        %v4263 = vpop.f32.mrb[0].mxu0
        %v4264 = vadd.f32 %v3631, %v4263
        %v4265 = vpop.f32.mrb[0].mxu0
        %v4266 = vadd.f32 %v3633, %v4265
        %v4267 = vpop.f32.mrb[0].mxu0
        %v4268 = vadd.f32 %v3635, %v4267
        %4269 = vmatprep.mubr.bf16.mxu0 %v3248
        %4270 = vmatmul.mubr.bf16.gmra.mrb[0].mxu0 %v3247
        %v4271 = vpop.f32.mrb[0].mxu0
        %v4272 = vadd.f32 %v3639, %v4271
        %v4273 = vpop.f32.mrb[0].mxu0
        %v4274 = vadd.f32 %v3641, %v4273
        %v4275 = vpop.f32.mrb[0].mxu0
        %v4276 = vadd.f32 %v3643, %v4275
        %v4277 = vpop.f32.mrb[0].mxu0
        %v4278 = vadd.f32 %v3645, %v4277
        %4279 = vmatprep.mubr.bf16.mxu0 %v3250
        %4280 = vmatmul.mubr.bf16.gmra.mrb[0].mxu0 %v3249
        %v4281 = vpop.f32.mrb[0].mxu0
        %v4282 = vadd.f32 %v3649, %v4281
        %v4283 = vpop.f32.mrb[0].mxu0
        %v4284 = vadd.f32 %v3651, %v4283
        %v4285 = vpop.f32.mrb[0].mxu0
        %v4286 = vadd.f32 %v3653, %v4285
        %v4287 = vpop.f32.mrb[0].mxu0
        %v4288 = vadd.f32 %v3655, %v4287
        %4289 = vmatprep.mubr.bf16.mxu0 %v3252
        %4290 = vmatmul.mubr.bf16.gmra.mrb[0].mxu0 %v3251
        %v4291 = vpop.f32.mrb[0].mxu0
        %v4292 = vadd.f32 %v3659, %v4291
        %v4293 = vpop.f32.mrb[0].mxu0
        %v4294 = vadd.f32 %v3661, %v4293
        %v4295 = vpop.f32.mrb[0].mxu0
        %v4296 = vadd.f32 %v3663, %v4295
        %v4297 = vpop.f32.mrb[0].mxu0
        %v4298 = vadd.f32 %v3665, %v4297
        %4299 = vmatprep.mubr.bf16.mxu0 %v3254
        %4300 = vmatmul.mubr.bf16.gmra.mrb[0].mxu0 %v3253
        %v4301 = vpop.f32.mrb[0].mxu0
        %v4302 = vadd.f32 %v3669, %v4301
        %v4303 = vpop.f32.mrb[0].mxu0
        %v4304 = vadd.f32 %v3671, %v4303
        %v4305 = vpop.f32.mrb[0].mxu0
        %v4306 = vadd.f32 %v3673, %v4305
        %v4307 = vpop.f32.mrb[0].mxu0
        %v4308 = vadd.f32 %v3675, %v4307
        %4309 = vmatprep.mubr.bf16.mxu0 %v3256
        %4310 = vmatmul.mubr.bf16.gmra.mrb[0].mxu0 %v3255
        %v4311 = vpop.f32.mrb[0].mxu0
        %v4312 = vadd.f32 %v3679, %v4311
        %v4313 = vpop.f32.mrb[0].mxu0
        %v4314 = vadd.f32 %v3681, %v4313
        %v4315 = vpop.f32.mrb[0].mxu0
        %v4316 = vadd.f32 %v3683, %v4315
        %v4317 = vpop.f32.mrb[0].mxu0
        %v4318 = vadd.f32 %v3685, %v4317
        %4319 = vmatprep.mubr.bf16.mxu0 %v3258
        %4320 = vmatmul.mubr.bf16.gmra.mrb[0].mxu0 %v3257
        %v4321 = vpop.f32.mrb[0].mxu0
        %v4322 = vadd.f32 %v3689, %v4321
        %v4323 = vpop.f32.mrb[0].mxu0
        %v4324 = vadd.f32 %v3691, %v4323
        %v4325 = vpop.f32.mrb[0].mxu0
        %v4326 = vadd.f32 %v3693, %v4325
        %v4327 = vpop.f32.mrb[0].mxu0
        %v4328 = vadd.f32 %v3695, %v4327
        %4329 = vmatprep.mubr.bf16.mxu0 %v3260
        %4330 = vmatmul.mubr.bf16.gmra.mrb[0].mxu0 %v3259
        %v4331 = vpop.f32.mrb[0].mxu0
        %v4332 = vadd.f32 %v3699, %v4331
        %v4333 = vpop.f32.mrb[0].mxu0
        %v4334 = vadd.f32 %v3701, %v4333
        %v4335 = vpop.f32.mrb[0].mxu0
        %v4336 = vadd.f32 %v3703, %v4335
        %v4337 = vpop.f32.mrb[0].mxu0
        %v4338 = vadd.f32 %v3705, %v4337
        %4339 = vmatprep.mubr.bf16.mxu0 %v3262
        %4340 = vmatmul.mubr.bf16.gmra.mrb[0].mxu0 %v3261
        %v4341 = vpop.f32.mrb[0].mxu0
        %v4342 = vadd.f32 %v3709, %v4341
        %v4343 = vpop.f32.mrb[0].mxu0
        %v4344 = vadd.f32 %v3711, %v4343
        %v4345 = vpop.f32.mrb[0].mxu0
        %v4346 = vadd.f32 %v3713, %v4345
        %v4347 = vpop.f32.mrb[0].mxu0
        %v4348 = vadd.f32 %v3715, %v4347
        %4349 = vmatprep.mubr.bf16.mxu0 %v3264
        %4350 = vmatmul.mubr.bf16.gmra.mrb[0].mxu0 %v3263
        %v4351 = vpop.f32.mrb[0].mxu0
        %v4352 = vadd.f32 %v3719, %v4351
        %v4353 = vpop.f32.mrb[0].mxu0
        %v4354 = vadd.f32 %v3721, %v4353
        %v4355 = vpop.f32.mrb[0].mxu0
        %v4356 = vadd.f32 %v3723, %v4355
        %v4357 = vpop.f32.mrb[0].mxu0
        %v4358 = vadd.f32 %v3725, %v4357
        %4359 = vmatprep.mubr.bf16.mxu0 %v3266
        %4360 = vmatmul.mubr.bf16.gmra.mrb[0].mxu0 %v3265
        %v4361 = vpop.f32.mrb[0].mxu0
        %v4362 = vadd.f32 %v3729, %v4361
        %v4363 = vpop.f32.mrb[0].mxu0
        %v4364 = vadd.f32 %v3731, %v4363
        %v4365 = vpop.f32.mrb[0].mxu0
        %v4366 = vadd.f32 %v3733, %v4365
        %v4367 = vpop.f32.mrb[0].mxu0
        %v4368 = vadd.f32 %v3735, %v4367
        %4369 = vmatprep.mubr.bf16.mxu0 %v3268
        %4370 = vmatmul.mubr.bf16.gmra.mrb[0].mxu0 %v3267
        %v4371 = vpop.f32.mrb[0].mxu0
        %v4372 = vadd.f32 %v3739, %v4371
        %v4373 = vpop.f32.mrb[0].mxu0
        %v4374 = vadd.f32 %v3741, %v4373
        %v4375 = vpop.f32.mrb[0].mxu0
        %v4376 = vadd.f32 %v3743, %v4375
        %v4377 = vpop.f32.mrb[0].mxu0
        %v4378 = vadd.f32 %v3745, %v4377
        %4379 = vmatprep.mubr.bf16.mxu0 %v3270
        %4380 = vmatmul.mubr.bf16.gmra.mrb[0].mxu0 %v3269
        %v4381 = vpop.f32.mrb[0].mxu0
        %v4382 = vadd.f32 %v3749, %v4381
        %v4383 = vpop.f32.mrb[0].mxu0
        %v4384 = vadd.f32 %v3751, %v4383
        %v4385 = vpop.f32.mrb[0].mxu0
        %v4386 = vadd.f32 %v3753, %v4385
        %v4387 = vpop.f32.mrb[0].mxu0
        %v4388 = vadd.f32 %v3755, %v4387
        %4389 = vmatprep.mubr.bf16.mxu0 %v3272
        %4390 = vmatmul.mubr.bf16.gmra.mrb[0].mxu0 %v3271
        %v4391 = vpop.f32.mrb[0].mxu0
        %v4392 = vadd.f32 %v3759, %v4391
        %v4393 = vpop.f32.mrb[0].mxu0
        %v4394 = vadd.f32 %v3761, %v4393
        %v4395 = vpop.f32.mrb[0].mxu0
        %v4396 = vadd.f32 %v3763, %v4395
        %v4397 = vpop.f32.mrb[0].mxu0
        %v4398 = vadd.f32 %v3765, %v4397
        %4399 = vmatprep.mubr.bf16.mxu0 %v3274
        %4400 = vmatmul.mubr.bf16.gmra.mrb[0].mxu0 %v3273
        %v4401 = vpop.f32.mrb[0].mxu0
        %v4402 = vadd.f32 %v3769, %v4401
        %v4403 = vpop.f32.mrb[0].mxu0
        %v4404 = vadd.f32 %v3771, %v4403
        %v4405 = vpop.f32.mrb[0].mxu0
        %v4406 = vadd.f32 %v3773, %v4405
        %v4407 = vpop.f32.mrb[0].mxu0
        %v4408 = vadd.f32 %v3775, %v4407
        %4409 = vmatprep.mubr.bf16.mxu0 %v3276
        %4410 = vmatmul.mubr.bf16.gmra.mrb[0].mxu0 %v3275
        %v4411 = vpop.f32.mrb[0].mxu0
        %v4412 = vadd.f32 %v3779, %v4411
        %v4413 = vpop.f32.mrb[0].mxu0
        %v4414 = vadd.f32 %v3781, %v4413
        %v4415 = vpop.f32.mrb[0].mxu0
        %v4416 = vadd.f32 %v3783, %v4415
        %v4417 = vpop.f32.mrb[0].mxu0
        %v4418 = vadd.f32 %v3785, %v4417
        %4419 = vmatprep.mubr.bf16.mxu0 %v3278
        %4420 = vmatmul.mubr.bf16.gmra.mrb[0].mxu0 %v3277
        %v4421 = vpop.f32.mrb[0].mxu0
        %v4422 = vadd.f32 %v3789, %v4421
        %v4423 = vpop.f32.mrb[0].mxu0
        %v4424 = vadd.f32 %v3791, %v4423
        %v4425 = vpop.f32.mrb[0].mxu0
        %v4426 = vadd.f32 %v3793, %v4425
        %v4427 = vpop.f32.mrb[0].mxu0
        %v4428 = vadd.f32 %v3795, %v4427
        %4429 = vmatprep.mubr.bf16.mxu0 %v3280
        %4430 = vmatmul.mubr.bf16.gmra.mrb[0].mxu0 %v3279
        %v4431 = vpop.f32.mrb[0].mxu0
        %v4432 = vadd.f32 %v3799, %v4431
        %v4433 = vpop.f32.mrb[0].mxu0
        %v4434 = vadd.f32 %v3801, %v4433
        %v4435 = vpop.f32.mrb[0].mxu0
        %v4436 = vadd.f32 %v3803, %v4435
        %v4437 = vpop.f32.mrb[0].mxu0
        %v4438 = vadd.f32 %v3805, %v4437
        %4439 = vmatprep.mubr.bf16.mxu0 %v3282
        %4440 = vmatmul.mubr.bf16.gmra.mrb[0].mxu0 %v3281
        %v4441 = vpop.f32.mrb[0].mxu0
        %v4442 = vadd.f32 %v3809, %v4441
        %v4443 = vpop.f32.mrb[0].mxu0
        %v4444 = vadd.f32 %v3811, %v4443
        %v4445 = vpop.f32.mrb[0].mxu0
        %v4446 = vadd.f32 %v3813, %v4445
        %v4447 = vpop.f32.mrb[0].mxu0
        %v4448 = vadd.f32 %v3815, %v4447
        %4449 = vmatprep.mubr.bf16.mxu0 %v3284
        %4450 = vmatmul.mubr.bf16.gmra.mrb[0].mxu0 %v3283
        %v4451 = vpop.f32.mrb[0].mxu0
        %v4452 = vadd.f32 %v3819, %v4451
        %v4453 = vpop.f32.mrb[0].mxu0
        %v4454 = vadd.f32 %v3821, %v4453
        %v4455 = vpop.f32.mrb[0].mxu0
        %v4456 = vadd.f32 %v3823, %v4455
        %v4457 = vpop.f32.mrb[0].mxu0
        %v4458 = vadd.f32 %v3825, %v4457
        %4459 = vmatprep.mubr.bf16.mxu0 %v3286
        %4460 = vmatmul.mubr.bf16.gmra.mrb[0].mxu0 %v3285
        %v4461 = vpop.f32.mrb[0].mxu0
        %v4462 = vadd.f32 %v3829, %v4461
        %v4463 = vpop.f32.mrb[0].mxu0
        %v4464 = vadd.f32 %v3831, %v4463
        %v4465 = vpop.f32.mrb[0].mxu0
        %v4466 = vadd.f32 %v3833, %v4465
        %v4467 = vpop.f32.mrb[0].mxu0
        %v4468 = vadd.f32 %v3835, %v4467
        %4469 = vmatprep.mubr.bf16.mxu0 %v3288
        %4470 = vmatmul.mubr.bf16.gmra.mrb[0].mxu0 %v3287
        %v4471 = vpop.f32.mrb[0].mxu0
        %v4472 = vadd.f32 %v3839, %v4471
        %v4473 = vpop.f32.mrb[0].mxu0
        %v4474 = vadd.f32 %v3841, %v4473
        %v4475 = vpop.f32.mrb[0].mxu0
        %v4476 = vadd.f32 %v3843, %v4475
        %v4477 = vpop.f32.mrb[0].mxu0
        %v4478 = vadd.f32 %v3845, %v4477
        %4479 = vmatprep.mubr.bf16.mxu0 %v3290
        %4480 = vmatmul.mubr.bf16.gmra.mrb[0].mxu0 %v3289
        %v4481 = vpop.f32.mrb[0].mxu0
        %v4482 = vadd.f32 %v3849, %v4481
        %v4483 = vpop.f32.mrb[0].mxu0
        %v4484 = vadd.f32 %v3851, %v4483
        %v4485 = vpop.f32.mrb[0].mxu0
        %v4486 = vadd.f32 %v3853, %v4485
        %v4487 = vpop.f32.mrb[0].mxu0
        %v4488 = vadd.f32 %v3855, %v4487
        %4489 = vmatprep.mubr.bf16.mxu0 %v3292
        %4490 = vmatmul.mubr.bf16.gmra.mrb[0].mxu0 %v3291
        %v4491 = vpop.f32.mrb[0].mxu0
        %v4492 = vadd.f32 %v3859, %v4491
        %v4493 = vpop.f32.mrb[0].mxu0
        %v4494 = vadd.f32 %v3861, %v4493
        %v4495 = vpop.f32.mrb[0].mxu0
        %v4496 = vadd.f32 %v3863, %v4495
        %v4497 = vpop.f32.mrb[0].mxu0
        %v4498 = vadd.f32 %v3865, %v4497
        %4499 = vmatprep.mubr.bf16.mxu0 %v3294
        %4500 = vmatmul.mubr.bf16.gmra.mrb[0].mxu0 %v3293
        %v4501 = vpop.f32.mrb[0].mxu0
        %v4502 = vadd.f32 %v3869, %v4501
        %v4503 = vpop.f32.mrb[0].mxu0
        %v4504 = vadd.f32 %v3871, %v4503
        %v4505 = vpop.f32.mrb[0].mxu0
        %v4506 = vadd.f32 %v3873, %v4505
        %v4507 = vpop.f32.mrb[0].mxu0
        %v4508 = vadd.f32 %v3875, %v4507
        %4509 = vmatprep.mubr.bf16.mxu0 %v3296
        %4510 = vmatmul.mubr.bf16.gmra.mrb[0].mxu0 %v3295
        %v4511 = vpop.f32.mrb[0].mxu0
        %v4512 = vadd.f32 %v3879, %v4511
        %v4513 = vpop.f32.mrb[0].mxu0
        %v4514 = vadd.f32 %v3881, %v4513
        %v4515 = vpop.f32.mrb[0].mxu0
        %v4516 = vadd.f32 %v3883, %v4515
        %v4517 = vpop.f32.mrb[0].mxu0
        %v4518 = vadd.f32 %v3885, %v4517
        %4519 = vmatprep.mubr.bf16.mxu0 %v3298
        %4520 = vmatmul.mubr.bf16.gmra.mrb[0].mxu0 %v3297
        %v4521 = vpop.f32.mrb[0].mxu0
        %v4522 = vadd.f32 %v3889, %v4521
        %v4523 = vpop.f32.mrb[0].mxu0
        %v4524 = vadd.f32 %v3891, %v4523
        %v4525 = vpop.f32.mrb[0].mxu0
        %v4526 = vadd.f32 %v3893, %v4525
        %v4527 = vpop.f32.mrb[0].mxu0
        %v4528 = vadd.f32 %v3895, %v4527
        %4529 = vmatprep.mubr.bf16.mxu0 %v3300
        %4530 = vmatmul.mubr.bf16.gmra.mrb[0].mxu0 %v3299
        %v4531 = vpop.f32.mrb[0].mxu0
        %v4532 = vadd.f32 %v3899, %v4531
        %v4533 = vpop.f32.mrb[0].mxu0
        %v4534 = vadd.f32 %v3901, %v4533
        %v4535 = vpop.f32.mrb[0].mxu0
        %v4536 = vadd.f32 %v3903, %v4535
        %v4537 = vpop.f32.mrb[0].mxu0
        %v4538 = vadd.f32 %v3905, %v4537
        %4539 = vmatprep.mubr.bf16.mxu0 %v3302
        %4540 = vmatmul.mubr.bf16.gmra.mrb[0].mxu0 %v3301
        %v4541 = vpop.f32.mrb[0].mxu0
        %v4542 = vadd.f32 %v3909, %v4541
        %v4543 = vpop.f32.mrb[0].mxu0
        %v4544 = vadd.f32 %v3911, %v4543
        %v4545 = vpop.f32.mrb[0].mxu0
        %v4546 = vadd.f32 %v3913, %v4545
        %v4547 = vpop.f32.mrb[0].mxu0
        %v4548 = vadd.f32 %v3915, %v4547
        %4549 = vmatprep.mubr.bf16.mxu0 %v3304
        %4550 = vmatmul.mubr.bf16.gmra.mrb[0].mxu0 %v3303
        %v4551 = vpop.f32.mrb[0].mxu0
        %v4552 = vadd.f32 %v3919, %v4551
        %v4553 = vpop.f32.mrb[0].mxu0
        %v4554 = vadd.f32 %v3921, %v4553
        %v4555 = vpop.f32.mrb[0].mxu0
        %v4556 = vadd.f32 %v3923, %v4555
        %v4557 = vpop.f32.mrb[0].mxu0
        %v4558 = vadd.f32 %v3925, %v4557
        %4559 = vmatprep.mubr.bf16.mxu0 %v3306
        %4560 = vmatmul.mubr.bf16.gmra.mrb[0].mxu0 %v3305
        %v4561 = vpop.f32.mrb[0].mxu0
        %v4562 = vadd.f32 %v3929, %v4561
        %v4563 = vpop.f32.mrb[0].mxu0
        %v4564 = vadd.f32 %v3931, %v4563
        %v4565 = vpop.f32.mrb[0].mxu0
        %v4566 = vadd.f32 %v3933, %v4565
        %v4567 = vpop.f32.mrb[0].mxu0
        %v4568 = vadd.f32 %v3935, %v4567
        %4569 = vmatprep.mubr.bf16.mxu0 %v3308
        %4570 = vmatmul.mubr.bf16.gmra.mrb[0].mxu0 %v3307
        %v4571 = vpop.f32.mrb[0].mxu0
        %v4572 = vadd.f32 %v3939, %v4571
        %v4573 = vpop.f32.mrb[0].mxu0
        %v4574 = vadd.f32 %v3941, %v4573
        %v4575 = vpop.f32.mrb[0].mxu0
        %v4576 = vadd.f32 %v3943, %v4575
        %v4577 = vpop.f32.mrb[0].mxu0
        %v4578 = vadd.f32 %v3945, %v4577
        %4579 = vmatprep.mubr.bf16.mxu0 %v3310
        %4580 = vmatmul.mubr.bf16.gmra.mrb[0].mxu0 %v3309
        %v4581 = vpop.f32.mrb[0].mxu0
        %v4582 = vadd.f32 %v3949, %v4581
        %v4583 = vpop.f32.mrb[0].mxu0
        %v4584 = vadd.f32 %v3951, %v4583
        %v4585 = vpop.f32.mrb[0].mxu0
        %v4586 = vadd.f32 %v3953, %v4585
        %v4587 = vpop.f32.mrb[0].mxu0
        %v4588 = vadd.f32 %v3955, %v4587
        %4589 = vmatprep.mubr.bf16.mxu0 %v3312
        %4590 = vmatmul.mubr.bf16.gmra.mrb[0].mxu0 %v3311
        %v4591 = vpop.f32.mrb[0].mxu0
        %v4592 = vadd.f32 %v3959, %v4591
        %v4593 = vpop.f32.mrb[0].mxu0
        %v4594 = vadd.f32 %v3961, %v4593
        %v4595 = vpop.f32.mrb[0].mxu0
        %v4596 = vadd.f32 %v3963, %v4595
        %v4597 = vpop.f32.mrb[0].mxu0
        %v4598 = vadd.f32 %v3965, %v4597
        %4599 = vmatprep.mubr.bf16.mxu0 %v3314
        %4600 = vmatmul.mubr.bf16.gmra.mrb[0].mxu0 %v3313
        %v4601 = vpop.f32.mrb[0].mxu0
        %v4602 = vadd.f32 %v3969, %v4601
        %v4603 = vpop.f32.mrb[0].mxu0
        %v4604 = vadd.f32 %v3971, %v4603
        %v4605 = vpop.f32.mrb[0].mxu0
        %v4606 = vadd.f32 %v3973, %v4605
        %v4607 = vpop.f32.mrb[0].mxu0
        %v4608 = vadd.f32 %v3975, %v4607
        %4609 = vmatprep.mubr.bf16.mxu0 %v3316
        %4610 = vmatmul.mubr.bf16.gmra.mrb[0].mxu0 %v3315
        %v4611 = vpop.f32.mrb[0].mxu0
        %v4612 = vadd.f32 %v3979, %v4611
        %v4613 = vpop.f32.mrb[0].mxu0
        %v4614 = vadd.f32 %v3981, %v4613
        %v4615 = vpop.f32.mrb[0].mxu0
        %v4616 = vadd.f32 %v3983, %v4615
        %v4617 = vpop.f32.mrb[0].mxu0
        %v4618 = vadd.f32 %v3985, %v4617
        %4619 = vmatprep.mubr.bf16.mxu0 %v3318
        %4620 = vmatmul.mubr.bf16.gmra.mrb[0].mxu0 %v3317
        %v4621 = vpop.f32.mrb[0].mxu0
        %v4622 = vadd.f32 %v3989, %v4621
        %v4623 = vpop.f32.mrb[0].mxu0
        %v4624 = vadd.f32 %v3991, %v4623
        %v4625 = vpop.f32.mrb[0].mxu0
        %v4626 = vadd.f32 %v3993, %v4625
        %v4627 = vpop.f32.mrb[0].mxu0
        %v4628 = vadd.f32 %v3995, %v4627
        %4629 = vmatprep.mubr.bf16.mxu0 %v3320
        %4630 = vmatmul.mubr.bf16.gmra.mrb[0].mxu0 %v3319
        %v4631 = vpop.f32.mrb[0].mxu0
        %v4632 = vadd.f32 %v3999, %v4631
        %v4633 = vpop.f32.mrb[0].mxu0
        %v4634 = vadd.f32 %v4001, %v4633
        %v4635 = vpop.f32.mrb[0].mxu0
        %v4636 = vadd.f32 %v4003, %v4635
        %v4637 = vpop.f32.mrb[0].mxu0
        %v4638 = vadd.f32 %v4005, %v4637
        %4639 = vmatprep.mubr.bf16.mxu0 %v3322
        %4640 = vmatmul.mubr.bf16.gmra.mrb[0].mxu0 %v3321
        %v4641 = vpop.f32.mrb[0].mxu0
        %v4642 = vadd.f32 %v4009, %v4641
        %v4643 = vpop.f32.mrb[0].mxu0
        %v4644 = vadd.f32 %v4011, %v4643
        %v4645 = vpop.f32.mrb[0].mxu0
        %v4646 = vadd.f32 %v4013, %v4645
        %v4647 = vpop.f32.mrb[0].mxu0
        %v4648 = vadd.f32 %v4015, %v4647
        %4649 = vmatprep.mubr.bf16.mxu0 %v3324
        %4650 = vmatmul.mubr.bf16.gmra.mrb[0].mxu0 %v3323
        %v4651 = vpop.f32.mrb[0].mxu0
        %v4652 = vadd.f32 %v4019, %v4651
        %v4653 = vpop.f32.mrb[0].mxu0
        %v4654 = vadd.f32 %v4021, %v4653
        %v4655 = vpop.f32.mrb[0].mxu0
        %v4656 = vadd.f32 %v4023, %v4655
        %v4657 = vpop.f32.mrb[0].mxu0
        %v4658 = vadd.f32 %v4025, %v4657
        %4659 = vdwg.mxu0
        %v4661 = vlaneseq
        %v4662 = vshrl.u32 %v4661, 7
        %v4663 = vsub.s32 0, %v4662
        %v4664 = vrot.slane %v3393, %v4663
        %v4665 = vlaneseq
        %v4666 = vshrl.u32 %v4665, 7
        %v4667 = vsub.s32 1, %v4666
        %v4668 = vrot.slane %v3393, %v4667
        %v4671 = vadd.f32 %v4222, %v4664
        %v4672 = vadd.f32 %v4224, %v4668
        %v4673 = vadd.f32 %v4226, %v4664
        %v4674 = vadd.f32 %v4228, %v4668
        %v4675 = vadd.f32 %v4232, %v4664
        %v4676 = vadd.f32 %v4234, %v4668
        %v4677 = vadd.f32 %v4236, %v4664
        %v4678 = vadd.f32 %v4238, %v4668
        %v4679 = vadd.f32 %v4242, %v4664
        %v4680 = vadd.f32 %v4244, %v4668
        %v4681 = vadd.f32 %v4246, %v4664
        %v4682 = vadd.f32 %v4248, %v4668
        %v4683 = vadd.f32 %v4252, %v4664
        %v4684 = vadd.f32 %v4254, %v4668
        %v4685 = vadd.f32 %v4256, %v4664
        %v4686 = vadd.f32 %v4258, %v4668
        %v4687 = vadd.f32 %v4262, %v4664
        %v4688 = vadd.f32 %v4264, %v4668
        %v4689 = vadd.f32 %v4266, %v4664
        %v4690 = vadd.f32 %v4268, %v4668
        %v4691 = vadd.f32 %v4272, %v4664
        %v4692 = vadd.f32 %v4274, %v4668
        %v4693 = vadd.f32 %v4276, %v4664
        %v4694 = vadd.f32 %v4278, %v4668
        %v4695 = vadd.f32 %v4282, %v4664
        %v4696 = vadd.f32 %v4284, %v4668
        %v4697 = vadd.f32 %v4286, %v4664
        %v4698 = vadd.f32 %v4288, %v4668
        %v4699 = vadd.f32 %v4292, %v4664
        %v4700 = vadd.f32 %v4294, %v4668
        %v4701 = vadd.f32 %v4296, %v4664
        %v4702 = vadd.f32 %v4298, %v4668
        %v4703 = vadd.f32 %v4302, %v4664
        %v4704 = vadd.f32 %v4304, %v4668
        %v4705 = vadd.f32 %v4306, %v4664
        %v4706 = vadd.f32 %v4308, %v4668
        %v4707 = vadd.f32 %v4312, %v4664
        %v4708 = vadd.f32 %v4314, %v4668
        %v4709 = vadd.f32 %v4316, %v4664
        %v4710 = vadd.f32 %v4318, %v4668
        %v4711 = vadd.f32 %v4322, %v4664
        %v4712 = vadd.f32 %v4324, %v4668
        %v4713 = vadd.f32 %v4326, %v4664
        %v4714 = vadd.f32 %v4328, %v4668
        %v4715 = vadd.f32 %v4332, %v4664
        %v4716 = vadd.f32 %v4334, %v4668
        %v4717 = vadd.f32 %v4336, %v4664
        %v4718 = vadd.f32 %v4338, %v4668
        %v4719 = vadd.f32 %v4342, %v4664
        %v4720 = vadd.f32 %v4344, %v4668
        %v4721 = vadd.f32 %v4346, %v4664
        %v4722 = vadd.f32 %v4348, %v4668
        %v4723 = vadd.f32 %v4352, %v4664
        %v4724 = vadd.f32 %v4354, %v4668
        %v4725 = vadd.f32 %v4356, %v4664
        %v4726 = vadd.f32 %v4358, %v4668
        %v4727 = vadd.f32 %v4362, %v4664
        %v4728 = vadd.f32 %v4364, %v4668
        %v4729 = vadd.f32 %v4366, %v4664
        %v4730 = vadd.f32 %v4368, %v4668
        %v4731 = vadd.f32 %v4372, %v4664
        %v4732 = vadd.f32 %v4374, %v4668
        %v4733 = vadd.f32 %v4376, %v4664
        %v4734 = vadd.f32 %v4378, %v4668
        %v4735 = vadd.f32 %v4382, %v4664
        %v4736 = vadd.f32 %v4384, %v4668
        %v4737 = vadd.f32 %v4386, %v4664
        %v4738 = vadd.f32 %v4388, %v4668
        %v4739 = vadd.f32 %v4392, %v4664
        %v4740 = vadd.f32 %v4394, %v4668
        %v4741 = vadd.f32 %v4396, %v4664
        %v4742 = vadd.f32 %v4398, %v4668
        %v4743 = vadd.f32 %v4402, %v4664
        %v4744 = vadd.f32 %v4404, %v4668
        %v4745 = vadd.f32 %v4406, %v4664
        %v4746 = vadd.f32 %v4408, %v4668
        %v4747 = vadd.f32 %v4412, %v4664
        %v4748 = vadd.f32 %v4414, %v4668
        %v4749 = vadd.f32 %v4416, %v4664
        %v4750 = vadd.f32 %v4418, %v4668
        %v4751 = vadd.f32 %v4422, %v4664
        %v4752 = vadd.f32 %v4424, %v4668
        %v4753 = vadd.f32 %v4426, %v4664
        %v4754 = vadd.f32 %v4428, %v4668
        %v4755 = vadd.f32 %v4432, %v4664
        %v4756 = vadd.f32 %v4434, %v4668
        %v4757 = vadd.f32 %v4436, %v4664
        %v4758 = vadd.f32 %v4438, %v4668
        %v4759 = vadd.f32 %v4442, %v4664
        %v4760 = vadd.f32 %v4444, %v4668
        %v4761 = vadd.f32 %v4446, %v4664
        %v4762 = vadd.f32 %v4448, %v4668
        %v4763 = vadd.f32 %v4452, %v4664
        %v4764 = vadd.f32 %v4454, %v4668
        %v4765 = vadd.f32 %v4456, %v4664
        %v4766 = vadd.f32 %v4458, %v4668
        %v4767 = vadd.f32 %v4462, %v4664
        %v4768 = vadd.f32 %v4464, %v4668
        %v4769 = vadd.f32 %v4466, %v4664
        %v4770 = vadd.f32 %v4468, %v4668
        %v4771 = vadd.f32 %v4472, %v4664
        %v4772 = vadd.f32 %v4474, %v4668
        %v4773 = vadd.f32 %v4476, %v4664
        %v4774 = vadd.f32 %v4478, %v4668
        %v4775 = vadd.f32 %v4482, %v4664
        %v4776 = vadd.f32 %v4484, %v4668
        %v4777 = vadd.f32 %v4486, %v4664
        %v4778 = vadd.f32 %v4488, %v4668
        %v4779 = vadd.f32 %v4492, %v4664
        %v4780 = vadd.f32 %v4494, %v4668
        %v4781 = vadd.f32 %v4496, %v4664
        %v4782 = vadd.f32 %v4498, %v4668
        %v4783 = vadd.f32 %v4502, %v4664
        %v4784 = vadd.f32 %v4504, %v4668
        %v4785 = vadd.f32 %v4506, %v4664
        %v4786 = vadd.f32 %v4508, %v4668
        %v4787 = vadd.f32 %v4512, %v4664
        %v4788 = vadd.f32 %v4514, %v4668
        %v4789 = vadd.f32 %v4516, %v4664
        %v4790 = vadd.f32 %v4518, %v4668
        %v4791 = vadd.f32 %v4522, %v4664
        %v4792 = vadd.f32 %v4524, %v4668
        %v4793 = vadd.f32 %v4526, %v4664
        %v4794 = vadd.f32 %v4528, %v4668
        %v4795 = vadd.f32 %v4532, %v4664
        %v4796 = vadd.f32 %v4534, %v4668
        %v4797 = vadd.f32 %v4536, %v4664
        %v4798 = vadd.f32 %v4538, %v4668
        %v4799 = vadd.f32 %v4542, %v4664
        %v4800 = vadd.f32 %v4544, %v4668
        %v4801 = vadd.f32 %v4546, %v4664
        %v4802 = vadd.f32 %v4548, %v4668
        %v4803 = vadd.f32 %v4552, %v4664
        %v4804 = vadd.f32 %v4554, %v4668
        %v4805 = vadd.f32 %v4556, %v4664
        %v4806 = vadd.f32 %v4558, %v4668
        %v4807 = vadd.f32 %v4562, %v4664
        %v4808 = vadd.f32 %v4564, %v4668
        %v4809 = vadd.f32 %v4566, %v4664
        %v4810 = vadd.f32 %v4568, %v4668
        %v4811 = vadd.f32 %v4572, %v4664
        %v4812 = vadd.f32 %v4574, %v4668
        %v4813 = vadd.f32 %v4576, %v4664
        %v4814 = vadd.f32 %v4578, %v4668
        %v4815 = vadd.f32 %v4582, %v4664
        %v4816 = vadd.f32 %v4584, %v4668
        %v4817 = vadd.f32 %v4586, %v4664
        %v4818 = vadd.f32 %v4588, %v4668
        %v4819 = vadd.f32 %v4592, %v4664
        %v4820 = vadd.f32 %v4594, %v4668
        %v4821 = vadd.f32 %v4596, %v4664
        %v4822 = vadd.f32 %v4598, %v4668
        %v4823 = vadd.f32 %v4602, %v4664
        %v4824 = vadd.f32 %v4604, %v4668
        %v4825 = vadd.f32 %v4606, %v4664
        %v4826 = vadd.f32 %v4608, %v4668
        %v4827 = vadd.f32 %v4612, %v4664
        %v4828 = vadd.f32 %v4614, %v4668
        %v4829 = vadd.f32 %v4616, %v4664
        %v4830 = vadd.f32 %v4618, %v4668
        %v4831 = vadd.f32 %v4622, %v4664
        %v4832 = vadd.f32 %v4624, %v4668
        %v4833 = vadd.f32 %v4626, %v4664
        %v4834 = vadd.f32 %v4628, %v4668
        %v4835 = vadd.f32 %v4632, %v4664
        %v4836 = vadd.f32 %v4634, %v4668
        %v4837 = vadd.f32 %v4636, %v4664
        %v4838 = vadd.f32 %v4638, %v4668
        %v4839 = vadd.f32 %v4642, %v4664
        %v4840 = vadd.f32 %v4644, %v4668
        %v4841 = vadd.f32 %v4646, %v4664
        %v4842 = vadd.f32 %v4648, %v4668
        %v4843 = vadd.f32 %v4652, %v4664
        %v4844 = vadd.f32 %v4654, %v4668
        %v4845 = vadd.f32 %v4656, %v4664
        %v4846 = vadd.f32 %v4658, %v4668
        %v4847 = vpack.c.bf16 %v4673, %v4671
        %v4848 = vpack.c.bf16 %v4674, %v4672
        %v4849 = vpack.c.bf16 %v4677, %v4675
        %v4850 = vpack.c.bf16 %v4678, %v4676
        %v4851 = vpack.c.bf16 %v4681, %v4679
        %v4852 = vpack.c.bf16 %v4682, %v4680
        %v4853 = vpack.c.bf16 %v4685, %v4683
        %v4854 = vpack.c.bf16 %v4686, %v4684
        %v4855 = vpack.c.bf16 %v4689, %v4687
        %v4856 = vpack.c.bf16 %v4690, %v4688
        %v4857 = vpack.c.bf16 %v4693, %v4691
        %v4858 = vpack.c.bf16 %v4694, %v4692
        %v4859 = vpack.c.bf16 %v4697, %v4695
        %v4860 = vpack.c.bf16 %v4698, %v4696
        %v4861 = vpack.c.bf16 %v4701, %v4699
        %v4862 = vpack.c.bf16 %v4702, %v4700
        %v4863 = vpack.c.bf16 %v4705, %v4703
        %v4864 = vpack.c.bf16 %v4706, %v4704
        %v4865 = vpack.c.bf16 %v4709, %v4707
        %v4866 = vpack.c.bf16 %v4710, %v4708
        %v4867 = vpack.c.bf16 %v4713, %v4711
        %v4868 = vpack.c.bf16 %v4714, %v4712
        %v4869 = vpack.c.bf16 %v4717, %v4715
        %v4870 = vpack.c.bf16 %v4718, %v4716
        %v4871 = vpack.c.bf16 %v4721, %v4719
        %v4872 = vpack.c.bf16 %v4722, %v4720
        %v4873 = vpack.c.bf16 %v4725, %v4723
        %v4874 = vpack.c.bf16 %v4726, %v4724
        %v4875 = vpack.c.bf16 %v4729, %v4727
        %v4876 = vpack.c.bf16 %v4730, %v4728
        %v4877 = vpack.c.bf16 %v4733, %v4731
        %v4878 = vpack.c.bf16 %v4734, %v4732
        %v4879 = vpack.c.bf16 %v4737, %v4735
        %v4880 = vpack.c.bf16 %v4738, %v4736
        %v4881 = vpack.c.bf16 %v4741, %v4739
        %v4882 = vpack.c.bf16 %v4742, %v4740
        %v4883 = vpack.c.bf16 %v4745, %v4743
        %v4884 = vpack.c.bf16 %v4746, %v4744
        %v4885 = vpack.c.bf16 %v4749, %v4747
        %v4886 = vpack.c.bf16 %v4750, %v4748
        %v4887 = vpack.c.bf16 %v4753, %v4751
        %v4888 = vpack.c.bf16 %v4754, %v4752
        %v4889 = vpack.c.bf16 %v4757, %v4755
        %v4890 = vpack.c.bf16 %v4758, %v4756
        %v4891 = vpack.c.bf16 %v4761, %v4759
        %v4892 = vpack.c.bf16 %v4762, %v4760
        %v4893 = vpack.c.bf16 %v4765, %v4763
        %v4894 = vpack.c.bf16 %v4766, %v4764
        %v4895 = vpack.c.bf16 %v4769, %v4767
        %v4896 = vpack.c.bf16 %v4770, %v4768
        %v4897 = vpack.c.bf16 %v4773, %v4771
        %v4898 = vpack.c.bf16 %v4774, %v4772
        %v4899 = vpack.c.bf16 %v4777, %v4775
        %v4900 = vpack.c.bf16 %v4778, %v4776
        %v4901 = vpack.c.bf16 %v4781, %v4779
        %v4902 = vpack.c.bf16 %v4782, %v4780
        %v4903 = vpack.c.bf16 %v4785, %v4783
        %v4904 = vpack.c.bf16 %v4786, %v4784
        %v4905 = vpack.c.bf16 %v4789, %v4787
        %v4906 = vpack.c.bf16 %v4790, %v4788
        %v4907 = vpack.c.bf16 %v4793, %v4791
        %v4908 = vpack.c.bf16 %v4794, %v4792
        %v4909 = vpack.c.bf16 %v4797, %v4795
        %v4910 = vpack.c.bf16 %v4798, %v4796
        %v4911 = vpack.c.bf16 %v4801, %v4799
        %v4912 = vpack.c.bf16 %v4802, %v4800
        %v4913 = vpack.c.bf16 %v4805, %v4803
        %v4914 = vpack.c.bf16 %v4806, %v4804
        %v4915 = vpack.c.bf16 %v4809, %v4807
        %v4916 = vpack.c.bf16 %v4810, %v4808
        %v4917 = vpack.c.bf16 %v4813, %v4811
        %v4918 = vpack.c.bf16 %v4814, %v4812
        %v4919 = vpack.c.bf16 %v4817, %v4815
        %v4920 = vpack.c.bf16 %v4818, %v4816
        %v4921 = vpack.c.bf16 %v4821, %v4819
        %v4922 = vpack.c.bf16 %v4822, %v4820
        %v4923 = vpack.c.bf16 %v4825, %v4823
        %v4924 = vpack.c.bf16 %v4826, %v4824
        %v4925 = vpack.c.bf16 %v4829, %v4827
        %v4926 = vpack.c.bf16 %v4830, %v4828
        %v4927 = vpack.c.bf16 %v4833, %v4831
        %v4928 = vpack.c.bf16 %v4834, %v4832
        %v4929 = vpack.c.bf16 %v4837, %v4835
        %v4930 = vpack.c.bf16 %v4838, %v4836
        %v4931 = vpack.c.bf16 %v4841, %v4839
        %v4932 = vpack.c.bf16 %v4842, %v4840
        %v4933 = vpack.c.bf16 %v4845, %v4843
        %v4934 = vpack.c.bf16 %v4846, %v4844
        %4935 = vst [vmem:[#allocation2] sm:$0xff] %v4847
        %4936 = vst [vmem:[#allocation2 + $0x8] sm:$0xff] %v4848
        %4937 = vst [vmem:[#allocation2 + $0x10] sm:$0xff] %v4849
        %4938 = vst [vmem:[#allocation2 + $0x18] sm:$0xff] %v4850
        %4939 = vst [vmem:[#allocation2 + $0x20] sm:$0xff] %v4851
        %4940 = vst [vmem:[#allocation2 + $0x28] sm:$0xff] %v4852
        %4941 = vst [vmem:[#allocation2 + $0x30] sm:$0xff] %v4853
        %4942 = vst [vmem:[#allocation2 + $0x38] sm:$0xff] %v4854
        %4943 = vst [vmem:[#allocation2 + $0x40] sm:$0xff] %v4855
        %4944 = vst [vmem:[#allocation2 + $0x48] sm:$0xff] %v4856
        %4945 = vst [vmem:[#allocation2 + $0x50] sm:$0xff] %v4857
        %4946 = vst [vmem:[#allocation2 + $0x58] sm:$0xff] %v4858
        %4947 = vst [vmem:[#allocation2 + $0x60] sm:$0xff] %v4859
        %4948 = vst [vmem:[#allocation2 + $0x68] sm:$0xff] %v4860
        %4949 = vst [vmem:[#allocation2 + $0x70] sm:$0xff] %v4861
        %4950 = vst [vmem:[#allocation2 + $0x78] sm:$0xff] %v4862
        %4951 = vst [vmem:[#allocation2 + $0x80] sm:$0xff] %v4863
        %4952 = vst [vmem:[#allocation2 + $0x88] sm:$0xff] %v4864
        %4953 = vst [vmem:[#allocation2 + $0x90] sm:$0xff] %v4865
        %4954 = vst [vmem:[#allocation2 + $0x98] sm:$0xff] %v4866
        %4955 = vst [vmem:[#allocation2 + $0xa0] sm:$0xff] %v4867
        %4956 = vst [vmem:[#allocation2 + $0xa8] sm:$0xff] %v4868
        %4957 = vst [vmem:[#allocation2 + $0xb0] sm:$0xff] %v4869
        %4958 = vst [vmem:[#allocation2 + $0xb8] sm:$0xff] %v4870
        %4959 = vst [vmem:[#allocation2 + $0xc0] sm:$0xff] %v4871
        %4960 = vst [vmem:[#allocation2 + $0xc8] sm:$0xff] %v4872
        %4961 = vst [vmem:[#allocation2 + $0xd0] sm:$0xff] %v4873
        %4962 = vst [vmem:[#allocation2 + $0xd8] sm:$0xff] %v4874
        %4963 = vst [vmem:[#allocation2 + $0xe0] sm:$0xff] %v4875
        %4964 = vst [vmem:[#allocation2 + $0xe8] sm:$0xff] %v4876
        %4965 = vst [vmem:[#allocation2 + $0xf0] sm:$0xff] %v4877
        %4966 = vst [vmem:[#allocation2 + $0xf8] sm:$0xff] %v4878
        %4967 = vst [vmem:[#allocation2 + $0x100] sm:$0xff] %v4879
        %4968 = vst [vmem:[#allocation2 + $0x108] sm:$0xff] %v4880
        %4969 = vst [vmem:[#allocation2 + $0x110] sm:$0xff] %v4881
        %4970 = vst [vmem:[#allocation2 + $0x118] sm:$0xff] %v4882
        %4971 = vst [vmem:[#allocation2 + $0x120] sm:$0xff] %v4883
        %4972 = vst [vmem:[#allocation2 + $0x128] sm:$0xff] %v4884
        %4973 = vst [vmem:[#allocation2 + $0x130] sm:$0xff] %v4885
        %4974 = vst [vmem:[#allocation2 + $0x138] sm:$0xff] %v4886
        %4975 = vst [vmem:[#allocation2 + $0x140] sm:$0xff] %v4887
        %4976 = vst [vmem:[#allocation2 + $0x148] sm:$0xff] %v4888
        %4977 = vst [vmem:[#allocation2 + $0x150] sm:$0xff] %v4889
        %4978 = vst [vmem:[#allocation2 + $0x158] sm:$0xff] %v4890
        %4979 = vst [vmem:[#allocation2 + $0x160] sm:$0xff] %v4891
        %4980 = vst [vmem:[#allocation2 + $0x168] sm:$0xff] %v4892
        %4981 = vst [vmem:[#allocation2 + $0x170] sm:$0xff] %v4893
        %4982 = vst [vmem:[#allocation2 + $0x178] sm:$0xff] %v4894
        %4983 = vst [vmem:[#allocation2 + $0x180] sm:$0xff] %v4895
        %4984 = vst [vmem:[#allocation2 + $0x188] sm:$0xff] %v4896
        %4985 = vst [vmem:[#allocation2 + $0x190] sm:$0xff] %v4897
        %4986 = vst [vmem:[#allocation2 + $0x198] sm:$0xff] %v4898
        %4987 = vst [vmem:[#allocation2 + $0x1a0] sm:$0xff] %v4899
        %4988 = vst [vmem:[#allocation2 + $0x1a8] sm:$0xff] %v4900
        %4989 = vst [vmem:[#allocation2 + $0x1b0] sm:$0xff] %v4901
        %4990 = vst [vmem:[#allocation2 + $0x1b8] sm:$0xff] %v4902
        %4991 = vst [vmem:[#allocation2 + $0x1c0] sm:$0xff] %v4903
        %4992 = vst [vmem:[#allocation2 + $0x1c8] sm:$0xff] %v4904
        %4993 = vst [vmem:[#allocation2 + $0x1d0] sm:$0xff] %v4905
        %4994 = vst [vmem:[#allocation2 + $0x1d8] sm:$0xff] %v4906
        %4995 = vst [vmem:[#allocation2 + $0x1e0] sm:$0xff] %v4907
        %4996 = vst [vmem:[#allocation2 + $0x1e8] sm:$0xff] %v4908
        %4997 = vst [vmem:[#allocation2 + $0x1f0] sm:$0xff] %v4909
        %4998 = vst [vmem:[#allocation2 + $0x1f8] sm:$0xff] %v4910
        %4999 = vst [vmem:[#allocation2 + $0x200] sm:$0xff] %v4911
        %5000 = vst [vmem:[#allocation2 + $0x208] sm:$0xff] %v4912
        %5001 = vst [vmem:[#allocation2 + $0x210] sm:$0xff] %v4913
        %5002 = vst [vmem:[#allocation2 + $0x218] sm:$0xff] %v4914
        %5003 = vst [vmem:[#allocation2 + $0x220] sm:$0xff] %v4915
        %5004 = vst [vmem:[#allocation2 + $0x228] sm:$0xff] %v4916
        %5005 = vst [vmem:[#allocation2 + $0x230] sm:$0xff] %v4917
        %5006 = vst [vmem:[#allocation2 + $0x238] sm:$0xff] %v4918
        %5007 = vst [vmem:[#allocation2 + $0x240] sm:$0xff] %v4919
        %5008 = vst [vmem:[#allocation2 + $0x248] sm:$0xff] %v4920
        %5009 = vst [vmem:[#allocation2 + $0x250] sm:$0xff] %v4921
        %5010 = vst [vmem:[#allocation2 + $0x258] sm:$0xff] %v4922
        %5011 = vst [vmem:[#allocation2 + $0x260] sm:$0xff] %v4923
        %5012 = vst [vmem:[#allocation2 + $0x268] sm:$0xff] %v4924
        %5013 = vst [vmem:[#allocation2 + $0x270] sm:$0xff] %v4925
        %5014 = vst [vmem:[#allocation2 + $0x278] sm:$0xff] %v4926
        %5015 = vst [vmem:[#allocation2 + $0x280] sm:$0xff] %v4927
        %5016 = vst [vmem:[#allocation2 + $0x288] sm:$0xff] %v4928
        %5017 = vst [vmem:[#allocation2 + $0x290] sm:$0xff] %v4929
        %5018 = vst [vmem:[#allocation2 + $0x298] sm:$0xff] %v4930
        %5019 = vst [vmem:[#allocation2 + $0x2a0] sm:$0xff] %v4931
        %5020 = vst [vmem:[#allocation2 + $0x2a8] sm:$0xff] %v4932
        %5021 = vst [vmem:[#allocation2 + $0x2b0] sm:$0xff] %v4933
        %5022 = vst [vmem:[#allocation2 + $0x2b8] sm:$0xff] %v4934
        %v5023 = vld [vmem:[#allocation20] sm:$0x1]
        %v5025 = vlaneseq
        %v5026 = vshrl.u32 %v5025, 7
        %v5027 = vsub.s32 0, %v5026
        %v5028 = vrot.slane %v5023, %v5027
        %s5030 = smul.u32 0, 2
        %s5031 = smul.addr %s5030, 8
        %s5032 = scalar_lea.vmem [#allocation2], %s5031
        %v5033 = vld [vmem:[%s5032] sm:$0xff]
        %v5034 = vld [vmem:[%s5032 + $0x8] sm:$0xff]
        %v5035 = vld [vmem:[%s5032 + $0x10] sm:$0xff]
        %v5036 = vld [vmem:[%s5032 + $0x18] sm:$0xff]
        %v5037 = vld [vmem:[#allocation18] sm:$0xf]
        %v5038 = vld [vmem:[#allocation18 + $0x4] sm:$0xf]
        %v5039 = vld [vmem:[#allocation18 + $0x8] sm:$0xf]
        %v5040 = vld [vmem:[#allocation18 + $0xc] sm:$0xf]
        %v5041 = vld [vmem:[#allocation18 + $0x10] sm:$0xf]
        %v5042 = vld [vmem:[#allocation18 + $0x14] sm:$0xf]
        %v5043 = vld [vmem:[#allocation18 + $0x18] sm:$0xf]
        %v5044 = vld [vmem:[#allocation18 + $0x1c] sm:$0xf]
        %v5045 = vld [vmem:[#allocation18 + $0x20] sm:$0xf]
        %v5046 = vld [vmem:[#allocation18 + $0x24] sm:$0xf]
        %v5047 = vld [vmem:[#allocation18 + $0x28] sm:$0xf]
        %v5048 = vld [vmem:[#allocation18 + $0x2c] sm:$0xf]
        %v5049 = vld [vmem:[#allocation18 + $0x30] sm:$0xf]
        %v5050 = vld [vmem:[#allocation18 + $0x34] sm:$0xf]
        %v5051 = vld [vmem:[#allocation18 + $0x38] sm:$0xf]
        %v5052 = vld [vmem:[#allocation18 + $0x3c] sm:$0xf]
        %v5053 = vld [vmem:[#allocation18 + $0x40] sm:$0xf]
        %v5054 = vld [vmem:[#allocation18 + $0x44] sm:$0xf]
        %v5055 = vld [vmem:[#allocation18 + $0x48] sm:$0xf]
        %v5056 = vld [vmem:[#allocation18 + $0x4c] sm:$0xf]
        %v5057 = vld [vmem:[#allocation18 + $0x50] sm:$0xf]
        %v5058 = vld [vmem:[#allocation18 + $0x54] sm:$0xf]
        %v5059 = vld [vmem:[#allocation18 + $0x58] sm:$0xf]
        %v5060 = vld [vmem:[#allocation18 + $0x5c] sm:$0xf]
        %v5061 = vld [vmem:[#allocation18 + $0x60] sm:$0xf]
        %v5062 = vld [vmem:[#allocation18 + $0x64] sm:$0xf]
        %v5063 = vld [vmem:[#allocation18 + $0x68] sm:$0xf]
        %v5064 = vld [vmem:[#allocation18 + $0x6c] sm:$0xf]
        %v5065 = vld [vmem:[#allocation18 + $0x70] sm:$0xf]
        %v5066 = vld [vmem:[#allocation18 + $0x74] sm:$0xf]
        %v5067 = vld [vmem:[#allocation18 + $0x78] sm:$0xf]
        %v5068 = vld [vmem:[#allocation18 + $0x7c] sm:$0xf]
        %s5069 = smul.u32 2, 2
        %s5070 = smul.addr %s5069, 8
        %s5071 = scalar_lea.vmem [#allocation2], %s5070
        %v5072 = vld [vmem:[%s5071] sm:$0xff]
        %v5073 = vld [vmem:[%s5071 + $0x8] sm:$0xff]
        %v5074 = vld [vmem:[%s5071 + $0x10] sm:$0xff]
        %v5075 = vld [vmem:[%s5071 + $0x18] sm:$0xff]
        %s5076 = scalar_lea.vmem [#allocation18], 128
        %v5077 = vld [vmem:[%s5076] sm:$0xf]
        %v5078 = vld [vmem:[%s5076 + $0x4] sm:$0xf]
        %v5079 = vld [vmem:[%s5076 + $0x8] sm:$0xf]
        %v5080 = vld [vmem:[%s5076 + $0xc] sm:$0xf]
        %v5081 = vld [vmem:[%s5076 + $0x10] sm:$0xf]
        %v5082 = vld [vmem:[%s5076 + $0x14] sm:$0xf]
        %v5083 = vld [vmem:[%s5076 + $0x18] sm:$0xf]
        %v5084 = vld [vmem:[%s5076 + $0x1c] sm:$0xf]
        %v5085 = vld [vmem:[%s5076 + $0x20] sm:$0xf]
        %v5086 = vld [vmem:[%s5076 + $0x24] sm:$0xf]
        %v5087 = vld [vmem:[%s5076 + $0x28] sm:$0xf]
        %v5088 = vld [vmem:[%s5076 + $0x2c] sm:$0xf]
        %v5089 = vld [vmem:[%s5076 + $0x30] sm:$0xf]
        %v5090 = vld [vmem:[%s5076 + $0x34] sm:$0xf]
        %v5091 = vld [vmem:[%s5076 + $0x38] sm:$0xf]
        %v5092 = vld [vmem:[%s5076 + $0x3c] sm:$0xf]
        %v5093 = vld [vmem:[%s5076 + $0x40] sm:$0xf]
        %v5094 = vld [vmem:[%s5076 + $0x44] sm:$0xf]
        %v5095 = vld [vmem:[%s5076 + $0x48] sm:$0xf]
        %v5096 = vld [vmem:[%s5076 + $0x4c] sm:$0xf]
        %v5097 = vld [vmem:[%s5076 + $0x50] sm:$0xf]
        %v5098 = vld [vmem:[%s5076 + $0x54] sm:$0xf]
        %v5099 = vld [vmem:[%s5076 + $0x58] sm:$0xf]
        %v5100 = vld [vmem:[%s5076 + $0x5c] sm:$0xf]
        %v5101 = vld [vmem:[%s5076 + $0x60] sm:$0xf]
        %v5102 = vld [vmem:[%s5076 + $0x64] sm:$0xf]
        %v5103 = vld [vmem:[%s5076 + $0x68] sm:$0xf]
        %v5104 = vld [vmem:[%s5076 + $0x6c] sm:$0xf]
        %v5105 = vld [vmem:[%s5076 + $0x70] sm:$0xf]
        %v5106 = vld [vmem:[%s5076 + $0x74] sm:$0xf]
        %v5107 = vld [vmem:[%s5076 + $0x78] sm:$0xf]
        %v5108 = vld [vmem:[%s5076 + $0x7c] sm:$0xf]
        %v5141 = vunpack.c.l.b16 %v5077
        %v5142 = vunpack.c.l.b16 %v5078
        %v5143 = vunpack.c.l.b16 %v5079
        %v5144 = vunpack.c.l.b16 %v5080
        %v5145 = vunpack.c.l.b16 %v5081
        %v5146 = vunpack.c.l.b16 %v5082
        %v5147 = vunpack.c.l.b16 %v5083
        %v5148 = vunpack.c.l.b16 %v5084
        %v5149 = vunpack.c.l.b16 %v5085
        %v5150 = vunpack.c.l.b16 %v5086
        %v5151 = vunpack.c.l.b16 %v5087
        %v5152 = vunpack.c.l.b16 %v5088
        %v5153 = vunpack.c.l.b16 %v5089
        %v5154 = vunpack.c.l.b16 %v5090
        %v5155 = vunpack.c.l.b16 %v5091
        %v5156 = vunpack.c.l.b16 %v5092
        %v5157 = vunpack.c.l.b16 %v5093
        %v5158 = vunpack.c.l.b16 %v5094
        %v5159 = vunpack.c.l.b16 %v5095
        %v5160 = vunpack.c.l.b16 %v5096
        %v5161 = vunpack.c.l.b16 %v5097
        %v5162 = vunpack.c.l.b16 %v5098
        %v5163 = vunpack.c.l.b16 %v5099
        %v5164 = vunpack.c.l.b16 %v5100
        %v5165 = vunpack.c.l.b16 %v5101
        %v5166 = vunpack.c.l.b16 %v5102
        %v5167 = vunpack.c.l.b16 %v5103
        %v5168 = vunpack.c.l.b16 %v5104
        %v5169 = vunpack.c.l.b16 %v5105
        %v5170 = vunpack.c.l.b16 %v5106
        %v5171 = vunpack.c.l.b16 %v5107
        %v5172 = vunpack.c.l.b16 %v5108
        %v5173 = vpack.c.b16 %v5142, %v5141
        %v5174 = vpack.c.b16 %v5144, %v5143
        %v5175 = vpack.c.b16 %v5146, %v5145
        %v5176 = vpack.c.b16 %v5148, %v5147
        %v5177 = vpack.c.b16 %v5150, %v5149
        %v5178 = vpack.c.b16 %v5152, %v5151
        %v5179 = vpack.c.b16 %v5154, %v5153
        %v5180 = vpack.c.b16 %v5156, %v5155
        %v5181 = vpack.c.b16 %v5158, %v5157
        %v5182 = vpack.c.b16 %v5160, %v5159
        %v5183 = vpack.c.b16 %v5162, %v5161
        %v5184 = vpack.c.b16 %v5164, %v5163
        %v5185 = vpack.c.b16 %v5166, %v5165
        %v5186 = vpack.c.b16 %v5168, %v5167
        %v5187 = vpack.c.b16 %v5170, %v5169
        %v5188 = vpack.c.b16 %v5172, %v5171
        %5205 = vmatprep.subr.bf16.mxu0 0
        %5206 = vmatpush1.bf16.msra.mxu0 %v5173
        %5207 = vmatprep.subr.bf16.mxu0 0
        %5208 = vmatpush1.bf16.msra.mxu0 %v5174
        %5209 = vmatprep.subr.bf16.mxu0 0
        %5210 = vmatpush1.bf16.msra.mxu0 %v5175
        %5211 = vmatprep.subr.bf16.mxu0 0
        %5212 = vmatpush1.bf16.msra.mxu0 %v5176
        %5213 = vmatprep.subr.bf16.mxu0 0
        %5214 = vmatpush1.bf16.msra.mxu0 %v5177
        %5215 = vmatprep.subr.bf16.mxu0 0
        %5216 = vmatpush1.bf16.msra.mxu0 %v5178
        %5217 = vmatprep.subr.bf16.mxu0 0
        %5218 = vmatpush1.bf16.msra.mxu0 %v5179
        %5219 = vmatprep.subr.bf16.mxu0 0
        %5220 = vmatpush1.bf16.msra.mxu0 %v5180
        %5221 = vmatprep.subr.bf16.mxu0 0
        %5222 = vmatpush1.bf16.msra.mxu0 %v5181
        %5223 = vmatprep.subr.bf16.mxu0 0
        %5224 = vmatpush1.bf16.msra.mxu0 %v5182
        %5225 = vmatprep.subr.bf16.mxu0 0
        %5226 = vmatpush1.bf16.msra.mxu0 %v5183
        %5227 = vmatprep.subr.bf16.mxu0 0
        %5228 = vmatpush1.bf16.msra.mxu0 %v5184
        %5229 = vmatprep.subr.bf16.mxu0 0
        %5230 = vmatpush1.bf16.msra.mxu0 %v5185
        %5231 = vmatprep.subr.bf16.mxu0 0
        %5232 = vmatpush1.bf16.msra.mxu0 %v5186
        %5233 = vmatprep.subr.bf16.mxu0 0
        %5234 = vmatpush1.bf16.msra.mxu0 %v5187
        %5235 = vmatprep.subr.bf16.mxu0 0
        %5236 = vmatpush1.bf16.msra.mxu0 %v5188
        %5237 = vmatprep.mubr.bf16.mxu0 %v5073
        %5238 = vmatmul.mubr.bf16.gmra.mrb[0].mxu0 %v5072
        %v5239 = vpop.f32.mrb[0].mxu0
        %v5240 = vadd.f32 0.0, %v5239
        %v5241 = vpop.f32.mrb[0].mxu0
        %v5242 = vpop.f32.mrb[0].mxu0
        %v5243 = vadd.f32 0.0, %v5242
        %v5244 = vpop.f32.mrb[0].mxu0
        %5245 = vmatprep.mubr.bf16.mxu0 %v5075
        %5246 = vmatmul.mubr.bf16.gmra.mrb[0].mxu0 %v5074
        %v5247 = vpop.f32.mrb[0].mxu0
        %v5248 = vadd.f32 0.0, %v5247
        %v5249 = vpop.f32.mrb[0].mxu0
        %v5250 = vpop.f32.mrb[0].mxu0
        %v5251 = vadd.f32 0.0, %v5250
        %v5252 = vpop.f32.mrb[0].mxu0
        %5253 = vdwg.mxu0
        %v5286 = vunpack.c.l.b16 %v5037
        %v5287 = vunpack.c.l.b16 %v5038
        %v5288 = vunpack.c.l.b16 %v5039
        %v5289 = vunpack.c.l.b16 %v5040
        %v5290 = vunpack.c.l.b16 %v5041
        %v5291 = vunpack.c.l.b16 %v5042
        %v5292 = vunpack.c.l.b16 %v5043
        %v5293 = vunpack.c.l.b16 %v5044
        %v5294 = vunpack.c.l.b16 %v5045
        %v5295 = vunpack.c.l.b16 %v5046
        %v5296 = vunpack.c.l.b16 %v5047
        %v5297 = vunpack.c.l.b16 %v5048
        %v5298 = vunpack.c.l.b16 %v5049
        %v5299 = vunpack.c.l.b16 %v5050
        %v5300 = vunpack.c.l.b16 %v5051
        %v5301 = vunpack.c.l.b16 %v5052
        %v5302 = vunpack.c.l.b16 %v5053
        %v5303 = vunpack.c.l.b16 %v5054
        %v5304 = vunpack.c.l.b16 %v5055
        %v5305 = vunpack.c.l.b16 %v5056
        %v5306 = vunpack.c.l.b16 %v5057
        %v5307 = vunpack.c.l.b16 %v5058
        %v5308 = vunpack.c.l.b16 %v5059
        %v5309 = vunpack.c.l.b16 %v5060
        %v5310 = vunpack.c.l.b16 %v5061
        %v5311 = vunpack.c.l.b16 %v5062
        %v5312 = vunpack.c.l.b16 %v5063
        %v5313 = vunpack.c.l.b16 %v5064
        %v5314 = vunpack.c.l.b16 %v5065
        %v5315 = vunpack.c.l.b16 %v5066
        %v5316 = vunpack.c.l.b16 %v5067
        %v5317 = vunpack.c.l.b16 %v5068
        %v5318 = vpack.c.b16 %v5287, %v5286
        %v5319 = vpack.c.b16 %v5289, %v5288
        %v5320 = vpack.c.b16 %v5291, %v5290
        %v5321 = vpack.c.b16 %v5293, %v5292
        %v5322 = vpack.c.b16 %v5295, %v5294
        %v5323 = vpack.c.b16 %v5297, %v5296
        %v5324 = vpack.c.b16 %v5299, %v5298
        %v5325 = vpack.c.b16 %v5301, %v5300
        %v5326 = vpack.c.b16 %v5303, %v5302
        %v5327 = vpack.c.b16 %v5305, %v5304
        %v5328 = vpack.c.b16 %v5307, %v5306
        %v5329 = vpack.c.b16 %v5309, %v5308
        %v5330 = vpack.c.b16 %v5311, %v5310
        %v5331 = vpack.c.b16 %v5313, %v5312
        %v5332 = vpack.c.b16 %v5315, %v5314
        %v5333 = vpack.c.b16 %v5317, %v5316
        %5350 = vmatprep.subr.bf16.mxu0 0
        %5351 = vmatpush1.bf16.msra.mxu0 %v5318
        %5352 = vmatprep.subr.bf16.mxu0 0
        %5353 = vmatpush1.bf16.msra.mxu0 %v5319
        %5354 = vmatprep.subr.bf16.mxu0 0
        %5355 = vmatpush1.bf16.msra.mxu0 %v5320
        %5356 = vmatprep.subr.bf16.mxu0 0
        %5357 = vmatpush1.bf16.msra.mxu0 %v5321
        %5358 = vmatprep.subr.bf16.mxu0 0
        %5359 = vmatpush1.bf16.msra.mxu0 %v5322
        %5360 = vmatprep.subr.bf16.mxu0 0
        %5361 = vmatpush1.bf16.msra.mxu0 %v5323
        %5362 = vmatprep.subr.bf16.mxu0 0
        %5363 = vmatpush1.bf16.msra.mxu0 %v5324
        %5364 = vmatprep.subr.bf16.mxu0 0
        %5365 = vmatpush1.bf16.msra.mxu0 %v5325
        %5366 = vmatprep.subr.bf16.mxu0 0
        %5367 = vmatpush1.bf16.msra.mxu0 %v5326
        %5368 = vmatprep.subr.bf16.mxu0 0
        %5369 = vmatpush1.bf16.msra.mxu0 %v5327
        %5370 = vmatprep.subr.bf16.mxu0 0
        %5371 = vmatpush1.bf16.msra.mxu0 %v5328
        %5372 = vmatprep.subr.bf16.mxu0 0
        %5373 = vmatpush1.bf16.msra.mxu0 %v5329
        %5374 = vmatprep.subr.bf16.mxu0 0
        %5375 = vmatpush1.bf16.msra.mxu0 %v5330
        %5376 = vmatprep.subr.bf16.mxu0 0
        %5377 = vmatpush1.bf16.msra.mxu0 %v5331
        %5378 = vmatprep.subr.bf16.mxu0 0
        %5379 = vmatpush1.bf16.msra.mxu0 %v5332
        %5380 = vmatprep.subr.bf16.mxu0 0
        %5381 = vmatpush1.bf16.msra.mxu0 %v5333
        %5382 = vmatprep.mubr.bf16.mxu0 %v5034
        %5383 = vmatmul.mubr.bf16.gmra.mrb[0].mxu0 %v5033
        %v5384 = vpop.f32.mrb[0].mxu0
        %v5385 = vadd.f32 %v5240, %v5384
        %v5386 = vpop.f32.mrb[0].mxu0
        %v5387 = vpop.f32.mrb[0].mxu0
        %v5388 = vadd.f32 %v5243, %v5387
        %v5389 = vpop.f32.mrb[0].mxu0
        %5390 = vmatprep.mubr.bf16.mxu0 %v5036
        %5391 = vmatmul.mubr.bf16.gmra.mrb[0].mxu0 %v5035
        %v5392 = vpop.f32.mrb[0].mxu0
        %v5393 = vadd.f32 %v5248, %v5392
        %v5394 = vpop.f32.mrb[0].mxu0
        %v5395 = vpop.f32.mrb[0].mxu0
        %v5396 = vadd.f32 %v5251, %v5395
        %v5397 = vpop.f32.mrb[0].mxu0
        %5398 = vdwg.mxu0
        %s5399 = smul.u32 4, 2
        %s5400 = smul.addr %s5399, 8
        %s5401 = scalar_lea.vmem [#allocation2], %s5400
        %v5402 = vld [vmem:[%s5401] sm:$0xff]
        %v5403 = vld [vmem:[%s5401 + $0x8] sm:$0xff]
        %v5404 = vld [vmem:[%s5401 + $0x10] sm:$0xff]
        %v5405 = vld [vmem:[%s5401 + $0x18] sm:$0xff]
        %s5406 = scalar_lea.vmem [#allocation18], 256
        %v5407 = vld [vmem:[%s5406] sm:$0xf]
        %v5408 = vld [vmem:[%s5406 + $0x4] sm:$0xf]
        %v5409 = vld [vmem:[%s5406 + $0x8] sm:$0xf]
        %v5410 = vld [vmem:[%s5406 + $0xc] sm:$0xf]
        %v5411 = vld [vmem:[%s5406 + $0x10] sm:$0xf]
        %v5412 = vld [vmem:[%s5406 + $0x14] sm:$0xf]
        %v5413 = vld [vmem:[%s5406 + $0x18] sm:$0xf]
        %v5414 = vld [vmem:[%s5406 + $0x1c] sm:$0xf]
        %v5415 = vld [vmem:[%s5406 + $0x20] sm:$0xf]
        %v5416 = vld [vmem:[%s5406 + $0x24] sm:$0xf]
        %v5417 = vld [vmem:[%s5406 + $0x28] sm:$0xf]
        %v5418 = vld [vmem:[%s5406 + $0x2c] sm:$0xf]
        %v5419 = vld [vmem:[%s5406 + $0x30] sm:$0xf]
        %v5420 = vld [vmem:[%s5406 + $0x34] sm:$0xf]
        %v5421 = vld [vmem:[%s5406 + $0x38] sm:$0xf]
        %v5422 = vld [vmem:[%s5406 + $0x3c] sm:$0xf]
        %v5423 = vld [vmem:[%s5406 + $0x40] sm:$0xf]
        %v5424 = vld [vmem:[%s5406 + $0x44] sm:$0xf]
        %v5425 = vld [vmem:[%s5406 + $0x48] sm:$0xf]
        %v5426 = vld [vmem:[%s5406 + $0x4c] sm:$0xf]
        %v5427 = vld [vmem:[%s5406 + $0x50] sm:$0xf]
        %v5428 = vld [vmem:[%s5406 + $0x54] sm:$0xf]
        %v5429 = vld [vmem:[%s5406 + $0x58] sm:$0xf]
        %v5430 = vld [vmem:[%s5406 + $0x5c] sm:$0xf]
        %v5431 = vld [vmem:[%s5406 + $0x60] sm:$0xf]
        %v5432 = vld [vmem:[%s5406 + $0x64] sm:$0xf]
        %v5433 = vld [vmem:[%s5406 + $0x68] sm:$0xf]
        %v5434 = vld [vmem:[%s5406 + $0x6c] sm:$0xf]
        %v5435 = vld [vmem:[%s5406 + $0x70] sm:$0xf]
        %v5436 = vld [vmem:[%s5406 + $0x74] sm:$0xf]
        %v5437 = vld [vmem:[%s5406 + $0x78] sm:$0xf]
        %v5438 = vld [vmem:[%s5406 + $0x7c] sm:$0xf]
        %v5471 = vunpack.c.l.b16 %v5407
        %v5472 = vunpack.c.l.b16 %v5408
        %v5473 = vunpack.c.l.b16 %v5409
        %v5474 = vunpack.c.l.b16 %v5410
        %v5475 = vunpack.c.l.b16 %v5411
        %v5476 = vunpack.c.l.b16 %v5412
        %v5477 = vunpack.c.l.b16 %v5413
        %v5478 = vunpack.c.l.b16 %v5414
        %v5479 = vunpack.c.l.b16 %v5415
        %v5480 = vunpack.c.l.b16 %v5416
        %v5481 = vunpack.c.l.b16 %v5417
        %v5482 = vunpack.c.l.b16 %v5418
        %v5483 = vunpack.c.l.b16 %v5419
        %v5484 = vunpack.c.l.b16 %v5420
        %v5485 = vunpack.c.l.b16 %v5421
        %v5486 = vunpack.c.l.b16 %v5422
        %v5487 = vunpack.c.l.b16 %v5423
        %v5488 = vunpack.c.l.b16 %v5424
        %v5489 = vunpack.c.l.b16 %v5425
        %v5490 = vunpack.c.l.b16 %v5426
        %v5491 = vunpack.c.l.b16 %v5427
        %v5492 = vunpack.c.l.b16 %v5428
        %v5493 = vunpack.c.l.b16 %v5429
        %v5494 = vunpack.c.l.b16 %v5430
        %v5495 = vunpack.c.l.b16 %v5431
        %v5496 = vunpack.c.l.b16 %v5432
        %v5497 = vunpack.c.l.b16 %v5433
        %v5498 = vunpack.c.l.b16 %v5434
        %v5499 = vunpack.c.l.b16 %v5435
        %v5500 = vunpack.c.l.b16 %v5436
        %v5501 = vunpack.c.l.b16 %v5437
        %v5502 = vunpack.c.l.b16 %v5438
        %v5503 = vpack.c.b16 %v5472, %v5471
        %v5504 = vpack.c.b16 %v5474, %v5473
        %v5505 = vpack.c.b16 %v5476, %v5475
        %v5506 = vpack.c.b16 %v5478, %v5477
        %v5507 = vpack.c.b16 %v5480, %v5479
        %v5508 = vpack.c.b16 %v5482, %v5481
        %v5509 = vpack.c.b16 %v5484, %v5483
        %v5510 = vpack.c.b16 %v5486, %v5485
        %v5511 = vpack.c.b16 %v5488, %v5487
        %v5512 = vpack.c.b16 %v5490, %v5489
        %v5513 = vpack.c.b16 %v5492, %v5491
        %v5514 = vpack.c.b16 %v5494, %v5493
        %v5515 = vpack.c.b16 %v5496, %v5495
        %v5516 = vpack.c.b16 %v5498, %v5497
        %v5517 = vpack.c.b16 %v5500, %v5499
        %v5518 = vpack.c.b16 %v5502, %v5501
        %5535 = vmatprep.subr.bf16.mxu0 0
        %5536 = vmatpush1.bf16.msra.mxu0 %v5503
        %5537 = vmatprep.subr.bf16.mxu0 0
        %5538 = vmatpush1.bf16.msra.mxu0 %v5504
        %5539 = vmatprep.subr.bf16.mxu0 0
        %5540 = vmatpush1.bf16.msra.mxu0 %v5505
        %5541 = vmatprep.subr.bf16.mxu0 0
        %5542 = vmatpush1.bf16.msra.mxu0 %v5506
        %5543 = vmatprep.subr.bf16.mxu0 0
        %5544 = vmatpush1.bf16.msra.mxu0 %v5507
        %5545 = vmatprep.subr.bf16.mxu0 0
        %5546 = vmatpush1.bf16.msra.mxu0 %v5508
        %5547 = vmatprep.subr.bf16.mxu0 0
        %5548 = vmatpush1.bf16.msra.mxu0 %v5509
        %5549 = vmatprep.subr.bf16.mxu0 0
        %5550 = vmatpush1.bf16.msra.mxu0 %v5510
        %5551 = vmatprep.subr.bf16.mxu0 0
        %5552 = vmatpush1.bf16.msra.mxu0 %v5511
        %5553 = vmatprep.subr.bf16.mxu0 0
        %5554 = vmatpush1.bf16.msra.mxu0 %v5512
        %5555 = vmatprep.subr.bf16.mxu0 0
        %5556 = vmatpush1.bf16.msra.mxu0 %v5513
        %5557 = vmatprep.subr.bf16.mxu0 0
        %5558 = vmatpush1.bf16.msra.mxu0 %v5514
        %5559 = vmatprep.subr.bf16.mxu0 0
        %5560 = vmatpush1.bf16.msra.mxu0 %v5515
        %5561 = vmatprep.subr.bf16.mxu0 0
        %5562 = vmatpush1.bf16.msra.mxu0 %v5516
        %5563 = vmatprep.subr.bf16.mxu0 0
        %5564 = vmatpush1.bf16.msra.mxu0 %v5517
        %5565 = vmatprep.subr.bf16.mxu0 0
        %5566 = vmatpush1.bf16.msra.mxu0 %v5518
        %5567 = vmatprep.mubr.bf16.mxu0 %v5403
        %5568 = vmatmul.mubr.bf16.gmra.mrb[0].mxu0 %v5402
        %v5569 = vpop.f32.mrb[0].mxu0
        %v5570 = vadd.f32 0.0, %v5569
        %v5571 = vpop.f32.mrb[0].mxu0
        %v5572 = vpop.f32.mrb[0].mxu0
        %v5573 = vadd.f32 0.0, %v5572
        %v5574 = vpop.f32.mrb[0].mxu0
        %5575 = vmatprep.mubr.bf16.mxu0 %v5405
        %5576 = vmatmul.mubr.bf16.gmra.mrb[0].mxu0 %v5404
        %v5577 = vpop.f32.mrb[0].mxu0
        %v5578 = vadd.f32 0.0, %v5577
        %v5579 = vpop.f32.mrb[0].mxu0
        %v5580 = vpop.f32.mrb[0].mxu0
        %v5581 = vadd.f32 0.0, %v5580
        %v5582 = vpop.f32.mrb[0].mxu0
        %5583 = vdwg.mxu0
        %v5584 = vadd.f32 %v5385, %v5570
        %v5585 = vadd.f32 %v5388, %v5573
        %v5586 = vadd.f32 %v5393, %v5578
        %v5587 = vadd.f32 %v5396, %v5581
        %s5588 = smul.u32 6, 2
        %s5589 = smul.addr %s5588, 8
        %s5590 = scalar_lea.vmem [#allocation2], %s5589
        %v5591 = vld [vmem:[%s5590] sm:$0xff]
        %v5592 = vld [vmem:[%s5590 + $0x8] sm:$0xff]
        %v5593 = vld [vmem:[%s5590 + $0x10] sm:$0xff]
        %v5594 = vld [vmem:[%s5590 + $0x18] sm:$0xff]
        %s5595 = scalar_lea.vmem [#allocation18], 384
        %v5596 = vld [vmem:[%s5595] sm:$0xf]
        %v5597 = vld [vmem:[%s5595 + $0x4] sm:$0xf]
        %v5598 = vld [vmem:[%s5595 + $0x8] sm:$0xf]
        %v5599 = vld [vmem:[%s5595 + $0xc] sm:$0xf]
        %v5600 = vld [vmem:[%s5595 + $0x10] sm:$0xf]
        %v5601 = vld [vmem:[%s5595 + $0x14] sm:$0xf]
        %v5602 = vld [vmem:[%s5595 + $0x18] sm:$0xf]
        %v5603 = vld [vmem:[%s5595 + $0x1c] sm:$0xf]
        %v5604 = vld [vmem:[%s5595 + $0x20] sm:$0xf]
        %v5605 = vld [vmem:[%s5595 + $0x24] sm:$0xf]
        %v5606 = vld [vmem:[%s5595 + $0x28] sm:$0xf]
        %v5607 = vld [vmem:[%s5595 + $0x2c] sm:$0xf]
        %v5608 = vld [vmem:[%s5595 + $0x30] sm:$0xf]
        %v5609 = vld [vmem:[%s5595 + $0x34] sm:$0xf]
        %v5610 = vld [vmem:[%s5595 + $0x38] sm:$0xf]
        %v5611 = vld [vmem:[%s5595 + $0x3c] sm:$0xf]
        %v5612 = vld [vmem:[%s5595 + $0x40] sm:$0xf]
        %v5613 = vld [vmem:[%s5595 + $0x44] sm:$0xf]
        %v5614 = vld [vmem:[%s5595 + $0x48] sm:$0xf]
        %v5615 = vld [vmem:[%s5595 + $0x4c] sm:$0xf]
        %v5616 = vld [vmem:[%s5595 + $0x50] sm:$0xf]
        %v5617 = vld [vmem:[%s5595 + $0x54] sm:$0xf]
        %v5618 = vld [vmem:[%s5595 + $0x58] sm:$0xf]
        %v5619 = vld [vmem:[%s5595 + $0x5c] sm:$0xf]
        %v5620 = vld [vmem:[%s5595 + $0x60] sm:$0xf]
        %v5621 = vld [vmem:[%s5595 + $0x64] sm:$0xf]
        %v5622 = vld [vmem:[%s5595 + $0x68] sm:$0xf]
        %v5623 = vld [vmem:[%s5595 + $0x6c] sm:$0xf]
        %v5624 = vld [vmem:[%s5595 + $0x70] sm:$0xf]
        %v5625 = vld [vmem:[%s5595 + $0x74] sm:$0xf]
        %v5626 = vld [vmem:[%s5595 + $0x78] sm:$0xf]
        %v5627 = vld [vmem:[%s5595 + $0x7c] sm:$0xf]
        %v5660 = vunpack.c.l.b16 %v5596
        %v5661 = vunpack.c.l.b16 %v5597
        %v5662 = vunpack.c.l.b16 %v5598
        %v5663 = vunpack.c.l.b16 %v5599
        %v5664 = vunpack.c.l.b16 %v5600
        %v5665 = vunpack.c.l.b16 %v5601
        %v5666 = vunpack.c.l.b16 %v5602
        %v5667 = vunpack.c.l.b16 %v5603
        %v5668 = vunpack.c.l.b16 %v5604
        %v5669 = vunpack.c.l.b16 %v5605
        %v5670 = vunpack.c.l.b16 %v5606
        %v5671 = vunpack.c.l.b16 %v5607
        %v5672 = vunpack.c.l.b16 %v5608
        %v5673 = vunpack.c.l.b16 %v5609
        %v5674 = vunpack.c.l.b16 %v5610
        %v5675 = vunpack.c.l.b16 %v5611
        %v5676 = vunpack.c.l.b16 %v5612
        %v5677 = vunpack.c.l.b16 %v5613
        %v5678 = vunpack.c.l.b16 %v5614
        %v5679 = vunpack.c.l.b16 %v5615
        %v5680 = vunpack.c.l.b16 %v5616
        %v5681 = vunpack.c.l.b16 %v5617
        %v5682 = vunpack.c.l.b16 %v5618
        %v5683 = vunpack.c.l.b16 %v5619
        %v5684 = vunpack.c.l.b16 %v5620
        %v5685 = vunpack.c.l.b16 %v5621
        %v5686 = vunpack.c.l.b16 %v5622
        %v5687 = vunpack.c.l.b16 %v5623
        %v5688 = vunpack.c.l.b16 %v5624
        %v5689 = vunpack.c.l.b16 %v5625
        %v5690 = vunpack.c.l.b16 %v5626
        %v5691 = vunpack.c.l.b16 %v5627
        %v5692 = vpack.c.b16 %v5661, %v5660
        %v5693 = vpack.c.b16 %v5663, %v5662
        %v5694 = vpack.c.b16 %v5665, %v5664
        %v5695 = vpack.c.b16 %v5667, %v5666
        %v5696 = vpack.c.b16 %v5669, %v5668
        %v5697 = vpack.c.b16 %v5671, %v5670
        %v5698 = vpack.c.b16 %v5673, %v5672
        %v5699 = vpack.c.b16 %v5675, %v5674
        %v5700 = vpack.c.b16 %v5677, %v5676
        %v5701 = vpack.c.b16 %v5679, %v5678
        %v5702 = vpack.c.b16 %v5681, %v5680
        %v5703 = vpack.c.b16 %v5683, %v5682
        %v5704 = vpack.c.b16 %v5685, %v5684
        %v5705 = vpack.c.b16 %v5687, %v5686
        %v5706 = vpack.c.b16 %v5689, %v5688
        %v5707 = vpack.c.b16 %v5691, %v5690
        %5724 = vmatprep.subr.bf16.mxu0 0
        %5725 = vmatpush1.bf16.msra.mxu0 %v5692
        %5726 = vmatprep.subr.bf16.mxu0 0
        %5727 = vmatpush1.bf16.msra.mxu0 %v5693
        %5728 = vmatprep.subr.bf16.mxu0 0
        %5729 = vmatpush1.bf16.msra.mxu0 %v5694
        %5730 = vmatprep.subr.bf16.mxu0 0
        %5731 = vmatpush1.bf16.msra.mxu0 %v5695
        %5732 = vmatprep.subr.bf16.mxu0 0
        %5733 = vmatpush1.bf16.msra.mxu0 %v5696
        %5734 = vmatprep.subr.bf16.mxu0 0
        %5735 = vmatpush1.bf16.msra.mxu0 %v5697
        %5736 = vmatprep.subr.bf16.mxu0 0
        %5737 = vmatpush1.bf16.msra.mxu0 %v5698
        %5738 = vmatprep.subr.bf16.mxu0 0
        %5739 = vmatpush1.bf16.msra.mxu0 %v5699
        %5740 = vmatprep.subr.bf16.mxu0 0
        %5741 = vmatpush1.bf16.msra.mxu0 %v5700
        %5742 = vmatprep.subr.bf16.mxu0 0
        %5743 = vmatpush1.bf16.msra.mxu0 %v5701
        %5744 = vmatprep.subr.bf16.mxu0 0
        %5745 = vmatpush1.bf16.msra.mxu0 %v5702
        %5746 = vmatprep.subr.bf16.mxu0 0
        %5747 = vmatpush1.bf16.msra.mxu0 %v5703
        %5748 = vmatprep.subr.bf16.mxu0 0
        %5749 = vmatpush1.bf16.msra.mxu0 %v5704
        %5750 = vmatprep.subr.bf16.mxu0 0
        %5751 = vmatpush1.bf16.msra.mxu0 %v5705
        %5752 = vmatprep.subr.bf16.mxu0 0
        %5753 = vmatpush1.bf16.msra.mxu0 %v5706
        %5754 = vmatprep.subr.bf16.mxu0 0
        %5755 = vmatpush1.bf16.msra.mxu0 %v5707
        %5756 = vmatprep.mubr.bf16.mxu0 %v5592
        %5757 = vmatmul.mubr.bf16.gmra.mrb[0].mxu0 %v5591
        %v5758 = vpop.f32.mrb[0].mxu0
        %v5759 = vadd.f32 0.0, %v5758
        %v5760 = vpop.f32.mrb[0].mxu0
        %v5761 = vpop.f32.mrb[0].mxu0
        %v5762 = vadd.f32 0.0, %v5761
        %v5763 = vpop.f32.mrb[0].mxu0
        %5764 = vmatprep.mubr.bf16.mxu0 %v5594
        %5765 = vmatmul.mubr.bf16.gmra.mrb[0].mxu0 %v5593
        %v5766 = vpop.f32.mrb[0].mxu0
        %v5767 = vadd.f32 0.0, %v5766
        %v5768 = vpop.f32.mrb[0].mxu0
        %v5769 = vpop.f32.mrb[0].mxu0
        %v5770 = vadd.f32 0.0, %v5769
        %v5771 = vpop.f32.mrb[0].mxu0
        %5772 = vdwg.mxu0
        %v5773 = vadd.f32 %v5584, %v5759
        %v5774 = vadd.f32 %v5585, %v5762
        %v5775 = vadd.f32 %v5586, %v5767
        %v5776 = vadd.f32 %v5587, %v5770
        %s5777 = smul.u32 8, 2
        %s5778 = smul.addr %s5777, 8
        %s5779 = scalar_lea.vmem [#allocation2], %s5778
        %v5780 = vld [vmem:[%s5779] sm:$0xff]
        %v5781 = vld [vmem:[%s5779 + $0x8] sm:$0xff]
        %v5782 = vld [vmem:[%s5779 + $0x10] sm:$0xff]
        %v5783 = vld [vmem:[%s5779 + $0x18] sm:$0xff]
        %s5784 = scalar_lea.vmem [#allocation18], 512
        %v5785 = vld [vmem:[%s5784] sm:$0xf]
        %v5786 = vld [vmem:[%s5784 + $0x4] sm:$0xf]
        %v5787 = vld [vmem:[%s5784 + $0x8] sm:$0xf]
        %v5788 = vld [vmem:[%s5784 + $0xc] sm:$0xf]
        %v5789 = vld [vmem:[%s5784 + $0x10] sm:$0xf]
        %v5790 = vld [vmem:[%s5784 + $0x14] sm:$0xf]
        %v5791 = vld [vmem:[%s5784 + $0x18] sm:$0xf]
        %v5792 = vld [vmem:[%s5784 + $0x1c] sm:$0xf]
        %v5793 = vld [vmem:[%s5784 + $0x20] sm:$0xf]
        %v5794 = vld [vmem:[%s5784 + $0x24] sm:$0xf]
        %v5795 = vld [vmem:[%s5784 + $0x28] sm:$0xf]
        %v5796 = vld [vmem:[%s5784 + $0x2c] sm:$0xf]
        %v5797 = vld [vmem:[%s5784 + $0x30] sm:$0xf]
        %v5798 = vld [vmem:[%s5784 + $0x34] sm:$0xf]
        %v5799 = vld [vmem:[%s5784 + $0x38] sm:$0xf]
        %v5800 = vld [vmem:[%s5784 + $0x3c] sm:$0xf]
        %v5801 = vld [vmem:[%s5784 + $0x40] sm:$0xf]
        %v5802 = vld [vmem:[%s5784 + $0x44] sm:$0xf]
        %v5803 = vld [vmem:[%s5784 + $0x48] sm:$0xf]
        %v5804 = vld [vmem:[%s5784 + $0x4c] sm:$0xf]
        %v5805 = vld [vmem:[%s5784 + $0x50] sm:$0xf]
        %v5806 = vld [vmem:[%s5784 + $0x54] sm:$0xf]
        %v5807 = vld [vmem:[%s5784 + $0x58] sm:$0xf]
        %v5808 = vld [vmem:[%s5784 + $0x5c] sm:$0xf]
        %v5809 = vld [vmem:[%s5784 + $0x60] sm:$0xf]
        %v5810 = vld [vmem:[%s5784 + $0x64] sm:$0xf]
        %v5811 = vld [vmem:[%s5784 + $0x68] sm:$0xf]
        %v5812 = vld [vmem:[%s5784 + $0x6c] sm:$0xf]
        %v5813 = vld [vmem:[%s5784 + $0x70] sm:$0xf]
        %v5814 = vld [vmem:[%s5784 + $0x74] sm:$0xf]
        %v5815 = vld [vmem:[%s5784 + $0x78] sm:$0xf]
        %v5816 = vld [vmem:[%s5784 + $0x7c] sm:$0xf]
        %v5849 = vunpack.c.l.b16 %v5785
        %v5850 = vunpack.c.l.b16 %v5786
        %v5851 = vunpack.c.l.b16 %v5787
        %v5852 = vunpack.c.l.b16 %v5788
        %v5853 = vunpack.c.l.b16 %v5789
        %v5854 = vunpack.c.l.b16 %v5790
        %v5855 = vunpack.c.l.b16 %v5791
        %v5856 = vunpack.c.l.b16 %v5792
        %v5857 = vunpack.c.l.b16 %v5793
        %v5858 = vunpack.c.l.b16 %v5794
        %v5859 = vunpack.c.l.b16 %v5795
        %v5860 = vunpack.c.l.b16 %v5796
        %v5861 = vunpack.c.l.b16 %v5797
        %v5862 = vunpack.c.l.b16 %v5798
        %v5863 = vunpack.c.l.b16 %v5799
        %v5864 = vunpack.c.l.b16 %v5800
        %v5865 = vunpack.c.l.b16 %v5801
        %v5866 = vunpack.c.l.b16 %v5802
        %v5867 = vunpack.c.l.b16 %v5803
        %v5868 = vunpack.c.l.b16 %v5804
        %v5869 = vunpack.c.l.b16 %v5805
        %v5870 = vunpack.c.l.b16 %v5806
        %v5871 = vunpack.c.l.b16 %v5807
        %v5872 = vunpack.c.l.b16 %v5808
        %v5873 = vunpack.c.l.b16 %v5809
        %v5874 = vunpack.c.l.b16 %v5810
        %v5875 = vunpack.c.l.b16 %v5811
        %v5876 = vunpack.c.l.b16 %v5812
        %v5877 = vunpack.c.l.b16 %v5813
        %v5878 = vunpack.c.l.b16 %v5814
        %v5879 = vunpack.c.l.b16 %v5815
        %v5880 = vunpack.c.l.b16 %v5816
        %v5881 = vpack.c.b16 %v5850, %v5849
        %v5882 = vpack.c.b16 %v5852, %v5851
        %v5883 = vpack.c.b16 %v5854, %v5853
        %v5884 = vpack.c.b16 %v5856, %v5855
        %v5885 = vpack.c.b16 %v5858, %v5857
        %v5886 = vpack.c.b16 %v5860, %v5859
        %v5887 = vpack.c.b16 %v5862, %v5861
        %v5888 = vpack.c.b16 %v5864, %v5863
        %v5889 = vpack.c.b16 %v5866, %v5865
        %v5890 = vpack.c.b16 %v5868, %v5867
        %v5891 = vpack.c.b16 %v5870, %v5869
        %v5892 = vpack.c.b16 %v5872, %v5871
        %v5893 = vpack.c.b16 %v5874, %v5873
        %v5894 = vpack.c.b16 %v5876, %v5875
        %v5895 = vpack.c.b16 %v5878, %v5877
        %v5896 = vpack.c.b16 %v5880, %v5879
        %5913 = vmatprep.subr.bf16.mxu0 0
        %5914 = vmatpush1.bf16.msra.mxu0 %v5881
        %5915 = vmatprep.subr.bf16.mxu0 0
        %5916 = vmatpush1.bf16.msra.mxu0 %v5882
        %5917 = vmatprep.subr.bf16.mxu0 0
        %5918 = vmatpush1.bf16.msra.mxu0 %v5883
        %5919 = vmatprep.subr.bf16.mxu0 0
        %5920 = vmatpush1.bf16.msra.mxu0 %v5884
        %5921 = vmatprep.subr.bf16.mxu0 0
        %5922 = vmatpush1.bf16.msra.mxu0 %v5885
        %5923 = vmatprep.subr.bf16.mxu0 0
        %5924 = vmatpush1.bf16.msra.mxu0 %v5886
        %5925 = vmatprep.subr.bf16.mxu0 0
        %5926 = vmatpush1.bf16.msra.mxu0 %v5887
        %5927 = vmatprep.subr.bf16.mxu0 0
        %5928 = vmatpush1.bf16.msra.mxu0 %v5888
        %5929 = vmatprep.subr.bf16.mxu0 0
        %5930 = vmatpush1.bf16.msra.mxu0 %v5889
        %5931 = vmatprep.subr.bf16.mxu0 0
        %5932 = vmatpush1.bf16.msra.mxu0 %v5890
        %5933 = vmatprep.subr.bf16.mxu0 0
        %5934 = vmatpush1.bf16.msra.mxu0 %v5891
        %5935 = vmatprep.subr.bf16.mxu0 0
        %5936 = vmatpush1.bf16.msra.mxu0 %v5892
        %5937 = vmatprep.subr.bf16.mxu0 0
        %5938 = vmatpush1.bf16.msra.mxu0 %v5893
        %5939 = vmatprep.subr.bf16.mxu0 0
        %5940 = vmatpush1.bf16.msra.mxu0 %v5894
        %5941 = vmatprep.subr.bf16.mxu0 0
        %5942 = vmatpush1.bf16.msra.mxu0 %v5895
        %5943 = vmatprep.subr.bf16.mxu0 0
        %5944 = vmatpush1.bf16.msra.mxu0 %v5896
        %5945 = vmatprep.mubr.bf16.mxu0 %v5781
        %5946 = vmatmul.mubr.bf16.gmra.mrb[0].mxu0 %v5780
        %v5947 = vpop.f32.mrb[0].mxu0
        %v5948 = vadd.f32 0.0, %v5947
        %v5949 = vpop.f32.mrb[0].mxu0
        %v5950 = vpop.f32.mrb[0].mxu0
        %v5951 = vadd.f32 0.0, %v5950
        %v5952 = vpop.f32.mrb[0].mxu0
        %5953 = vmatprep.mubr.bf16.mxu0 %v5783
        %5954 = vmatmul.mubr.bf16.gmra.mrb[0].mxu0 %v5782
        %v5955 = vpop.f32.mrb[0].mxu0
        %v5956 = vadd.f32 0.0, %v5955
        %v5957 = vpop.f32.mrb[0].mxu0
        %v5958 = vpop.f32.mrb[0].mxu0
        %v5959 = vadd.f32 0.0, %v5958
        %v5960 = vpop.f32.mrb[0].mxu0
        %5961 = vdwg.mxu0
        %v5962 = vadd.f32 %v5773, %v5948
        %v5963 = vadd.f32 %v5774, %v5951
        %v5964 = vadd.f32 %v5775, %v5956
        %v5965 = vadd.f32 %v5776, %v5959
        %s5966 = smul.u32 10, 2
        %s5967 = smul.addr %s5966, 8
        %s5968 = scalar_lea.vmem [#allocation2], %s5967
        %v5969 = vld [vmem:[%s5968] sm:$0xff]
        %v5970 = vld [vmem:[%s5968 + $0x8] sm:$0xff]
        %v5971 = vld [vmem:[%s5968 + $0x10] sm:$0xff]
        %v5972 = vld [vmem:[%s5968 + $0x18] sm:$0xff]
        %s5973 = scalar_lea.vmem [#allocation18], 640
        %v5974 = vld [vmem:[%s5973] sm:$0xf]
        %v5975 = vld [vmem:[%s5973 + $0x4] sm:$0xf]
        %v5976 = vld [vmem:[%s5973 + $0x8] sm:$0xf]
        %v5977 = vld [vmem:[%s5973 + $0xc] sm:$0xf]
        %v5978 = vld [vmem:[%s5973 + $0x10] sm:$0xf]
        %v5979 = vld [vmem:[%s5973 + $0x14] sm:$0xf]
        %v5980 = vld [vmem:[%s5973 + $0x18] sm:$0xf]
        %v5981 = vld [vmem:[%s5973 + $0x1c] sm:$0xf]
        %v5982 = vld [vmem:[%s5973 + $0x20] sm:$0xf]
        %v5983 = vld [vmem:[%s5973 + $0x24] sm:$0xf]
        %v5984 = vld [vmem:[%s5973 + $0x28] sm:$0xf]
        %v5985 = vld [vmem:[%s5973 + $0x2c] sm:$0xf]
        %v5986 = vld [vmem:[%s5973 + $0x30] sm:$0xf]
        %v5987 = vld [vmem:[%s5973 + $0x34] sm:$0xf]
        %v5988 = vld [vmem:[%s5973 + $0x38] sm:$0xf]
        %v5989 = vld [vmem:[%s5973 + $0x3c] sm:$0xf]
        %v5990 = vld [vmem:[%s5973 + $0x40] sm:$0xf]
        %v5991 = vld [vmem:[%s5973 + $0x44] sm:$0xf]
        %v5992 = vld [vmem:[%s5973 + $0x48] sm:$0xf]
        %v5993 = vld [vmem:[%s5973 + $0x4c] sm:$0xf]
        %v5994 = vld [vmem:[%s5973 + $0x50] sm:$0xf]
        %v5995 = vld [vmem:[%s5973 + $0x54] sm:$0xf]
        %v5996 = vld [vmem:[%s5973 + $0x58] sm:$0xf]
        %v5997 = vld [vmem:[%s5973 + $0x5c] sm:$0xf]
        %v5998 = vld [vmem:[%s5973 + $0x60] sm:$0xf]
        %v5999 = vld [vmem:[%s5973 + $0x64] sm:$0xf]
        %v6000 = vld [vmem:[%s5973 + $0x68] sm:$0xf]
        %v6001 = vld [vmem:[%s5973 + $0x6c] sm:$0xf]
        %v6002 = vld [vmem:[%s5973 + $0x70] sm:$0xf]
        %v6003 = vld [vmem:[%s5973 + $0x74] sm:$0xf]
        %v6004 = vld [vmem:[%s5973 + $0x78] sm:$0xf]
        %v6005 = vld [vmem:[%s5973 + $0x7c] sm:$0xf]
        %v6038 = vunpack.c.l.b16 %v5974
        %v6039 = vunpack.c.l.b16 %v5975
        %v6040 = vunpack.c.l.b16 %v5976
        %v6041 = vunpack.c.l.b16 %v5977
        %v6042 = vunpack.c.l.b16 %v5978
        %v6043 = vunpack.c.l.b16 %v5979
        %v6044 = vunpack.c.l.b16 %v5980
        %v6045 = vunpack.c.l.b16 %v5981
        %v6046 = vunpack.c.l.b16 %v5982
        %v6047 = vunpack.c.l.b16 %v5983
        %v6048 = vunpack.c.l.b16 %v5984
        %v6049 = vunpack.c.l.b16 %v5985
        %v6050 = vunpack.c.l.b16 %v5986
        %v6051 = vunpack.c.l.b16 %v5987
        %v6052 = vunpack.c.l.b16 %v5988
        %v6053 = vunpack.c.l.b16 %v5989
        %v6054 = vunpack.c.l.b16 %v5990
        %v6055 = vunpack.c.l.b16 %v5991
        %v6056 = vunpack.c.l.b16 %v5992
        %v6057 = vunpack.c.l.b16 %v5993
        %v6058 = vunpack.c.l.b16 %v5994
        %v6059 = vunpack.c.l.b16 %v5995
        %v6060 = vunpack.c.l.b16 %v5996
        %v6061 = vunpack.c.l.b16 %v5997
        %v6062 = vunpack.c.l.b16 %v5998
        %v6063 = vunpack.c.l.b16 %v5999
        %v6064 = vunpack.c.l.b16 %v6000
        %v6065 = vunpack.c.l.b16 %v6001
        %v6066 = vunpack.c.l.b16 %v6002
        %v6067 = vunpack.c.l.b16 %v6003
        %v6068 = vunpack.c.l.b16 %v6004
        %v6069 = vunpack.c.l.b16 %v6005
        %v6070 = vpack.c.b16 %v6039, %v6038
        %v6071 = vpack.c.b16 %v6041, %v6040
        %v6072 = vpack.c.b16 %v6043, %v6042
        %v6073 = vpack.c.b16 %v6045, %v6044
        %v6074 = vpack.c.b16 %v6047, %v6046
        %v6075 = vpack.c.b16 %v6049, %v6048
        %v6076 = vpack.c.b16 %v6051, %v6050
        %v6077 = vpack.c.b16 %v6053, %v6052
        %v6078 = vpack.c.b16 %v6055, %v6054
        %v6079 = vpack.c.b16 %v6057, %v6056
        %v6080 = vpack.c.b16 %v6059, %v6058
        %v6081 = vpack.c.b16 %v6061, %v6060
        %v6082 = vpack.c.b16 %v6063, %v6062
        %v6083 = vpack.c.b16 %v6065, %v6064
        %v6084 = vpack.c.b16 %v6067, %v6066
        %v6085 = vpack.c.b16 %v6069, %v6068
        %6102 = vmatprep.subr.bf16.mxu0 0
        %6103 = vmatpush1.bf16.msra.mxu0 %v6070
        %6104 = vmatprep.subr.bf16.mxu0 0
        %6105 = vmatpush1.bf16.msra.mxu0 %v6071
        %6106 = vmatprep.subr.bf16.mxu0 0
        %6107 = vmatpush1.bf16.msra.mxu0 %v6072
        %6108 = vmatprep.subr.bf16.mxu0 0
        %6109 = vmatpush1.bf16.msra.mxu0 %v6073
        %6110 = vmatprep.subr.bf16.mxu0 0
        %6111 = vmatpush1.bf16.msra.mxu0 %v6074
        %6112 = vmatprep.subr.bf16.mxu0 0
        %6113 = vmatpush1.bf16.msra.mxu0 %v6075
        %6114 = vmatprep.subr.bf16.mxu0 0
        %6115 = vmatpush1.bf16.msra.mxu0 %v6076
        %6116 = vmatprep.subr.bf16.mxu0 0
        %6117 = vmatpush1.bf16.msra.mxu0 %v6077
        %6118 = vmatprep.subr.bf16.mxu0 0
        %6119 = vmatpush1.bf16.msra.mxu0 %v6078
        %6120 = vmatprep.subr.bf16.mxu0 0
        %6121 = vmatpush1.bf16.msra.mxu0 %v6079
        %6122 = vmatprep.subr.bf16.mxu0 0
        %6123 = vmatpush1.bf16.msra.mxu0 %v6080
        %6124 = vmatprep.subr.bf16.mxu0 0
        %6125 = vmatpush1.bf16.msra.mxu0 %v6081
        %6126 = vmatprep.subr.bf16.mxu0 0
        %6127 = vmatpush1.bf16.msra.mxu0 %v6082
        %6128 = vmatprep.subr.bf16.mxu0 0
        %6129 = vmatpush1.bf16.msra.mxu0 %v6083
        %6130 = vmatprep.subr.bf16.mxu0 0
        %6131 = vmatpush1.bf16.msra.mxu0 %v6084
        %6132 = vmatprep.subr.bf16.mxu0 0
        %6133 = vmatpush1.bf16.msra.mxu0 %v6085
        %6134 = vmatprep.mubr.bf16.mxu0 %v5970
        %6135 = vmatmul.mubr.bf16.gmra.mrb[0].mxu0 %v5969
        %v6136 = vpop.f32.mrb[0].mxu0
        %v6137 = vadd.f32 0.0, %v6136
        %v6138 = vpop.f32.mrb[0].mxu0
        %v6139 = vpop.f32.mrb[0].mxu0
        %v6140 = vadd.f32 0.0, %v6139
        %v6141 = vpop.f32.mrb[0].mxu0
        %6142 = vmatprep.mubr.bf16.mxu0 %v5972
        %6143 = vmatmul.mubr.bf16.gmra.mrb[0].mxu0 %v5971
        %v6144 = vpop.f32.mrb[0].mxu0
        %v6145 = vadd.f32 0.0, %v6144
        %v6146 = vpop.f32.mrb[0].mxu0
        %v6147 = vpop.f32.mrb[0].mxu0
        %v6148 = vadd.f32 0.0, %v6147
        %v6149 = vpop.f32.mrb[0].mxu0
        %6150 = vdwg.mxu0
        %v6151 = vadd.f32 %v5962, %v6137
        %v6152 = vadd.f32 %v5963, %v6140
        %v6153 = vadd.f32 %v5964, %v6145
        %v6154 = vadd.f32 %v5965, %v6148
        %s6155 = smul.u32 12, 2
        %s6156 = smul.addr %s6155, 8
        %s6157 = scalar_lea.vmem [#allocation2], %s6156
        %v6158 = vld [vmem:[%s6157] sm:$0xff]
        %v6159 = vld [vmem:[%s6157 + $0x8] sm:$0xff]
        %v6160 = vld [vmem:[%s6157 + $0x10] sm:$0xff]
        %v6161 = vld [vmem:[%s6157 + $0x18] sm:$0xff]
        %s6162 = scalar_lea.vmem [#allocation18], 768
        %v6163 = vld [vmem:[%s6162] sm:$0xf]
        %v6164 = vld [vmem:[%s6162 + $0x4] sm:$0xf]
        %v6165 = vld [vmem:[%s6162 + $0x8] sm:$0xf]
        %v6166 = vld [vmem:[%s6162 + $0xc] sm:$0xf]
        %v6167 = vld [vmem:[%s6162 + $0x10] sm:$0xf]
        %v6168 = vld [vmem:[%s6162 + $0x14] sm:$0xf]
        %v6169 = vld [vmem:[%s6162 + $0x18] sm:$0xf]
        %v6170 = vld [vmem:[%s6162 + $0x1c] sm:$0xf]
        %v6171 = vld [vmem:[%s6162 + $0x20] sm:$0xf]
        %v6172 = vld [vmem:[%s6162 + $0x24] sm:$0xf]
        %v6173 = vld [vmem:[%s6162 + $0x28] sm:$0xf]
        %v6174 = vld [vmem:[%s6162 + $0x2c] sm:$0xf]
        %v6175 = vld [vmem:[%s6162 + $0x30] sm:$0xf]
        %v6176 = vld [vmem:[%s6162 + $0x34] sm:$0xf]
        %v6177 = vld [vmem:[%s6162 + $0x38] sm:$0xf]
        %v6178 = vld [vmem:[%s6162 + $0x3c] sm:$0xf]
        %v6179 = vld [vmem:[%s6162 + $0x40] sm:$0xf]
        %v6180 = vld [vmem:[%s6162 + $0x44] sm:$0xf]
        %v6181 = vld [vmem:[%s6162 + $0x48] sm:$0xf]
        %v6182 = vld [vmem:[%s6162 + $0x4c] sm:$0xf]
        %v6183 = vld [vmem:[%s6162 + $0x50] sm:$0xf]
        %v6184 = vld [vmem:[%s6162 + $0x54] sm:$0xf]
        %v6185 = vld [vmem:[%s6162 + $0x58] sm:$0xf]
        %v6186 = vld [vmem:[%s6162 + $0x5c] sm:$0xf]
        %v6187 = vld [vmem:[%s6162 + $0x60] sm:$0xf]
        %v6188 = vld [vmem:[%s6162 + $0x64] sm:$0xf]
        %v6189 = vld [vmem:[%s6162 + $0x68] sm:$0xf]
        %v6190 = vld [vmem:[%s6162 + $0x6c] sm:$0xf]
        %v6191 = vld [vmem:[%s6162 + $0x70] sm:$0xf]
        %v6192 = vld [vmem:[%s6162 + $0x74] sm:$0xf]
        %v6193 = vld [vmem:[%s6162 + $0x78] sm:$0xf]
        %v6194 = vld [vmem:[%s6162 + $0x7c] sm:$0xf]
        %v6227 = vunpack.c.l.b16 %v6163
        %v6228 = vunpack.c.l.b16 %v6164
        %v6229 = vunpack.c.l.b16 %v6165
        %v6230 = vunpack.c.l.b16 %v6166
        %v6231 = vunpack.c.l.b16 %v6167
        %v6232 = vunpack.c.l.b16 %v6168
        %v6233 = vunpack.c.l.b16 %v6169
        %v6234 = vunpack.c.l.b16 %v6170
        %v6235 = vunpack.c.l.b16 %v6171
        %v6236 = vunpack.c.l.b16 %v6172
        %v6237 = vunpack.c.l.b16 %v6173
        %v6238 = vunpack.c.l.b16 %v6174
        %v6239 = vunpack.c.l.b16 %v6175
        %v6240 = vunpack.c.l.b16 %v6176
        %v6241 = vunpack.c.l.b16 %v6177
        %v6242 = vunpack.c.l.b16 %v6178
        %v6243 = vunpack.c.l.b16 %v6179
        %v6244 = vunpack.c.l.b16 %v6180
        %v6245 = vunpack.c.l.b16 %v6181
        %v6246 = vunpack.c.l.b16 %v6182
        %v6247 = vunpack.c.l.b16 %v6183
        %v6248 = vunpack.c.l.b16 %v6184
        %v6249 = vunpack.c.l.b16 %v6185
        %v6250 = vunpack.c.l.b16 %v6186
        %v6251 = vunpack.c.l.b16 %v6187
        %v6252 = vunpack.c.l.b16 %v6188
        %v6253 = vunpack.c.l.b16 %v6189
        %v6254 = vunpack.c.l.b16 %v6190
        %v6255 = vunpack.c.l.b16 %v6191
        %v6256 = vunpack.c.l.b16 %v6192
        %v6257 = vunpack.c.l.b16 %v6193
        %v6258 = vunpack.c.l.b16 %v6194
        %v6259 = vpack.c.b16 %v6228, %v6227
        %v6260 = vpack.c.b16 %v6230, %v6229
        %v6261 = vpack.c.b16 %v6232, %v6231
        %v6262 = vpack.c.b16 %v6234, %v6233
        %v6263 = vpack.c.b16 %v6236, %v6235
        %v6264 = vpack.c.b16 %v6238, %v6237
        %v6265 = vpack.c.b16 %v6240, %v6239
        %v6266 = vpack.c.b16 %v6242, %v6241
        %v6267 = vpack.c.b16 %v6244, %v6243
        %v6268 = vpack.c.b16 %v6246, %v6245
        %v6269 = vpack.c.b16 %v6248, %v6247
        %v6270 = vpack.c.b16 %v6250, %v6249
        %v6271 = vpack.c.b16 %v6252, %v6251
        %v6272 = vpack.c.b16 %v6254, %v6253
        %v6273 = vpack.c.b16 %v6256, %v6255
        %v6274 = vpack.c.b16 %v6258, %v6257
        %6291 = vmatprep.subr.bf16.mxu0 0
        %6292 = vmatpush1.bf16.msra.mxu0 %v6259
        %6293 = vmatprep.subr.bf16.mxu0 0
        %6294 = vmatpush1.bf16.msra.mxu0 %v6260
        %6295 = vmatprep.subr.bf16.mxu0 0
        %6296 = vmatpush1.bf16.msra.mxu0 %v6261
        %6297 = vmatprep.subr.bf16.mxu0 0
        %6298 = vmatpush1.bf16.msra.mxu0 %v6262
        %6299 = vmatprep.subr.bf16.mxu0 0
        %6300 = vmatpush1.bf16.msra.mxu0 %v6263
        %6301 = vmatprep.subr.bf16.mxu0 0
        %6302 = vmatpush1.bf16.msra.mxu0 %v6264
        %6303 = vmatprep.subr.bf16.mxu0 0
        %6304 = vmatpush1.bf16.msra.mxu0 %v6265
        %6305 = vmatprep.subr.bf16.mxu0 0
        %6306 = vmatpush1.bf16.msra.mxu0 %v6266
        %6307 = vmatprep.subr.bf16.mxu0 0
        %6308 = vmatpush1.bf16.msra.mxu0 %v6267
        %6309 = vmatprep.subr.bf16.mxu0 0
        %6310 = vmatpush1.bf16.msra.mxu0 %v6268
        %6311 = vmatprep.subr.bf16.mxu0 0
        %6312 = vmatpush1.bf16.msra.mxu0 %v6269
        %6313 = vmatprep.subr.bf16.mxu0 0
        %6314 = vmatpush1.bf16.msra.mxu0 %v6270
        %6315 = vmatprep.subr.bf16.mxu0 0
        %6316 = vmatpush1.bf16.msra.mxu0 %v6271
        %6317 = vmatprep.subr.bf16.mxu0 0
        %6318 = vmatpush1.bf16.msra.mxu0 %v6272
        %6319 = vmatprep.subr.bf16.mxu0 0
        %6320 = vmatpush1.bf16.msra.mxu0 %v6273
        %6321 = vmatprep.subr.bf16.mxu0 0
        %6322 = vmatpush1.bf16.msra.mxu0 %v6274
        %6323 = vmatprep.mubr.bf16.mxu0 %v6159
        %6324 = vmatmul.mubr.bf16.gmra.mrb[0].mxu0 %v6158
        %v6325 = vpop.f32.mrb[0].mxu0
        %v6326 = vadd.f32 0.0, %v6325
        %v6327 = vpop.f32.mrb[0].mxu0
        %v6328 = vpop.f32.mrb[0].mxu0
        %v6329 = vadd.f32 0.0, %v6328
        %v6330 = vpop.f32.mrb[0].mxu0
        %6331 = vmatprep.mubr.bf16.mxu0 %v6161
        %6332 = vmatmul.mubr.bf16.gmra.mrb[0].mxu0 %v6160
        %v6333 = vpop.f32.mrb[0].mxu0
        %v6334 = vadd.f32 0.0, %v6333
        %v6335 = vpop.f32.mrb[0].mxu0
        %v6336 = vpop.f32.mrb[0].mxu0
        %v6337 = vadd.f32 0.0, %v6336
        %v6338 = vpop.f32.mrb[0].mxu0
        %6339 = vdwg.mxu0
        %v6340 = vadd.f32 %v6151, %v6326
        %v6341 = vadd.f32 %v6152, %v6329
        %v6342 = vadd.f32 %v6153, %v6334
        %v6343 = vadd.f32 %v6154, %v6337
        %s6344 = smul.u32 14, 2
        %s6345 = smul.addr %s6344, 8
        %s6346 = scalar_lea.vmem [#allocation2], %s6345
        %v6347 = vld [vmem:[%s6346] sm:$0xff]
        %v6348 = vld [vmem:[%s6346 + $0x8] sm:$0xff]
        %v6349 = vld [vmem:[%s6346 + $0x10] sm:$0xff]
        %v6350 = vld [vmem:[%s6346 + $0x18] sm:$0xff]
        %s6351 = scalar_lea.vmem [#allocation18], 896
        %v6352 = vld [vmem:[%s6351] sm:$0xf]
        %v6353 = vld [vmem:[%s6351 + $0x4] sm:$0xf]
        %v6354 = vld [vmem:[%s6351 + $0x8] sm:$0xf]
        %v6355 = vld [vmem:[%s6351 + $0xc] sm:$0xf]
        %v6356 = vld [vmem:[%s6351 + $0x10] sm:$0xf]
        %v6357 = vld [vmem:[%s6351 + $0x14] sm:$0xf]
        %v6358 = vld [vmem:[%s6351 + $0x18] sm:$0xf]
        %v6359 = vld [vmem:[%s6351 + $0x1c] sm:$0xf]
        %v6360 = vld [vmem:[%s6351 + $0x20] sm:$0xf]
        %v6361 = vld [vmem:[%s6351 + $0x24] sm:$0xf]
        %v6362 = vld [vmem:[%s6351 + $0x28] sm:$0xf]
        %v6363 = vld [vmem:[%s6351 + $0x2c] sm:$0xf]
        %v6364 = vld [vmem:[%s6351 + $0x30] sm:$0xf]
        %v6365 = vld [vmem:[%s6351 + $0x34] sm:$0xf]
        %v6366 = vld [vmem:[%s6351 + $0x38] sm:$0xf]
        %v6367 = vld [vmem:[%s6351 + $0x3c] sm:$0xf]
        %v6368 = vld [vmem:[%s6351 + $0x40] sm:$0xf]
        %v6369 = vld [vmem:[%s6351 + $0x44] sm:$0xf]
        %v6370 = vld [vmem:[%s6351 + $0x48] sm:$0xf]
        %v6371 = vld [vmem:[%s6351 + $0x4c] sm:$0xf]
        %v6372 = vld [vmem:[%s6351 + $0x50] sm:$0xf]
        %v6373 = vld [vmem:[%s6351 + $0x54] sm:$0xf]
        %v6374 = vld [vmem:[%s6351 + $0x58] sm:$0xf]
        %v6375 = vld [vmem:[%s6351 + $0x5c] sm:$0xf]
        %v6376 = vld [vmem:[%s6351 + $0x60] sm:$0xf]
        %v6377 = vld [vmem:[%s6351 + $0x64] sm:$0xf]
        %v6378 = vld [vmem:[%s6351 + $0x68] sm:$0xf]
        %v6379 = vld [vmem:[%s6351 + $0x6c] sm:$0xf]
        %v6380 = vld [vmem:[%s6351 + $0x70] sm:$0xf]
        %v6381 = vld [vmem:[%s6351 + $0x74] sm:$0xf]
        %v6382 = vld [vmem:[%s6351 + $0x78] sm:$0xf]
        %v6383 = vld [vmem:[%s6351 + $0x7c] sm:$0xf]
        %v6416 = vunpack.c.l.b16 %v6352
        %v6417 = vunpack.c.l.b16 %v6353
        %v6418 = vunpack.c.l.b16 %v6354
        %v6419 = vunpack.c.l.b16 %v6355
        %v6420 = vunpack.c.l.b16 %v6356
        %v6421 = vunpack.c.l.b16 %v6357
        %v6422 = vunpack.c.l.b16 %v6358
        %v6423 = vunpack.c.l.b16 %v6359
        %v6424 = vunpack.c.l.b16 %v6360
        %v6425 = vunpack.c.l.b16 %v6361
        %v6426 = vunpack.c.l.b16 %v6362
        %v6427 = vunpack.c.l.b16 %v6363
        %v6428 = vunpack.c.l.b16 %v6364
        %v6429 = vunpack.c.l.b16 %v6365
        %v6430 = vunpack.c.l.b16 %v6366
        %v6431 = vunpack.c.l.b16 %v6367
        %v6432 = vunpack.c.l.b16 %v6368
        %v6433 = vunpack.c.l.b16 %v6369
        %v6434 = vunpack.c.l.b16 %v6370
        %v6435 = vunpack.c.l.b16 %v6371
        %v6436 = vunpack.c.l.b16 %v6372
        %v6437 = vunpack.c.l.b16 %v6373
        %v6438 = vunpack.c.l.b16 %v6374
        %v6439 = vunpack.c.l.b16 %v6375
        %v6440 = vunpack.c.l.b16 %v6376
        %v6441 = vunpack.c.l.b16 %v6377
        %v6442 = vunpack.c.l.b16 %v6378
        %v6443 = vunpack.c.l.b16 %v6379
        %v6444 = vunpack.c.l.b16 %v6380
        %v6445 = vunpack.c.l.b16 %v6381
        %v6446 = vunpack.c.l.b16 %v6382
        %v6447 = vunpack.c.l.b16 %v6383
        %v6448 = vpack.c.b16 %v6417, %v6416
        %v6449 = vpack.c.b16 %v6419, %v6418
        %v6450 = vpack.c.b16 %v6421, %v6420
        %v6451 = vpack.c.b16 %v6423, %v6422
        %v6452 = vpack.c.b16 %v6425, %v6424
        %v6453 = vpack.c.b16 %v6427, %v6426
        %v6454 = vpack.c.b16 %v6429, %v6428
        %v6455 = vpack.c.b16 %v6431, %v6430
        %v6456 = vpack.c.b16 %v6433, %v6432
        %v6457 = vpack.c.b16 %v6435, %v6434
        %v6458 = vpack.c.b16 %v6437, %v6436
        %v6459 = vpack.c.b16 %v6439, %v6438
        %v6460 = vpack.c.b16 %v6441, %v6440
        %v6461 = vpack.c.b16 %v6443, %v6442
        %v6462 = vpack.c.b16 %v6445, %v6444
        %v6463 = vpack.c.b16 %v6447, %v6446
        %6480 = vmatprep.subr.bf16.mxu0 0
        %6481 = vmatpush1.bf16.msra.mxu0 %v6448
        %6482 = vmatprep.subr.bf16.mxu0 0
        %6483 = vmatpush1.bf16.msra.mxu0 %v6449
        %6484 = vmatprep.subr.bf16.mxu0 0
        %6485 = vmatpush1.bf16.msra.mxu0 %v6450
        %6486 = vmatprep.subr.bf16.mxu0 0
        %6487 = vmatpush1.bf16.msra.mxu0 %v6451
        %6488 = vmatprep.subr.bf16.mxu0 0
        %6489 = vmatpush1.bf16.msra.mxu0 %v6452
        %6490 = vmatprep.subr.bf16.mxu0 0
        %6491 = vmatpush1.bf16.msra.mxu0 %v6453
        %6492 = vmatprep.subr.bf16.mxu0 0
        %6493 = vmatpush1.bf16.msra.mxu0 %v6454
        %6494 = vmatprep.subr.bf16.mxu0 0
        %6495 = vmatpush1.bf16.msra.mxu0 %v6455
        %6496 = vmatprep.subr.bf16.mxu0 0
        %6497 = vmatpush1.bf16.msra.mxu0 %v6456
        %6498 = vmatprep.subr.bf16.mxu0 0
        %6499 = vmatpush1.bf16.msra.mxu0 %v6457
        %6500 = vmatprep.subr.bf16.mxu0 0
        %6501 = vmatpush1.bf16.msra.mxu0 %v6458
        %6502 = vmatprep.subr.bf16.mxu0 0
        %6503 = vmatpush1.bf16.msra.mxu0 %v6459
        %6504 = vmatprep.subr.bf16.mxu0 0
        %6505 = vmatpush1.bf16.msra.mxu0 %v6460
        %6506 = vmatprep.subr.bf16.mxu0 0
        %6507 = vmatpush1.bf16.msra.mxu0 %v6461
        %6508 = vmatprep.subr.bf16.mxu0 0
        %6509 = vmatpush1.bf16.msra.mxu0 %v6462
        %6510 = vmatprep.subr.bf16.mxu0 0
        %6511 = vmatpush1.bf16.msra.mxu0 %v6463
        %6512 = vmatprep.mubr.bf16.mxu0 %v6348
        %6513 = vmatmul.mubr.bf16.gmra.mrb[0].mxu0 %v6347
        %v6514 = vpop.f32.mrb[0].mxu0
        %v6515 = vadd.f32 0.0, %v6514
        %v6516 = vpop.f32.mrb[0].mxu0
        %v6517 = vpop.f32.mrb[0].mxu0
        %v6518 = vadd.f32 0.0, %v6517
        %v6519 = vpop.f32.mrb[0].mxu0
        %6520 = vmatprep.mubr.bf16.mxu0 %v6350
        %6521 = vmatmul.mubr.bf16.gmra.mrb[0].mxu0 %v6349
        %v6522 = vpop.f32.mrb[0].mxu0
        %v6523 = vadd.f32 0.0, %v6522
        %v6524 = vpop.f32.mrb[0].mxu0
        %v6525 = vpop.f32.mrb[0].mxu0
        %v6526 = vadd.f32 0.0, %v6525
        %v6527 = vpop.f32.mrb[0].mxu0
        %6528 = vdwg.mxu0
        %v6529 = vadd.f32 %v6340, %v6515
        %v6530 = vadd.f32 %v6341, %v6518
        %v6531 = vadd.f32 %v6342, %v6523
        %v6532 = vadd.f32 %v6343, %v6526
        %s6533 = smul.u32 16, 2
        %s6534 = smul.addr %s6533, 8
        %s6535 = scalar_lea.vmem [#allocation2], %s6534
        %v6536 = vld [vmem:[%s6535] sm:$0xff]
        %v6537 = vld [vmem:[%s6535 + $0x8] sm:$0xff]
        %v6538 = vld [vmem:[%s6535 + $0x10] sm:$0xff]
        %v6539 = vld [vmem:[%s6535 + $0x18] sm:$0xff]
        %s6540 = scalar_lea.vmem [#allocation18], 1024
        %v6541 = vld [vmem:[%s6540] sm:$0xf]
        %v6542 = vld [vmem:[%s6540 + $0x4] sm:$0xf]
        %v6543 = vld [vmem:[%s6540 + $0x8] sm:$0xf]
        %v6544 = vld [vmem:[%s6540 + $0xc] sm:$0xf]
        %v6545 = vld [vmem:[%s6540 + $0x10] sm:$0xf]
        %v6546 = vld [vmem:[%s6540 + $0x14] sm:$0xf]
        %v6547 = vld [vmem:[%s6540 + $0x18] sm:$0xf]
        %v6548 = vld [vmem:[%s6540 + $0x1c] sm:$0xf]
        %v6549 = vld [vmem:[%s6540 + $0x20] sm:$0xf]
        %v6550 = vld [vmem:[%s6540 + $0x24] sm:$0xf]
        %v6551 = vld [vmem:[%s6540 + $0x28] sm:$0xf]
        %v6552 = vld [vmem:[%s6540 + $0x2c] sm:$0xf]
        %v6553 = vld [vmem:[%s6540 + $0x30] sm:$0xf]
        %v6554 = vld [vmem:[%s6540 + $0x34] sm:$0xf]
        %v6555 = vld [vmem:[%s6540 + $0x38] sm:$0xf]
        %v6556 = vld [vmem:[%s6540 + $0x3c] sm:$0xf]
        %v6557 = vld [vmem:[%s6540 + $0x40] sm:$0xf]
        %v6558 = vld [vmem:[%s6540 + $0x44] sm:$0xf]
        %v6559 = vld [vmem:[%s6540 + $0x48] sm:$0xf]
        %v6560 = vld [vmem:[%s6540 + $0x4c] sm:$0xf]
        %v6561 = vld [vmem:[%s6540 + $0x50] sm:$0xf]
        %v6562 = vld [vmem:[%s6540 + $0x54] sm:$0xf]
        %v6563 = vld [vmem:[%s6540 + $0x58] sm:$0xf]
        %v6564 = vld [vmem:[%s6540 + $0x5c] sm:$0xf]
        %v6565 = vld [vmem:[%s6540 + $0x60] sm:$0xf]
        %v6566 = vld [vmem:[%s6540 + $0x64] sm:$0xf]
        %v6567 = vld [vmem:[%s6540 + $0x68] sm:$0xf]
        %v6568 = vld [vmem:[%s6540 + $0x6c] sm:$0xf]
        %v6569 = vld [vmem:[%s6540 + $0x70] sm:$0xf]
        %v6570 = vld [vmem:[%s6540 + $0x74] sm:$0xf]
        %v6571 = vld [vmem:[%s6540 + $0x78] sm:$0xf]
        %v6572 = vld [vmem:[%s6540 + $0x7c] sm:$0xf]
        %v6605 = vunpack.c.l.b16 %v6541
        %v6606 = vunpack.c.l.b16 %v6542
        %v6607 = vunpack.c.l.b16 %v6543
        %v6608 = vunpack.c.l.b16 %v6544
        %v6609 = vunpack.c.l.b16 %v6545
        %v6610 = vunpack.c.l.b16 %v6546
        %v6611 = vunpack.c.l.b16 %v6547
        %v6612 = vunpack.c.l.b16 %v6548
        %v6613 = vunpack.c.l.b16 %v6549
        %v6614 = vunpack.c.l.b16 %v6550
        %v6615 = vunpack.c.l.b16 %v6551
        %v6616 = vunpack.c.l.b16 %v6552
        %v6617 = vunpack.c.l.b16 %v6553
        %v6618 = vunpack.c.l.b16 %v6554
        %v6619 = vunpack.c.l.b16 %v6555
        %v6620 = vunpack.c.l.b16 %v6556
        %v6621 = vunpack.c.l.b16 %v6557
        %v6622 = vunpack.c.l.b16 %v6558
        %v6623 = vunpack.c.l.b16 %v6559
        %v6624 = vunpack.c.l.b16 %v6560
        %v6625 = vunpack.c.l.b16 %v6561
        %v6626 = vunpack.c.l.b16 %v6562
        %v6627 = vunpack.c.l.b16 %v6563
        %v6628 = vunpack.c.l.b16 %v6564
        %v6629 = vunpack.c.l.b16 %v6565
        %v6630 = vunpack.c.l.b16 %v6566
        %v6631 = vunpack.c.l.b16 %v6567
        %v6632 = vunpack.c.l.b16 %v6568
        %v6633 = vunpack.c.l.b16 %v6569
        %v6634 = vunpack.c.l.b16 %v6570
        %v6635 = vunpack.c.l.b16 %v6571
        %v6636 = vunpack.c.l.b16 %v6572
        %v6637 = vpack.c.b16 %v6606, %v6605
        %v6638 = vpack.c.b16 %v6608, %v6607
        %v6639 = vpack.c.b16 %v6610, %v6609
        %v6640 = vpack.c.b16 %v6612, %v6611
        %v6641 = vpack.c.b16 %v6614, %v6613
        %v6642 = vpack.c.b16 %v6616, %v6615
        %v6643 = vpack.c.b16 %v6618, %v6617
        %v6644 = vpack.c.b16 %v6620, %v6619
        %v6645 = vpack.c.b16 %v6622, %v6621
        %v6646 = vpack.c.b16 %v6624, %v6623
        %v6647 = vpack.c.b16 %v6626, %v6625
        %v6648 = vpack.c.b16 %v6628, %v6627
        %v6649 = vpack.c.b16 %v6630, %v6629
        %v6650 = vpack.c.b16 %v6632, %v6631
        %v6651 = vpack.c.b16 %v6634, %v6633
        %v6652 = vpack.c.b16 %v6636, %v6635
        %6669 = vmatprep.subr.bf16.mxu0 0
        %6670 = vmatpush1.bf16.msra.mxu0 %v6637
        %6671 = vmatprep.subr.bf16.mxu0 0
        %6672 = vmatpush1.bf16.msra.mxu0 %v6638
        %6673 = vmatprep.subr.bf16.mxu0 0
        %6674 = vmatpush1.bf16.msra.mxu0 %v6639
        %6675 = vmatprep.subr.bf16.mxu0 0
        %6676 = vmatpush1.bf16.msra.mxu0 %v6640
        %6677 = vmatprep.subr.bf16.mxu0 0
        %6678 = vmatpush1.bf16.msra.mxu0 %v6641
        %6679 = vmatprep.subr.bf16.mxu0 0
        %6680 = vmatpush1.bf16.msra.mxu0 %v6642
        %6681 = vmatprep.subr.bf16.mxu0 0
        %6682 = vmatpush1.bf16.msra.mxu0 %v6643
        %6683 = vmatprep.subr.bf16.mxu0 0
        %6684 = vmatpush1.bf16.msra.mxu0 %v6644
        %6685 = vmatprep.subr.bf16.mxu0 0
        %6686 = vmatpush1.bf16.msra.mxu0 %v6645
        %6687 = vmatprep.subr.bf16.mxu0 0
        %6688 = vmatpush1.bf16.msra.mxu0 %v6646
        %6689 = vmatprep.subr.bf16.mxu0 0
        %6690 = vmatpush1.bf16.msra.mxu0 %v6647
        %6691 = vmatprep.subr.bf16.mxu0 0
        %6692 = vmatpush1.bf16.msra.mxu0 %v6648
        %6693 = vmatprep.subr.bf16.mxu0 0
        %6694 = vmatpush1.bf16.msra.mxu0 %v6649
        %6695 = vmatprep.subr.bf16.mxu0 0
        %6696 = vmatpush1.bf16.msra.mxu0 %v6650
        %6697 = vmatprep.subr.bf16.mxu0 0
        %6698 = vmatpush1.bf16.msra.mxu0 %v6651
        %6699 = vmatprep.subr.bf16.mxu0 0
        %6700 = vmatpush1.bf16.msra.mxu0 %v6652
        %6701 = vmatprep.mubr.bf16.mxu0 %v6537
        %6702 = vmatmul.mubr.bf16.gmra.mrb[0].mxu0 %v6536
        %v6703 = vpop.f32.mrb[0].mxu0
        %v6704 = vadd.f32 0.0, %v6703
        %v6705 = vpop.f32.mrb[0].mxu0
        %v6706 = vpop.f32.mrb[0].mxu0
        %v6707 = vadd.f32 0.0, %v6706
        %v6708 = vpop.f32.mrb[0].mxu0
        %6709 = vmatprep.mubr.bf16.mxu0 %v6539
        %6710 = vmatmul.mubr.bf16.gmra.mrb[0].mxu0 %v6538
        %v6711 = vpop.f32.mrb[0].mxu0
        %v6712 = vadd.f32 0.0, %v6711
        %v6713 = vpop.f32.mrb[0].mxu0
        %v6714 = vpop.f32.mrb[0].mxu0
        %v6715 = vadd.f32 0.0, %v6714
        %v6716 = vpop.f32.mrb[0].mxu0
        %6717 = vdwg.mxu0
        %v6718 = vadd.f32 %v6529, %v6704
        %v6719 = vadd.f32 %v6530, %v6707
        %v6720 = vadd.f32 %v6531, %v6712
        %v6721 = vadd.f32 %v6532, %v6715
        %s6722 = smul.u32 18, 2
        %s6723 = smul.addr %s6722, 8
        %s6724 = scalar_lea.vmem [#allocation2], %s6723
        %v6725 = vld [vmem:[%s6724] sm:$0xff]
        %v6726 = vld [vmem:[%s6724 + $0x8] sm:$0xff]
        %v6727 = vld [vmem:[%s6724 + $0x10] sm:$0xff]
        %v6728 = vld [vmem:[%s6724 + $0x18] sm:$0xff]
        %s6729 = scalar_lea.vmem [#allocation18], 1152
        %v6730 = vld [vmem:[%s6729] sm:$0xf]
        %v6731 = vld [vmem:[%s6729 + $0x4] sm:$0xf]
        %v6732 = vld [vmem:[%s6729 + $0x8] sm:$0xf]
        %v6733 = vld [vmem:[%s6729 + $0xc] sm:$0xf]
        %v6734 = vld [vmem:[%s6729 + $0x10] sm:$0xf]
        %v6735 = vld [vmem:[%s6729 + $0x14] sm:$0xf]
        %v6736 = vld [vmem:[%s6729 + $0x18] sm:$0xf]
        %v6737 = vld [vmem:[%s6729 + $0x1c] sm:$0xf]
        %v6738 = vld [vmem:[%s6729 + $0x20] sm:$0xf]
        %v6739 = vld [vmem:[%s6729 + $0x24] sm:$0xf]
        %v6740 = vld [vmem:[%s6729 + $0x28] sm:$0xf]
        %v6741 = vld [vmem:[%s6729 + $0x2c] sm:$0xf]
        %v6742 = vld [vmem:[%s6729 + $0x30] sm:$0xf]
        %v6743 = vld [vmem:[%s6729 + $0x34] sm:$0xf]
        %v6744 = vld [vmem:[%s6729 + $0x38] sm:$0xf]
        %v6745 = vld [vmem:[%s6729 + $0x3c] sm:$0xf]
        %v6746 = vld [vmem:[%s6729 + $0x40] sm:$0xf]
        %v6747 = vld [vmem:[%s6729 + $0x44] sm:$0xf]
        %v6748 = vld [vmem:[%s6729 + $0x48] sm:$0xf]
        %v6749 = vld [vmem:[%s6729 + $0x4c] sm:$0xf]
        %v6750 = vld [vmem:[%s6729 + $0x50] sm:$0xf]
        %v6751 = vld [vmem:[%s6729 + $0x54] sm:$0xf]
        %v6752 = vld [vmem:[%s6729 + $0x58] sm:$0xf]
        %v6753 = vld [vmem:[%s6729 + $0x5c] sm:$0xf]
        %v6754 = vld [vmem:[%s6729 + $0x60] sm:$0xf]
        %v6755 = vld [vmem:[%s6729 + $0x64] sm:$0xf]
        %v6756 = vld [vmem:[%s6729 + $0x68] sm:$0xf]
        %v6757 = vld [vmem:[%s6729 + $0x6c] sm:$0xf]
        %v6758 = vld [vmem:[%s6729 + $0x70] sm:$0xf]
        %v6759 = vld [vmem:[%s6729 + $0x74] sm:$0xf]
        %v6760 = vld [vmem:[%s6729 + $0x78] sm:$0xf]
        %v6761 = vld [vmem:[%s6729 + $0x7c] sm:$0xf]
        %v6794 = vunpack.c.l.b16 %v6730
        %v6795 = vunpack.c.l.b16 %v6731
        %v6796 = vunpack.c.l.b16 %v6732
        %v6797 = vunpack.c.l.b16 %v6733
        %v6798 = vunpack.c.l.b16 %v6734
        %v6799 = vunpack.c.l.b16 %v6735
        %v6800 = vunpack.c.l.b16 %v6736
        %v6801 = vunpack.c.l.b16 %v6737
        %v6802 = vunpack.c.l.b16 %v6738
        %v6803 = vunpack.c.l.b16 %v6739
        %v6804 = vunpack.c.l.b16 %v6740
        %v6805 = vunpack.c.l.b16 %v6741
        %v6806 = vunpack.c.l.b16 %v6742
        %v6807 = vunpack.c.l.b16 %v6743
        %v6808 = vunpack.c.l.b16 %v6744
        %v6809 = vunpack.c.l.b16 %v6745
        %v6810 = vunpack.c.l.b16 %v6746
        %v6811 = vunpack.c.l.b16 %v6747
        %v6812 = vunpack.c.l.b16 %v6748
        %v6813 = vunpack.c.l.b16 %v6749
        %v6814 = vunpack.c.l.b16 %v6750
        %v6815 = vunpack.c.l.b16 %v6751
        %v6816 = vunpack.c.l.b16 %v6752
        %v6817 = vunpack.c.l.b16 %v6753
        %v6818 = vunpack.c.l.b16 %v6754
        %v6819 = vunpack.c.l.b16 %v6755
        %v6820 = vunpack.c.l.b16 %v6756
        %v6821 = vunpack.c.l.b16 %v6757
        %v6822 = vunpack.c.l.b16 %v6758
        %v6823 = vunpack.c.l.b16 %v6759
        %v6824 = vunpack.c.l.b16 %v6760
        %v6825 = vunpack.c.l.b16 %v6761
        %v6826 = vpack.c.b16 %v6795, %v6794
        %v6827 = vpack.c.b16 %v6797, %v6796
        %v6828 = vpack.c.b16 %v6799, %v6798
        %v6829 = vpack.c.b16 %v6801, %v6800
        %v6830 = vpack.c.b16 %v6803, %v6802
        %v6831 = vpack.c.b16 %v6805, %v6804
        %v6832 = vpack.c.b16 %v6807, %v6806
        %v6833 = vpack.c.b16 %v6809, %v6808
        %v6834 = vpack.c.b16 %v6811, %v6810
        %v6835 = vpack.c.b16 %v6813, %v6812
        %v6836 = vpack.c.b16 %v6815, %v6814
        %v6837 = vpack.c.b16 %v6817, %v6816
        %v6838 = vpack.c.b16 %v6819, %v6818
        %v6839 = vpack.c.b16 %v6821, %v6820
        %v6840 = vpack.c.b16 %v6823, %v6822
        %v6841 = vpack.c.b16 %v6825, %v6824
        %6858 = vmatprep.subr.bf16.mxu0 0
        %6859 = vmatpush1.bf16.msra.mxu0 %v6826
        %6860 = vmatprep.subr.bf16.mxu0 0
        %6861 = vmatpush1.bf16.msra.mxu0 %v6827
        %6862 = vmatprep.subr.bf16.mxu0 0
        %6863 = vmatpush1.bf16.msra.mxu0 %v6828
        %6864 = vmatprep.subr.bf16.mxu0 0
        %6865 = vmatpush1.bf16.msra.mxu0 %v6829
        %6866 = vmatprep.subr.bf16.mxu0 0
        %6867 = vmatpush1.bf16.msra.mxu0 %v6830
        %6868 = vmatprep.subr.bf16.mxu0 0
        %6869 = vmatpush1.bf16.msra.mxu0 %v6831
        %6870 = vmatprep.subr.bf16.mxu0 0
        %6871 = vmatpush1.bf16.msra.mxu0 %v6832
        %6872 = vmatprep.subr.bf16.mxu0 0
        %6873 = vmatpush1.bf16.msra.mxu0 %v6833
        %6874 = vmatprep.subr.bf16.mxu0 0
        %6875 = vmatpush1.bf16.msra.mxu0 %v6834
        %6876 = vmatprep.subr.bf16.mxu0 0
        %6877 = vmatpush1.bf16.msra.mxu0 %v6835
        %6878 = vmatprep.subr.bf16.mxu0 0
        %6879 = vmatpush1.bf16.msra.mxu0 %v6836
        %6880 = vmatprep.subr.bf16.mxu0 0
        %6881 = vmatpush1.bf16.msra.mxu0 %v6837
        %6882 = vmatprep.subr.bf16.mxu0 0
        %6883 = vmatpush1.bf16.msra.mxu0 %v6838
        %6884 = vmatprep.subr.bf16.mxu0 0
        %6885 = vmatpush1.bf16.msra.mxu0 %v6839
        %6886 = vmatprep.subr.bf16.mxu0 0
        %6887 = vmatpush1.bf16.msra.mxu0 %v6840
        %6888 = vmatprep.subr.bf16.mxu0 0
        %6889 = vmatpush1.bf16.msra.mxu0 %v6841
        %6890 = vmatprep.mubr.bf16.mxu0 %v6726
        %6891 = vmatmul.mubr.bf16.gmra.mrb[0].mxu0 %v6725
        %v6892 = vpop.f32.mrb[0].mxu0
        %v6893 = vadd.f32 0.0, %v6892
        %v6894 = vpop.f32.mrb[0].mxu0
        %v6895 = vpop.f32.mrb[0].mxu0
        %v6896 = vadd.f32 0.0, %v6895
        %v6897 = vpop.f32.mrb[0].mxu0
        %6898 = vmatprep.mubr.bf16.mxu0 %v6728
        %6899 = vmatmul.mubr.bf16.gmra.mrb[0].mxu0 %v6727
        %v6900 = vpop.f32.mrb[0].mxu0
        %v6901 = vadd.f32 0.0, %v6900
        %v6902 = vpop.f32.mrb[0].mxu0
        %v6903 = vpop.f32.mrb[0].mxu0
        %v6904 = vadd.f32 0.0, %v6903
        %v6905 = vpop.f32.mrb[0].mxu0
        %6906 = vdwg.mxu0
        %v6907 = vadd.f32 %v6718, %v6893
        %v6908 = vadd.f32 %v6719, %v6896
        %v6909 = vadd.f32 %v6720, %v6901
        %v6910 = vadd.f32 %v6721, %v6904
        %s6911 = smul.u32 20, 2
        %s6912 = smul.addr %s6911, 8
        %s6913 = scalar_lea.vmem [#allocation2], %s6912
        %v6914 = vld [vmem:[%s6913] sm:$0xff]
        %v6915 = vld [vmem:[%s6913 + $0x8] sm:$0xff]
        %v6916 = vld [vmem:[%s6913 + $0x10] sm:$0xff]
        %v6917 = vld [vmem:[%s6913 + $0x18] sm:$0xff]
        %s6918 = scalar_lea.vmem [#allocation18], 1280
        %v6919 = vld [vmem:[%s6918] sm:$0xf]
        %v6920 = vld [vmem:[%s6918 + $0x4] sm:$0xf]
        %v6921 = vld [vmem:[%s6918 + $0x8] sm:$0xf]
        %v6922 = vld [vmem:[%s6918 + $0xc] sm:$0xf]
        %v6923 = vld [vmem:[%s6918 + $0x10] sm:$0xf]
        %v6924 = vld [vmem:[%s6918 + $0x14] sm:$0xf]
        %v6925 = vld [vmem:[%s6918 + $0x18] sm:$0xf]
        %v6926 = vld [vmem:[%s6918 + $0x1c] sm:$0xf]
        %v6927 = vld [vmem:[%s6918 + $0x20] sm:$0xf]
        %v6928 = vld [vmem:[%s6918 + $0x24] sm:$0xf]
        %v6929 = vld [vmem:[%s6918 + $0x28] sm:$0xf]
        %v6930 = vld [vmem:[%s6918 + $0x2c] sm:$0xf]
        %v6931 = vld [vmem:[%s6918 + $0x30] sm:$0xf]
        %v6932 = vld [vmem:[%s6918 + $0x34] sm:$0xf]
        %v6933 = vld [vmem:[%s6918 + $0x38] sm:$0xf]
        %v6934 = vld [vmem:[%s6918 + $0x3c] sm:$0xf]
        %v6935 = vld [vmem:[%s6918 + $0x40] sm:$0xf]
        %v6936 = vld [vmem:[%s6918 + $0x44] sm:$0xf]
        %v6937 = vld [vmem:[%s6918 + $0x48] sm:$0xf]
        %v6938 = vld [vmem:[%s6918 + $0x4c] sm:$0xf]
        %v6939 = vld [vmem:[%s6918 + $0x50] sm:$0xf]
        %v6940 = vld [vmem:[%s6918 + $0x54] sm:$0xf]
        %v6941 = vld [vmem:[%s6918 + $0x58] sm:$0xf]
        %v6942 = vld [vmem:[%s6918 + $0x5c] sm:$0xf]
        %v6943 = vld [vmem:[%s6918 + $0x60] sm:$0xf]
        %v6944 = vld [vmem:[%s6918 + $0x64] sm:$0xf]
        %v6945 = vld [vmem:[%s6918 + $0x68] sm:$0xf]
        %v6946 = vld [vmem:[%s6918 + $0x6c] sm:$0xf]
        %v6947 = vld [vmem:[%s6918 + $0x70] sm:$0xf]
        %v6948 = vld [vmem:[%s6918 + $0x74] sm:$0xf]
        %v6949 = vld [vmem:[%s6918 + $0x78] sm:$0xf]
        %v6950 = vld [vmem:[%s6918 + $0x7c] sm:$0xf]
        %v6983 = vunpack.c.l.b16 %v6919
        %v6984 = vunpack.c.l.b16 %v6920
        %v6985 = vunpack.c.l.b16 %v6921
        %v6986 = vunpack.c.l.b16 %v6922
        %v6987 = vunpack.c.l.b16 %v6923
        %v6988 = vunpack.c.l.b16 %v6924
        %v6989 = vunpack.c.l.b16 %v6925
        %v6990 = vunpack.c.l.b16 %v6926
        %v6991 = vunpack.c.l.b16 %v6927
        %v6992 = vunpack.c.l.b16 %v6928
        %v6993 = vunpack.c.l.b16 %v6929
        %v6994 = vunpack.c.l.b16 %v6930
        %v6995 = vunpack.c.l.b16 %v6931
        %v6996 = vunpack.c.l.b16 %v6932
        %v6997 = vunpack.c.l.b16 %v6933
        %v6998 = vunpack.c.l.b16 %v6934
        %v6999 = vunpack.c.l.b16 %v6935
        %v7000 = vunpack.c.l.b16 %v6936
        %v7001 = vunpack.c.l.b16 %v6937
        %v7002 = vunpack.c.l.b16 %v6938
        %v7003 = vunpack.c.l.b16 %v6939
        %v7004 = vunpack.c.l.b16 %v6940
        %v7005 = vunpack.c.l.b16 %v6941
        %v7006 = vunpack.c.l.b16 %v6942
        %v7007 = vunpack.c.l.b16 %v6943
        %v7008 = vunpack.c.l.b16 %v6944
        %v7009 = vunpack.c.l.b16 %v6945
        %v7010 = vunpack.c.l.b16 %v6946
        %v7011 = vunpack.c.l.b16 %v6947
        %v7012 = vunpack.c.l.b16 %v6948
        %v7013 = vunpack.c.l.b16 %v6949
        %v7014 = vunpack.c.l.b16 %v6950
        %v7015 = vpack.c.b16 %v6984, %v6983
        %v7016 = vpack.c.b16 %v6986, %v6985
        %v7017 = vpack.c.b16 %v6988, %v6987
        %v7018 = vpack.c.b16 %v6990, %v6989
        %v7019 = vpack.c.b16 %v6992, %v6991
        %v7020 = vpack.c.b16 %v6994, %v6993
        %v7021 = vpack.c.b16 %v6996, %v6995
        %v7022 = vpack.c.b16 %v6998, %v6997
        %v7023 = vpack.c.b16 %v7000, %v6999
        %v7024 = vpack.c.b16 %v7002, %v7001
        %v7025 = vpack.c.b16 %v7004, %v7003
        %v7026 = vpack.c.b16 %v7006, %v7005
        %v7027 = vpack.c.b16 %v7008, %v7007
        %v7028 = vpack.c.b16 %v7010, %v7009
        %v7029 = vpack.c.b16 %v7012, %v7011
        %v7030 = vpack.c.b16 %v7014, %v7013
        %7047 = vmatprep.subr.bf16.mxu0 0
        %7048 = vmatpush1.bf16.msra.mxu0 %v7015
        %7049 = vmatprep.subr.bf16.mxu0 0
        %7050 = vmatpush1.bf16.msra.mxu0 %v7016
        %7051 = vmatprep.subr.bf16.mxu0 0
        %7052 = vmatpush1.bf16.msra.mxu0 %v7017
        %7053 = vmatprep.subr.bf16.mxu0 0
        %7054 = vmatpush1.bf16.msra.mxu0 %v7018
        %7055 = vmatprep.subr.bf16.mxu0 0
        %7056 = vmatpush1.bf16.msra.mxu0 %v7019
        %7057 = vmatprep.subr.bf16.mxu0 0
        %7058 = vmatpush1.bf16.msra.mxu0 %v7020
        %7059 = vmatprep.subr.bf16.mxu0 0
        %7060 = vmatpush1.bf16.msra.mxu0 %v7021
        %7061 = vmatprep.subr.bf16.mxu0 0
        %7062 = vmatpush1.bf16.msra.mxu0 %v7022
        %7063 = vmatprep.subr.bf16.mxu0 0
        %7064 = vmatpush1.bf16.msra.mxu0 %v7023
        %7065 = vmatprep.subr.bf16.mxu0 0
        %7066 = vmatpush1.bf16.msra.mxu0 %v7024
        %7067 = vmatprep.subr.bf16.mxu0 0
        %7068 = vmatpush1.bf16.msra.mxu0 %v7025
        %7069 = vmatprep.subr.bf16.mxu0 0
        %7070 = vmatpush1.bf16.msra.mxu0 %v7026
        %7071 = vmatprep.subr.bf16.mxu0 0
        %7072 = vmatpush1.bf16.msra.mxu0 %v7027
        %7073 = vmatprep.subr.bf16.mxu0 0
        %7074 = vmatpush1.bf16.msra.mxu0 %v7028
        %7075 = vmatprep.subr.bf16.mxu0 0
        %7076 = vmatpush1.bf16.msra.mxu0 %v7029
        %7077 = vmatprep.subr.bf16.mxu0 0
        %7078 = vmatpush1.bf16.msra.mxu0 %v7030
        %7079 = vmatprep.mubr.bf16.mxu0 %v6915
        %7080 = vmatmul.mubr.bf16.gmra.mrb[0].mxu0 %v6914
        %v7081 = vpop.f32.mrb[0].mxu0
        %v7082 = vadd.f32 0.0, %v7081
        %v7083 = vpop.f32.mrb[0].mxu0
        %v7084 = vpop.f32.mrb[0].mxu0
        %v7085 = vadd.f32 0.0, %v7084
        %v7086 = vpop.f32.mrb[0].mxu0
        %7087 = vmatprep.mubr.bf16.mxu0 %v6917
        %7088 = vmatmul.mubr.bf16.gmra.mrb[0].mxu0 %v6916
        %v7089 = vpop.f32.mrb[0].mxu0
        %v7090 = vadd.f32 0.0, %v7089
        %v7091 = vpop.f32.mrb[0].mxu0
        %v7092 = vpop.f32.mrb[0].mxu0
        %v7093 = vadd.f32 0.0, %v7092
        %v7094 = vpop.f32.mrb[0].mxu0
        %7095 = vdwg.mxu0
        %v7096 = vadd.f32 %v6907, %v7082
        %v7097 = vadd.f32 %v6908, %v7085
        %v7098 = vadd.f32 %v6909, %v7090
        %v7099 = vadd.f32 %v6910, %v7093
        %s7100 = smul.u32 22, 2
        %s7101 = smul.addr %s7100, 8
        %s7102 = scalar_lea.vmem [#allocation2], %s7101
        %v7103 = vld [vmem:[%s7102] sm:$0xff]
        %v7104 = vld [vmem:[%s7102 + $0x8] sm:$0xff]
        %v7105 = vld [vmem:[%s7102 + $0x10] sm:$0xff]
        %v7106 = vld [vmem:[%s7102 + $0x18] sm:$0xff]
        %s7107 = scalar_lea.vmem [#allocation18], 1408
        %v7108 = vld [vmem:[%s7107] sm:$0xf]
        %v7109 = vld [vmem:[%s7107 + $0x4] sm:$0xf]
        %v7110 = vld [vmem:[%s7107 + $0x8] sm:$0xf]
        %v7111 = vld [vmem:[%s7107 + $0xc] sm:$0xf]
        %v7112 = vld [vmem:[%s7107 + $0x10] sm:$0xf]
        %v7113 = vld [vmem:[%s7107 + $0x14] sm:$0xf]
        %v7114 = vld [vmem:[%s7107 + $0x18] sm:$0xf]
        %v7115 = vld [vmem:[%s7107 + $0x1c] sm:$0xf]
        %v7116 = vld [vmem:[%s7107 + $0x20] sm:$0xf]
        %v7117 = vld [vmem:[%s7107 + $0x24] sm:$0xf]
        %v7118 = vld [vmem:[%s7107 + $0x28] sm:$0xf]
        %v7119 = vld [vmem:[%s7107 + $0x2c] sm:$0xf]
        %v7120 = vld [vmem:[%s7107 + $0x30] sm:$0xf]
        %v7121 = vld [vmem:[%s7107 + $0x34] sm:$0xf]
        %v7122 = vld [vmem:[%s7107 + $0x38] sm:$0xf]
        %v7123 = vld [vmem:[%s7107 + $0x3c] sm:$0xf]
        %v7124 = vld [vmem:[%s7107 + $0x40] sm:$0xf]
        %v7125 = vld [vmem:[%s7107 + $0x44] sm:$0xf]
        %v7126 = vld [vmem:[%s7107 + $0x48] sm:$0xf]
        %v7127 = vld [vmem:[%s7107 + $0x4c] sm:$0xf]
        %v7128 = vld [vmem:[%s7107 + $0x50] sm:$0xf]
        %v7129 = vld [vmem:[%s7107 + $0x54] sm:$0xf]
        %v7130 = vld [vmem:[%s7107 + $0x58] sm:$0xf]
        %v7131 = vld [vmem:[%s7107 + $0x5c] sm:$0xf]
        %v7132 = vld [vmem:[%s7107 + $0x60] sm:$0xf]
        %v7133 = vld [vmem:[%s7107 + $0x64] sm:$0xf]
        %v7134 = vld [vmem:[%s7107 + $0x68] sm:$0xf]
        %v7135 = vld [vmem:[%s7107 + $0x6c] sm:$0xf]
        %v7136 = vld [vmem:[%s7107 + $0x70] sm:$0xf]
        %v7137 = vld [vmem:[%s7107 + $0x74] sm:$0xf]
        %v7138 = vld [vmem:[%s7107 + $0x78] sm:$0xf]
        %v7139 = vld [vmem:[%s7107 + $0x7c] sm:$0xf]
        %v7172 = vunpack.c.l.b16 %v7108
        %v7173 = vunpack.c.l.b16 %v7109
        %v7174 = vunpack.c.l.b16 %v7110
        %v7175 = vunpack.c.l.b16 %v7111
        %v7176 = vunpack.c.l.b16 %v7112
        %v7177 = vunpack.c.l.b16 %v7113
        %v7178 = vunpack.c.l.b16 %v7114
        %v7179 = vunpack.c.l.b16 %v7115
        %v7180 = vunpack.c.l.b16 %v7116
        %v7181 = vunpack.c.l.b16 %v7117
        %v7182 = vunpack.c.l.b16 %v7118
        %v7183 = vunpack.c.l.b16 %v7119
        %v7184 = vunpack.c.l.b16 %v7120
        %v7185 = vunpack.c.l.b16 %v7121
        %v7186 = vunpack.c.l.b16 %v7122
        %v7187 = vunpack.c.l.b16 %v7123
        %v7188 = vunpack.c.l.b16 %v7124
        %v7189 = vunpack.c.l.b16 %v7125
        %v7190 = vunpack.c.l.b16 %v7126
        %v7191 = vunpack.c.l.b16 %v7127
        %v7192 = vunpack.c.l.b16 %v7128
        %v7193 = vunpack.c.l.b16 %v7129
        %v7194 = vunpack.c.l.b16 %v7130
        %v7195 = vunpack.c.l.b16 %v7131
        %v7196 = vunpack.c.l.b16 %v7132
        %v7197 = vunpack.c.l.b16 %v7133
        %v7198 = vunpack.c.l.b16 %v7134
        %v7199 = vunpack.c.l.b16 %v7135
        %v7200 = vunpack.c.l.b16 %v7136
        %v7201 = vunpack.c.l.b16 %v7137
        %v7202 = vunpack.c.l.b16 %v7138
        %v7203 = vunpack.c.l.b16 %v7139
        %v7204 = vpack.c.b16 %v7173, %v7172
        %v7205 = vpack.c.b16 %v7175, %v7174
        %v7206 = vpack.c.b16 %v7177, %v7176
        %v7207 = vpack.c.b16 %v7179, %v7178
        %v7208 = vpack.c.b16 %v7181, %v7180
        %v7209 = vpack.c.b16 %v7183, %v7182
        %v7210 = vpack.c.b16 %v7185, %v7184
        %v7211 = vpack.c.b16 %v7187, %v7186
        %v7212 = vpack.c.b16 %v7189, %v7188
        %v7213 = vpack.c.b16 %v7191, %v7190
        %v7214 = vpack.c.b16 %v7193, %v7192
        %v7215 = vpack.c.b16 %v7195, %v7194
        %v7216 = vpack.c.b16 %v7197, %v7196
        %v7217 = vpack.c.b16 %v7199, %v7198
        %v7218 = vpack.c.b16 %v7201, %v7200
        %v7219 = vpack.c.b16 %v7203, %v7202
        %7236 = vmatprep.subr.bf16.mxu0 0
        %7237 = vmatpush1.bf16.msra.mxu0 %v7204
        %7238 = vmatprep.subr.bf16.mxu0 0
        %7239 = vmatpush1.bf16.msra.mxu0 %v7205
        %7240 = vmatprep.subr.bf16.mxu0 0
        %7241 = vmatpush1.bf16.msra.mxu0 %v7206
        %7242 = vmatprep.subr.bf16.mxu0 0
        %7243 = vmatpush1.bf16.msra.mxu0 %v7207
        %7244 = vmatprep.subr.bf16.mxu0 0
        %7245 = vmatpush1.bf16.msra.mxu0 %v7208
        %7246 = vmatprep.subr.bf16.mxu0 0
        %7247 = vmatpush1.bf16.msra.mxu0 %v7209
        %7248 = vmatprep.subr.bf16.mxu0 0
        %7249 = vmatpush1.bf16.msra.mxu0 %v7210
        %7250 = vmatprep.subr.bf16.mxu0 0
        %7251 = vmatpush1.bf16.msra.mxu0 %v7211
        %7252 = vmatprep.subr.bf16.mxu0 0
        %7253 = vmatpush1.bf16.msra.mxu0 %v7212
        %7254 = vmatprep.subr.bf16.mxu0 0
        %7255 = vmatpush1.bf16.msra.mxu0 %v7213
        %7256 = vmatprep.subr.bf16.mxu0 0
        %7257 = vmatpush1.bf16.msra.mxu0 %v7214
        %7258 = vmatprep.subr.bf16.mxu0 0
        %7259 = vmatpush1.bf16.msra.mxu0 %v7215
        %7260 = vmatprep.subr.bf16.mxu0 0
        %7261 = vmatpush1.bf16.msra.mxu0 %v7216
        %7262 = vmatprep.subr.bf16.mxu0 0
        %7263 = vmatpush1.bf16.msra.mxu0 %v7217
        %7264 = vmatprep.subr.bf16.mxu0 0
        %7265 = vmatpush1.bf16.msra.mxu0 %v7218
        %7266 = vmatprep.subr.bf16.mxu0 0
        %7267 = vmatpush1.bf16.msra.mxu0 %v7219
        %7268 = vmatprep.mubr.bf16.mxu0 %v7104
        %7269 = vmatmul.mubr.bf16.gmra.mrb[0].mxu0 %v7103
        %v7270 = vpop.f32.mrb[0].mxu0
        %v7271 = vadd.f32 0.0, %v7270
        %v7272 = vpop.f32.mrb[0].mxu0
        %v7273 = vpop.f32.mrb[0].mxu0
        %v7274 = vadd.f32 0.0, %v7273
        %v7275 = vpop.f32.mrb[0].mxu0
        %7276 = vmatprep.mubr.bf16.mxu0 %v7106
        %7277 = vmatmul.mubr.bf16.gmra.mrb[0].mxu0 %v7105
        %v7278 = vpop.f32.mrb[0].mxu0
        %v7279 = vadd.f32 0.0, %v7278
        %v7280 = vpop.f32.mrb[0].mxu0
        %v7281 = vpop.f32.mrb[0].mxu0
        %v7282 = vadd.f32 0.0, %v7281
        %v7283 = vpop.f32.mrb[0].mxu0
        %7284 = vdwg.mxu0
        %v7285 = vadd.f32 %v7096, %v7271
        %v7286 = vadd.f32 %v7097, %v7274
        %v7287 = vadd.f32 %v7098, %v7279
        %v7288 = vadd.f32 %v7099, %v7282
        %s7289 = smul.u32 24, 2
        %s7290 = smul.addr %s7289, 8
        %s7291 = scalar_lea.vmem [#allocation2], %s7290
        %v7292 = vld [vmem:[%s7291] sm:$0xff]
        %v7293 = vld [vmem:[%s7291 + $0x8] sm:$0xff]
        %v7294 = vld [vmem:[%s7291 + $0x10] sm:$0xff]
        %v7295 = vld [vmem:[%s7291 + $0x18] sm:$0xff]
        %s7296 = scalar_lea.vmem [#allocation18], 1536
        %v7297 = vld [vmem:[%s7296] sm:$0xf]
        %v7298 = vld [vmem:[%s7296 + $0x4] sm:$0xf]
        %v7299 = vld [vmem:[%s7296 + $0x8] sm:$0xf]
        %v7300 = vld [vmem:[%s7296 + $0xc] sm:$0xf]
        %v7301 = vld [vmem:[%s7296 + $0x10] sm:$0xf]
        %v7302 = vld [vmem:[%s7296 + $0x14] sm:$0xf]
        %v7303 = vld [vmem:[%s7296 + $0x18] sm:$0xf]
        %v7304 = vld [vmem:[%s7296 + $0x1c] sm:$0xf]
        %v7305 = vld [vmem:[%s7296 + $0x20] sm:$0xf]
        %v7306 = vld [vmem:[%s7296 + $0x24] sm:$0xf]
        %v7307 = vld [vmem:[%s7296 + $0x28] sm:$0xf]
        %v7308 = vld [vmem:[%s7296 + $0x2c] sm:$0xf]
        %v7309 = vld [vmem:[%s7296 + $0x30] sm:$0xf]
        %v7310 = vld [vmem:[%s7296 + $0x34] sm:$0xf]
        %v7311 = vld [vmem:[%s7296 + $0x38] sm:$0xf]
        %v7312 = vld [vmem:[%s7296 + $0x3c] sm:$0xf]
        %v7313 = vld [vmem:[%s7296 + $0x40] sm:$0xf]
        %v7314 = vld [vmem:[%s7296 + $0x44] sm:$0xf]
        %v7315 = vld [vmem:[%s7296 + $0x48] sm:$0xf]
        %v7316 = vld [vmem:[%s7296 + $0x4c] sm:$0xf]
        %v7317 = vld [vmem:[%s7296 + $0x50] sm:$0xf]
        %v7318 = vld [vmem:[%s7296 + $0x54] sm:$0xf]
        %v7319 = vld [vmem:[%s7296 + $0x58] sm:$0xf]
        %v7320 = vld [vmem:[%s7296 + $0x5c] sm:$0xf]
        %v7321 = vld [vmem:[%s7296 + $0x60] sm:$0xf]
        %v7322 = vld [vmem:[%s7296 + $0x64] sm:$0xf]
        %v7323 = vld [vmem:[%s7296 + $0x68] sm:$0xf]
        %v7324 = vld [vmem:[%s7296 + $0x6c] sm:$0xf]
        %v7325 = vld [vmem:[%s7296 + $0x70] sm:$0xf]
        %v7326 = vld [vmem:[%s7296 + $0x74] sm:$0xf]
        %v7327 = vld [vmem:[%s7296 + $0x78] sm:$0xf]
        %v7328 = vld [vmem:[%s7296 + $0x7c] sm:$0xf]
        %v7361 = vunpack.c.l.b16 %v7297
        %v7362 = vunpack.c.l.b16 %v7298
        %v7363 = vunpack.c.l.b16 %v7299
        %v7364 = vunpack.c.l.b16 %v7300
        %v7365 = vunpack.c.l.b16 %v7301
        %v7366 = vunpack.c.l.b16 %v7302
        %v7367 = vunpack.c.l.b16 %v7303
        %v7368 = vunpack.c.l.b16 %v7304
        %v7369 = vunpack.c.l.b16 %v7305
        %v7370 = vunpack.c.l.b16 %v7306
        %v7371 = vunpack.c.l.b16 %v7307
        %v7372 = vunpack.c.l.b16 %v7308
        %v7373 = vunpack.c.l.b16 %v7309
        %v7374 = vunpack.c.l.b16 %v7310
        %v7375 = vunpack.c.l.b16 %v7311
        %v7376 = vunpack.c.l.b16 %v7312
        %v7377 = vunpack.c.l.b16 %v7313
        %v7378 = vunpack.c.l.b16 %v7314
        %v7379 = vunpack.c.l.b16 %v7315
        %v7380 = vunpack.c.l.b16 %v7316
        %v7381 = vunpack.c.l.b16 %v7317
        %v7382 = vunpack.c.l.b16 %v7318
        %v7383 = vunpack.c.l.b16 %v7319
        %v7384 = vunpack.c.l.b16 %v7320
        %v7385 = vunpack.c.l.b16 %v7321
        %v7386 = vunpack.c.l.b16 %v7322
        %v7387 = vunpack.c.l.b16 %v7323
        %v7388 = vunpack.c.l.b16 %v7324
        %v7389 = vunpack.c.l.b16 %v7325
        %v7390 = vunpack.c.l.b16 %v7326
        %v7391 = vunpack.c.l.b16 %v7327
        %v7392 = vunpack.c.l.b16 %v7328
        %v7393 = vpack.c.b16 %v7362, %v7361
        %v7394 = vpack.c.b16 %v7364, %v7363
        %v7395 = vpack.c.b16 %v7366, %v7365
        %v7396 = vpack.c.b16 %v7368, %v7367
        %v7397 = vpack.c.b16 %v7370, %v7369
        %v7398 = vpack.c.b16 %v7372, %v7371
        %v7399 = vpack.c.b16 %v7374, %v7373
        %v7400 = vpack.c.b16 %v7376, %v7375
        %v7401 = vpack.c.b16 %v7378, %v7377
        %v7402 = vpack.c.b16 %v7380, %v7379
        %v7403 = vpack.c.b16 %v7382, %v7381
        %v7404 = vpack.c.b16 %v7384, %v7383
        %v7405 = vpack.c.b16 %v7386, %v7385
        %v7406 = vpack.c.b16 %v7388, %v7387
        %v7407 = vpack.c.b16 %v7390, %v7389
        %v7408 = vpack.c.b16 %v7392, %v7391
        %7425 = vmatprep.subr.bf16.mxu0 0
        %7426 = vmatpush1.bf16.msra.mxu0 %v7393
        %7427 = vmatprep.subr.bf16.mxu0 0
        %7428 = vmatpush1.bf16.msra.mxu0 %v7394
        %7429 = vmatprep.subr.bf16.mxu0 0
        %7430 = vmatpush1.bf16.msra.mxu0 %v7395
        %7431 = vmatprep.subr.bf16.mxu0 0
        %7432 = vmatpush1.bf16.msra.mxu0 %v7396
        %7433 = vmatprep.subr.bf16.mxu0 0
        %7434 = vmatpush1.bf16.msra.mxu0 %v7397
        %7435 = vmatprep.subr.bf16.mxu0 0
        %7436 = vmatpush1.bf16.msra.mxu0 %v7398
        %7437 = vmatprep.subr.bf16.mxu0 0
        %7438 = vmatpush1.bf16.msra.mxu0 %v7399
        %7439 = vmatprep.subr.bf16.mxu0 0
        %7440 = vmatpush1.bf16.msra.mxu0 %v7400
        %7441 = vmatprep.subr.bf16.mxu0 0
        %7442 = vmatpush1.bf16.msra.mxu0 %v7401
        %7443 = vmatprep.subr.bf16.mxu0 0
        %7444 = vmatpush1.bf16.msra.mxu0 %v7402
        %7445 = vmatprep.subr.bf16.mxu0 0
        %7446 = vmatpush1.bf16.msra.mxu0 %v7403
        %7447 = vmatprep.subr.bf16.mxu0 0
        %7448 = vmatpush1.bf16.msra.mxu0 %v7404
        %7449 = vmatprep.subr.bf16.mxu0 0
        %7450 = vmatpush1.bf16.msra.mxu0 %v7405
        %7451 = vmatprep.subr.bf16.mxu0 0
        %7452 = vmatpush1.bf16.msra.mxu0 %v7406
        %7453 = vmatprep.subr.bf16.mxu0 0
        %7454 = vmatpush1.bf16.msra.mxu0 %v7407
        %7455 = vmatprep.subr.bf16.mxu0 0
        %7456 = vmatpush1.bf16.msra.mxu0 %v7408
        %7457 = vmatprep.mubr.bf16.mxu0 %v7293
        %7458 = vmatmul.mubr.bf16.gmra.mrb[0].mxu0 %v7292
        %v7459 = vpop.f32.mrb[0].mxu0
        %v7460 = vadd.f32 0.0, %v7459
        %v7461 = vpop.f32.mrb[0].mxu0
        %v7462 = vpop.f32.mrb[0].mxu0
        %v7463 = vadd.f32 0.0, %v7462
        %v7464 = vpop.f32.mrb[0].mxu0
        %7465 = vmatprep.mubr.bf16.mxu0 %v7295
        %7466 = vmatmul.mubr.bf16.gmra.mrb[0].mxu0 %v7294
        %v7467 = vpop.f32.mrb[0].mxu0
        %v7468 = vadd.f32 0.0, %v7467
        %v7469 = vpop.f32.mrb[0].mxu0
        %v7470 = vpop.f32.mrb[0].mxu0
        %v7471 = vadd.f32 0.0, %v7470
        %v7472 = vpop.f32.mrb[0].mxu0
        %7473 = vdwg.mxu0
        %v7474 = vadd.f32 %v7285, %v7460
        %v7475 = vadd.f32 %v7286, %v7463
        %v7476 = vadd.f32 %v7287, %v7468
        %v7477 = vadd.f32 %v7288, %v7471
        %s7478 = smul.u32 26, 2
        %s7479 = smul.addr %s7478, 8
        %s7480 = scalar_lea.vmem [#allocation2], %s7479
        %v7481 = vld [vmem:[%s7480] sm:$0xff]
        %v7482 = vld [vmem:[%s7480 + $0x8] sm:$0xff]
        %v7483 = vld [vmem:[%s7480 + $0x10] sm:$0xff]
        %v7484 = vld [vmem:[%s7480 + $0x18] sm:$0xff]
        %s7485 = scalar_lea.vmem [#allocation18], 1664
        %v7486 = vld [vmem:[%s7485] sm:$0xf]
        %v7487 = vld [vmem:[%s7485 + $0x4] sm:$0xf]
        %v7488 = vld [vmem:[%s7485 + $0x8] sm:$0xf]
        %v7489 = vld [vmem:[%s7485 + $0xc] sm:$0xf]
        %v7490 = vld [vmem:[%s7485 + $0x10] sm:$0xf]
        %v7491 = vld [vmem:[%s7485 + $0x14] sm:$0xf]
        %v7492 = vld [vmem:[%s7485 + $0x18] sm:$0xf]
        %v7493 = vld [vmem:[%s7485 + $0x1c] sm:$0xf]
        %v7494 = vld [vmem:[%s7485 + $0x20] sm:$0xf]
        %v7495 = vld [vmem:[%s7485 + $0x24] sm:$0xf]
        %v7496 = vld [vmem:[%s7485 + $0x28] sm:$0xf]
        %v7497 = vld [vmem:[%s7485 + $0x2c] sm:$0xf]
        %v7498 = vld [vmem:[%s7485 + $0x30] sm:$0xf]
        %v7499 = vld [vmem:[%s7485 + $0x34] sm:$0xf]
        %v7500 = vld [vmem:[%s7485 + $0x38] sm:$0xf]
        %v7501 = vld [vmem:[%s7485 + $0x3c] sm:$0xf]
        %v7502 = vld [vmem:[%s7485 + $0x40] sm:$0xf]
        %v7503 = vld [vmem:[%s7485 + $0x44] sm:$0xf]
        %v7504 = vld [vmem:[%s7485 + $0x48] sm:$0xf]
        %v7505 = vld [vmem:[%s7485 + $0x4c] sm:$0xf]
        %v7506 = vld [vmem:[%s7485 + $0x50] sm:$0xf]
        %v7507 = vld [vmem:[%s7485 + $0x54] sm:$0xf]
        %v7508 = vld [vmem:[%s7485 + $0x58] sm:$0xf]
        %v7509 = vld [vmem:[%s7485 + $0x5c] sm:$0xf]
        %v7510 = vld [vmem:[%s7485 + $0x60] sm:$0xf]
        %v7511 = vld [vmem:[%s7485 + $0x64] sm:$0xf]
        %v7512 = vld [vmem:[%s7485 + $0x68] sm:$0xf]
        %v7513 = vld [vmem:[%s7485 + $0x6c] sm:$0xf]
        %v7514 = vld [vmem:[%s7485 + $0x70] sm:$0xf]
        %v7515 = vld [vmem:[%s7485 + $0x74] sm:$0xf]
        %v7516 = vld [vmem:[%s7485 + $0x78] sm:$0xf]
        %v7517 = vld [vmem:[%s7485 + $0x7c] sm:$0xf]
        %v7550 = vunpack.c.l.b16 %v7486
        %v7551 = vunpack.c.l.b16 %v7487
        %v7552 = vunpack.c.l.b16 %v7488
        %v7553 = vunpack.c.l.b16 %v7489
        %v7554 = vunpack.c.l.b16 %v7490
        %v7555 = vunpack.c.l.b16 %v7491
        %v7556 = vunpack.c.l.b16 %v7492
        %v7557 = vunpack.c.l.b16 %v7493
        %v7558 = vunpack.c.l.b16 %v7494
        %v7559 = vunpack.c.l.b16 %v7495
        %v7560 = vunpack.c.l.b16 %v7496
        %v7561 = vunpack.c.l.b16 %v7497
        %v7562 = vunpack.c.l.b16 %v7498
        %v7563 = vunpack.c.l.b16 %v7499
        %v7564 = vunpack.c.l.b16 %v7500
        %v7565 = vunpack.c.l.b16 %v7501
        %v7566 = vunpack.c.l.b16 %v7502
        %v7567 = vunpack.c.l.b16 %v7503
        %v7568 = vunpack.c.l.b16 %v7504
        %v7569 = vunpack.c.l.b16 %v7505
        %v7570 = vunpack.c.l.b16 %v7506
        %v7571 = vunpack.c.l.b16 %v7507
        %v7572 = vunpack.c.l.b16 %v7508
        %v7573 = vunpack.c.l.b16 %v7509
        %v7574 = vunpack.c.l.b16 %v7510
        %v7575 = vunpack.c.l.b16 %v7511
        %v7576 = vunpack.c.l.b16 %v7512
        %v7577 = vunpack.c.l.b16 %v7513
        %v7578 = vunpack.c.l.b16 %v7514
        %v7579 = vunpack.c.l.b16 %v7515
        %v7580 = vunpack.c.l.b16 %v7516
        %v7581 = vunpack.c.l.b16 %v7517
        %v7582 = vpack.c.b16 %v7551, %v7550
        %v7583 = vpack.c.b16 %v7553, %v7552
        %v7584 = vpack.c.b16 %v7555, %v7554
        %v7585 = vpack.c.b16 %v7557, %v7556
        %v7586 = vpack.c.b16 %v7559, %v7558
        %v7587 = vpack.c.b16 %v7561, %v7560
        %v7588 = vpack.c.b16 %v7563, %v7562
        %v7589 = vpack.c.b16 %v7565, %v7564
        %v7590 = vpack.c.b16 %v7567, %v7566
        %v7591 = vpack.c.b16 %v7569, %v7568
        %v7592 = vpack.c.b16 %v7571, %v7570
        %v7593 = vpack.c.b16 %v7573, %v7572
        %v7594 = vpack.c.b16 %v7575, %v7574
        %v7595 = vpack.c.b16 %v7577, %v7576
        %v7596 = vpack.c.b16 %v7579, %v7578
        %v7597 = vpack.c.b16 %v7581, %v7580
        %7614 = vmatprep.subr.bf16.mxu0 0
        %7615 = vmatpush1.bf16.msra.mxu0 %v7582
        %7616 = vmatprep.subr.bf16.mxu0 0
        %7617 = vmatpush1.bf16.msra.mxu0 %v7583
        %7618 = vmatprep.subr.bf16.mxu0 0
        %7619 = vmatpush1.bf16.msra.mxu0 %v7584
        %7620 = vmatprep.subr.bf16.mxu0 0
        %7621 = vmatpush1.bf16.msra.mxu0 %v7585
        %7622 = vmatprep.subr.bf16.mxu0 0
        %7623 = vmatpush1.bf16.msra.mxu0 %v7586
        %7624 = vmatprep.subr.bf16.mxu0 0
        %7625 = vmatpush1.bf16.msra.mxu0 %v7587
        %7626 = vmatprep.subr.bf16.mxu0 0
        %7627 = vmatpush1.bf16.msra.mxu0 %v7588
        %7628 = vmatprep.subr.bf16.mxu0 0
        %7629 = vmatpush1.bf16.msra.mxu0 %v7589
        %7630 = vmatprep.subr.bf16.mxu0 0
        %7631 = vmatpush1.bf16.msra.mxu0 %v7590
        %7632 = vmatprep.subr.bf16.mxu0 0
        %7633 = vmatpush1.bf16.msra.mxu0 %v7591
        %7634 = vmatprep.subr.bf16.mxu0 0
        %7635 = vmatpush1.bf16.msra.mxu0 %v7592
        %7636 = vmatprep.subr.bf16.mxu0 0
        %7637 = vmatpush1.bf16.msra.mxu0 %v7593
        %7638 = vmatprep.subr.bf16.mxu0 0
        %7639 = vmatpush1.bf16.msra.mxu0 %v7594
        %7640 = vmatprep.subr.bf16.mxu0 0
        %7641 = vmatpush1.bf16.msra.mxu0 %v7595
        %7642 = vmatprep.subr.bf16.mxu0 0
        %7643 = vmatpush1.bf16.msra.mxu0 %v7596
        %7644 = vmatprep.subr.bf16.mxu0 0
        %7645 = vmatpush1.bf16.msra.mxu0 %v7597
        %7646 = vmatprep.mubr.bf16.mxu0 %v7482
        %7647 = vmatmul.mubr.bf16.gmra.mrb[0].mxu0 %v7481
        %v7648 = vpop.f32.mrb[0].mxu0
        %v7649 = vadd.f32 0.0, %v7648
        %v7650 = vpop.f32.mrb[0].mxu0
        %v7651 = vpop.f32.mrb[0].mxu0
        %v7652 = vadd.f32 0.0, %v7651
        %v7653 = vpop.f32.mrb[0].mxu0
        %7654 = vmatprep.mubr.bf16.mxu0 %v7484
        %7655 = vmatmul.mubr.bf16.gmra.mrb[0].mxu0 %v7483
        %v7656 = vpop.f32.mrb[0].mxu0
        %v7657 = vadd.f32 0.0, %v7656
        %v7658 = vpop.f32.mrb[0].mxu0
        %v7659 = vpop.f32.mrb[0].mxu0
        %v7660 = vadd.f32 0.0, %v7659
        %v7661 = vpop.f32.mrb[0].mxu0
        %7662 = vdwg.mxu0
        %v7663 = vadd.f32 %v7474, %v7649
        %v7664 = vadd.f32 %v7475, %v7652
        %v7665 = vadd.f32 %v7476, %v7657
        %v7666 = vadd.f32 %v7477, %v7660
        %s7667 = smul.u32 28, 2
        %s7668 = smul.addr %s7667, 8
        %s7669 = scalar_lea.vmem [#allocation2], %s7668
        %v7670 = vld [vmem:[%s7669] sm:$0xff]
        %v7671 = vld [vmem:[%s7669 + $0x8] sm:$0xff]
        %v7672 = vld [vmem:[%s7669 + $0x10] sm:$0xff]
        %v7673 = vld [vmem:[%s7669 + $0x18] sm:$0xff]
        %s7674 = scalar_lea.vmem [#allocation18], 1792
        %v7675 = vld [vmem:[%s7674] sm:$0xf]
        %v7676 = vld [vmem:[%s7674 + $0x4] sm:$0xf]
        %v7677 = vld [vmem:[%s7674 + $0x8] sm:$0xf]
        %v7678 = vld [vmem:[%s7674 + $0xc] sm:$0xf]
        %v7679 = vld [vmem:[%s7674 + $0x10] sm:$0xf]
        %v7680 = vld [vmem:[%s7674 + $0x14] sm:$0xf]
        %v7681 = vld [vmem:[%s7674 + $0x18] sm:$0xf]
        %v7682 = vld [vmem:[%s7674 + $0x1c] sm:$0xf]
        %v7683 = vld [vmem:[%s7674 + $0x20] sm:$0xf]
        %v7684 = vld [vmem:[%s7674 + $0x24] sm:$0xf]
        %v7685 = vld [vmem:[%s7674 + $0x28] sm:$0xf]
        %v7686 = vld [vmem:[%s7674 + $0x2c] sm:$0xf]
        %v7687 = vld [vmem:[%s7674 + $0x30] sm:$0xf]
        %v7688 = vld [vmem:[%s7674 + $0x34] sm:$0xf]
        %v7689 = vld [vmem:[%s7674 + $0x38] sm:$0xf]
        %v7690 = vld [vmem:[%s7674 + $0x3c] sm:$0xf]
        %v7691 = vld [vmem:[%s7674 + $0x40] sm:$0xf]
        %v7692 = vld [vmem:[%s7674 + $0x44] sm:$0xf]
        %v7693 = vld [vmem:[%s7674 + $0x48] sm:$0xf]
        %v7694 = vld [vmem:[%s7674 + $0x4c] sm:$0xf]
        %v7695 = vld [vmem:[%s7674 + $0x50] sm:$0xf]
        %v7696 = vld [vmem:[%s7674 + $0x54] sm:$0xf]
        %v7697 = vld [vmem:[%s7674 + $0x58] sm:$0xf]
        %v7698 = vld [vmem:[%s7674 + $0x5c] sm:$0xf]
        %v7699 = vld [vmem:[%s7674 + $0x60] sm:$0xf]
        %v7700 = vld [vmem:[%s7674 + $0x64] sm:$0xf]
        %v7701 = vld [vmem:[%s7674 + $0x68] sm:$0xf]
        %v7702 = vld [vmem:[%s7674 + $0x6c] sm:$0xf]
        %v7703 = vld [vmem:[%s7674 + $0x70] sm:$0xf]
        %v7704 = vld [vmem:[%s7674 + $0x74] sm:$0xf]
        %v7705 = vld [vmem:[%s7674 + $0x78] sm:$0xf]
        %v7706 = vld [vmem:[%s7674 + $0x7c] sm:$0xf]
        %v7739 = vunpack.c.l.b16 %v7675
        %v7740 = vunpack.c.l.b16 %v7676
        %v7741 = vunpack.c.l.b16 %v7677
        %v7742 = vunpack.c.l.b16 %v7678
        %v7743 = vunpack.c.l.b16 %v7679
        %v7744 = vunpack.c.l.b16 %v7680
        %v7745 = vunpack.c.l.b16 %v7681
        %v7746 = vunpack.c.l.b16 %v7682
        %v7747 = vunpack.c.l.b16 %v7683
        %v7748 = vunpack.c.l.b16 %v7684
        %v7749 = vunpack.c.l.b16 %v7685
        %v7750 = vunpack.c.l.b16 %v7686
        %v7751 = vunpack.c.l.b16 %v7687
        %v7752 = vunpack.c.l.b16 %v7688
        %v7753 = vunpack.c.l.b16 %v7689
        %v7754 = vunpack.c.l.b16 %v7690
        %v7755 = vunpack.c.l.b16 %v7691
        %v7756 = vunpack.c.l.b16 %v7692
        %v7757 = vunpack.c.l.b16 %v7693
        %v7758 = vunpack.c.l.b16 %v7694
        %v7759 = vunpack.c.l.b16 %v7695
        %v7760 = vunpack.c.l.b16 %v7696
        %v7761 = vunpack.c.l.b16 %v7697
        %v7762 = vunpack.c.l.b16 %v7698
        %v7763 = vunpack.c.l.b16 %v7699
        %v7764 = vunpack.c.l.b16 %v7700
        %v7765 = vunpack.c.l.b16 %v7701
        %v7766 = vunpack.c.l.b16 %v7702
        %v7767 = vunpack.c.l.b16 %v7703
        %v7768 = vunpack.c.l.b16 %v7704
        %v7769 = vunpack.c.l.b16 %v7705
        %v7770 = vunpack.c.l.b16 %v7706
        %v7771 = vpack.c.b16 %v7740, %v7739
        %v7772 = vpack.c.b16 %v7742, %v7741
        %v7773 = vpack.c.b16 %v7744, %v7743
        %v7774 = vpack.c.b16 %v7746, %v7745
        %v7775 = vpack.c.b16 %v7748, %v7747
        %v7776 = vpack.c.b16 %v7750, %v7749
        %v7777 = vpack.c.b16 %v7752, %v7751
        %v7778 = vpack.c.b16 %v7754, %v7753
        %v7779 = vpack.c.b16 %v7756, %v7755
        %v7780 = vpack.c.b16 %v7758, %v7757
        %v7781 = vpack.c.b16 %v7760, %v7759
        %v7782 = vpack.c.b16 %v7762, %v7761
        %v7783 = vpack.c.b16 %v7764, %v7763
        %v7784 = vpack.c.b16 %v7766, %v7765
        %v7785 = vpack.c.b16 %v7768, %v7767
        %v7786 = vpack.c.b16 %v7770, %v7769
        %7803 = vmatprep.subr.bf16.mxu0 0
        %7804 = vmatpush1.bf16.msra.mxu0 %v7771
        %7805 = vmatprep.subr.bf16.mxu0 0
        %7806 = vmatpush1.bf16.msra.mxu0 %v7772
        %7807 = vmatprep.subr.bf16.mxu0 0
        %7808 = vmatpush1.bf16.msra.mxu0 %v7773
        %7809 = vmatprep.subr.bf16.mxu0 0
        %7810 = vmatpush1.bf16.msra.mxu0 %v7774
        %7811 = vmatprep.subr.bf16.mxu0 0
        %7812 = vmatpush1.bf16.msra.mxu0 %v7775
        %7813 = vmatprep.subr.bf16.mxu0 0
        %7814 = vmatpush1.bf16.msra.mxu0 %v7776
        %7815 = vmatprep.subr.bf16.mxu0 0
        %7816 = vmatpush1.bf16.msra.mxu0 %v7777
        %7817 = vmatprep.subr.bf16.mxu0 0
        %7818 = vmatpush1.bf16.msra.mxu0 %v7778
        %7819 = vmatprep.subr.bf16.mxu0 0
        %7820 = vmatpush1.bf16.msra.mxu0 %v7779
        %7821 = vmatprep.subr.bf16.mxu0 0
        %7822 = vmatpush1.bf16.msra.mxu0 %v7780
        %7823 = vmatprep.subr.bf16.mxu0 0
        %7824 = vmatpush1.bf16.msra.mxu0 %v7781
        %7825 = vmatprep.subr.bf16.mxu0 0
        %7826 = vmatpush1.bf16.msra.mxu0 %v7782
        %7827 = vmatprep.subr.bf16.mxu0 0
        %7828 = vmatpush1.bf16.msra.mxu0 %v7783
        %7829 = vmatprep.subr.bf16.mxu0 0
        %7830 = vmatpush1.bf16.msra.mxu0 %v7784
        %7831 = vmatprep.subr.bf16.mxu0 0
        %7832 = vmatpush1.bf16.msra.mxu0 %v7785
        %7833 = vmatprep.subr.bf16.mxu0 0
        %7834 = vmatpush1.bf16.msra.mxu0 %v7786
        %7835 = vmatprep.mubr.bf16.mxu0 %v7671
        %7836 = vmatmul.mubr.bf16.gmra.mrb[0].mxu0 %v7670
        %v7837 = vpop.f32.mrb[0].mxu0
        %v7838 = vadd.f32 0.0, %v7837
        %v7839 = vpop.f32.mrb[0].mxu0
        %v7840 = vpop.f32.mrb[0].mxu0
        %v7841 = vadd.f32 0.0, %v7840
        %v7842 = vpop.f32.mrb[0].mxu0
        %7843 = vmatprep.mubr.bf16.mxu0 %v7673
        %7844 = vmatmul.mubr.bf16.gmra.mrb[0].mxu0 %v7672
        %v7845 = vpop.f32.mrb[0].mxu0
        %v7846 = vadd.f32 0.0, %v7845
        %v7847 = vpop.f32.mrb[0].mxu0
        %v7848 = vpop.f32.mrb[0].mxu0
        %v7849 = vadd.f32 0.0, %v7848
        %v7850 = vpop.f32.mrb[0].mxu0
        %7851 = vdwg.mxu0
        %v7852 = vadd.f32 %v7663, %v7838
        %v7853 = vadd.f32 %v7664, %v7841
        %v7854 = vadd.f32 %v7665, %v7846
        %v7855 = vadd.f32 %v7666, %v7849
        %s7856 = smul.u32 30, 2
        %s7857 = smul.addr %s7856, 8
        %s7858 = scalar_lea.vmem [#allocation2], %s7857
        %v7859 = vld [vmem:[%s7858] sm:$0xff]
        %v7860 = vld [vmem:[%s7858 + $0x8] sm:$0xff]
        %v7861 = vld [vmem:[%s7858 + $0x10] sm:$0xff]
        %v7862 = vld [vmem:[%s7858 + $0x18] sm:$0xff]
        %s7863 = scalar_lea.vmem [#allocation18], 1920
        %v7864 = vld [vmem:[%s7863] sm:$0xf]
        %v7865 = vld [vmem:[%s7863 + $0x4] sm:$0xf]
        %v7866 = vld [vmem:[%s7863 + $0x8] sm:$0xf]
        %v7867 = vld [vmem:[%s7863 + $0xc] sm:$0xf]
        %v7868 = vld [vmem:[%s7863 + $0x10] sm:$0xf]
        %v7869 = vld [vmem:[%s7863 + $0x14] sm:$0xf]
        %v7870 = vld [vmem:[%s7863 + $0x18] sm:$0xf]
        %v7871 = vld [vmem:[%s7863 + $0x1c] sm:$0xf]
        %v7872 = vld [vmem:[%s7863 + $0x20] sm:$0xf]
        %v7873 = vld [vmem:[%s7863 + $0x24] sm:$0xf]
        %v7874 = vld [vmem:[%s7863 + $0x28] sm:$0xf]
        %v7875 = vld [vmem:[%s7863 + $0x2c] sm:$0xf]
        %v7876 = vld [vmem:[%s7863 + $0x30] sm:$0xf]
        %v7877 = vld [vmem:[%s7863 + $0x34] sm:$0xf]
        %v7878 = vld [vmem:[%s7863 + $0x38] sm:$0xf]
        %v7879 = vld [vmem:[%s7863 + $0x3c] sm:$0xf]
        %v7880 = vld [vmem:[%s7863 + $0x40] sm:$0xf]
        %v7881 = vld [vmem:[%s7863 + $0x44] sm:$0xf]
        %v7882 = vld [vmem:[%s7863 + $0x48] sm:$0xf]
        %v7883 = vld [vmem:[%s7863 + $0x4c] sm:$0xf]
        %v7884 = vld [vmem:[%s7863 + $0x50] sm:$0xf]
        %v7885 = vld [vmem:[%s7863 + $0x54] sm:$0xf]
        %v7886 = vld [vmem:[%s7863 + $0x58] sm:$0xf]
        %v7887 = vld [vmem:[%s7863 + $0x5c] sm:$0xf]
        %v7888 = vld [vmem:[%s7863 + $0x60] sm:$0xf]
        %v7889 = vld [vmem:[%s7863 + $0x64] sm:$0xf]
        %v7890 = vld [vmem:[%s7863 + $0x68] sm:$0xf]
        %v7891 = vld [vmem:[%s7863 + $0x6c] sm:$0xf]
        %v7892 = vld [vmem:[%s7863 + $0x70] sm:$0xf]
        %v7893 = vld [vmem:[%s7863 + $0x74] sm:$0xf]
        %v7894 = vld [vmem:[%s7863 + $0x78] sm:$0xf]
        %v7895 = vld [vmem:[%s7863 + $0x7c] sm:$0xf]
        %v7928 = vunpack.c.l.b16 %v7864
        %v7929 = vunpack.c.l.b16 %v7865
        %v7930 = vunpack.c.l.b16 %v7866
        %v7931 = vunpack.c.l.b16 %v7867
        %v7932 = vunpack.c.l.b16 %v7868
        %v7933 = vunpack.c.l.b16 %v7869
        %v7934 = vunpack.c.l.b16 %v7870
        %v7935 = vunpack.c.l.b16 %v7871
        %v7936 = vunpack.c.l.b16 %v7872
        %v7937 = vunpack.c.l.b16 %v7873
        %v7938 = vunpack.c.l.b16 %v7874
        %v7939 = vunpack.c.l.b16 %v7875
        %v7940 = vunpack.c.l.b16 %v7876
        %v7941 = vunpack.c.l.b16 %v7877
        %v7942 = vunpack.c.l.b16 %v7878
        %v7943 = vunpack.c.l.b16 %v7879
        %v7944 = vunpack.c.l.b16 %v7880
        %v7945 = vunpack.c.l.b16 %v7881
        %v7946 = vunpack.c.l.b16 %v7882
        %v7947 = vunpack.c.l.b16 %v7883
        %v7948 = vunpack.c.l.b16 %v7884
        %v7949 = vunpack.c.l.b16 %v7885
        %v7950 = vunpack.c.l.b16 %v7886
        %v7951 = vunpack.c.l.b16 %v7887
        %v7952 = vunpack.c.l.b16 %v7888
        %v7953 = vunpack.c.l.b16 %v7889
        %v7954 = vunpack.c.l.b16 %v7890
        %v7955 = vunpack.c.l.b16 %v7891
        %v7956 = vunpack.c.l.b16 %v7892
        %v7957 = vunpack.c.l.b16 %v7893
        %v7958 = vunpack.c.l.b16 %v7894
        %v7959 = vunpack.c.l.b16 %v7895
        %v7960 = vpack.c.b16 %v7929, %v7928
        %v7961 = vpack.c.b16 %v7931, %v7930
        %v7962 = vpack.c.b16 %v7933, %v7932
        %v7963 = vpack.c.b16 %v7935, %v7934
        %v7964 = vpack.c.b16 %v7937, %v7936
        %v7965 = vpack.c.b16 %v7939, %v7938
        %v7966 = vpack.c.b16 %v7941, %v7940
        %v7967 = vpack.c.b16 %v7943, %v7942
        %v7968 = vpack.c.b16 %v7945, %v7944
        %v7969 = vpack.c.b16 %v7947, %v7946
        %v7970 = vpack.c.b16 %v7949, %v7948
        %v7971 = vpack.c.b16 %v7951, %v7950
        %v7972 = vpack.c.b16 %v7953, %v7952
        %v7973 = vpack.c.b16 %v7955, %v7954
        %v7974 = vpack.c.b16 %v7957, %v7956
        %v7975 = vpack.c.b16 %v7959, %v7958
        %7992 = vmatprep.subr.bf16.mxu0 0
        %7993 = vmatpush1.bf16.msra.mxu0 %v7960
        %7994 = vmatprep.subr.bf16.mxu0 0
        %7995 = vmatpush1.bf16.msra.mxu0 %v7961
        %7996 = vmatprep.subr.bf16.mxu0 0
        %7997 = vmatpush1.bf16.msra.mxu0 %v7962
        %7998 = vmatprep.subr.bf16.mxu0 0
        %7999 = vmatpush1.bf16.msra.mxu0 %v7963
        %8000 = vmatprep.subr.bf16.mxu0 0
        %8001 = vmatpush1.bf16.msra.mxu0 %v7964
        %8002 = vmatprep.subr.bf16.mxu0 0
        %8003 = vmatpush1.bf16.msra.mxu0 %v7965
        %8004 = vmatprep.subr.bf16.mxu0 0
        %8005 = vmatpush1.bf16.msra.mxu0 %v7966
        %8006 = vmatprep.subr.bf16.mxu0 0
        %8007 = vmatpush1.bf16.msra.mxu0 %v7967
        %8008 = vmatprep.subr.bf16.mxu0 0
        %8009 = vmatpush1.bf16.msra.mxu0 %v7968
        %8010 = vmatprep.subr.bf16.mxu0 0
        %8011 = vmatpush1.bf16.msra.mxu0 %v7969
        %8012 = vmatprep.subr.bf16.mxu0 0
        %8013 = vmatpush1.bf16.msra.mxu0 %v7970
        %8014 = vmatprep.subr.bf16.mxu0 0
        %8015 = vmatpush1.bf16.msra.mxu0 %v7971
        %8016 = vmatprep.subr.bf16.mxu0 0
        %8017 = vmatpush1.bf16.msra.mxu0 %v7972
        %8018 = vmatprep.subr.bf16.mxu0 0
        %8019 = vmatpush1.bf16.msra.mxu0 %v7973
        %8020 = vmatprep.subr.bf16.mxu0 0
        %8021 = vmatpush1.bf16.msra.mxu0 %v7974
        %8022 = vmatprep.subr.bf16.mxu0 0
        %8023 = vmatpush1.bf16.msra.mxu0 %v7975
        %8024 = vmatprep.mubr.bf16.mxu0 %v7860
        %8025 = vmatmul.mubr.bf16.gmra.mrb[0].mxu0 %v7859
        %v8026 = vpop.f32.mrb[0].mxu0
        %v8027 = vadd.f32 0.0, %v8026
        %v8028 = vpop.f32.mrb[0].mxu0
        %v8029 = vpop.f32.mrb[0].mxu0
        %v8030 = vadd.f32 0.0, %v8029
        %v8031 = vpop.f32.mrb[0].mxu0
        %8032 = vmatprep.mubr.bf16.mxu0 %v7862
        %8033 = vmatmul.mubr.bf16.gmra.mrb[0].mxu0 %v7861
        %v8034 = vpop.f32.mrb[0].mxu0
        %v8035 = vadd.f32 0.0, %v8034
        %v8036 = vpop.f32.mrb[0].mxu0
        %v8037 = vpop.f32.mrb[0].mxu0
        %v8038 = vadd.f32 0.0, %v8037
        %v8039 = vpop.f32.mrb[0].mxu0
        %8040 = vdwg.mxu0
        %v8041 = vadd.f32 %v7852, %v8027
        %v8042 = vadd.f32 %v7853, %v8030
        %v8043 = vadd.f32 %v7854, %v8035
        %v8044 = vadd.f32 %v7855, %v8038
        %s8045 = smul.u32 32, 2
        %s8046 = smul.addr %s8045, 8
        %s8047 = scalar_lea.vmem [#allocation2], %s8046
        %v8048 = vld [vmem:[%s8047] sm:$0xff]
        %v8049 = vld [vmem:[%s8047 + $0x8] sm:$0xff]
        %v8050 = vld [vmem:[%s8047 + $0x10] sm:$0xff]
        %v8051 = vld [vmem:[%s8047 + $0x18] sm:$0xff]
        %s8052 = scalar_lea.vmem [#allocation18], 2048
        %v8053 = vld [vmem:[%s8052] sm:$0xf]
        %v8054 = vld [vmem:[%s8052 + $0x4] sm:$0xf]
        %v8055 = vld [vmem:[%s8052 + $0x8] sm:$0xf]
        %v8056 = vld [vmem:[%s8052 + $0xc] sm:$0xf]
        %v8057 = vld [vmem:[%s8052 + $0x10] sm:$0xf]
        %v8058 = vld [vmem:[%s8052 + $0x14] sm:$0xf]
        %v8059 = vld [vmem:[%s8052 + $0x18] sm:$0xf]
        %v8060 = vld [vmem:[%s8052 + $0x1c] sm:$0xf]
        %v8061 = vld [vmem:[%s8052 + $0x20] sm:$0xf]
        %v8062 = vld [vmem:[%s8052 + $0x24] sm:$0xf]
        %v8063 = vld [vmem:[%s8052 + $0x28] sm:$0xf]
        %v8064 = vld [vmem:[%s8052 + $0x2c] sm:$0xf]
        %v8065 = vld [vmem:[%s8052 + $0x30] sm:$0xf]
        %v8066 = vld [vmem:[%s8052 + $0x34] sm:$0xf]
        %v8067 = vld [vmem:[%s8052 + $0x38] sm:$0xf]
        %v8068 = vld [vmem:[%s8052 + $0x3c] sm:$0xf]
        %v8069 = vld [vmem:[%s8052 + $0x40] sm:$0xf]
        %v8070 = vld [vmem:[%s8052 + $0x44] sm:$0xf]
        %v8071 = vld [vmem:[%s8052 + $0x48] sm:$0xf]
        %v8072 = vld [vmem:[%s8052 + $0x4c] sm:$0xf]
        %v8073 = vld [vmem:[%s8052 + $0x50] sm:$0xf]
        %v8074 = vld [vmem:[%s8052 + $0x54] sm:$0xf]
        %v8075 = vld [vmem:[%s8052 + $0x58] sm:$0xf]
        %v8076 = vld [vmem:[%s8052 + $0x5c] sm:$0xf]
        %v8077 = vld [vmem:[%s8052 + $0x60] sm:$0xf]
        %v8078 = vld [vmem:[%s8052 + $0x64] sm:$0xf]
        %v8079 = vld [vmem:[%s8052 + $0x68] sm:$0xf]
        %v8080 = vld [vmem:[%s8052 + $0x6c] sm:$0xf]
        %v8081 = vld [vmem:[%s8052 + $0x70] sm:$0xf]
        %v8082 = vld [vmem:[%s8052 + $0x74] sm:$0xf]
        %v8083 = vld [vmem:[%s8052 + $0x78] sm:$0xf]
        %v8084 = vld [vmem:[%s8052 + $0x7c] sm:$0xf]
        %v8117 = vunpack.c.l.b16 %v8053
        %v8118 = vunpack.c.l.b16 %v8054
        %v8119 = vunpack.c.l.b16 %v8055
        %v8120 = vunpack.c.l.b16 %v8056
        %v8121 = vunpack.c.l.b16 %v8057
        %v8122 = vunpack.c.l.b16 %v8058
        %v8123 = vunpack.c.l.b16 %v8059
        %v8124 = vunpack.c.l.b16 %v8060
        %v8125 = vunpack.c.l.b16 %v8061
        %v8126 = vunpack.c.l.b16 %v8062
        %v8127 = vunpack.c.l.b16 %v8063
        %v8128 = vunpack.c.l.b16 %v8064
        %v8129 = vunpack.c.l.b16 %v8065
        %v8130 = vunpack.c.l.b16 %v8066
        %v8131 = vunpack.c.l.b16 %v8067
        %v8132 = vunpack.c.l.b16 %v8068
        %v8133 = vunpack.c.l.b16 %v8069
        %v8134 = vunpack.c.l.b16 %v8070
        %v8135 = vunpack.c.l.b16 %v8071
        %v8136 = vunpack.c.l.b16 %v8072
        %v8137 = vunpack.c.l.b16 %v8073
        %v8138 = vunpack.c.l.b16 %v8074
        %v8139 = vunpack.c.l.b16 %v8075
        %v8140 = vunpack.c.l.b16 %v8076
        %v8141 = vunpack.c.l.b16 %v8077
        %v8142 = vunpack.c.l.b16 %v8078
        %v8143 = vunpack.c.l.b16 %v8079
        %v8144 = vunpack.c.l.b16 %v8080
        %v8145 = vunpack.c.l.b16 %v8081
        %v8146 = vunpack.c.l.b16 %v8082
        %v8147 = vunpack.c.l.b16 %v8083
        %v8148 = vunpack.c.l.b16 %v8084
        %v8149 = vpack.c.b16 %v8118, %v8117
        %v8150 = vpack.c.b16 %v8120, %v8119
        %v8151 = vpack.c.b16 %v8122, %v8121
        %v8152 = vpack.c.b16 %v8124, %v8123
        %v8153 = vpack.c.b16 %v8126, %v8125
        %v8154 = vpack.c.b16 %v8128, %v8127
        %v8155 = vpack.c.b16 %v8130, %v8129
        %v8156 = vpack.c.b16 %v8132, %v8131
        %v8157 = vpack.c.b16 %v8134, %v8133
        %v8158 = vpack.c.b16 %v8136, %v8135
        %v8159 = vpack.c.b16 %v8138, %v8137
        %v8160 = vpack.c.b16 %v8140, %v8139
        %v8161 = vpack.c.b16 %v8142, %v8141
        %v8162 = vpack.c.b16 %v8144, %v8143
        %v8163 = vpack.c.b16 %v8146, %v8145
        %v8164 = vpack.c.b16 %v8148, %v8147
        %8181 = vmatprep.subr.bf16.mxu0 0
        %8182 = vmatpush1.bf16.msra.mxu0 %v8149
        %8183 = vmatprep.subr.bf16.mxu0 0
        %8184 = vmatpush1.bf16.msra.mxu0 %v8150
        %8185 = vmatprep.subr.bf16.mxu0 0
        %8186 = vmatpush1.bf16.msra.mxu0 %v8151
        %8187 = vmatprep.subr.bf16.mxu0 0
        %8188 = vmatpush1.bf16.msra.mxu0 %v8152
        %8189 = vmatprep.subr.bf16.mxu0 0
        %8190 = vmatpush1.bf16.msra.mxu0 %v8153
        %8191 = vmatprep.subr.bf16.mxu0 0
        %8192 = vmatpush1.bf16.msra.mxu0 %v8154
        %8193 = vmatprep.subr.bf16.mxu0 0
        %8194 = vmatpush1.bf16.msra.mxu0 %v8155
        %8195 = vmatprep.subr.bf16.mxu0 0
        %8196 = vmatpush1.bf16.msra.mxu0 %v8156
        %8197 = vmatprep.subr.bf16.mxu0 0
        %8198 = vmatpush1.bf16.msra.mxu0 %v8157
        %8199 = vmatprep.subr.bf16.mxu0 0
        %8200 = vmatpush1.bf16.msra.mxu0 %v8158
        %8201 = vmatprep.subr.bf16.mxu0 0
        %8202 = vmatpush1.bf16.msra.mxu0 %v8159
        %8203 = vmatprep.subr.bf16.mxu0 0
        %8204 = vmatpush1.bf16.msra.mxu0 %v8160
        %8205 = vmatprep.subr.bf16.mxu0 0
        %8206 = vmatpush1.bf16.msra.mxu0 %v8161
        %8207 = vmatprep.subr.bf16.mxu0 0
        %8208 = vmatpush1.bf16.msra.mxu0 %v8162
        %8209 = vmatprep.subr.bf16.mxu0 0
        %8210 = vmatpush1.bf16.msra.mxu0 %v8163
        %8211 = vmatprep.subr.bf16.mxu0 0
        %8212 = vmatpush1.bf16.msra.mxu0 %v8164
        %8213 = vmatprep.mubr.bf16.mxu0 %v8049
        %8214 = vmatmul.mubr.bf16.gmra.mrb[0].mxu0 %v8048
        %v8215 = vpop.f32.mrb[0].mxu0
        %v8216 = vadd.f32 0.0, %v8215
        %v8217 = vpop.f32.mrb[0].mxu0
        %v8218 = vpop.f32.mrb[0].mxu0
        %v8219 = vadd.f32 0.0, %v8218
        %v8220 = vpop.f32.mrb[0].mxu0
        %8221 = vmatprep.mubr.bf16.mxu0 %v8051
        %8222 = vmatmul.mubr.bf16.gmra.mrb[0].mxu0 %v8050
        %v8223 = vpop.f32.mrb[0].mxu0
        %v8224 = vadd.f32 0.0, %v8223
        %v8225 = vpop.f32.mrb[0].mxu0
        %v8226 = vpop.f32.mrb[0].mxu0
        %v8227 = vadd.f32 0.0, %v8226
        %v8228 = vpop.f32.mrb[0].mxu0
        %8229 = vdwg.mxu0
        %v8230 = vadd.f32 %v8041, %v8216
        %v8231 = vadd.f32 %v8042, %v8219
        %v8232 = vadd.f32 %v8043, %v8224
        %v8233 = vadd.f32 %v8044, %v8227
        %s8234 = smul.u32 34, 2
        %s8235 = smul.addr %s8234, 8
        %s8236 = scalar_lea.vmem [#allocation2], %s8235
        %v8237 = vld [vmem:[%s8236] sm:$0xff]
        %v8238 = vld [vmem:[%s8236 + $0x8] sm:$0xff]
        %v8239 = vld [vmem:[%s8236 + $0x10] sm:$0xff]
        %v8240 = vld [vmem:[%s8236 + $0x18] sm:$0xff]
        %s8241 = scalar_lea.vmem [#allocation18], 2176
        %v8242 = vld [vmem:[%s8241] sm:$0xf]
        %v8243 = vld [vmem:[%s8241 + $0x4] sm:$0xf]
        %v8244 = vld [vmem:[%s8241 + $0x8] sm:$0xf]
        %v8245 = vld [vmem:[%s8241 + $0xc] sm:$0xf]
        %v8246 = vld [vmem:[%s8241 + $0x10] sm:$0xf]
        %v8247 = vld [vmem:[%s8241 + $0x14] sm:$0xf]
        %v8248 = vld [vmem:[%s8241 + $0x18] sm:$0xf]
        %v8249 = vld [vmem:[%s8241 + $0x1c] sm:$0xf]
        %v8250 = vld [vmem:[%s8241 + $0x20] sm:$0xf]
        %v8251 = vld [vmem:[%s8241 + $0x24] sm:$0xf]
        %v8252 = vld [vmem:[%s8241 + $0x28] sm:$0xf]
        %v8253 = vld [vmem:[%s8241 + $0x2c] sm:$0xf]
        %v8254 = vld [vmem:[%s8241 + $0x30] sm:$0xf]
        %v8255 = vld [vmem:[%s8241 + $0x34] sm:$0xf]
        %v8256 = vld [vmem:[%s8241 + $0x38] sm:$0xf]
        %v8257 = vld [vmem:[%s8241 + $0x3c] sm:$0xf]
        %v8258 = vld [vmem:[%s8241 + $0x40] sm:$0xf]
        %v8259 = vld [vmem:[%s8241 + $0x44] sm:$0xf]
        %v8260 = vld [vmem:[%s8241 + $0x48] sm:$0xf]
        %v8261 = vld [vmem:[%s8241 + $0x4c] sm:$0xf]
        %v8262 = vld [vmem:[%s8241 + $0x50] sm:$0xf]
        %v8263 = vld [vmem:[%s8241 + $0x54] sm:$0xf]
        %v8264 = vld [vmem:[%s8241 + $0x58] sm:$0xf]
        %v8265 = vld [vmem:[%s8241 + $0x5c] sm:$0xf]
        %v8266 = vld [vmem:[%s8241 + $0x60] sm:$0xf]
        %v8267 = vld [vmem:[%s8241 + $0x64] sm:$0xf]
        %v8268 = vld [vmem:[%s8241 + $0x68] sm:$0xf]
        %v8269 = vld [vmem:[%s8241 + $0x6c] sm:$0xf]
        %v8270 = vld [vmem:[%s8241 + $0x70] sm:$0xf]
        %v8271 = vld [vmem:[%s8241 + $0x74] sm:$0xf]
        %v8272 = vld [vmem:[%s8241 + $0x78] sm:$0xf]
        %v8273 = vld [vmem:[%s8241 + $0x7c] sm:$0xf]
        %v8306 = vunpack.c.l.b16 %v8242
        %v8307 = vunpack.c.l.b16 %v8243
        %v8308 = vunpack.c.l.b16 %v8244
        %v8309 = vunpack.c.l.b16 %v8245
        %v8310 = vunpack.c.l.b16 %v8246
        %v8311 = vunpack.c.l.b16 %v8247
        %v8312 = vunpack.c.l.b16 %v8248
        %v8313 = vunpack.c.l.b16 %v8249
        %v8314 = vunpack.c.l.b16 %v8250
        %v8315 = vunpack.c.l.b16 %v8251
        %v8316 = vunpack.c.l.b16 %v8252
        %v8317 = vunpack.c.l.b16 %v8253
        %v8318 = vunpack.c.l.b16 %v8254
        %v8319 = vunpack.c.l.b16 %v8255
        %v8320 = vunpack.c.l.b16 %v8256
        %v8321 = vunpack.c.l.b16 %v8257
        %v8322 = vunpack.c.l.b16 %v8258
        %v8323 = vunpack.c.l.b16 %v8259
        %v8324 = vunpack.c.l.b16 %v8260
        %v8325 = vunpack.c.l.b16 %v8261
        %v8326 = vunpack.c.l.b16 %v8262
        %v8327 = vunpack.c.l.b16 %v8263
        %v8328 = vunpack.c.l.b16 %v8264
        %v8329 = vunpack.c.l.b16 %v8265
        %v8330 = vunpack.c.l.b16 %v8266
        %v8331 = vunpack.c.l.b16 %v8267
        %v8332 = vunpack.c.l.b16 %v8268
        %v8333 = vunpack.c.l.b16 %v8269
        %v8334 = vunpack.c.l.b16 %v8270
        %v8335 = vunpack.c.l.b16 %v8271
        %v8336 = vunpack.c.l.b16 %v8272
        %v8337 = vunpack.c.l.b16 %v8273
        %v8338 = vpack.c.b16 %v8307, %v8306
        %v8339 = vpack.c.b16 %v8309, %v8308
        %v8340 = vpack.c.b16 %v8311, %v8310
        %v8341 = vpack.c.b16 %v8313, %v8312
        %v8342 = vpack.c.b16 %v8315, %v8314
        %v8343 = vpack.c.b16 %v8317, %v8316
        %v8344 = vpack.c.b16 %v8319, %v8318
        %v8345 = vpack.c.b16 %v8321, %v8320
        %v8346 = vpack.c.b16 %v8323, %v8322
        %v8347 = vpack.c.b16 %v8325, %v8324
        %v8348 = vpack.c.b16 %v8327, %v8326
        %v8349 = vpack.c.b16 %v8329, %v8328
        %v8350 = vpack.c.b16 %v8331, %v8330
        %v8351 = vpack.c.b16 %v8333, %v8332
        %v8352 = vpack.c.b16 %v8335, %v8334
        %v8353 = vpack.c.b16 %v8337, %v8336
        %8370 = vmatprep.subr.bf16.mxu0 0
        %8371 = vmatpush1.bf16.msra.mxu0 %v8338
        %8372 = vmatprep.subr.bf16.mxu0 0
        %8373 = vmatpush1.bf16.msra.mxu0 %v8339
        %8374 = vmatprep.subr.bf16.mxu0 0
        %8375 = vmatpush1.bf16.msra.mxu0 %v8340
        %8376 = vmatprep.subr.bf16.mxu0 0
        %8377 = vmatpush1.bf16.msra.mxu0 %v8341
        %8378 = vmatprep.subr.bf16.mxu0 0
        %8379 = vmatpush1.bf16.msra.mxu0 %v8342
        %8380 = vmatprep.subr.bf16.mxu0 0
        %8381 = vmatpush1.bf16.msra.mxu0 %v8343
        %8382 = vmatprep.subr.bf16.mxu0 0
        %8383 = vmatpush1.bf16.msra.mxu0 %v8344
        %8384 = vmatprep.subr.bf16.mxu0 0
        %8385 = vmatpush1.bf16.msra.mxu0 %v8345
        %8386 = vmatprep.subr.bf16.mxu0 0
        %8387 = vmatpush1.bf16.msra.mxu0 %v8346
        %8388 = vmatprep.subr.bf16.mxu0 0
        %8389 = vmatpush1.bf16.msra.mxu0 %v8347
        %8390 = vmatprep.subr.bf16.mxu0 0
        %8391 = vmatpush1.bf16.msra.mxu0 %v8348
        %8392 = vmatprep.subr.bf16.mxu0 0
        %8393 = vmatpush1.bf16.msra.mxu0 %v8349
        %8394 = vmatprep.subr.bf16.mxu0 0
        %8395 = vmatpush1.bf16.msra.mxu0 %v8350
        %8396 = vmatprep.subr.bf16.mxu0 0
        %8397 = vmatpush1.bf16.msra.mxu0 %v8351
        %8398 = vmatprep.subr.bf16.mxu0 0
        %8399 = vmatpush1.bf16.msra.mxu0 %v8352
        %8400 = vmatprep.subr.bf16.mxu0 0
        %8401 = vmatpush1.bf16.msra.mxu0 %v8353
        %8402 = vmatprep.mubr.bf16.mxu0 %v8238
        %8403 = vmatmul.mubr.bf16.gmra.mrb[0].mxu0 %v8237
        %v8404 = vpop.f32.mrb[0].mxu0
        %v8405 = vadd.f32 0.0, %v8404
        %v8406 = vpop.f32.mrb[0].mxu0
        %v8407 = vpop.f32.mrb[0].mxu0
        %v8408 = vadd.f32 0.0, %v8407
        %v8409 = vpop.f32.mrb[0].mxu0
        %8410 = vmatprep.mubr.bf16.mxu0 %v8240
        %8411 = vmatmul.mubr.bf16.gmra.mrb[0].mxu0 %v8239
        %v8412 = vpop.f32.mrb[0].mxu0
        %v8413 = vadd.f32 0.0, %v8412
        %v8414 = vpop.f32.mrb[0].mxu0
        %v8415 = vpop.f32.mrb[0].mxu0
        %v8416 = vadd.f32 0.0, %v8415
        %v8417 = vpop.f32.mrb[0].mxu0
        %8418 = vdwg.mxu0
        %v8419 = vadd.f32 %v8230, %v8405
        %v8420 = vadd.f32 %v8231, %v8408
        %v8421 = vadd.f32 %v8232, %v8413
        %v8422 = vadd.f32 %v8233, %v8416
        %s8423 = smul.u32 36, 2
        %s8424 = smul.addr %s8423, 8
        %s8425 = scalar_lea.vmem [#allocation2], %s8424
        %v8426 = vld [vmem:[%s8425] sm:$0xff]
        %v8427 = vld [vmem:[%s8425 + $0x8] sm:$0xff]
        %v8428 = vld [vmem:[%s8425 + $0x10] sm:$0xff]
        %v8429 = vld [vmem:[%s8425 + $0x18] sm:$0xff]
        %s8430 = scalar_lea.vmem [#allocation18], 2304
        %v8431 = vld [vmem:[%s8430] sm:$0xf]
        %v8432 = vld [vmem:[%s8430 + $0x4] sm:$0xf]
        %v8433 = vld [vmem:[%s8430 + $0x8] sm:$0xf]
        %v8434 = vld [vmem:[%s8430 + $0xc] sm:$0xf]
        %v8435 = vld [vmem:[%s8430 + $0x10] sm:$0xf]
        %v8436 = vld [vmem:[%s8430 + $0x14] sm:$0xf]
        %v8437 = vld [vmem:[%s8430 + $0x18] sm:$0xf]
        %v8438 = vld [vmem:[%s8430 + $0x1c] sm:$0xf]
        %v8439 = vld [vmem:[%s8430 + $0x20] sm:$0xf]
        %v8440 = vld [vmem:[%s8430 + $0x24] sm:$0xf]
        %v8441 = vld [vmem:[%s8430 + $0x28] sm:$0xf]
        %v8442 = vld [vmem:[%s8430 + $0x2c] sm:$0xf]
        %v8443 = vld [vmem:[%s8430 + $0x30] sm:$0xf]
        %v8444 = vld [vmem:[%s8430 + $0x34] sm:$0xf]
        %v8445 = vld [vmem:[%s8430 + $0x38] sm:$0xf]
        %v8446 = vld [vmem:[%s8430 + $0x3c] sm:$0xf]
        %v8447 = vld [vmem:[%s8430 + $0x40] sm:$0xf]
        %v8448 = vld [vmem:[%s8430 + $0x44] sm:$0xf]
        %v8449 = vld [vmem:[%s8430 + $0x48] sm:$0xf]
        %v8450 = vld [vmem:[%s8430 + $0x4c] sm:$0xf]
        %v8451 = vld [vmem:[%s8430 + $0x50] sm:$0xf]
        %v8452 = vld [vmem:[%s8430 + $0x54] sm:$0xf]
        %v8453 = vld [vmem:[%s8430 + $0x58] sm:$0xf]
        %v8454 = vld [vmem:[%s8430 + $0x5c] sm:$0xf]
        %v8455 = vld [vmem:[%s8430 + $0x60] sm:$0xf]
        %v8456 = vld [vmem:[%s8430 + $0x64] sm:$0xf]
        %v8457 = vld [vmem:[%s8430 + $0x68] sm:$0xf]
        %v8458 = vld [vmem:[%s8430 + $0x6c] sm:$0xf]
        %v8459 = vld [vmem:[%s8430 + $0x70] sm:$0xf]
        %v8460 = vld [vmem:[%s8430 + $0x74] sm:$0xf]
        %v8461 = vld [vmem:[%s8430 + $0x78] sm:$0xf]
        %v8462 = vld [vmem:[%s8430 + $0x7c] sm:$0xf]
        %v8495 = vunpack.c.l.b16 %v8431
        %v8496 = vunpack.c.l.b16 %v8432
        %v8497 = vunpack.c.l.b16 %v8433
        %v8498 = vunpack.c.l.b16 %v8434
        %v8499 = vunpack.c.l.b16 %v8435
        %v8500 = vunpack.c.l.b16 %v8436
        %v8501 = vunpack.c.l.b16 %v8437
        %v8502 = vunpack.c.l.b16 %v8438
        %v8503 = vunpack.c.l.b16 %v8439
        %v8504 = vunpack.c.l.b16 %v8440
        %v8505 = vunpack.c.l.b16 %v8441
        %v8506 = vunpack.c.l.b16 %v8442
        %v8507 = vunpack.c.l.b16 %v8443
        %v8508 = vunpack.c.l.b16 %v8444
        %v8509 = vunpack.c.l.b16 %v8445
        %v8510 = vunpack.c.l.b16 %v8446
        %v8511 = vunpack.c.l.b16 %v8447
        %v8512 = vunpack.c.l.b16 %v8448
        %v8513 = vunpack.c.l.b16 %v8449
        %v8514 = vunpack.c.l.b16 %v8450
        %v8515 = vunpack.c.l.b16 %v8451
        %v8516 = vunpack.c.l.b16 %v8452
        %v8517 = vunpack.c.l.b16 %v8453
        %v8518 = vunpack.c.l.b16 %v8454
        %v8519 = vunpack.c.l.b16 %v8455
        %v8520 = vunpack.c.l.b16 %v8456
        %v8521 = vunpack.c.l.b16 %v8457
        %v8522 = vunpack.c.l.b16 %v8458
        %v8523 = vunpack.c.l.b16 %v8459
        %v8524 = vunpack.c.l.b16 %v8460
        %v8525 = vunpack.c.l.b16 %v8461
        %v8526 = vunpack.c.l.b16 %v8462
        %v8527 = vpack.c.b16 %v8496, %v8495
        %v8528 = vpack.c.b16 %v8498, %v8497
        %v8529 = vpack.c.b16 %v8500, %v8499
        %v8530 = vpack.c.b16 %v8502, %v8501
        %v8531 = vpack.c.b16 %v8504, %v8503
        %v8532 = vpack.c.b16 %v8506, %v8505
        %v8533 = vpack.c.b16 %v8508, %v8507
        %v8534 = vpack.c.b16 %v8510, %v8509
        %v8535 = vpack.c.b16 %v8512, %v8511
        %v8536 = vpack.c.b16 %v8514, %v8513
        %v8537 = vpack.c.b16 %v8516, %v8515
        %v8538 = vpack.c.b16 %v8518, %v8517
        %v8539 = vpack.c.b16 %v8520, %v8519
        %v8540 = vpack.c.b16 %v8522, %v8521
        %v8541 = vpack.c.b16 %v8524, %v8523
        %v8542 = vpack.c.b16 %v8526, %v8525
        %8559 = vmatprep.subr.bf16.mxu0 0
        %8560 = vmatpush1.bf16.msra.mxu0 %v8527
        %8561 = vmatprep.subr.bf16.mxu0 0
        %8562 = vmatpush1.bf16.msra.mxu0 %v8528
        %8563 = vmatprep.subr.bf16.mxu0 0
        %8564 = vmatpush1.bf16.msra.mxu0 %v8529
        %8565 = vmatprep.subr.bf16.mxu0 0
        %8566 = vmatpush1.bf16.msra.mxu0 %v8530
        %8567 = vmatprep.subr.bf16.mxu0 0
        %8568 = vmatpush1.bf16.msra.mxu0 %v8531
        %8569 = vmatprep.subr.bf16.mxu0 0
        %8570 = vmatpush1.bf16.msra.mxu0 %v8532
        %8571 = vmatprep.subr.bf16.mxu0 0
        %8572 = vmatpush1.bf16.msra.mxu0 %v8533
        %8573 = vmatprep.subr.bf16.mxu0 0
        %8574 = vmatpush1.bf16.msra.mxu0 %v8534
        %8575 = vmatprep.subr.bf16.mxu0 0
        %8576 = vmatpush1.bf16.msra.mxu0 %v8535
        %8577 = vmatprep.subr.bf16.mxu0 0
        %8578 = vmatpush1.bf16.msra.mxu0 %v8536
        %8579 = vmatprep.subr.bf16.mxu0 0
        %8580 = vmatpush1.bf16.msra.mxu0 %v8537
        %8581 = vmatprep.subr.bf16.mxu0 0
        %8582 = vmatpush1.bf16.msra.mxu0 %v8538
        %8583 = vmatprep.subr.bf16.mxu0 0
        %8584 = vmatpush1.bf16.msra.mxu0 %v8539
        %8585 = vmatprep.subr.bf16.mxu0 0
        %8586 = vmatpush1.bf16.msra.mxu0 %v8540
        %8587 = vmatprep.subr.bf16.mxu0 0
        %8588 = vmatpush1.bf16.msra.mxu0 %v8541
        %8589 = vmatprep.subr.bf16.mxu0 0
        %8590 = vmatpush1.bf16.msra.mxu0 %v8542
        %8591 = vmatprep.mubr.bf16.mxu0 %v8427
        %8592 = vmatmul.mubr.bf16.gmra.mrb[0].mxu0 %v8426
        %v8593 = vpop.f32.mrb[0].mxu0
        %v8594 = vadd.f32 0.0, %v8593
        %v8595 = vpop.f32.mrb[0].mxu0
        %v8596 = vpop.f32.mrb[0].mxu0
        %v8597 = vadd.f32 0.0, %v8596
        %v8598 = vpop.f32.mrb[0].mxu0
        %8599 = vmatprep.mubr.bf16.mxu0 %v8429
        %8600 = vmatmul.mubr.bf16.gmra.mrb[0].mxu0 %v8428
        %v8601 = vpop.f32.mrb[0].mxu0
        %v8602 = vadd.f32 0.0, %v8601
        %v8603 = vpop.f32.mrb[0].mxu0
        %v8604 = vpop.f32.mrb[0].mxu0
        %v8605 = vadd.f32 0.0, %v8604
        %v8606 = vpop.f32.mrb[0].mxu0
        %8607 = vdwg.mxu0
        %v8608 = vadd.f32 %v8419, %v8594
        %v8609 = vadd.f32 %v8420, %v8597
        %v8610 = vadd.f32 %v8421, %v8602
        %v8611 = vadd.f32 %v8422, %v8605
        %s8612 = smul.u32 38, 2
        %s8613 = smul.addr %s8612, 8
        %s8614 = scalar_lea.vmem [#allocation2], %s8613
        %v8615 = vld [vmem:[%s8614] sm:$0xff]
        %v8616 = vld [vmem:[%s8614 + $0x8] sm:$0xff]
        %v8617 = vld [vmem:[%s8614 + $0x10] sm:$0xff]
        %v8618 = vld [vmem:[%s8614 + $0x18] sm:$0xff]
        %s8619 = scalar_lea.vmem [#allocation18], 2432
        %v8620 = vld [vmem:[%s8619] sm:$0xf]
        %v8621 = vld [vmem:[%s8619 + $0x4] sm:$0xf]
        %v8622 = vld [vmem:[%s8619 + $0x8] sm:$0xf]
        %v8623 = vld [vmem:[%s8619 + $0xc] sm:$0xf]
        %v8624 = vld [vmem:[%s8619 + $0x10] sm:$0xf]
        %v8625 = vld [vmem:[%s8619 + $0x14] sm:$0xf]
        %v8626 = vld [vmem:[%s8619 + $0x18] sm:$0xf]
        %v8627 = vld [vmem:[%s8619 + $0x1c] sm:$0xf]
        %v8628 = vld [vmem:[%s8619 + $0x20] sm:$0xf]
        %v8629 = vld [vmem:[%s8619 + $0x24] sm:$0xf]
        %v8630 = vld [vmem:[%s8619 + $0x28] sm:$0xf]
        %v8631 = vld [vmem:[%s8619 + $0x2c] sm:$0xf]
        %v8632 = vld [vmem:[%s8619 + $0x30] sm:$0xf]
        %v8633 = vld [vmem:[%s8619 + $0x34] sm:$0xf]
        %v8634 = vld [vmem:[%s8619 + $0x38] sm:$0xf]
        %v8635 = vld [vmem:[%s8619 + $0x3c] sm:$0xf]
        %v8636 = vld [vmem:[%s8619 + $0x40] sm:$0xf]
        %v8637 = vld [vmem:[%s8619 + $0x44] sm:$0xf]
        %v8638 = vld [vmem:[%s8619 + $0x48] sm:$0xf]
        %v8639 = vld [vmem:[%s8619 + $0x4c] sm:$0xf]
        %v8640 = vld [vmem:[%s8619 + $0x50] sm:$0xf]
        %v8641 = vld [vmem:[%s8619 + $0x54] sm:$0xf]
        %v8642 = vld [vmem:[%s8619 + $0x58] sm:$0xf]
        %v8643 = vld [vmem:[%s8619 + $0x5c] sm:$0xf]
        %v8644 = vld [vmem:[%s8619 + $0x60] sm:$0xf]
        %v8645 = vld [vmem:[%s8619 + $0x64] sm:$0xf]
        %v8646 = vld [vmem:[%s8619 + $0x68] sm:$0xf]
        %v8647 = vld [vmem:[%s8619 + $0x6c] sm:$0xf]
        %v8648 = vld [vmem:[%s8619 + $0x70] sm:$0xf]
        %v8649 = vld [vmem:[%s8619 + $0x74] sm:$0xf]
        %v8650 = vld [vmem:[%s8619 + $0x78] sm:$0xf]
        %v8651 = vld [vmem:[%s8619 + $0x7c] sm:$0xf]
        %v8684 = vunpack.c.l.b16 %v8620
        %v8685 = vunpack.c.l.b16 %v8621
        %v8686 = vunpack.c.l.b16 %v8622
        %v8687 = vunpack.c.l.b16 %v8623
        %v8688 = vunpack.c.l.b16 %v8624
        %v8689 = vunpack.c.l.b16 %v8625
        %v8690 = vunpack.c.l.b16 %v8626
        %v8691 = vunpack.c.l.b16 %v8627
        %v8692 = vunpack.c.l.b16 %v8628
        %v8693 = vunpack.c.l.b16 %v8629
        %v8694 = vunpack.c.l.b16 %v8630
        %v8695 = vunpack.c.l.b16 %v8631
        %v8696 = vunpack.c.l.b16 %v8632
        %v8697 = vunpack.c.l.b16 %v8633
        %v8698 = vunpack.c.l.b16 %v8634
        %v8699 = vunpack.c.l.b16 %v8635
        %v8700 = vunpack.c.l.b16 %v8636
        %v8701 = vunpack.c.l.b16 %v8637
        %v8702 = vunpack.c.l.b16 %v8638
        %v8703 = vunpack.c.l.b16 %v8639
        %v8704 = vunpack.c.l.b16 %v8640
        %v8705 = vunpack.c.l.b16 %v8641
        %v8706 = vunpack.c.l.b16 %v8642
        %v8707 = vunpack.c.l.b16 %v8643
        %v8708 = vunpack.c.l.b16 %v8644
        %v8709 = vunpack.c.l.b16 %v8645
        %v8710 = vunpack.c.l.b16 %v8646
        %v8711 = vunpack.c.l.b16 %v8647
        %v8712 = vunpack.c.l.b16 %v8648
        %v8713 = vunpack.c.l.b16 %v8649
        %v8714 = vunpack.c.l.b16 %v8650
        %v8715 = vunpack.c.l.b16 %v8651
        %v8716 = vpack.c.b16 %v8685, %v8684
        %v8717 = vpack.c.b16 %v8687, %v8686
        %v8718 = vpack.c.b16 %v8689, %v8688
        %v8719 = vpack.c.b16 %v8691, %v8690
        %v8720 = vpack.c.b16 %v8693, %v8692
        %v8721 = vpack.c.b16 %v8695, %v8694
        %v8722 = vpack.c.b16 %v8697, %v8696
        %v8723 = vpack.c.b16 %v8699, %v8698
        %v8724 = vpack.c.b16 %v8701, %v8700
        %v8725 = vpack.c.b16 %v8703, %v8702
        %v8726 = vpack.c.b16 %v8705, %v8704
        %v8727 = vpack.c.b16 %v8707, %v8706
        %v8728 = vpack.c.b16 %v8709, %v8708
        %v8729 = vpack.c.b16 %v8711, %v8710
        %v8730 = vpack.c.b16 %v8713, %v8712
        %v8731 = vpack.c.b16 %v8715, %v8714
        %8748 = vmatprep.subr.bf16.mxu0 0
        %8749 = vmatpush1.bf16.msra.mxu0 %v8716
        %8750 = vmatprep.subr.bf16.mxu0 0
        %8751 = vmatpush1.bf16.msra.mxu0 %v8717
        %8752 = vmatprep.subr.bf16.mxu0 0
        %8753 = vmatpush1.bf16.msra.mxu0 %v8718
        %8754 = vmatprep.subr.bf16.mxu0 0
        %8755 = vmatpush1.bf16.msra.mxu0 %v8719
        %8756 = vmatprep.subr.bf16.mxu0 0
        %8757 = vmatpush1.bf16.msra.mxu0 %v8720
        %8758 = vmatprep.subr.bf16.mxu0 0
        %8759 = vmatpush1.bf16.msra.mxu0 %v8721
        %8760 = vmatprep.subr.bf16.mxu0 0
        %8761 = vmatpush1.bf16.msra.mxu0 %v8722
        %8762 = vmatprep.subr.bf16.mxu0 0
        %8763 = vmatpush1.bf16.msra.mxu0 %v8723
        %8764 = vmatprep.subr.bf16.mxu0 0
        %8765 = vmatpush1.bf16.msra.mxu0 %v8724
        %8766 = vmatprep.subr.bf16.mxu0 0
        %8767 = vmatpush1.bf16.msra.mxu0 %v8725
        %8768 = vmatprep.subr.bf16.mxu0 0
        %8769 = vmatpush1.bf16.msra.mxu0 %v8726
        %8770 = vmatprep.subr.bf16.mxu0 0
        %8771 = vmatpush1.bf16.msra.mxu0 %v8727
        %8772 = vmatprep.subr.bf16.mxu0 0
        %8773 = vmatpush1.bf16.msra.mxu0 %v8728
        %8774 = vmatprep.subr.bf16.mxu0 0
        %8775 = vmatpush1.bf16.msra.mxu0 %v8729
        %8776 = vmatprep.subr.bf16.mxu0 0
        %8777 = vmatpush1.bf16.msra.mxu0 %v8730
        %8778 = vmatprep.subr.bf16.mxu0 0
        %8779 = vmatpush1.bf16.msra.mxu0 %v8731
        %8780 = vmatprep.mubr.bf16.mxu0 %v8616
        %8781 = vmatmul.mubr.bf16.gmra.mrb[0].mxu0 %v8615
        %v8782 = vpop.f32.mrb[0].mxu0
        %v8783 = vadd.f32 0.0, %v8782
        %v8784 = vpop.f32.mrb[0].mxu0
        %v8785 = vpop.f32.mrb[0].mxu0
        %v8786 = vadd.f32 0.0, %v8785
        %v8787 = vpop.f32.mrb[0].mxu0
        %8788 = vmatprep.mubr.bf16.mxu0 %v8618
        %8789 = vmatmul.mubr.bf16.gmra.mrb[0].mxu0 %v8617
        %v8790 = vpop.f32.mrb[0].mxu0
        %v8791 = vadd.f32 0.0, %v8790
        %v8792 = vpop.f32.mrb[0].mxu0
        %v8793 = vpop.f32.mrb[0].mxu0
        %v8794 = vadd.f32 0.0, %v8793
        %v8795 = vpop.f32.mrb[0].mxu0
        %8796 = vdwg.mxu0
        %v8797 = vadd.f32 %v8608, %v8783
        %v8798 = vadd.f32 %v8609, %v8786
        %v8799 = vadd.f32 %v8610, %v8791
        %v8800 = vadd.f32 %v8611, %v8794
        %s8801 = smul.u32 40, 2
        %s8802 = smul.addr %s8801, 8
        %s8803 = scalar_lea.vmem [#allocation2], %s8802
        %v8804 = vld [vmem:[%s8803] sm:$0xff]
        %v8805 = vld [vmem:[%s8803 + $0x8] sm:$0xff]
        %v8806 = vld [vmem:[%s8803 + $0x10] sm:$0xff]
        %v8807 = vld [vmem:[%s8803 + $0x18] sm:$0xff]
        %s8808 = scalar_lea.vmem [#allocation18], 2560
        %v8809 = vld [vmem:[%s8808] sm:$0xf]
        %v8810 = vld [vmem:[%s8808 + $0x4] sm:$0xf]
        %v8811 = vld [vmem:[%s8808 + $0x8] sm:$0xf]
        %v8812 = vld [vmem:[%s8808 + $0xc] sm:$0xf]
        %v8813 = vld [vmem:[%s8808 + $0x10] sm:$0xf]
        %v8814 = vld [vmem:[%s8808 + $0x14] sm:$0xf]
        %v8815 = vld [vmem:[%s8808 + $0x18] sm:$0xf]
        %v8816 = vld [vmem:[%s8808 + $0x1c] sm:$0xf]
        %v8817 = vld [vmem:[%s8808 + $0x20] sm:$0xf]
        %v8818 = vld [vmem:[%s8808 + $0x24] sm:$0xf]
        %v8819 = vld [vmem:[%s8808 + $0x28] sm:$0xf]
        %v8820 = vld [vmem:[%s8808 + $0x2c] sm:$0xf]
        %v8821 = vld [vmem:[%s8808 + $0x30] sm:$0xf]
        %v8822 = vld [vmem:[%s8808 + $0x34] sm:$0xf]
        %v8823 = vld [vmem:[%s8808 + $0x38] sm:$0xf]
        %v8824 = vld [vmem:[%s8808 + $0x3c] sm:$0xf]
        %v8825 = vld [vmem:[%s8808 + $0x40] sm:$0xf]
        %v8826 = vld [vmem:[%s8808 + $0x44] sm:$0xf]
        %v8827 = vld [vmem:[%s8808 + $0x48] sm:$0xf]
        %v8828 = vld [vmem:[%s8808 + $0x4c] sm:$0xf]
        %v8829 = vld [vmem:[%s8808 + $0x50] sm:$0xf]
        %v8830 = vld [vmem:[%s8808 + $0x54] sm:$0xf]
        %v8831 = vld [vmem:[%s8808 + $0x58] sm:$0xf]
        %v8832 = vld [vmem:[%s8808 + $0x5c] sm:$0xf]
        %v8833 = vld [vmem:[%s8808 + $0x60] sm:$0xf]
        %v8834 = vld [vmem:[%s8808 + $0x64] sm:$0xf]
        %v8835 = vld [vmem:[%s8808 + $0x68] sm:$0xf]
        %v8836 = vld [vmem:[%s8808 + $0x6c] sm:$0xf]
        %v8837 = vld [vmem:[%s8808 + $0x70] sm:$0xf]
        %v8838 = vld [vmem:[%s8808 + $0x74] sm:$0xf]
        %v8839 = vld [vmem:[%s8808 + $0x78] sm:$0xf]
        %v8840 = vld [vmem:[%s8808 + $0x7c] sm:$0xf]
        %v8873 = vunpack.c.l.b16 %v8809
        %v8874 = vunpack.c.l.b16 %v8810
        %v8875 = vunpack.c.l.b16 %v8811
        %v8876 = vunpack.c.l.b16 %v8812
        %v8877 = vunpack.c.l.b16 %v8813
        %v8878 = vunpack.c.l.b16 %v8814
        %v8879 = vunpack.c.l.b16 %v8815
        %v8880 = vunpack.c.l.b16 %v8816
        %v8881 = vunpack.c.l.b16 %v8817
        %v8882 = vunpack.c.l.b16 %v8818
        %v8883 = vunpack.c.l.b16 %v8819
        %v8884 = vunpack.c.l.b16 %v8820
        %v8885 = vunpack.c.l.b16 %v8821
        %v8886 = vunpack.c.l.b16 %v8822
        %v8887 = vunpack.c.l.b16 %v8823
        %v8888 = vunpack.c.l.b16 %v8824
        %v8889 = vunpack.c.l.b16 %v8825
        %v8890 = vunpack.c.l.b16 %v8826
        %v8891 = vunpack.c.l.b16 %v8827
        %v8892 = vunpack.c.l.b16 %v8828
        %v8893 = vunpack.c.l.b16 %v8829
        %v8894 = vunpack.c.l.b16 %v8830
        %v8895 = vunpack.c.l.b16 %v8831
        %v8896 = vunpack.c.l.b16 %v8832
        %v8897 = vunpack.c.l.b16 %v8833
        %v8898 = vunpack.c.l.b16 %v8834
        %v8899 = vunpack.c.l.b16 %v8835
        %v8900 = vunpack.c.l.b16 %v8836
        %v8901 = vunpack.c.l.b16 %v8837
        %v8902 = vunpack.c.l.b16 %v8838
        %v8903 = vunpack.c.l.b16 %v8839
        %v8904 = vunpack.c.l.b16 %v8840
        %v8905 = vpack.c.b16 %v8874, %v8873
        %v8906 = vpack.c.b16 %v8876, %v8875
        %v8907 = vpack.c.b16 %v8878, %v8877
        %v8908 = vpack.c.b16 %v8880, %v8879
        %v8909 = vpack.c.b16 %v8882, %v8881
        %v8910 = vpack.c.b16 %v8884, %v8883
        %v8911 = vpack.c.b16 %v8886, %v8885
        %v8912 = vpack.c.b16 %v8888, %v8887
        %v8913 = vpack.c.b16 %v8890, %v8889
        %v8914 = vpack.c.b16 %v8892, %v8891
        %v8915 = vpack.c.b16 %v8894, %v8893
        %v8916 = vpack.c.b16 %v8896, %v8895
        %v8917 = vpack.c.b16 %v8898, %v8897
        %v8918 = vpack.c.b16 %v8900, %v8899
        %v8919 = vpack.c.b16 %v8902, %v8901
        %v8920 = vpack.c.b16 %v8904, %v8903
        %8937 = vmatprep.subr.bf16.mxu0 0
        %8938 = vmatpush1.bf16.msra.mxu0 %v8905
        %8939 = vmatprep.subr.bf16.mxu0 0
        %8940 = vmatpush1.bf16.msra.mxu0 %v8906
        %8941 = vmatprep.subr.bf16.mxu0 0
        %8942 = vmatpush1.bf16.msra.mxu0 %v8907
        %8943 = vmatprep.subr.bf16.mxu0 0
        %8944 = vmatpush1.bf16.msra.mxu0 %v8908
        %8945 = vmatprep.subr.bf16.mxu0 0
        %8946 = vmatpush1.bf16.msra.mxu0 %v8909
        %8947 = vmatprep.subr.bf16.mxu0 0
        %8948 = vmatpush1.bf16.msra.mxu0 %v8910
        %8949 = vmatprep.subr.bf16.mxu0 0
        %8950 = vmatpush1.bf16.msra.mxu0 %v8911
        %8951 = vmatprep.subr.bf16.mxu0 0
        %8952 = vmatpush1.bf16.msra.mxu0 %v8912
        %8953 = vmatprep.subr.bf16.mxu0 0
        %8954 = vmatpush1.bf16.msra.mxu0 %v8913
        %8955 = vmatprep.subr.bf16.mxu0 0
        %8956 = vmatpush1.bf16.msra.mxu0 %v8914
        %8957 = vmatprep.subr.bf16.mxu0 0
        %8958 = vmatpush1.bf16.msra.mxu0 %v8915
        %8959 = vmatprep.subr.bf16.mxu0 0
        %8960 = vmatpush1.bf16.msra.mxu0 %v8916
        %8961 = vmatprep.subr.bf16.mxu0 0
        %8962 = vmatpush1.bf16.msra.mxu0 %v8917
        %8963 = vmatprep.subr.bf16.mxu0 0
        %8964 = vmatpush1.bf16.msra.mxu0 %v8918
        %8965 = vmatprep.subr.bf16.mxu0 0
        %8966 = vmatpush1.bf16.msra.mxu0 %v8919
        %8967 = vmatprep.subr.bf16.mxu0 0
        %8968 = vmatpush1.bf16.msra.mxu0 %v8920
        %8969 = vmatprep.mubr.bf16.mxu0 %v8805
        %8970 = vmatmul.mubr.bf16.gmra.mrb[0].mxu0 %v8804
        %v8971 = vpop.f32.mrb[0].mxu0
        %v8972 = vadd.f32 0.0, %v8971
        %v8973 = vpop.f32.mrb[0].mxu0
        %v8974 = vpop.f32.mrb[0].mxu0
        %v8975 = vadd.f32 0.0, %v8974
        %v8976 = vpop.f32.mrb[0].mxu0
        %8977 = vmatprep.mubr.bf16.mxu0 %v8807
        %8978 = vmatmul.mubr.bf16.gmra.mrb[0].mxu0 %v8806
        %v8979 = vpop.f32.mrb[0].mxu0
        %v8980 = vadd.f32 0.0, %v8979
        %v8981 = vpop.f32.mrb[0].mxu0
        %v8982 = vpop.f32.mrb[0].mxu0
        %v8983 = vadd.f32 0.0, %v8982
        %v8984 = vpop.f32.mrb[0].mxu0
        %8985 = vdwg.mxu0
        %v8986 = vadd.f32 %v8797, %v8972
        %v8987 = vadd.f32 %v8798, %v8975
        %v8988 = vadd.f32 %v8799, %v8980
        %v8989 = vadd.f32 %v8800, %v8983
        %s8990 = smul.u32 42, 2
        %s8991 = smul.addr %s8990, 8
        %s8992 = scalar_lea.vmem [#allocation2], %s8991
        %v8993 = vld [vmem:[%s8992] sm:$0xff]
        %v8994 = vld [vmem:[%s8992 + $0x8] sm:$0xff]
        %v8995 = vld [vmem:[%s8992 + $0x10] sm:$0xff]
        %v8996 = vld [vmem:[%s8992 + $0x18] sm:$0xff]
        %s8997 = scalar_lea.vmem [#allocation18], 2688
        %v8998 = vld [vmem:[%s8997] sm:$0xf]
        %v8999 = vld [vmem:[%s8997 + $0x4] sm:$0xf]
        %v9000 = vld [vmem:[%s8997 + $0x8] sm:$0xf]
        %v9001 = vld [vmem:[%s8997 + $0xc] sm:$0xf]
        %v9002 = vld [vmem:[%s8997 + $0x10] sm:$0xf]
        %v9003 = vld [vmem:[%s8997 + $0x14] sm:$0xf]
        %v9004 = vld [vmem:[%s8997 + $0x18] sm:$0xf]
        %v9005 = vld [vmem:[%s8997 + $0x1c] sm:$0xf]
        %v9006 = vld [vmem:[%s8997 + $0x20] sm:$0xf]
        %v9007 = vld [vmem:[%s8997 + $0x24] sm:$0xf]
        %v9008 = vld [vmem:[%s8997 + $0x28] sm:$0xf]
        %v9009 = vld [vmem:[%s8997 + $0x2c] sm:$0xf]
        %v9010 = vld [vmem:[%s8997 + $0x30] sm:$0xf]
        %v9011 = vld [vmem:[%s8997 + $0x34] sm:$0xf]
        %v9012 = vld [vmem:[%s8997 + $0x38] sm:$0xf]
        %v9013 = vld [vmem:[%s8997 + $0x3c] sm:$0xf]
        %v9014 = vld [vmem:[%s8997 + $0x40] sm:$0xf]
        %v9015 = vld [vmem:[%s8997 + $0x44] sm:$0xf]
        %v9016 = vld [vmem:[%s8997 + $0x48] sm:$0xf]
        %v9017 = vld [vmem:[%s8997 + $0x4c] sm:$0xf]
        %v9018 = vld [vmem:[%s8997 + $0x50] sm:$0xf]
        %v9019 = vld [vmem:[%s8997 + $0x54] sm:$0xf]
        %v9020 = vld [vmem:[%s8997 + $0x58] sm:$0xf]
        %v9021 = vld [vmem:[%s8997 + $0x5c] sm:$0xf]
        %v9022 = vld [vmem:[%s8997 + $0x60] sm:$0xf]
        %v9023 = vld [vmem:[%s8997 + $0x64] sm:$0xf]
        %v9024 = vld [vmem:[%s8997 + $0x68] sm:$0xf]
        %v9025 = vld [vmem:[%s8997 + $0x6c] sm:$0xf]
        %v9026 = vld [vmem:[%s8997 + $0x70] sm:$0xf]
        %v9027 = vld [vmem:[%s8997 + $0x74] sm:$0xf]
        %v9028 = vld [vmem:[%s8997 + $0x78] sm:$0xf]
        %v9029 = vld [vmem:[%s8997 + $0x7c] sm:$0xf]
        %v9062 = vunpack.c.l.b16 %v8998
        %v9063 = vunpack.c.l.b16 %v8999
        %v9064 = vunpack.c.l.b16 %v9000
        %v9065 = vunpack.c.l.b16 %v9001
        %v9066 = vunpack.c.l.b16 %v9002
        %v9067 = vunpack.c.l.b16 %v9003
        %v9068 = vunpack.c.l.b16 %v9004
        %v9069 = vunpack.c.l.b16 %v9005
        %v9070 = vunpack.c.l.b16 %v9006
        %v9071 = vunpack.c.l.b16 %v9007
        %v9072 = vunpack.c.l.b16 %v9008
        %v9073 = vunpack.c.l.b16 %v9009
        %v9074 = vunpack.c.l.b16 %v9010
        %v9075 = vunpack.c.l.b16 %v9011
        %v9076 = vunpack.c.l.b16 %v9012
        %v9077 = vunpack.c.l.b16 %v9013
        %v9078 = vunpack.c.l.b16 %v9014
        %v9079 = vunpack.c.l.b16 %v9015
        %v9080 = vunpack.c.l.b16 %v9016
        %v9081 = vunpack.c.l.b16 %v9017
        %v9082 = vunpack.c.l.b16 %v9018
        %v9083 = vunpack.c.l.b16 %v9019
        %v9084 = vunpack.c.l.b16 %v9020
        %v9085 = vunpack.c.l.b16 %v9021
        %v9086 = vunpack.c.l.b16 %v9022
        %v9087 = vunpack.c.l.b16 %v9023
        %v9088 = vunpack.c.l.b16 %v9024
        %v9089 = vunpack.c.l.b16 %v9025
        %v9090 = vunpack.c.l.b16 %v9026
        %v9091 = vunpack.c.l.b16 %v9027
        %v9092 = vunpack.c.l.b16 %v9028
        %v9093 = vunpack.c.l.b16 %v9029
        %v9094 = vpack.c.b16 %v9063, %v9062
        %v9095 = vpack.c.b16 %v9065, %v9064
        %v9096 = vpack.c.b16 %v9067, %v9066
        %v9097 = vpack.c.b16 %v9069, %v9068
        %v9098 = vpack.c.b16 %v9071, %v9070
        %v9099 = vpack.c.b16 %v9073, %v9072
        %v9100 = vpack.c.b16 %v9075, %v9074
        %v9101 = vpack.c.b16 %v9077, %v9076
        %v9102 = vpack.c.b16 %v9079, %v9078
        %v9103 = vpack.c.b16 %v9081, %v9080
        %v9104 = vpack.c.b16 %v9083, %v9082
        %v9105 = vpack.c.b16 %v9085, %v9084
        %v9106 = vpack.c.b16 %v9087, %v9086
        %v9107 = vpack.c.b16 %v9089, %v9088
        %v9108 = vpack.c.b16 %v9091, %v9090
        %v9109 = vpack.c.b16 %v9093, %v9092
        %9126 = vmatprep.subr.bf16.mxu0 0
        %9127 = vmatpush1.bf16.msra.mxu0 %v9094
        %9128 = vmatprep.subr.bf16.mxu0 0
        %9129 = vmatpush1.bf16.msra.mxu0 %v9095
        %9130 = vmatprep.subr.bf16.mxu0 0
        %9131 = vmatpush1.bf16.msra.mxu0 %v9096
        %9132 = vmatprep.subr.bf16.mxu0 0
        %9133 = vmatpush1.bf16.msra.mxu0 %v9097
        %9134 = vmatprep.subr.bf16.mxu0 0
        %9135 = vmatpush1.bf16.msra.mxu0 %v9098
        %9136 = vmatprep.subr.bf16.mxu0 0
        %9137 = vmatpush1.bf16.msra.mxu0 %v9099
        %9138 = vmatprep.subr.bf16.mxu0 0
        %9139 = vmatpush1.bf16.msra.mxu0 %v9100
        %9140 = vmatprep.subr.bf16.mxu0 0
        %9141 = vmatpush1.bf16.msra.mxu0 %v9101
        %9142 = vmatprep.subr.bf16.mxu0 0
        %9143 = vmatpush1.bf16.msra.mxu0 %v9102
        %9144 = vmatprep.subr.bf16.mxu0 0
        %9145 = vmatpush1.bf16.msra.mxu0 %v9103
        %9146 = vmatprep.subr.bf16.mxu0 0
        %9147 = vmatpush1.bf16.msra.mxu0 %v9104
        %9148 = vmatprep.subr.bf16.mxu0 0
        %9149 = vmatpush1.bf16.msra.mxu0 %v9105
        %9150 = vmatprep.subr.bf16.mxu0 0
        %9151 = vmatpush1.bf16.msra.mxu0 %v9106
        %9152 = vmatprep.subr.bf16.mxu0 0
        %9153 = vmatpush1.bf16.msra.mxu0 %v9107
        %9154 = vmatprep.subr.bf16.mxu0 0
        %9155 = vmatpush1.bf16.msra.mxu0 %v9108
        %9156 = vmatprep.subr.bf16.mxu0 0
        %9157 = vmatpush1.bf16.msra.mxu0 %v9109
        %9158 = vmatprep.mubr.bf16.mxu0 %v8994
        %9159 = vmatmul.mubr.bf16.gmra.mrb[0].mxu0 %v8993
        %v9160 = vpop.f32.mrb[0].mxu0
        %v9161 = vadd.f32 0.0, %v9160
        %v9162 = vpop.f32.mrb[0].mxu0
        %v9163 = vpop.f32.mrb[0].mxu0
        %v9164 = vadd.f32 0.0, %v9163
        %v9165 = vpop.f32.mrb[0].mxu0
        %9166 = vmatprep.mubr.bf16.mxu0 %v8996
        %9167 = vmatmul.mubr.bf16.gmra.mrb[0].mxu0 %v8995
        %v9168 = vpop.f32.mrb[0].mxu0
        %v9169 = vadd.f32 0.0, %v9168
        %v9170 = vpop.f32.mrb[0].mxu0
        %v9171 = vpop.f32.mrb[0].mxu0
        %v9172 = vadd.f32 0.0, %v9171
        %v9173 = vpop.f32.mrb[0].mxu0
        %9174 = vdwg.mxu0
        %v9175 = vadd.f32 %v8986, %v9161
        %v9176 = vadd.f32 %v8987, %v9164
        %v9177 = vadd.f32 %v8988, %v9169
        %v9178 = vadd.f32 %v8989, %v9172
        %v9179 = vadd.f32 %v9175, %v5028
        %v9180 = vadd.f32 %v9176, %v5028
        %v9181 = vadd.f32 %v9177, %v5028
        %v9182 = vadd.f32 %v9178, %v5028
        %9183 = vst [vmem:[%s541] sm:$0xff] %v9179
        %9184 = vst [vmem:[%s541 + $0x8] sm:$0xff] %v9180
        %9185 = vst [vmem:[%s541 + $0x10] sm:$0xff] %v9181
        %9186 = vst [vmem:[%s541 + $0x18] sm:$0xff] %v9182
        %s9187 = sand.u32 %s277, 1
        %s9188 = scalar_lea.sflag [#allocation5], %s9187
        %s9189 = sand.u32 %s277, 1
        %s9190 = smul.addr %s9189, 32
        %s9191 = scalar_lea.vmem [#allocation21], %s9190
        // Predicated region
        $region109: #{conv1d_predictor.1} parent=63 // pred_check
          %p9192 = pneg %p287
        $region110: #{conv1d_predictor.1} parent=63 // pred_check_branch
          %9194 = sbr.rel (%p9192) target = $region112
        $region111: #{conv1d_predictor.1} parent=63 // pred_region
          %s9195 = smul.u32 4, %s33
          %s9197 = ssub.s32 512, 512
          %9198 = vsyncadd %s9188, %s9197
          %s9199 = smul.addr %s9195, 128
          %s9200 = scalar_lea.hbm %s11, %s9199
          %s9201 = sshll.u32 %s9191, 4
          %s9202 = int_to_ptr.vmem [resolvable:$true] %s9201
          %9207 = dma.vmem_to_hbm [thread:$0]  %s9202, 512, %s9200, %s9188, 128, 128, 8
        $region112: #{conv1d_predictor.1} parent=63 // pred_fallthru
          _
      $region64: #{conv1d_predictor.1} parent=5 // pred_fallthru
        _
      %p9208 = scmp.le.s32.totalorder 2, %s28
      // Predicated region
      $region113: #{conv1d_predictor.1} parent=5 // pred_check
        %p9209 = pneg %p9208
      $region114: #{conv1d_predictor.1} parent=5 // pred_check_branch
        %9211 = sbr.rel (%p9209) target = $region116
      $region115: #{conv1d_predictor.1} parent=5 // pred_region
        %s9212 = ssub.s32 %s28, 2
        // Predicated region
        $region117: #{conv1d_predictor.1} parent=115 // pred_check
          %p9213 = pneg %p293
        $region118: #{conv1d_predictor.1} parent=115 // pred_check_branch
          %9215 = sbr.rel (%p9213) target = $region120
        $region119: #{conv1d_predictor.1} parent=115 // pred_region
          %s9216 = sand.u32 %s278, 1
          %s9217 = scalar_lea.sflag [#allocation5], %s9216
          %s9218 = sand.u32 %s278, 1
          %s9219 = smul.addr %s9218, 32
          %s9220 = scalar_lea.vmem [#allocation21], %s9219
          %9221 = dma.done %s9217, 512
        $region120: #{conv1d_predictor.1} parent=115 // pred_fallthru
          _
      $region116: #{conv1d_predictor.1} parent=5 // pred_fallthru
        _
    $region6: #{conv1d_predictor.1} parent=1 // loop_footer
      %s32 = sadd.s32 1, %s28
    $region7: #{conv1d_predictor.1} parent=1 // loop_footer_branch
      %27 = sbr.rel target = $region3
    $region8: #{conv1d_predictor.1} parent=1 // loop_exit
      _
    %9222 = vsyncpa [#allocation4], 1
    %s9223 = scalar_lea.sflag [#allocation4], 1
    %9224 = vsyncpa %s9223, 1
    %9225 = vsyncpa [#allocation7], 1
    %9226 = vsyncpa [#allocation10], 1
    %9227 = vsyncpa [#allocation13], 1
    %9228 = vsyncpa [#allocation16], 1
    %9229 = vsyncpa [#allocation19], 1
    %9230 = vsyncpa [#allocation5], 1
    %s9231 = scalar_lea.sflag [#allocation5], 1
    %9232 = vsyncpa %s9231, 1

</llo_original>
